<compile_context>
chip_gen: v6e
topology: v6e:2x2x1
jax: 0.10.0
libtpu: 0.0.40
codegen_flags: <defaults>
</compile_context>

<pallas_src>
import math
import functools

import jax
import jax.numpy as jnp
from jax.experimental import pallas as pl
from jax.experimental.pallas import tpu as pltpu

LANES = 128
_EPS = 1e-5

_VMEM_LIMIT_SMALL = 32 * 1024 * 1024   # fused / fc calls
_VMEM_LIMIT_LARGE = 48 * 1024 * 1024   # tiled two-pass fallback
_TILE_VMEM_BUDGET = 24 * 1024 * 1024   # working-set budget for tile sizing (v7x-safe)
_FUSED_BYTES_MAX = 12 * 1024 * 1024    # raw working set; x2 for buffers stays < limit


def _round_up(x, m):
    return (x + m - 1) // m * m


def _choose_tile_m(M, Kp, Cp):
    """Rows per grid step for the tiled (non-fused) paths, sized from VMEM."""
    # Double-buffered patch tile (bf16) + bf16 output tile per row, plus the
    # resident (double-buffered) weight.
    per_row = 2 * (Kp * 2 + Cp * 2)
    avail = _TILE_VMEM_BUDGET - 2 * Kp * Cp * 2 - (1 << 20)
    tm = (avail // max(per_row, 1)) // 128 * 128
    tm = max(256, min(tm, 8192))
    if tm >= M:
        return _round_up(M, 16)          # single block covers everything
    return tm


# ----------------------------------------------------------------------------
# Fused path: matmul + global BN stats + normalize + residual + ReLU, one call.
# Whole M block is VMEM-resident; variance is the stable two-pass form.
# ----------------------------------------------------------------------------
def _make_fused_conv_bn_kernel(cout, m_valid, add_res, relu, eps):
    inv_n = 1.0 / float(m_valid)

    def kernel(*refs):
        if add_res:
            x_ref, w_ref, gamma_ref, beta_ref, res_ref, out_ref = refs
        else:
            x_ref, w_ref, gamma_ref, beta_ref, out_ref = refs

        acc = jnp.dot(x_ref[...], w_ref[...], preferred_element_type=jnp.float32)

        # Zero-padded patch rows produce exactly-zero conv outputs (no bias),
        # so the plain sum already matches the true batch sum; padded rows only
        # need masking out of the squared deviations.
        mean = jnp.sum(acc, axis=0, keepdims=True) * inv_n          # (1, Cp)
        d = acc - mean
        rows = jax.lax.broadcasted_iota(jnp.int32, d.shape, 0)
        var = jnp.sum(jnp.where(rows < m_valid, d * d, 0.0),
                      axis=0, keepdims=True) * inv_n                # (1, Cp)

        scale = gamma_ref[...] * jax.lax.rsqrt(var + eps)
        shift = beta_ref[...] - mean * scale
        y = (acc * scale + shift)[:, :cout]
        if add_res:
            y = y + res_ref[...]
        if relu:
            y = jnp.maximum(y, 0.0)
        out_ref[...] = y.astype(out_ref.dtype)

    return kernel


def _conv_bn_act_fused(patches, wk, gamma_p, beta_p, res2d, M, Cout, relu, eps):
    Kp = patches.shape[1]
    Cp = wk.shape[1]
    Mp = _round_up(M, 16)
    patches = jnp.pad(patches, ((0, Mp - M), (0, 0)))

    add_res = res2d is not None
    inputs = [patches, wk, gamma_p, beta_p]
    in_specs = [pl.BlockSpec((Mp, Kp), lambda i: (0, 0)),
                pl.BlockSpec((Kp, Cp), lambda i: (0, 0)),
                pl.BlockSpec((1, Cp), lambda i: (0, 0)),
                pl.BlockSpec((1, Cp), lambda i: (0, 0))]
    if add_res:
        res2d = jnp.pad(res2d, ((0, Mp - M), (0, 0)))
        inputs.append(res2d)
        in_specs.append(pl.BlockSpec((Mp, Cout), lambda i: (0, 0)))

    kernel = _make_fused_conv_bn_kernel(Cout, M, add_res, relu, eps)
    out = pl.pallas_call(
        kernel,
        out_shape=jax.ShapeDtypeStruct((Mp, Cout), jnp.float32),
        grid=(1,),
        in_specs=in_specs,
        out_specs=pl.BlockSpec((Mp, Cout), lambda i: (0, 0)),
        compiler_params=pltpu.CompilerParams(
            dimension_semantics=("arbitrary",),
            vmem_limit_bytes=_VMEM_LIMIT_SMALL),
        cost_estimate=pl.CostEstimate(
            flops=2 * Mp * Kp * Cp + 10 * Mp * Cp,
            transcendentals=0,
            bytes_accessed=(patches.size * 2 + wk.size * 2
                            + Mp * Cout * 4 * (2 if add_res else 1))),
    )(*inputs)
    return out


# ----------------------------------------------------------------------------
# Two-pass fallback (large M): pass 1 matmul + per-tile partial stats
# ("parallel" grid), pass 2 normalize with global stats.
# ----------------------------------------------------------------------------
def _matmul_partial_stats_kernel(x_ref, w_ref, out_ref, stat_ref):
    acc = jnp.dot(x_ref[...], w_ref[...], preferred_element_type=jnp.float32)
    out_ref[...] = acc.astype(out_ref.dtype)                 # bf16, lane-dense
    # Per-tile partials: no resident accumulator, no concatenate, no RMW.
    stat_ref[0, 0:1, :] = jnp.sum(acc, axis=0, keepdims=True)
    stat_ref[0, 1:2, :] = jnp.sum(acc * acc, axis=0, keepdims=True)


def _make_bn_act_kernel(cout, count, add_res, relu, eps):
    inv_n = 1.0 / float(count)

    def kernel(*refs):
        if add_res:
            y_ref, stat_ref, gamma_ref, beta_ref, res_ref, out_ref = refs
        else:
            y_ref, stat_ref, gamma_ref, beta_ref, out_ref = refs

        mean = stat_ref[0:1, :] * inv_n
        # TODO(synk): E[x^2]-E[x]^2 can cancel for |mean| >> std; the fused
        # path uses the stable two-pass variance, this fallback does not.
        var = stat_ref[1:2, :] * inv_n - mean * mean
        scale = gamma_ref[...] * jax.lax.rsqrt(var + eps)
        shift = beta_ref[...] - mean * scale

        y = y_ref[...].astype(jnp.float32) * scale + shift
        y = y[:, :cout]
        if add_res:
            y = y + res_ref[...]
        if relu:
            y = jnp.maximum(y, 0.0)
        out_ref[...] = y.astype(out_ref.dtype)

    return kernel


def _conv_bn_act_two_pass(patches, wk, gamma_p, beta_p, res2d, M, Cout, relu, eps):
    Kp = patches.shape[1]
    Cp = wk.shape[1]
    TM = _choose_tile_m(M, Kp, Cp)
    Mp = _round_up(M, TM)
    G = Mp // TM
    patches = jnp.pad(patches, ((0, Mp - M), (0, 0)))

    conv_out, part_stats = pl.pallas_call(
        _matmul_partial_stats_kernel,
        out_shape=(jax.ShapeDtypeStruct((Mp, Cp), jnp.bfloat16),
                   jax.ShapeDtypeStruct((G, 2, Cp), jnp.float32)),
        grid=(G,),
        in_specs=[pl.BlockSpec((TM, Kp), lambda i: (i, 0)),
                  pl.BlockSpec((Kp, Cp), lambda i: (0, 0))],
        out_specs=(pl.BlockSpec((TM, Cp), lambda i: (i, 0)),
                   pl.BlockSpec((1, 2, Cp), lambda i: (i, 0, 0))),
        compiler_params=pltpu.CompilerParams(
            dimension_semantics=("parallel",),          # megacore-shardable
            vmem_limit_bytes=_VMEM_LIMIT_LARGE),
        cost_estimate=pl.CostEstimate(
            flops=2 * Mp * Kp * Cp,
            transcendentals=0,
            bytes_accessed=patches.size * 2 + wk.size * 2 + Mp * Cp * 2),
    )(patches, wk)

    stats = jnp.sum(part_stats, axis=0)                  # tiny XLA reduction

    inputs = [conv_out, stats, gamma_p, beta_p]
    in_specs = [pl.BlockSpec((TM, Cp), lambda i: (i, 0)),
                pl.BlockSpec((2, Cp), lambda i: (0, 0)),
                pl.BlockSpec((1, Cp), lambda i: (0, 0)),
                pl.BlockSpec((1, Cp), lambda i: (0, 0))]
    add_res = res2d is not None
    if add_res:
        res2d = jnp.pad(res2d, ((0, Mp - M), (0, 0)))
        inputs.append(res2d)
        in_specs.append(pl.BlockSpec((TM, Cout), lambda i: (i, 0)))

    kernel = _make_bn_act_kernel(Cout, M, add_res, relu, eps)
    out = pl.pallas_call(
        kernel,
        out_shape=jax.ShapeDtypeStruct((Mp, Cout), jnp.float32),
        grid=(G,),
        in_specs=in_specs,
        out_specs=pl.BlockSpec((TM, Cout), lambda i: (i, 0)),
        compiler_params=pltpu.CompilerParams(
            dimension_semantics=("parallel",),
            vmem_limit_bytes=_VMEM_LIMIT_LARGE),
        cost_estimate=pl.CostEstimate(
            flops=8 * Mp * Cp,
            transcendentals=0,
            bytes_accessed=Mp * Cp * 2 + 2 * Mp * Cout * 4),
    )(*inputs)
    return out


# ----------------------------------------------------------------------------
# BN-free path (fc 1x1 conv): matmul + bias + sigmoid, single pass.
# ----------------------------------------------------------------------------
def _make_matmul_bias_act_kernel(cout, has_bias, relu, sigmoid):
    def kernel(*refs):
        if has_bias:
            x_ref, w_ref, bias_ref, out_ref = refs
        else:
            x_ref, w_ref, out_ref = refs
        acc = jnp.dot(x_ref[...], w_ref[...], preferred_element_type=jnp.float32)
        if has_bias:
            acc = acc + bias_ref[...]
        acc = acc[:, :cout]
        if relu:
            acc = jnp.maximum(acc, 0.0)
        if sigmoid:
            acc = jax.nn.sigmoid(acc)
        out_ref[...] = acc.astype(out_ref.dtype)

    return kernel


def _conv_bias_act(patches, wk, bias, M, Cout, relu, sigmoid):
    Kp = patches.shape[1]
    Cp = wk.shape[1]
    TM = _choose_tile_m(M, Kp, Cp)
    Mp = _round_up(M, TM)
    G = Mp // TM
    patches = jnp.pad(patches, ((0, Mp - M), (0, 0)))

    has_bias = bias is not None
    inputs = [patches, wk]
    in_specs = [pl.BlockSpec((TM, Kp), lambda i: (i, 0)),
                pl.BlockSpec((Kp, Cp), lambda i: (0, 0))]
    if has_bias:
        bias_p = jnp.pad(bias.reshape(1, Cout).astype(jnp.float32),
                         ((0, 0), (0, Cp - Cout)))
        inputs.append(bias_p)
        in_specs.append(pl.BlockSpec((1, Cp), lambda i: (0, 0)))

    kernel = _make_matmul_bias_act_kernel(Cout, has_bias, relu, sigmoid)
    out = pl.pallas_call(
        kernel,
        out_shape=jax.ShapeDtypeStruct((Mp, Cout), jnp.float32),
        grid=(G,),
        in_specs=in_specs,
        out_specs=pl.BlockSpec((TM, Cout), lambda i: (i, 0)),
        compiler_params=pltpu.CompilerParams(
            dimension_semantics=("parallel",),
            vmem_limit_bytes=_VMEM_LIMIT_SMALL),
        cost_estimate=pl.CostEstimate(
            flops=2 * Mp * Kp * Cp,
            transcendentals=Mp * Cout if sigmoid else 0,
            bytes_accessed=patches.size * 2 + wk.size * 2 + Mp * Cout * 4),
    )(*inputs)
    return out


# ----------------------------------------------------------------------------
# Plain-JAX glue: im2col (bf16) with a 1x1 fast path (no pad/concat).
# ----------------------------------------------------------------------------
def _im2col(x, K, stride, pad, dil):
    N, H, W, C = x.shape
    OH = (H + 2 * pad - dil * (K - 1) - 1) // stride + 1
    OW = (W + 2 * pad - dil * (K - 1) - 1) // stride + 1
    if K == 1 and pad == 0:
        xs = x[:, ::stride, ::stride, :]
        return xs.reshape(N * OH * OW, C), OH, OW
    xp = jnp.pad(x, ((0, 0), (pad, pad), (pad, pad), (0, 0)))
    cols = []
    for kh in range(K):
        for kw in range(K):
            sl = xp[:, kh * dil: kh * dil + (OH - 1) * stride + 1: stride,
                       kw * dil: kw * dil + (OW - 1) * stride + 1: stride, :]
            cols.append(sl)
    pat = jnp.concatenate(cols, axis=-1).reshape(N * OH * OW, K * K * C)
    return pat, OH, OW


# ----------------------------------------------------------------------------
# conv + (BN) + (bias) + (residual) + activation.
# ----------------------------------------------------------------------------
def conv2d_fused(x, w, *, stride=1, pad=0, dil=1,
                 gamma=None, beta=None, bias=None, residual=None,
                 relu=False, sigmoid=False, eps=_EPS):
    """x: NHWC f32. w: PyTorch-layout (Cout, Cin, K, K). Returns NHWC f32."""
    N, H, W, Cin = x.shape
    Cout, Cin_w, K, _ = w.shape
    assert Cin == Cin_w

    # bf16 operands for the MXU (f32 accumulation). Epilogue math stays f32.
    xb = x.astype(jnp.bfloat16)
    patches, OH, OW = _im2col(xb, K, stride, pad, dil)
    M = N * OH * OW
    Kdim = K * K * Cin
    Kp = _round_up(Kdim, 16)
    Cp = _round_up(max(Cout, LANES), LANES)        # lane-dense matmul output
    patches = jnp.pad(patches, ((0, 0), (0, Kp - Kdim)))

    # (Cout, Cin, kh, kw) -> (kh, kw, Cin, Cout) -> (Kdim, Cout) -> pad
    wk = jnp.transpose(w, (2, 3, 1, 0)).reshape(Kdim, Cout)
    wk = jnp.pad(wk, ((0, Kp - Kdim), (0, Cp - Cout))).astype(jnp.bfloat16)

    if gamma is not None:
        gamma_p = jnp.pad(gamma.reshape(1, Cout).astype(jnp.float32),
                          ((0, 0), (0, Cp - Cout)))
        beta_p = jnp.pad(beta.reshape(1, Cout).astype(jnp.float32),
                         ((0, 0), (0, Cp - Cout)))
        res2d = None
        if residual is not None:
            res2d = residual.reshape(M, Cout).astype(jnp.float32)

        Mp16 = _round_up(M, 16)
        fused_bytes = (Mp16 * Kp * 2 + Kp * Cp * 2 + Mp16 * Cp * 4
                       + Mp16 * Cout * 4 * (2 if res2d is not None else 1))
        if fused_bytes <= _FUSED_BYTES_MAX:
            out2d = _conv_bn_act_fused(patches, wk, gamma_p, beta_p, res2d,
                                       M, Cout, relu, eps)
        else:
            out2d = _conv_bn_act_two_pass(patches, wk, gamma_p, beta_p, res2d,
                                          M, Cout, relu, eps)
    else:
        out2d = _conv_bias_act(patches, wk, bias, M, Cout, relu, sigmoid)

    return out2d[:M].reshape(N, OH, OW, Cout)


# ----------------------------------------------------------------------------
# DRN building blocks (arch='D').
# ----------------------------------------------------------------------------
def basic_block(x, p, *, stride, dil):
    # TODO(synk): downsample + conv1 + conv2 could be fused into fewer calls
    # once in-kernel im2col of the VMEM-resident intermediate is available.
    if 'dw' in p:
        residual = conv2d_fused(x, p['dw'], stride=stride, pad=0, dil=1,
                                gamma=p['dg'], beta=p['db'], relu=False)
    else:
        residual = x
    out = conv2d_fused(x, p['w1'], stride=stride, pad=dil[0], dil=dil[0],
                       gamma=p['g1'], beta=p['b1'], relu=True)
    out = conv2d_fused(out, p['w2'], stride=1, pad=dil[1], dil=dil[1],
                       gamma=p['g2'], beta=p['b2'], relu=True,
                       residual=residual)
    return out


def drn_forward(params, x_nchw, layers=(7,)):
    p = params
    x = jnp.transpose(x_nchw, (0, 2, 3, 1))  # NCHW -> NHWC
    y = []

    x = conv2d_fused(x, p['l0_w'], stride=1, pad=3, dil=1,
                     gamma=p['l0_g'], beta=p['l0_b'], relu=True)
    x = conv2d_fused(x, p['l1_w'], stride=1, pad=1, dil=1,
                     gamma=p['l1_g'], beta=p['l1_b'], relu=True)
    if 0 in layers:
        y.append(x)
    x = conv2d_fused(x, p['l2_w'], stride=2, pad=1, dil=1,
                     gamma=p['l2_g'], beta=p['l2_b'], relu=True)
    if 1 in layers:
        y.append(x)
    x = basic_block(x, p['l3'], stride=2, dil=(1, 1))
    if 2 in layers:
        y.append(x)
    x = basic_block(x, p['l4'], stride=2, dil=(1, 1))
    if 3 in layers:
        y.append(x)
    x = basic_block(x, p['l5'], stride=1, dil=(2, 2))
    if 4 in layers:
        y.append(x)
    x = basic_block(x, p['l6'], stride=1, dil=(4, 4))
    if 5 in layers:
        y.append(x)
    x = conv2d_fused(x, p['l7_w'], stride=1, pad=2, dil=2,
                     gamma=p['l7_g'], beta=p['l7_b'], relu=True)
    if 6 in layers:
        y.append(x)
    x = conv2d_fused(x, p['l8_w'], stride=1, pad=1, dil=1,
                     gamma=p['l8_g'], beta=p['l8_b'], relu=True)
    if 7 in layers:
        y.append(x)
    out = conv2d_fused(x, p['fc_w'], stride=1, pad=0,
                       bias=p['fc_b'], sigmoid=True)

    y = tuple(jnp.transpose(t, (0, 3, 1, 2)) for t in y)  # back to NCHW
    out = jnp.transpose(out, (0, 3, 1, 2))
    return y, out


# ----------------------------------------------------------------------------
# Deterministic parameter init (matches the module's __init__ shapes/init law).
# ----------------------------------------------------------------------------
def init_params(key, channels=(8, 8, 16, 16, 32, 32, 32, 32), num_classes=1):
    keys = iter(jax.random.split(key, 32))

    def conv_w(cout, cin, k):
        n = k * k * cout
        return jax.random.normal(next(keys), (cout, cin, k, k),
                                 jnp.float32) * math.sqrt(2.0 / n)

    def bn(c):
        return jnp.ones((c,), jnp.float32), jnp.zeros((c,), jnp.float32)

    def block_params(cin, cout, stride):
        b = {'w1': conv_w(cout, cin, 3), 'w2': conv_w(cout, cout, 3)}
        b['g1'], b['b1'] = bn(cout)
        b['g2'], b['b2'] = bn(cout)
        if stride != 1 or cin != cout:
            b['dw'] = conv_w(cout, cin, 1)
            b['dg'], b['db'] = bn(cout)
        return b

    c = channels
    p = {}
    p['l0_w'] = conv_w(c[0], 3, 7); p['l0_g'], p['l0_b'] = bn(c[0])
    p['l1_w'] = conv_w(c[0], c[0], 3); p['l1_g'], p['l1_b'] = bn(c[0])
    p['l2_w'] = conv_w(c[1], c[0], 3); p['l2_g'], p['l2_b'] = bn(c[1])
    p['l3'] = block_params(c[1], c[2], 2)
    p['l4'] = block_params(c[2], c[3], 2)
    p['l5'] = block_params(c[3], c[4], 1)
    p['l6'] = block_params(c[4], c[5], 1)
    p['l7_w'] = conv_w(c[6], c[5], 3); p['l7_g'], p['l7_b'] = bn(c[6])
    p['l8_w'] = conv_w(c[7], c[6], 3); p['l8_g'], p['l8_b'] = bn(c[7])
    p['fc_w'] = conv_w(num_classes, c[7], 1)
    p['fc_b'] = jnp.zeros((num_classes,), jnp.float32)
    return p


if __name__ == "__main__":
    key = jax.random.PRNGKey(0)
    pkey, xkey = jax.random.split(key)
    # Small DRN-D-ish config: layers=[1]*8, channels=(8,8,16,16,32,32,32,32)
    params = init_params(pkey)
    x = jax.random.normal(xkey, (2, 3, 16, 16), jnp.float32)  # NCHW like torch

    fwd = jax.jit(functools.partial(drn_forward, layers=(7,)))
    y, out = fwd(params, x)
    jax.block_until_ready(out)
    jax.block_until_ready(y)

    assert out.shape == (2, 1, 2, 2), out.shape
    assert len(y) == 1 and y[0].shape == (2, 32, 2, 2), [t.shape for t in y]
    assert bool(jnp.all((out >= 0.0) & (out <= 1.0)))
    assert bool(jnp.all(jnp.isfinite(out)))
    print("KERNEL_OK")
</pallas_src>

<mosaic_0001>
module attributes {stable_mosaic.version = 11 : i64} {
  func.func @kernel(%arg0: i32, %arg1: memref<512x160xbf16, #tpu.memory_space<vmem>>, %arg2: memref<160x128xbf16, #tpu.memory_space<vmem>>, %arg3: memref<1x128xf32, #tpu.memory_space<vmem>>, %arg4: memref<1x128xf32, #tpu.memory_space<vmem>>, %arg5: memref<512x8xf32, #tpu.memory_space<vmem>>) attributes {dimension_semantics = [#tpu.dimension_semantics<arbitrary>], iteration_bounds = array<i64: 1>, scalar_prefetch = 0 : i64, scratch_operands = 0 : i64, tpu.core_type = #tpu.core_type<tc>, window_params = [{pipeline_mode = #tpu.pipeline_mode<synchronous>, transform_indices = @transform_0, window_bounds = array<i64: 512, 160>}, {pipeline_mode = #tpu.pipeline_mode<synchronous>, transform_indices = @transform_1, window_bounds = array<i64: 160, 128>}, {pipeline_mode = #tpu.pipeline_mode<synchronous>, transform_indices = @transform_2, window_bounds = array<i64: 1, 128>}, {pipeline_mode = #tpu.pipeline_mode<synchronous>, transform_indices = @transform_3, window_bounds = array<i64: 1, 128>}, {pipeline_mode = #tpu.pipeline_mode<synchronous>, transform_indices = @transform_4, window_bounds = array<i64: 512, 8>}]} {
    %c0 = arith.constant 0 : index
    %c0_0 = arith.constant 0 : index
    %0 = vector.load %arg1[%c0, %c0_0] : memref<512x160xbf16, #tpu.memory_space<vmem>>, vector<512x160xbf16>
    %c0_1 = arith.constant 0 : index
    %c0_2 = arith.constant 0 : index
    %1 = vector.load %arg2[%c0_1, %c0_2] : memref<160x128xbf16, #tpu.memory_space<vmem>>, vector<160x128xbf16>
    %cst = arith.constant dense<0.000000e+00> : vector<512x128xf32>
    %2 = tpu.matmul %0, %1, %cst {dimension_numbers = #tpu.dot_dimension_numbers<[1], [0], [0], [1], [0, 0, 1, 1], [], []>} : vector<512x160xbf16>, vector<160x128xbf16>, vector<512x128xf32> -> vector<512x128xf32>
    %cst_3 = arith.constant dense<0.000000e+00> : vector<128xf32>
    %3 = vector.multi_reduction <add>, %2, %cst_3 [0] : vector<512x128xf32> to vector<128xf32>
    %4 = vector.shape_cast %3 : vector<128xf32> to vector<1x128xf32>
    %cst_4 = arith.constant 0.001953125 : f32
    %5 = vector.broadcast %cst_4 : f32 to vector<1x128xf32>
    %6 = arith.mulf %4, %5 : vector<1x128xf32>
    %7 = vector.broadcast %6 : vector<1x128xf32> to vector<512x128xf32>
    %8 = arith.subf %2, %7 : vector<512x128xf32>
    %9 = tpu.iota {dimensions = array<i32: 0>} : vector<512x128xi32>
    %c512_i32 = arith.constant 512 : i32
    %10 = vector.broadcast %c512_i32 : i32 to vector<512x128xi32>
    %11 = arith.cmpi slt, %9, %10 : vector<512x128xi32>
    %12 = arith.mulf %8, %8 : vector<512x128xf32>
    %cst_5 = arith.constant 0.000000e+00 : f32
    %13 = vector.broadcast %cst_5 : f32 to vector<512x128xf32>
    %14 = arith.select %11, %12, %13 : vector<512x128xi1>, vector<512x128xf32>
    %cst_6 = arith.constant dense<0.000000e+00> : vector<128xf32>
    %15 = vector.multi_reduction <add>, %14, %cst_6 [0] : vector<512x128xf32> to vector<128xf32>
    %16 = vector.shape_cast %15 : vector<128xf32> to vector<1x128xf32>
    %cst_7 = arith.constant 0.001953125 : f32
    %17 = vector.broadcast %cst_7 : f32 to vector<1x128xf32>
    %18 = arith.mulf %16, %17 : vector<1x128xf32>
    %c0_8 = arith.constant 0 : index
    %c0_9 = arith.constant 0 : index
    %19 = vector.load %arg3[%c0_8, %c0_9] : memref<1x128xf32, #tpu.memory_space<vmem>>, vector<1x128xf32>
    %cst_10 = arith.constant 9.99999974E-6 : f32
    %20 = vector.broadcast %cst_10 : f32 to vector<1x128xf32>
    %21 = arith.addf %18, %20 : vector<1x128xf32>
    %22 = math.rsqrt %21 : vector<1x128xf32>
    %23 = arith.mulf %19, %22 : vector<1x128xf32>
    %c0_11 = arith.constant 0 : index
    %c0_12 = arith.constant 0 : index
    %24 = vector.load %arg4[%c0_11, %c0_12] : memref<1x128xf32, #tpu.memory_space<vmem>>, vector<1x128xf32>
    %25 = arith.mulf %6, %23 : vector<1x128xf32>
    %26 = arith.subf %24, %25 : vector<1x128xf32>
    %27 = vector.broadcast %23 : vector<1x128xf32> to vector<512x128xf32>
    %28 = arith.mulf %2, %27 : vector<512x128xf32>
    %29 = vector.broadcast %26 : vector<1x128xf32> to vector<512x128xf32>
    %30 = arith.addf %28, %29 : vector<512x128xf32>
    %31 = vector.extract_strided_slice %30 {offsets = [0, 0], sizes = [512, 8], strides = [1, 1]} : vector<512x128xf32> to vector<512x8xf32>
    %cst_13 = arith.constant 0.000000e+00 : f32
    %32 = vector.broadcast %cst_13 : f32 to vector<512x8xf32>
    %33 = arith.maximumf %31, %32 : vector<512x8xf32>
    %c0_14 = arith.constant 0 : index
    %c0_15 = arith.constant 0 : index
    %34 = vector.load %arg5[%c0_14, %c0_15] : memref<512x8xf32, #tpu.memory_space<vmem>>, vector<512x8xf32>
    tpu.vector_store %arg5[%c0_14, %c0_15], %33 {strides = array<i32>} : memref<512x8xf32, #tpu.memory_space<vmem>>, vector<512x8xf32>,
    return
  }
  func.func @transform_0(%arg0: i32) -> (i32, i32) {
    %c0_i32 = arith.constant 0 : i32
    %c0_i32_0 = arith.constant 0 : i32
    %c0_i32_1 = arith.constant 0 : i32
    return %c0_i32, %c0_i32_0 : i32, i32
  }
  func.func @transform_1(%arg0: i32) -> (i32, i32) {
    %c0_i32 = arith.constant 0 : i32
    %c0_i32_0 = arith.constant 0 : i32
    %c0_i32_1 = arith.constant 0 : i32
    return %c0_i32, %c0_i32_0 : i32, i32
  }
  func.func @transform_2(%arg0: i32) -> (i32, i32) {
    %c0_i32 = arith.constant 0 : i32
    %c0_i32_0 = arith.constant 0 : i32
    %c0_i32_1 = arith.constant 0 : i32
    return %c0_i32, %c0_i32_0 : i32, i32
  }
  func.func @transform_3(%arg0: i32) -> (i32, i32) {
    %c0_i32 = arith.constant 0 : i32
    %c0_i32_0 = arith.constant 0 : i32
    %c0_i32_1 = arith.constant 0 : i32
    return %c0_i32, %c0_i32_0 : i32, i32
  }
  func.func @transform_4(%arg0: i32) -> (i32, i32) {
    %c0_i32 = arith.constant 0 : i32
    %c0_i32_0 = arith.constant 0 : i32
    %c0_i32_1 = arith.constant 0 : i32
    return %c0_i32, %c0_i32_0 : i32, i32
  }
}

module attributes {stable_mosaic.version = 11 : i64} {
  func.func @kernel(%arg0: i32, %arg1: memref<512x80xbf16, #tpu.memory_space<vmem>>, %arg2: memref<80x128xbf16, #tpu.memory_space<vmem>>, %arg3: memref<1x128xf32, #tpu.memory_space<vmem>>, %arg4: memref<1x128xf32, #tpu.memory_space<vmem>>, %arg5: memref<512x8xf32, #tpu.memory_space<vmem>>) attributes {dimension_semantics = [#tpu.dimension_semantics<arbitrary>], iteration_bounds = array<i64: 1>, scalar_prefetch = 0 : i64, scratch_operands = 0 : i64, tpu.core_type = #tpu.core_type<tc>, window_params = [{pipeline_mode = #tpu.pipeline_mode<synchronous>, transform_indices = @transform_0, window_bounds = array<i64: 512, 80>}, {pipeline_mode = #tpu.pipeline_mode<synchronous>, transform_indices = @transform_1, window_bounds = array<i64: 80, 128>}, {pipeline_mode = #tpu.pipeline_mode<synchronous>, transform_indices = @transform_2, window_bounds = array<i64: 1, 128>}, {pipeline_mode = #tpu.pipeline_mode<synchronous>, transform_indices = @transform_3, window_bounds = array<i64: 1, 128>}, {pipeline_mode = #tpu.pipeline_mode<synchronous>, transform_indices = @transform_4, window_bounds = array<i64: 512, 8>}]} {
    %c0 = arith.constant 0 : index
    %c0_0 = arith.constant 0 : index
    %0 = vector.load %arg1[%c0, %c0_0] : memref<512x80xbf16, #tpu.memory_space<vmem>>, vector<512x80xbf16>
    %c0_1 = arith.constant 0 : index
    %c0_2 = arith.constant 0 : index
    %1 = vector.load %arg2[%c0_1, %c0_2] : memref<80x128xbf16, #tpu.memory_space<vmem>>, vector<80x128xbf16>
    %cst = arith.constant dense<0.000000e+00> : vector<512x128xf32>
    %2 = tpu.matmul %0, %1, %cst {dimension_numbers = #tpu.dot_dimension_numbers<[1], [0], [0], [1], [0, 0, 1, 1], [], []>} : vector<512x80xbf16>, vector<80x128xbf16>, vector<512x128xf32> -> vector<512x128xf32>
    %cst_3 = arith.constant dense<0.000000e+00> : vector<128xf32>
    %3 = vector.multi_reduction <add>, %2, %cst_3 [0] : vector<512x128xf32> to vector<128xf32>
    %4 = vector.shape_cast %3 : vector<128xf32> to vector<1x128xf32>
    %cst_4 = arith.constant 0.001953125 : f32
    %5 = vector.broadcast %cst_4 : f32 to vector<1x128xf32>
    %6 = arith.mulf %4, %5 : vector<1x128xf32>
    %7 = vector.broadcast %6 : vector<1x128xf32> to vector<512x128xf32>
    %8 = arith.subf %2, %7 : vector<512x128xf32>
    %9 = tpu.iota {dimensions = array<i32: 0>} : vector<512x128xi32>
    %c512_i32 = arith.constant 512 : i32
    %10 = vector.broadcast %c512_i32 : i32 to vector<512x128xi32>
    %11 = arith.cmpi slt, %9, %10 : vector<512x128xi32>
    %12 = arith.mulf %8, %8 : vector<512x128xf32>
    %cst_5 = arith.constant 0.000000e+00 : f32
    %13 = vector.broadcast %cst_5 : f32 to vector<512x128xf32>
    %14 = arith.select %11, %12, %13 : vector<512x128xi1>, vector<512x128xf32>
    %cst_6 = arith.constant dense<0.000000e+00> : vector<128xf32>
    %15 = vector.multi_reduction <add>, %14, %cst_6 [0] : vector<512x128xf32> to vector<128xf32>
    %16 = vector.shape_cast %15 : vector<128xf32> to vector<1x128xf32>
    %cst_7 = arith.constant 0.001953125 : f32
    %17 = vector.broadcast %cst_7 : f32 to vector<1x128xf32>
    %18 = arith.mulf %16, %17 : vector<1x128xf32>
    %c0_8 = arith.constant 0 : index
    %c0_9 = arith.constant 0 : index
    %19 = vector.load %arg3[%c0_8, %c0_9] : memref<1x128xf32, #tpu.memory_space<vmem>>, vector<1x128xf32>
    %cst_10 = arith.constant 9.99999974E-6 : f32
    %20 = vector.broadcast %cst_10 : f32 to vector<1x128xf32>
    %21 = arith.addf %18, %20 : vector<1x128xf32>
    %22 = math.rsqrt %21 : vector<1x128xf32>
    %23 = arith.mulf %19, %22 : vector<1x128xf32>
    %c0_11 = arith.constant 0 : index
    %c0_12 = arith.constant 0 : index
    %24 = vector.load %arg4[%c0_11, %c0_12] : memref<1x128xf32, #tpu.memory_space<vmem>>, vector<1x128xf32>
    %25 = arith.mulf %6, %23 : vector<1x128xf32>
    %26 = arith.subf %24, %25 : vector<1x128xf32>
    %27 = vector.broadcast %23 : vector<1x128xf32> to vector<512x128xf32>
    %28 = arith.mulf %2, %27 : vector<512x128xf32>
    %29 = vector.broadcast %26 : vector<1x128xf32> to vector<512x128xf32>
    %30 = arith.addf %28, %29 : vector<512x128xf32>
    %31 = vector.extract_strided_slice %30 {offsets = [0, 0], sizes = [512, 8], strides = [1, 1]} : vector<512x128xf32> to vector<512x8xf32>
    %cst_13 = arith.constant 0.000000e+00 : f32
    %32 = vector.broadcast %cst_13 : f32 to vector<512x8xf32>
    %33 = arith.maximumf %31, %32 : vector<512x8xf32>
    %c0_14 = arith.constant 0 : index
    %c0_15 = arith.constant 0 : index
    %34 = vector.load %arg5[%c0_14, %c0_15] : memref<512x8xf32, #tpu.memory_space<vmem>>, vector<512x8xf32>
    tpu.vector_store %arg5[%c0_14, %c0_15], %33 {strides = array<i32>} : memref<512x8xf32, #tpu.memory_space<vmem>>, vector<512x8xf32>,
    return
  }
  func.func @transform_0(%arg0: i32) -> (i32, i32) {
    %c0_i32 = arith.constant 0 : i32
    %c0_i32_0 = arith.constant 0 : i32
    %c0_i32_1 = arith.constant 0 : i32
    return %c0_i32, %c0_i32_0 : i32, i32
  }
  func.func @transform_1(%arg0: i32) -> (i32, i32) {
    %c0_i32 = arith.constant 0 : i32
    %c0_i32_0 = arith.constant 0 : i32
    %c0_i32_1 = arith.constant 0 : i32
    return %c0_i32, %c0_i32_0 : i32, i32
  }
  func.func @transform_2(%arg0: i32) -> (i32, i32) {
    %c0_i32 = arith.constant 0 : i32
    %c0_i32_0 = arith.constant 0 : i32
    %c0_i32_1 = arith.constant 0 : i32
    return %c0_i32, %c0_i32_0 : i32, i32
  }
  func.func @transform_3(%arg0: i32) -> (i32, i32) {
    %c0_i32 = arith.constant 0 : i32
    %c0_i32_0 = arith.constant 0 : i32
    %c0_i32_1 = arith.constant 0 : i32
    return %c0_i32, %c0_i32_0 : i32, i32
  }
  func.func @transform_4(%arg0: i32) -> (i32, i32) {
    %c0_i32 = arith.constant 0 : i32
    %c0_i32_0 = arith.constant 0 : i32
    %c0_i32_1 = arith.constant 0 : i32
    return %c0_i32, %c0_i32_0 : i32, i32
  }
}

module attributes {stable_mosaic.version = 11 : i64} {
  func.func @kernel(%arg0: i32, %arg1: memref<128x80xbf16, #tpu.memory_space<vmem>>, %arg2: memref<80x128xbf16, #tpu.memory_space<vmem>>, %arg3: memref<1x128xf32, #tpu.memory_space<vmem>>, %arg4: memref<1x128xf32, #tpu.memory_space<vmem>>, %arg5: memref<128x8xf32, #tpu.memory_space<vmem>>) attributes {dimension_semantics = [#tpu.dimension_semantics<arbitrary>], iteration_bounds = array<i64: 1>, scalar_prefetch = 0 : i64, scratch_operands = 0 : i64, tpu.core_type = #tpu.core_type<tc>, window_params = [{pipeline_mode = #tpu.pipeline_mode<synchronous>, transform_indices = @transform_0, window_bounds = array<i64: 128, 80>}, {pipeline_mode = #tpu.pipeline_mode<synchronous>, transform_indices = @transform_1, window_bounds = array<i64: 80, 128>}, {pipeline_mode = #tpu.pipeline_mode<synchronous>, transform_indices = @transform_2, window_bounds = array<i64: 1, 128>}, {pipeline_mode = #tpu.pipeline_mode<synchronous>, transform_indices = @transform_3, window_bounds = array<i64: 1, 128>}, {pipeline_mode = #tpu.pipeline_mode<synchronous>, transform_indices = @transform_4, window_bounds = array<i64: 128, 8>}]} {
    %c0 = arith.constant 0 : index
    %c0_0 = arith.constant 0 : index
    %0 = vector.load %arg1[%c0, %c0_0] : memref<128x80xbf16, #tpu.memory_space<vmem>>, vector<128x80xbf16>
    %c0_1 = arith.constant 0 : index
    %c0_2 = arith.constant 0 : index
    %1 = vector.load %arg2[%c0_1, %c0_2] : memref<80x128xbf16, #tpu.memory_space<vmem>>, vector<80x128xbf16>
    %cst = arith.constant dense<0.000000e+00> : vector<128x128xf32>
    %2 = tpu.matmul %0, %1, %cst {dimension_numbers = #tpu.dot_dimension_numbers<[1], [0], [0], [1], [0, 0, 1, 1], [], []>} : vector<128x80xbf16>, vector<80x128xbf16>, vector<128x128xf32> -> vector<128x128xf32>
    %cst_3 = arith.constant dense<0.000000e+00> : vector<128xf32>
    %3 = vector.multi_reduction <add>, %2, %cst_3 [0] : vector<128x128xf32> to vector<128xf32>
    %4 = vector.shape_cast %3 : vector<128xf32> to vector<1x128xf32>
    %cst_4 = arith.constant 7.812500e-03 : f32
    %5 = vector.broadcast %cst_4 : f32 to vector<1x128xf32>
    %6 = arith.mulf %4, %5 : vector<1x128xf32>
    %7 = vector.broadcast %6 : vector<1x128xf32> to vector<128x128xf32>
    %8 = arith.subf %2, %7 : vector<128x128xf32>
    %9 = tpu.iota {dimensions = array<i32: 0>} : vector<128x128xi32>
    %c128_i32 = arith.constant 128 : i32
    %10 = vector.broadcast %c128_i32 : i32 to vector<128x128xi32>
    %11 = arith.cmpi slt, %9, %10 : vector<128x128xi32>
    %12 = arith.mulf %8, %8 : vector<128x128xf32>
    %cst_5 = arith.constant 0.000000e+00 : f32
    %13 = vector.broadcast %cst_5 : f32 to vector<128x128xf32>
    %14 = arith.select %11, %12, %13 : vector<128x128xi1>, vector<128x128xf32>
    %cst_6 = arith.constant dense<0.000000e+00> : vector<128xf32>
    %15 = vector.multi_reduction <add>, %14, %cst_6 [0] : vector<128x128xf32> to vector<128xf32>
    %16 = vector.shape_cast %15 : vector<128xf32> to vector<1x128xf32>
    %cst_7 = arith.constant 7.812500e-03 : f32
    %17 = vector.broadcast %cst_7 : f32 to vector<1x128xf32>
    %18 = arith.mulf %16, %17 : vector<1x128xf32>
    %c0_8 = arith.constant 0 : index
    %c0_9 = arith.constant 0 : index
    %19 = vector.load %arg3[%c0_8, %c0_9] : memref<1x128xf32, #tpu.memory_space<vmem>>, vector<1x128xf32>
    %cst_10 = arith.constant 9.99999974E-6 : f32
    %20 = vector.broadcast %cst_10 : f32 to vector<1x128xf32>
    %21 = arith.addf %18, %20 : vector<1x128xf32>
    %22 = math.rsqrt %21 : vector<1x128xf32>
    %23 = arith.mulf %19, %22 : vector<1x128xf32>
    %c0_11 = arith.constant 0 : index
    %c0_12 = arith.constant 0 : index
    %24 = vector.load %arg4[%c0_11, %c0_12] : memref<1x128xf32, #tpu.memory_space<vmem>>, vector<1x128xf32>
    %25 = arith.mulf %6, %23 : vector<1x128xf32>
    %26 = arith.subf %24, %25 : vector<1x128xf32>
    %27 = vector.broadcast %23 : vector<1x128xf32> to vector<128x128xf32>
    %28 = arith.mulf %2, %27 : vector<128x128xf32>
    %29 = vector.broadcast %26 : vector<1x128xf32> to vector<128x128xf32>
    %30 = arith.addf %28, %29 : vector<128x128xf32>
    %31 = vector.extract_strided_slice %30 {offsets = [0, 0], sizes = [128, 8], strides = [1, 1]} : vector<128x128xf32> to vector<128x8xf32>
    %cst_13 = arith.constant 0.000000e+00 : f32
    %32 = vector.broadcast %cst_13 : f32 to vector<128x8xf32>
    %33 = arith.maximumf %31, %32 : vector<128x8xf32>
    %c0_14 = arith.constant 0 : index
    %c0_15 = arith.constant 0 : index
    %34 = vector.load %arg5[%c0_14, %c0_15] : memref<128x8xf32, #tpu.memory_space<vmem>>, vector<128x8xf32>
    tpu.vector_store %arg5[%c0_14, %c0_15], %33 {strides = array<i32>} : memref<128x8xf32, #tpu.memory_space<vmem>>, vector<128x8xf32>,
    return
  }
  func.func @transform_0(%arg0: i32) -> (i32, i32) {
    %c0_i32 = arith.constant 0 : i32
    %c0_i32_0 = arith.constant 0 : i32
    %c0_i32_1 = arith.constant 0 : i32
    return %c0_i32, %c0_i32_0 : i32, i32
  }
  func.func @transform_1(%arg0: i32) -> (i32, i32) {
    %c0_i32 = arith.constant 0 : i32
    %c0_i32_0 = arith.constant 0 : i32
    %c0_i32_1 = arith.constant 0 : i32
    return %c0_i32, %c0_i32_0 : i32, i32
  }
  func.func @transform_2(%arg0: i32) -> (i32, i32) {
    %c0_i32 = arith.constant 0 : i32
    %c0_i32_0 = arith.constant 0 : i32
    %c0_i32_1 = arith.constant 0 : i32
    return %c0_i32, %c0_i32_0 : i32, i32
  }
  func.func @transform_3(%arg0: i32) -> (i32, i32) {
    %c0_i32 = arith.constant 0 : i32
    %c0_i32_0 = arith.constant 0 : i32
    %c0_i32_1 = arith.constant 0 : i32
    return %c0_i32, %c0_i32_0 : i32, i32
  }
  func.func @transform_4(%arg0: i32) -> (i32, i32) {
    %c0_i32 = arith.constant 0 : i32
    %c0_i32_0 = arith.constant 0 : i32
    %c0_i32_1 = arith.constant 0 : i32
    return %c0_i32, %c0_i32_0 : i32, i32
  }
}

module attributes {stable_mosaic.version = 11 : i64} {
  func.func @kernel(%arg0: i32, %arg1: memref<32x80xbf16, #tpu.memory_space<vmem>>, %arg2: memref<80x128xbf16, #tpu.memory_space<vmem>>, %arg3: memref<1x128xf32, #tpu.memory_space<vmem>>, %arg4: memref<1x128xf32, #tpu.memory_space<vmem>>, %arg5: memref<32x16xf32, #tpu.memory_space<vmem>>) attributes {dimension_semantics = [#tpu.dimension_semantics<arbitrary>], iteration_bounds = array<i64: 1>, scalar_prefetch = 0 : i64, scratch_operands = 0 : i64, tpu.core_type = #tpu.core_type<tc>, window_params = [{pipeline_mode = #tpu.pipeline_mode<synchronous>, transform_indices = @transform_0, window_bounds = array<i64: 32, 80>}, {pipeline_mode = #tpu.pipeline_mode<synchronous>, transform_indices = @transform_1, window_bounds = array<i64: 80, 128>}, {pipeline_mode = #tpu.pipeline_mode<synchronous>, transform_indices = @transform_2, window_bounds = array<i64: 1, 128>}, {pipeline_mode = #tpu.pipeline_mode<synchronous>, transform_indices = @transform_3, window_bounds = array<i64: 1, 128>}, {pipeline_mode = #tpu.pipeline_mode<synchronous>, transform_indices = @transform_4, window_bounds = array<i64: 32, 16>}]} {
    %c0 = arith.constant 0 : index
    %c0_0 = arith.constant 0 : index
    %0 = vector.load %arg1[%c0, %c0_0] : memref<32x80xbf16, #tpu.memory_space<vmem>>, vector<32x80xbf16>
    %c0_1 = arith.constant 0 : index
    %c0_2 = arith.constant 0 : index
    %1 = vector.load %arg2[%c0_1, %c0_2] : memref<80x128xbf16, #tpu.memory_space<vmem>>, vector<80x128xbf16>
    %cst = arith.constant dense<0.000000e+00> : vector<32x128xf32>
    %2 = tpu.matmul %0, %1, %cst {dimension_numbers = #tpu.dot_dimension_numbers<[1], [0], [0], [1], [0, 0, 1, 1], [], []>} : vector<32x80xbf16>, vector<80x128xbf16>, vector<32x128xf32> -> vector<32x128xf32>
    %cst_3 = arith.constant dense<0.000000e+00> : vector<128xf32>
    %3 = vector.multi_reduction <add>, %2, %cst_3 [0] : vector<32x128xf32> to vector<128xf32>
    %4 = vector.shape_cast %3 : vector<128xf32> to vector<1x128xf32>
    %cst_4 = arith.constant 3.125000e-02 : f32
    %5 = vector.broadcast %cst_4 : f32 to vector<1x128xf32>
    %6 = arith.mulf %4, %5 : vector<1x128xf32>
    %7 = vector.broadcast %6 : vector<1x128xf32> to vector<32x128xf32>
    %8 = arith.subf %2, %7 : vector<32x128xf32>
    %9 = tpu.iota {dimensions = array<i32: 0>} : vector<32x128xi32>
    %c32_i32 = arith.constant 32 : i32
    %10 = vector.broadcast %c32_i32 : i32 to vector<32x128xi32>
    %11 = arith.cmpi slt, %9, %10 : vector<32x128xi32>
    %12 = arith.mulf %8, %8 : vector<32x128xf32>
    %cst_5 = arith.constant 0.000000e+00 : f32
    %13 = vector.broadcast %cst_5 : f32 to vector<32x128xf32>
    %14 = arith.select %11, %12, %13 : vector<32x128xi1>, vector<32x128xf32>
    %cst_6 = arith.constant dense<0.000000e+00> : vector<128xf32>
    %15 = vector.multi_reduction <add>, %14, %cst_6 [0] : vector<32x128xf32> to vector<128xf32>
    %16 = vector.shape_cast %15 : vector<128xf32> to vector<1x128xf32>
    %cst_7 = arith.constant 3.125000e-02 : f32
    %17 = vector.broadcast %cst_7 : f32 to vector<1x128xf32>
    %18 = arith.mulf %16, %17 : vector<1x128xf32>
    %c0_8 = arith.constant 0 : index
    %c0_9 = arith.constant 0 : index
    %19 = vector.load %arg3[%c0_8, %c0_9] : memref<1x128xf32, #tpu.memory_space<vmem>>, vector<1x128xf32>
    %cst_10 = arith.constant 9.99999974E-6 : f32
    %20 = vector.broadcast %cst_10 : f32 to vector<1x128xf32>
    %21 = arith.addf %18, %20 : vector<1x128xf32>
    %22 = math.rsqrt %21 : vector<1x128xf32>
    %23 = arith.mulf %19, %22 : vector<1x128xf32>
    %c0_11 = arith.constant 0 : index
    %c0_12 = arith.constant 0 : index
    %24 = vector.load %arg4[%c0_11, %c0_12] : memref<1x128xf32, #tpu.memory_space<vmem>>, vector<1x128xf32>
    %25 = arith.mulf %6, %23 : vector<1x128xf32>
    %26 = arith.subf %24, %25 : vector<1x128xf32>
    %27 = vector.broadcast %23 : vector<1x128xf32> to vector<32x128xf32>
    %28 = arith.mulf %2, %27 : vector<32x128xf32>
    %29 = vector.broadcast %26 : vector<1x128xf32> to vector<32x128xf32>
    %30 = arith.addf %28, %29 : vector<32x128xf32>
    %31 = vector.extract_strided_slice %30 {offsets = [0, 0], sizes = [32, 16], strides = [1, 1]} : vector<32x128xf32> to vector<32x16xf32>
    %cst_13 = arith.constant 0.000000e+00 : f32
    %32 = vector.broadcast %cst_13 : f32 to vector<32x16xf32>
    %33 = arith.maximumf %31, %32 : vector<32x16xf32>
    %c0_14 = arith.constant 0 : index
    %c0_15 = arith.constant 0 : index
    %34 = vector.load %arg5[%c0_14, %c0_15] : memref<32x16xf32, #tpu.memory_space<vmem>>, vector<32x16xf32>
    tpu.vector_store %arg5[%c0_14, %c0_15], %33 {strides = array<i32>} : memref<32x16xf32, #tpu.memory_space<vmem>>, vector<32x16xf32>,
    return
  }
  func.func @transform_0(%arg0: i32) -> (i32, i32) {
    %c0_i32 = arith.constant 0 : i32
    %c0_i32_0 = arith.constant 0 : i32
    %c0_i32_1 = arith.constant 0 : i32
    return %c0_i32, %c0_i32_0 : i32, i32
  }
  func.func @transform_1(%arg0: i32) -> (i32, i32) {
    %c0_i32 = arith.constant 0 : i32
    %c0_i32_0 = arith.constant 0 : i32
    %c0_i32_1 = arith.constant 0 : i32
    return %c0_i32, %c0_i32_0 : i32, i32
  }
  func.func @transform_2(%arg0: i32) -> (i32, i32) {
    %c0_i32 = arith.constant 0 : i32
    %c0_i32_0 = arith.constant 0 : i32
    %c0_i32_1 = arith.constant 0 : i32
    return %c0_i32, %c0_i32_0 : i32, i32
  }
  func.func @transform_3(%arg0: i32) -> (i32, i32) {
    %c0_i32 = arith.constant 0 : i32
    %c0_i32_0 = arith.constant 0 : i32
    %c0_i32_1 = arith.constant 0 : i32
    return %c0_i32, %c0_i32_0 : i32, i32
  }
  func.func @transform_4(%arg0: i32) -> (i32, i32) {
    %c0_i32 = arith.constant 0 : i32
    %c0_i32_0 = arith.constant 0 : i32
    %c0_i32_1 = arith.constant 0 : i32
    return %c0_i32, %c0_i32_0 : i32, i32
  }
}

module attributes {stable_mosaic.version = 11 : i64} {
  func.func @kernel(%arg0: i32, %arg1: memref<32x16xbf16, #tpu.memory_space<vmem>>, %arg2: memref<16x128xbf16, #tpu.memory_space<vmem>>, %arg3: memref<1x128xf32, #tpu.memory_space<vmem>>, %arg4: memref<1x128xf32, #tpu.memory_space<vmem>>, %arg5: memref<32x16xf32, #tpu.memory_space<vmem>>) attributes {dimension_semantics = [#tpu.dimension_semantics<arbitrary>], iteration_bounds = array<i64: 1>, scalar_prefetch = 0 : i64, scratch_operands = 0 : i64, tpu.core_type = #tpu.core_type<tc>, window_params = [{pipeline_mode = #tpu.pipeline_mode<synchronous>, transform_indices = @transform_0, window_bounds = array<i64: 32, 16>}, {pipeline_mode = #tpu.pipeline_mode<synchronous>, transform_indices = @transform_1, window_bounds = array<i64: 16, 128>}, {pipeline_mode = #tpu.pipeline_mode<synchronous>, transform_indices = @transform_2, window_bounds = array<i64: 1, 128>}, {pipeline_mode = #tpu.pipeline_mode<synchronous>, transform_indices = @transform_3, window_bounds = array<i64: 1, 128>}, {pipeline_mode = #tpu.pipeline_mode<synchronous>, transform_indices = @transform_4, window_bounds = array<i64: 32, 16>}]} {
    %c0 = arith.constant 0 : index
    %c0_0 = arith.constant 0 : index
    %0 = vector.load %arg1[%c0, %c0_0] : memref<32x16xbf16, #tpu.memory_space<vmem>>, vector<32x16xbf16>
    %c0_1 = arith.constant 0 : index
    %c0_2 = arith.constant 0 : index
    %1 = vector.load %arg2[%c0_1, %c0_2] : memref<16x128xbf16, #tpu.memory_space<vmem>>, vector<16x128xbf16>
    %cst = arith.constant dense<0.000000e+00> : vector<32x128xf32>
    %2 = tpu.matmul %0, %1, %cst {dimension_numbers = #tpu.dot_dimension_numbers<[1], [0], [0], [1], [0, 0, 1, 1], [], []>} : vector<32x16xbf16>, vector<16x128xbf16>, vector<32x128xf32> -> vector<32x128xf32>
    %cst_3 = arith.constant dense<0.000000e+00> : vector<128xf32>
    %3 = vector.multi_reduction <add>, %2, %cst_3 [0] : vector<32x128xf32> to vector<128xf32>
    %4 = vector.shape_cast %3 : vector<128xf32> to vector<1x128xf32>
    %cst_4 = arith.constant 3.125000e-02 : f32
    %5 = vector.broadcast %cst_4 : f32 to vector<1x128xf32>
    %6 = arith.mulf %4, %5 : vector<1x128xf32>
    %7 = vector.broadcast %6 : vector<1x128xf32> to vector<32x128xf32>
    %8 = arith.subf %2, %7 : vector<32x128xf32>
    %9 = tpu.iota {dimensions = array<i32: 0>} : vector<32x128xi32>
    %c32_i32 = arith.constant 32 : i32
    %10 = vector.broadcast %c32_i32 : i32 to vector<32x128xi32>
    %11 = arith.cmpi slt, %9, %10 : vector<32x128xi32>
    %12 = arith.mulf %8, %8 : vector<32x128xf32>
    %cst_5 = arith.constant 0.000000e+00 : f32
    %13 = vector.broadcast %cst_5 : f32 to vector<32x128xf32>
    %14 = arith.select %11, %12, %13 : vector<32x128xi1>, vector<32x128xf32>
    %cst_6 = arith.constant dense<0.000000e+00> : vector<128xf32>
    %15 = vector.multi_reduction <add>, %14, %cst_6 [0] : vector<32x128xf32> to vector<128xf32>
    %16 = vector.shape_cast %15 : vector<128xf32> to vector<1x128xf32>
    %cst_7 = arith.constant 3.125000e-02 : f32
    %17 = vector.broadcast %cst_7 : f32 to vector<1x128xf32>
    %18 = arith.mulf %16, %17 : vector<1x128xf32>
    %c0_8 = arith.constant 0 : index
    %c0_9 = arith.constant 0 : index
    %19 = vector.load %arg3[%c0_8, %c0_9] : memref<1x128xf32, #tpu.memory_space<vmem>>, vector<1x128xf32>
    %cst_10 = arith.constant 9.99999974E-6 : f32
    %20 = vector.broadcast %cst_10 : f32 to vector<1x128xf32>
    %21 = arith.addf %18, %20 : vector<1x128xf32>
    %22 = math.rsqrt %21 : vector<1x128xf32>
    %23 = arith.mulf %19, %22 : vector<1x128xf32>
    %c0_11 = arith.constant 0 : index
    %c0_12 = arith.constant 0 : index
    %24 = vector.load %arg4[%c0_11, %c0_12] : memref<1x128xf32, #tpu.memory_space<vmem>>, vector<1x128xf32>
    %25 = arith.mulf %6, %23 : vector<1x128xf32>
    %26 = arith.subf %24, %25 : vector<1x128xf32>
    %27 = vector.broadcast %23 : vector<1x128xf32> to vector<32x128xf32>
    %28 = arith.mulf %2, %27 : vector<32x128xf32>
    %29 = vector.broadcast %26 : vector<1x128xf32> to vector<32x128xf32>
    %30 = arith.addf %28, %29 : vector<32x128xf32>
    %31 = vector.extract_strided_slice %30 {offsets = [0, 0], sizes = [32, 16], strides = [1, 1]} : vector<32x128xf32> to vector<32x16xf32>
    %c0_13 = arith.constant 0 : index
    %c0_14 = arith.constant 0 : index
    %32 = vector.load %arg5[%c0_13, %c0_14] : memref<32x16xf32, #tpu.memory_space<vmem>>, vector<32x16xf32>
    tpu.vector_store %arg5[%c0_13, %c0_14], %31 {strides = array<i32>} : memref<32x16xf32, #tpu.memory_space<vmem>>, vector<32x16xf32>,
    return
  }
  func.func @transform_0(%arg0: i32) -> (i32, i32) {
    %c0_i32 = arith.constant 0 : i32
    %c0_i32_0 = arith.constant 0 : i32
    %c0_i32_1 = arith.constant 0 : i32
    return %c0_i32, %c0_i32_0 : i32, i32
  }
  func.func @transform_1(%arg0: i32) -> (i32, i32) {
    %c0_i32 = arith.constant 0 : i32
    %c0_i32_0 = arith.constant 0 : i32
    %c0_i32_1 = arith.constant 0 : i32
    return %c0_i32, %c0_i32_0 : i32, i32
  }
  func.func @transform_2(%arg0: i32) -> (i32, i32) {
    %c0_i32 = arith.constant 0 : i32
    %c0_i32_0 = arith.constant 0 : i32
    %c0_i32_1 = arith.constant 0 : i32
    return %c0_i32, %c0_i32_0 : i32, i32
  }
  func.func @transform_3(%arg0: i32) -> (i32, i32) {
    %c0_i32 = arith.constant 0 : i32
    %c0_i32_0 = arith.constant 0 : i32
    %c0_i32_1 = arith.constant 0 : i32
    return %c0_i32, %c0_i32_0 : i32, i32
  }
  func.func @transform_4(%arg0: i32) -> (i32, i32) {
    %c0_i32 = arith.constant 0 : i32
    %c0_i32_0 = arith.constant 0 : i32
    %c0_i32_1 = arith.constant 0 : i32
    return %c0_i32, %c0_i32_0 : i32, i32
  }
}

module attributes {stable_mosaic.version = 11 : i64} {
  func.func @kernel(%arg0: i32, %arg1: memref<32x144xbf16, #tpu.memory_space<vmem>>, %arg2: memref<144x128xbf16, #tpu.memory_space<vmem>>, %arg3: memref<1x128xf32, #tpu.memory_space<vmem>>, %arg4: memref<1x128xf32, #tpu.memory_space<vmem>>, %arg5: memref<32x16xf32, #tpu.memory_space<vmem>>, %arg6: memref<32x16xf32, #tpu.memory_space<vmem>>) attributes {dimension_semantics = [#tpu.dimension_semantics<arbitrary>], iteration_bounds = array<i64: 1>, scalar_prefetch = 0 : i64, scratch_operands = 0 : i64, tpu.core_type = #tpu.core_type<tc>, window_params = [{pipeline_mode = #tpu.pipeline_mode<synchronous>, transform_indices = @transform_0, window_bounds = array<i64: 32, 144>}, {pipeline_mode = #tpu.pipeline_mode<synchronous>, transform_indices = @transform_1, window_bounds = array<i64: 144, 128>}, {pipeline_mode = #tpu.pipeline_mode<synchronous>, transform_indices = @transform_2, window_bounds = array<i64: 1, 128>}, {pipeline_mode = #tpu.pipeline_mode<synchronous>, transform_indices = @transform_3, window_bounds = array<i64: 1, 128>}, {pipeline_mode = #tpu.pipeline_mode<synchronous>, transform_indices = @transform_4, window_bounds = array<i64: 32, 16>}, {pipeline_mode = #tpu.pipeline_mode<synchronous>, transform_indices = @transform_5, window_bounds = array<i64: 32, 16>}]} {
    %c0 = arith.constant 0 : index
    %c0_0 = arith.constant 0 : index
    %0 = vector.load %arg1[%c0, %c0_0] : memref<32x144xbf16, #tpu.memory_space<vmem>>, vector<32x144xbf16>
    %c0_1 = arith.constant 0 : index
    %c0_2 = arith.constant 0 : index
    %1 = vector.load %arg2[%c0_1, %c0_2] : memref<144x128xbf16, #tpu.memory_space<vmem>>, vector<144x128xbf16>
    %cst = arith.constant dense<0.000000e+00> : vector<32x128xf32>
    %2 = tpu.matmul %0, %1, %cst {dimension_numbers = #tpu.dot_dimension_numbers<[1], [0], [0], [1], [0, 0, 1, 1], [], []>} : vector<32x144xbf16>, vector<144x128xbf16>, vector<32x128xf32> -> vector<32x128xf32>
    %cst_3 = arith.constant dense<0.000000e+00> : vector<128xf32>
    %3 = vector.multi_reduction <add>, %2, %cst_3 [0] : vector<32x128xf32> to vector<128xf32>
    %4 = vector.shape_cast %3 : vector<128xf32> to vector<1x128xf32>
    %cst_4 = arith.constant 3.125000e-02 : f32
    %5 = vector.broadcast %cst_4 : f32 to vector<1x128xf32>
    %6 = arith.mulf %4, %5 : vector<1x128xf32>
    %7 = vector.broadcast %6 : vector<1x128xf32> to vector<32x128xf32>
    %8 = arith.subf %2, %7 : vector<32x128xf32>
    %9 = tpu.iota {dimensions = array<i32: 0>} : vector<32x128xi32>
    %c32_i32 = arith.constant 32 : i32
    %10 = vector.broadcast %c32_i32 : i32 to vector<32x128xi32>
    %11 = arith.cmpi slt, %9, %10 : vector<32x128xi32>
    %12 = arith.mulf %8, %8 : vector<32x128xf32>
    %cst_5 = arith.constant 0.000000e+00 : f32
    %13 = vector.broadcast %cst_5 : f32 to vector<32x128xf32>
    %14 = arith.select %11, %12, %13 : vector<32x128xi1>, vector<32x128xf32>
    %cst_6 = arith.constant dense<0.000000e+00> : vector<128xf32>
    %15 = vector.multi_reduction <add>, %14, %cst_6 [0] : vector<32x128xf32> to vector<128xf32>
    %16 = vector.shape_cast %15 : vector<128xf32> to vector<1x128xf32>
    %cst_7 = arith.constant 3.125000e-02 : f32
    %17 = vector.broadcast %cst_7 : f32 to vector<1x128xf32>
    %18 = arith.mulf %16, %17 : vector<1x128xf32>
    %c0_8 = arith.constant 0 : index
    %c0_9 = arith.constant 0 : index
    %19 = vector.load %arg3[%c0_8, %c0_9] : memref<1x128xf32, #tpu.memory_space<vmem>>, vector<1x128xf32>
    %cst_10 = arith.constant 9.99999974E-6 : f32
    %20 = vector.broadcast %cst_10 : f32 to vector<1x128xf32>
    %21 = arith.addf %18, %20 : vector<1x128xf32>
    %22 = math.rsqrt %21 : vector<1x128xf32>
    %23 = arith.mulf %19, %22 : vector<1x128xf32>
    %c0_11 = arith.constant 0 : index
    %c0_12 = arith.constant 0 : index
    %24 = vector.load %arg4[%c0_11, %c0_12] : memref<1x128xf32, #tpu.memory_space<vmem>>, vector<1x128xf32>
    %25 = arith.mulf %6, %23 : vector<1x128xf32>
    %26 = arith.subf %24, %25 : vector<1x128xf32>
    %27 = vector.broadcast %23 : vector<1x128xf32> to vector<32x128xf32>
    %28 = arith.mulf %2, %27 : vector<32x128xf32>
    %29 = vector.broadcast %26 : vector<1x128xf32> to vector<32x128xf32>
    %30 = arith.addf %28, %29 : vector<32x128xf32>
    %31 = vector.extract_strided_slice %30 {offsets = [0, 0], sizes = [32, 16], strides = [1, 1]} : vector<32x128xf32> to vector<32x16xf32>
    %c0_13 = arith.constant 0 : index
    %c0_14 = arith.constant 0 : index
    %32 = vector.load %arg5[%c0_13, %c0_14] : memref<32x16xf32, #tpu.memory_space<vmem>>, vector<32x16xf32>
    %33 = arith.addf %31, %32 : vector<32x16xf32>
    %cst_15 = arith.constant 0.000000e+00 : f32
    %34 = vector.broadcast %cst_15 : f32 to vector<32x16xf32>
    %35 = arith.maximumf %33, %34 : vector<32x16xf32>
    %c0_16 = arith.constant 0 : index
    %c0_17 = arith.constant 0 : index
    %36 = vector.load %arg6[%c0_16, %c0_17] : memref<32x16xf32, #tpu.memory_space<vmem>>, vector<32x16xf32>
    tpu.vector_store %arg6[%c0_16, %c0_17], %35 {strides = array<i32>} : memref<32x16xf32, #tpu.memory_space<vmem>>, vector<32x16xf32>,
    return
  }
  func.func @transform_0(%arg0: i32) -> (i32, i32) {
    %c0_i32 = arith.constant 0 : i32
    %c0_i32_0 = arith.constant 0 : i32
    %c0_i32_1 = arith.constant 0 : i32
    return %c0_i32, %c0_i32_0 : i32, i32
  }
  func.func @transform_1(%arg0: i32) -> (i32, i32) {
    %c0_i32 = arith.constant 0 : i32
    %c0_i32_0 = arith.constant 0 : i32
    %c0_i32_1 = arith.constant 0 : i32
    return %c0_i32, %c0_i32_0 : i32, i32
  }
  func.func @transform_2(%arg0: i32) -> (i32, i32) {
    %c0_i32 = arith.constant 0 : i32
    %c0_i32_0 = arith.constant 0 : i32
    %c0_i32_1 = arith.constant 0 : i32
    return %c0_i32, %c0_i32_0 : i32, i32
  }
  func.func @transform_3(%arg0: i32) -> (i32, i32) {
    %c0_i32 = arith.constant 0 : i32
    %c0_i32_0 = arith.constant 0 : i32
    %c0_i32_1 = arith.constant 0 : i32
    return %c0_i32, %c0_i32_0 : i32, i32
  }
  func.func @transform_4(%arg0: i32) -> (i32, i32) {
    %c0_i32 = arith.constant 0 : i32
    %c0_i32_0 = arith.constant 0 : i32
    %c0_i32_1 = arith.constant 0 : i32
    return %c0_i32, %c0_i32_0 : i32, i32
  }
  func.func @transform_5(%arg0: i32) -> (i32, i32) {
    %c0_i32 = arith.constant 0 : i32
    %c0_i32_0 = arith.constant 0 : i32
    %c0_i32_1 = arith.constant 0 : i32
    return %c0_i32, %c0_i32_0 : i32, i32
  }
}

module attributes {stable_mosaic.version = 11 : i64} {
  func.func @kernel(%arg0: i32, %arg1: memref<16x144xbf16, #tpu.memory_space<vmem>>, %arg2: memref<144x128xbf16, #tpu.memory_space<vmem>>, %arg3: memref<1x128xf32, #tpu.memory_space<vmem>>, %arg4: memref<1x128xf32, #tpu.memory_space<vmem>>, %arg5: memref<16x16xf32, #tpu.memory_space<vmem>>) attributes {dimension_semantics = [#tpu.dimension_semantics<arbitrary>], iteration_bounds = array<i64: 1>, scalar_prefetch = 0 : i64, scratch_operands = 0 : i64, tpu.core_type = #tpu.core_type<tc>, window_params = [{pipeline_mode = #tpu.pipeline_mode<synchronous>, transform_indices = @transform_0, window_bounds = array<i64: 16, 144>}, {pipeline_mode = #tpu.pipeline_mode<synchronous>, transform_indices = @transform_1, window_bounds = array<i64: 144, 128>}, {pipeline_mode = #tpu.pipeline_mode<synchronous>, transform_indices = @transform_2, window_bounds = array<i64: 1, 128>}, {pipeline_mode = #tpu.pipeline_mode<synchronous>, transform_indices = @transform_3, window_bounds = array<i64: 1, 128>}, {pipeline_mode = #tpu.pipeline_mode<synchronous>, transform_indices = @transform_4, window_bounds = array<i64: 16, 16>}]} {
    %c0 = arith.constant 0 : index
    %c0_0 = arith.constant 0 : index
    %0 = vector.load %arg1[%c0, %c0_0] : memref<16x144xbf16, #tpu.memory_space<vmem>>, vector<16x144xbf16>
    %c0_1 = arith.constant 0 : index
    %c0_2 = arith.constant 0 : index
    %1 = vector.load %arg2[%c0_1, %c0_2] : memref<144x128xbf16, #tpu.memory_space<vmem>>, vector<144x128xbf16>
    %cst = arith.constant dense<0.000000e+00> : vector<16x128xf32>
    %2 = tpu.matmul %0, %1, %cst {dimension_numbers = #tpu.dot_dimension_numbers<[1], [0], [0], [1], [0, 0, 1, 1], [], []>} : vector<16x144xbf16>, vector<144x128xbf16>, vector<16x128xf32> -> vector<16x128xf32>
    %cst_3 = arith.constant dense<0.000000e+00> : vector<128xf32>
    %3 = vector.multi_reduction <add>, %2, %cst_3 [0] : vector<16x128xf32> to vector<128xf32>
    %4 = vector.shape_cast %3 : vector<128xf32> to vector<1x128xf32>
    %cst_4 = arith.constant 1.250000e-01 : f32
    %5 = vector.broadcast %cst_4 : f32 to vector<1x128xf32>
    %6 = arith.mulf %4, %5 : vector<1x128xf32>
    %7 = vector.broadcast %6 : vector<1x128xf32> to vector<16x128xf32>
    %8 = arith.subf %2, %7 : vector<16x128xf32>
    %9 = tpu.iota {dimensions = array<i32: 0>} : vector<16x128xi32>
    %c8_i32 = arith.constant 8 : i32
    %10 = vector.broadcast %c8_i32 : i32 to vector<16x128xi32>
    %11 = arith.cmpi slt, %9, %10 : vector<16x128xi32>
    %12 = arith.mulf %8, %8 : vector<16x128xf32>
    %cst_5 = arith.constant 0.000000e+00 : f32
    %13 = vector.broadcast %cst_5 : f32 to vector<16x128xf32>
    %14 = arith.select %11, %12, %13 : vector<16x128xi1>, vector<16x128xf32>
    %cst_6 = arith.constant dense<0.000000e+00> : vector<128xf32>
    %15 = vector.multi_reduction <add>, %14, %cst_6 [0] : vector<16x128xf32> to vector<128xf32>
    %16 = vector.shape_cast %15 : vector<128xf32> to vector<1x128xf32>
    %cst_7 = arith.constant 1.250000e-01 : f32
    %17 = vector.broadcast %cst_7 : f32 to vector<1x128xf32>
    %18 = arith.mulf %16, %17 : vector<1x128xf32>
    %c0_8 = arith.constant 0 : index
    %c0_9 = arith.constant 0 : index
    %19 = vector.load %arg3[%c0_8, %c0_9] : memref<1x128xf32, #tpu.memory_space<vmem>>, vector<1x128xf32>
    %cst_10 = arith.constant 9.99999974E-6 : f32
    %20 = vector.broadcast %cst_10 : f32 to vector<1x128xf32>
    %21 = arith.addf %18, %20 : vector<1x128xf32>
    %22 = math.rsqrt %21 : vector<1x128xf32>
    %23 = arith.mulf %19, %22 : vector<1x128xf32>
    %c0_11 = arith.constant 0 : index
    %c0_12 = arith.constant 0 : index
    %24 = vector.load %arg4[%c0_11, %c0_12] : memref<1x128xf32, #tpu.memory_space<vmem>>, vector<1x128xf32>
    %25 = arith.mulf %6, %23 : vector<1x128xf32>
    %26 = arith.subf %24, %25 : vector<1x128xf32>
    %27 = vector.broadcast %23 : vector<1x128xf32> to vector<16x128xf32>
    %28 = arith.mulf %2, %27 : vector<16x128xf32>
    %29 = vector.broadcast %26 : vector<1x128xf32> to vector<16x128xf32>
    %30 = arith.addf %28, %29 : vector<16x128xf32>
    %31 = vector.extract_strided_slice %30 {offsets = [0, 0], sizes = [16, 16], strides = [1, 1]} : vector<16x128xf32> to vector<16x16xf32>
    %cst_13 = arith.constant 0.000000e+00 : f32
    %32 = vector.broadcast %cst_13 : f32 to vector<16x16xf32>
    %33 = arith.maximumf %31, %32 : vector<16x16xf32>
    %c0_14 = arith.constant 0 : index
    %c0_15 = arith.constant 0 : index
    %34 = vector.load %arg5[%c0_14, %c0_15] : memref<16x16xf32, #tpu.memory_space<vmem>>, vector<16x16xf32>
    tpu.vector_store %arg5[%c0_14, %c0_15], %33 {strides = array<i32>} : memref<16x16xf32, #tpu.memory_space<vmem>>, vector<16x16xf32>,
    return
  }
  func.func @transform_0(%arg0: i32) -> (i32, i32) {
    %c0_i32 = arith.constant 0 : i32
    %c0_i32_0 = arith.constant 0 : i32
    %c0_i32_1 = arith.constant 0 : i32
    return %c0_i32, %c0_i32_0 : i32, i32
  }
  func.func @transform_1(%arg0: i32) -> (i32, i32) {
    %c0_i32 = arith.constant 0 : i32
    %c0_i32_0 = arith.constant 0 : i32
    %c0_i32_1 = arith.constant 0 : i32
    return %c0_i32, %c0_i32_0 : i32, i32
  }
  func.func @transform_2(%arg0: i32) -> (i32, i32) {
    %c0_i32 = arith.constant 0 : i32
    %c0_i32_0 = arith.constant 0 : i32
    %c0_i32_1 = arith.constant 0 : i32
    return %c0_i32, %c0_i32_0 : i32, i32
  }
  func.func @transform_3(%arg0: i32) -> (i32, i32) {
    %c0_i32 = arith.constant 0 : i32
    %c0_i32_0 = arith.constant 0 : i32
    %c0_i32_1 = arith.constant 0 : i32
    return %c0_i32, %c0_i32_0 : i32, i32
  }
  func.func @transform_4(%arg0: i32) -> (i32, i32) {
    %c0_i32 = arith.constant 0 : i32
    %c0_i32_0 = arith.constant 0 : i32
    %c0_i32_1 = arith.constant 0 : i32
    return %c0_i32, %c0_i32_0 : i32, i32
  }
}

module attributes {stable_mosaic.version = 11 : i64} {
  func.func @kernel(%arg0: i32, %arg1: memref<16x16xbf16, #tpu.memory_space<vmem>>, %arg2: memref<16x128xbf16, #tpu.memory_space<vmem>>, %arg3: memref<1x128xf32, #tpu.memory_space<vmem>>, %arg4: memref<1x128xf32, #tpu.memory_space<vmem>>, %arg5: memref<16x16xf32, #tpu.memory_space<vmem>>) attributes {dimension_semantics = [#tpu.dimension_semantics<arbitrary>], iteration_bounds = array<i64: 1>, scalar_prefetch = 0 : i64, scratch_operands = 0 : i64, tpu.core_type = #tpu.core_type<tc>, window_params = [{pipeline_mode = #tpu.pipeline_mode<synchronous>, transform_indices = @transform_0, window_bounds = array<i64: 16, 16>}, {pipeline_mode = #tpu.pipeline_mode<synchronous>, transform_indices = @transform_1, window_bounds = array<i64: 16, 128>}, {pipeline_mode = #tpu.pipeline_mode<synchronous>, transform_indices = @transform_2, window_bounds = array<i64: 1, 128>}, {pipeline_mode = #tpu.pipeline_mode<synchronous>, transform_indices = @transform_3, window_bounds = array<i64: 1, 128>}, {pipeline_mode = #tpu.pipeline_mode<synchronous>, transform_indices = @transform_4, window_bounds = array<i64: 16, 16>}]} {
    %c0 = arith.constant 0 : index
    %c0_0 = arith.constant 0 : index
    %0 = vector.load %arg1[%c0, %c0_0] : memref<16x16xbf16, #tpu.memory_space<vmem>>, vector<16x16xbf16>
    %c0_1 = arith.constant 0 : index
    %c0_2 = arith.constant 0 : index
    %1 = vector.load %arg2[%c0_1, %c0_2] : memref<16x128xbf16, #tpu.memory_space<vmem>>, vector<16x128xbf16>
    %cst = arith.constant dense<0.000000e+00> : vector<16x128xf32>
    %2 = tpu.matmul %0, %1, %cst {dimension_numbers = #tpu.dot_dimension_numbers<[1], [0], [0], [1], [0, 0, 1, 1], [], []>} : vector<16x16xbf16>, vector<16x128xbf16>, vector<16x128xf32> -> vector<16x128xf32>
    %cst_3 = arith.constant dense<0.000000e+00> : vector<128xf32>
    %3 = vector.multi_reduction <add>, %2, %cst_3 [0] : vector<16x128xf32> to vector<128xf32>
    %4 = vector.shape_cast %3 : vector<128xf32> to vector<1x128xf32>
    %cst_4 = arith.constant 1.250000e-01 : f32
    %5 = vector.broadcast %cst_4 : f32 to vector<1x128xf32>
    %6 = arith.mulf %4, %5 : vector<1x128xf32>
    %7 = vector.broadcast %6 : vector<1x128xf32> to vector<16x128xf32>
    %8 = arith.subf %2, %7 : vector<16x128xf32>
    %9 = tpu.iota {dimensions = array<i32: 0>} : vector<16x128xi32>
    %c8_i32 = arith.constant 8 : i32
    %10 = vector.broadcast %c8_i32 : i32 to vector<16x128xi32>
    %11 = arith.cmpi slt, %9, %10 : vector<16x128xi32>
    %12 = arith.mulf %8, %8 : vector<16x128xf32>
    %cst_5 = arith.constant 0.000000e+00 : f32
    %13 = vector.broadcast %cst_5 : f32 to vector<16x128xf32>
    %14 = arith.select %11, %12, %13 : vector<16x128xi1>, vector<16x128xf32>
    %cst_6 = arith.constant dense<0.000000e+00> : vector<128xf32>
    %15 = vector.multi_reduction <add>, %14, %cst_6 [0] : vector<16x128xf32> to vector<128xf32>
    %16 = vector.shape_cast %15 : vector<128xf32> to vector<1x128xf32>
    %cst_7 = arith.constant 1.250000e-01 : f32
    %17 = vector.broadcast %cst_7 : f32 to vector<1x128xf32>
    %18 = arith.mulf %16, %17 : vector<1x128xf32>
    %c0_8 = arith.constant 0 : index
    %c0_9 = arith.constant 0 : index
    %19 = vector.load %arg3[%c0_8, %c0_9] : memref<1x128xf32, #tpu.memory_space<vmem>>, vector<1x128xf32>
    %cst_10 = arith.constant 9.99999974E-6 : f32
    %20 = vector.broadcast %cst_10 : f32 to vector<1x128xf32>
    %21 = arith.addf %18, %20 : vector<1x128xf32>
    %22 = math.rsqrt %21 : vector<1x128xf32>
    %23 = arith.mulf %19, %22 : vector<1x128xf32>
    %c0_11 = arith.constant 0 : index
    %c0_12 = arith.constant 0 : index
    %24 = vector.load %arg4[%c0_11, %c0_12] : memref<1x128xf32, #tpu.memory_space<vmem>>, vector<1x128xf32>
    %25 = arith.mulf %6, %23 : vector<1x128xf32>
    %26 = arith.subf %24, %25 : vector<1x128xf32>
    %27 = vector.broadcast %23 : vector<1x128xf32> to vector<16x128xf32>
    %28 = arith.mulf %2, %27 : vector<16x128xf32>
    %29 = vector.broadcast %26 : vector<1x128xf32> to vector<16x128xf32>
    %30 = arith.addf %28, %29 : vector<16x128xf32>
    %31 = vector.extract_strided_slice %30 {offsets = [0, 0], sizes = [16, 16], strides = [1, 1]} : vector<16x128xf32> to vector<16x16xf32>
    %c0_13 = arith.constant 0 : index
    %c0_14 = arith.constant 0 : index
    %32 = vector.load %arg5[%c0_13, %c0_14] : memref<16x16xf32, #tpu.memory_space<vmem>>, vector<16x16xf32>
    tpu.vector_store %arg5[%c0_13, %c0_14], %31 {strides = array<i32>} : memref<16x16xf32, #tpu.memory_space<vmem>>, vector<16x16xf32>,
    return
  }
  func.func @transform_0(%arg0: i32) -> (i32, i32) {
    %c0_i32 = arith.constant 0 : i32
    %c0_i32_0 = arith.constant 0 : i32
    %c0_i32_1 = arith.constant 0 : i32
    return %c0_i32, %c0_i32_0 : i32, i32
  }
  func.func @transform_1(%arg0: i32) -> (i32, i32) {
    %c0_i32 = arith.constant 0 : i32
    %c0_i32_0 = arith.constant 0 : i32
    %c0_i32_1 = arith.constant 0 : i32
    return %c0_i32, %c0_i32_0 : i32, i32
  }
  func.func @transform_2(%arg0: i32) -> (i32, i32) {
    %c0_i32 = arith.constant 0 : i32
    %c0_i32_0 = arith.constant 0 : i32
    %c0_i32_1 = arith.constant 0 : i32
    return %c0_i32, %c0_i32_0 : i32, i32
  }
  func.func @transform_3(%arg0: i32) -> (i32, i32) {
    %c0_i32 = arith.constant 0 : i32
    %c0_i32_0 = arith.constant 0 : i32
    %c0_i32_1 = arith.constant 0 : i32
    return %c0_i32, %c0_i32_0 : i32, i32
  }
  func.func @transform_4(%arg0: i32) -> (i32, i32) {
    %c0_i32 = arith.constant 0 : i32
    %c0_i32_0 = arith.constant 0 : i32
    %c0_i32_1 = arith.constant 0 : i32
    return %c0_i32, %c0_i32_0 : i32, i32
  }
}

module attributes {stable_mosaic.version = 11 : i64} {
  func.func @kernel(%arg0: i32, %arg1: memref<16x144xbf16, #tpu.memory_space<vmem>>, %arg2: memref<144x128xbf16, #tpu.memory_space<vmem>>, %arg3: memref<1x128xf32, #tpu.memory_space<vmem>>, %arg4: memref<1x128xf32, #tpu.memory_space<vmem>>, %arg5: memref<16x16xf32, #tpu.memory_space<vmem>>, %arg6: memref<16x16xf32, #tpu.memory_space<vmem>>) attributes {dimension_semantics = [#tpu.dimension_semantics<arbitrary>], iteration_bounds = array<i64: 1>, scalar_prefetch = 0 : i64, scratch_operands = 0 : i64, tpu.core_type = #tpu.core_type<tc>, window_params = [{pipeline_mode = #tpu.pipeline_mode<synchronous>, transform_indices = @transform_0, window_bounds = array<i64: 16, 144>}, {pipeline_mode = #tpu.pipeline_mode<synchronous>, transform_indices = @transform_1, window_bounds = array<i64: 144, 128>}, {pipeline_mode = #tpu.pipeline_mode<synchronous>, transform_indices = @transform_2, window_bounds = array<i64: 1, 128>}, {pipeline_mode = #tpu.pipeline_mode<synchronous>, transform_indices = @transform_3, window_bounds = array<i64: 1, 128>}, {pipeline_mode = #tpu.pipeline_mode<synchronous>, transform_indices = @transform_4, window_bounds = array<i64: 16, 16>}, {pipeline_mode = #tpu.pipeline_mode<synchronous>, transform_indices = @transform_5, window_bounds = array<i64: 16, 16>}]} {
    %c0 = arith.constant 0 : index
    %c0_0 = arith.constant 0 : index
    %0 = vector.load %arg1[%c0, %c0_0] : memref<16x144xbf16, #tpu.memory_space<vmem>>, vector<16x144xbf16>
    %c0_1 = arith.constant 0 : index
    %c0_2 = arith.constant 0 : index
    %1 = vector.load %arg2[%c0_1, %c0_2] : memref<144x128xbf16, #tpu.memory_space<vmem>>, vector<144x128xbf16>
    %cst = arith.constant dense<0.000000e+00> : vector<16x128xf32>
    %2 = tpu.matmul %0, %1, %cst {dimension_numbers = #tpu.dot_dimension_numbers<[1], [0], [0], [1], [0, 0, 1, 1], [], []>} : vector<16x144xbf16>, vector<144x128xbf16>, vector<16x128xf32> -> vector<16x128xf32>
    %cst_3 = arith.constant dense<0.000000e+00> : vector<128xf32>
    %3 = vector.multi_reduction <add>, %2, %cst_3 [0] : vector<16x128xf32> to vector<128xf32>
    %4 = vector.shape_cast %3 : vector<128xf32> to vector<1x128xf32>
    %cst_4 = arith.constant 1.250000e-01 : f32
    %5 = vector.broadcast %cst_4 : f32 to vector<1x128xf32>
    %6 = arith.mulf %4, %5 : vector<1x128xf32>
    %7 = vector.broadcast %6 : vector<1x128xf32> to vector<16x128xf32>
    %8 = arith.subf %2, %7 : vector<16x128xf32>
    %9 = tpu.iota {dimensions = array<i32: 0>} : vector<16x128xi32>
    %c8_i32 = arith.constant 8 : i32
    %10 = vector.broadcast %c8_i32 : i32 to vector<16x128xi32>
    %11 = arith.cmpi slt, %9, %10 : vector<16x128xi32>
    %12 = arith.mulf %8, %8 : vector<16x128xf32>
    %cst_5 = arith.constant 0.000000e+00 : f32
    %13 = vector.broadcast %cst_5 : f32 to vector<16x128xf32>
    %14 = arith.select %11, %12, %13 : vector<16x128xi1>, vector<16x128xf32>
    %cst_6 = arith.constant dense<0.000000e+00> : vector<128xf32>
    %15 = vector.multi_reduction <add>, %14, %cst_6 [0] : vector<16x128xf32> to vector<128xf32>
    %16 = vector.shape_cast %15 : vector<128xf32> to vector<1x128xf32>
    %cst_7 = arith.constant 1.250000e-01 : f32
    %17 = vector.broadcast %cst_7 : f32 to vector<1x128xf32>
    %18 = arith.mulf %16, %17 : vector<1x128xf32>
    %c0_8 = arith.constant 0 : index
    %c0_9 = arith.constant 0 : index
    %19 = vector.load %arg3[%c0_8, %c0_9] : memref<1x128xf32, #tpu.memory_space<vmem>>, vector<1x128xf32>
    %cst_10 = arith.constant 9.99999974E-6 : f32
    %20 = vector.broadcast %cst_10 : f32 to vector<1x128xf32>
    %21 = arith.addf %18, %20 : vector<1x128xf32>
    %22 = math.rsqrt %21 : vector<1x128xf32>
    %23 = arith.mulf %19, %22 : vector<1x128xf32>
    %c0_11 = arith.constant 0 : index
    %c0_12 = arith.constant 0 : index
    %24 = vector.load %arg4[%c0_11, %c0_12] : memref<1x128xf32, #tpu.memory_space<vmem>>, vector<1x128xf32>
    %25 = arith.mulf %6, %23 : vector<1x128xf32>
    %26 = arith.subf %24, %25 : vector<1x128xf32>
    %27 = vector.broadcast %23 : vector<1x128xf32> to vector<16x128xf32>
    %28 = arith.mulf %2, %27 : vector<16x128xf32>
    %29 = vector.broadcast %26 : vector<1x128xf32> to vector<16x128xf32>
    %30 = arith.addf %28, %29 : vector<16x128xf32>
    %31 = vector.extract_strided_slice %30 {offsets = [0, 0], sizes = [16, 16], strides = [1, 1]} : vector<16x128xf32> to vector<16x16xf32>
    %c0_13 = arith.constant 0 : index
    %c0_14 = arith.constant 0 : index
    %32 = vector.load %arg5[%c0_13, %c0_14] : memref<16x16xf32, #tpu.memory_space<vmem>>, vector<16x16xf32>
    %33 = arith.addf %31, %32 : vector<16x16xf32>
    %cst_15 = arith.constant 0.000000e+00 : f32
    %34 = vector.broadcast %cst_15 : f32 to vector<16x16xf32>
    %35 = arith.maximumf %33, %34 : vector<16x16xf32>
    %c0_16 = arith.constant 0 : index
    %c0_17 = arith.constant 0 : index
    %36 = vector.load %arg6[%c0_16, %c0_17] : memref<16x16xf32, #tpu.memory_space<vmem>>, vector<16x16xf32>
    tpu.vector_store %arg6[%c0_16, %c0_17], %35 {strides = array<i32>} : memref<16x16xf32, #tpu.memory_space<vmem>>, vector<16x16xf32>,
    return
  }
  func.func @transform_0(%arg0: i32) -> (i32, i32) {
    %c0_i32 = arith.constant 0 : i32
    %c0_i32_0 = arith.constant 0 : i32
    %c0_i32_1 = arith.constant 0 : i32
    return %c0_i32, %c0_i32_0 : i32, i32
  }
  func.func @transform_1(%arg0: i32) -> (i32, i32) {
    %c0_i32 = arith.constant 0 : i32
    %c0_i32_0 = arith.constant 0 : i32
    %c0_i32_1 = arith.constant 0 : i32
    return %c0_i32, %c0_i32_0 : i32, i32
  }
  func.func @transform_2(%arg0: i32) -> (i32, i32) {
    %c0_i32 = arith.constant 0 : i32
    %c0_i32_0 = arith.constant 0 : i32
    %c0_i32_1 = arith.constant 0 : i32
    return %c0_i32, %c0_i32_0 : i32, i32
  }
  func.func @transform_3(%arg0: i32) -> (i32, i32) {
    %c0_i32 = arith.constant 0 : i32
    %c0_i32_0 = arith.constant 0 : i32
    %c0_i32_1 = arith.constant 0 : i32
    return %c0_i32, %c0_i32_0 : i32, i32
  }
  func.func @transform_4(%arg0: i32) -> (i32, i32) {
    %c0_i32 = arith.constant 0 : i32
    %c0_i32_0 = arith.constant 0 : i32
    %c0_i32_1 = arith.constant 0 : i32
    return %c0_i32, %c0_i32_0 : i32, i32
  }
  func.func @transform_5(%arg0: i32) -> (i32, i32) {
    %c0_i32 = arith.constant 0 : i32
    %c0_i32_0 = arith.constant 0 : i32
    %c0_i32_1 = arith.constant 0 : i32
    return %c0_i32, %c0_i32_0 : i32, i32
  }
}

module attributes {stable_mosaic.version = 11 : i64} {
  func.func @kernel(%arg0: i32, %arg1: memref<16x144xbf16, #tpu.memory_space<vmem>>, %arg2: memref<144x128xbf16, #tpu.memory_space<vmem>>, %arg3: memref<1x128xf32, #tpu.memory_space<vmem>>, %arg4: memref<1x128xf32, #tpu.memory_space<vmem>>, %arg5: memref<16x32xf32, #tpu.memory_space<vmem>>) attributes {dimension_semantics = [#tpu.dimension_semantics<arbitrary>], iteration_bounds = array<i64: 1>, scalar_prefetch = 0 : i64, scratch_operands = 0 : i64, tpu.core_type = #tpu.core_type<tc>, window_params = [{pipeline_mode = #tpu.pipeline_mode<synchronous>, transform_indices = @transform_0, window_bounds = array<i64: 16, 144>}, {pipeline_mode = #tpu.pipeline_mode<synchronous>, transform_indices = @transform_1, window_bounds = array<i64: 144, 128>}, {pipeline_mode = #tpu.pipeline_mode<synchronous>, transform_indices = @transform_2, window_bounds = array<i64: 1, 128>}, {pipeline_mode = #tpu.pipeline_mode<synchronous>, transform_indices = @transform_3, window_bounds = array<i64: 1, 128>}, {pipeline_mode = #tpu.pipeline_mode<synchronous>, transform_indices = @transform_4, window_bounds = array<i64: 16, 32>}]} {
    %c0 = arith.constant 0 : index
    %c0_0 = arith.constant 0 : index
    %0 = vector.load %arg1[%c0, %c0_0] : memref<16x144xbf16, #tpu.memory_space<vmem>>, vector<16x144xbf16>
    %c0_1 = arith.constant 0 : index
    %c0_2 = arith.constant 0 : index
    %1 = vector.load %arg2[%c0_1, %c0_2] : memref<144x128xbf16, #tpu.memory_space<vmem>>, vector<144x128xbf16>
    %cst = arith.constant dense<0.000000e+00> : vector<16x128xf32>
    %2 = tpu.matmul %0, %1, %cst {dimension_numbers = #tpu.dot_dimension_numbers<[1], [0], [0], [1], [0, 0, 1, 1], [], []>} : vector<16x144xbf16>, vector<144x128xbf16>, vector<16x128xf32> -> vector<16x128xf32>
    %cst_3 = arith.constant dense<0.000000e+00> : vector<128xf32>
    %3 = vector.multi_reduction <add>, %2, %cst_3 [0] : vector<16x128xf32> to vector<128xf32>
    %4 = vector.shape_cast %3 : vector<128xf32> to vector<1x128xf32>
    %cst_4 = arith.constant 1.250000e-01 : f32
    %5 = vector.broadcast %cst_4 : f32 to vector<1x128xf32>
    %6 = arith.mulf %4, %5 : vector<1x128xf32>
    %7 = vector.broadcast %6 : vector<1x128xf32> to vector<16x128xf32>
    %8 = arith.subf %2, %7 : vector<16x128xf32>
    %9 = tpu.iota {dimensions = array<i32: 0>} : vector<16x128xi32>
    %c8_i32 = arith.constant 8 : i32
    %10 = vector.broadcast %c8_i32 : i32 to vector<16x128xi32>
    %11 = arith.cmpi slt, %9, %10 : vector<16x128xi32>
    %12 = arith.mulf %8, %8 : vector<16x128xf32>
    %cst_5 = arith.constant 0.000000e+00 : f32
    %13 = vector.broadcast %cst_5 : f32 to vector<16x128xf32>
    %14 = arith.select %11, %12, %13 : vector<16x128xi1>, vector<16x128xf32>
    %cst_6 = arith.constant dense<0.000000e+00> : vector<128xf32>
    %15 = vector.multi_reduction <add>, %14, %cst_6 [0] : vector<16x128xf32> to vector<128xf32>
    %16 = vector.shape_cast %15 : vector<128xf32> to vector<1x128xf32>
    %cst_7 = arith.constant 1.250000e-01 : f32
    %17 = vector.broadcast %cst_7 : f32 to vector<1x128xf32>
    %18 = arith.mulf %16, %17 : vector<1x128xf32>
    %c0_8 = arith.constant 0 : index
    %c0_9 = arith.constant 0 : index
    %19 = vector.load %arg3[%c0_8, %c0_9] : memref<1x128xf32, #tpu.memory_space<vmem>>, vector<1x128xf32>
    %cst_10 = arith.constant 9.99999974E-6 : f32
    %20 = vector.broadcast %cst_10 : f32 to vector<1x128xf32>
    %21 = arith.addf %18, %20 : vector<1x128xf32>
    %22 = math.rsqrt %21 : vector<1x128xf32>
    %23 = arith.mulf %19, %22 : vector<1x128xf32>
    %c0_11 = arith.constant 0 : index
    %c0_12 = arith.constant 0 : index
    %24 = vector.load %arg4[%c0_11, %c0_12] : memref<1x128xf32, #tpu.memory_space<vmem>>, vector<1x128xf32>
    %25 = arith.mulf %6, %23 : vector<1x128xf32>
    %26 = arith.subf %24, %25 : vector<1x128xf32>
    %27 = vector.broadcast %23 : vector<1x128xf32> to vector<16x128xf32>
    %28 = arith.mulf %2, %27 : vector<16x128xf32>
    %29 = vector.broadcast %26 : vector<1x128xf32> to vector<16x128xf32>
    %30 = arith.addf %28, %29 : vector<16x128xf32>
    %31 = vector.extract_strided_slice %30 {offsets = [0, 0], sizes = [16, 32], strides = [1, 1]} : vector<16x128xf32> to vector<16x32xf32>
    %cst_13 = arith.constant 0.000000e+00 : f32
    %32 = vector.broadcast %cst_13 : f32 to vector<16x32xf32>
    %33 = arith.maximumf %31, %32 : vector<16x32xf32>
    %c0_14 = arith.constant 0 : index
    %c0_15 = arith.constant 0 : index
    %34 = vector.load %arg5[%c0_14, %c0_15] : memref<16x32xf32, #tpu.memory_space<vmem>>, vector<16x32xf32>
    tpu.vector_store %arg5[%c0_14, %c0_15], %33 {strides = array<i32>} : memref<16x32xf32, #tpu.memory_space<vmem>>, vector<16x32xf32>,
    return
  }
  func.func @transform_0(%arg0: i32) -> (i32, i32) {
    %c0_i32 = arith.constant 0 : i32
    %c0_i32_0 = arith.constant 0 : i32
    %c0_i32_1 = arith.constant 0 : i32
    return %c0_i32, %c0_i32_0 : i32, i32
  }
  func.func @transform_1(%arg0: i32) -> (i32, i32) {
    %c0_i32 = arith.constant 0 : i32
    %c0_i32_0 = arith.constant 0 : i32
    %c0_i32_1 = arith.constant 0 : i32
    return %c0_i32, %c0_i32_0 : i32, i32
  }
  func.func @transform_2(%arg0: i32) -> (i32, i32) {
    %c0_i32 = arith.constant 0 : i32
    %c0_i32_0 = arith.constant 0 : i32
    %c0_i32_1 = arith.constant 0 : i32
    return %c0_i32, %c0_i32_0 : i32, i32
  }
  func.func @transform_3(%arg0: i32) -> (i32, i32) {
    %c0_i32 = arith.constant 0 : i32
    %c0_i32_0 = arith.constant 0 : i32
    %c0_i32_1 = arith.constant 0 : i32
    return %c0_i32, %c0_i32_0 : i32, i32
  }
  func.func @transform_4(%arg0: i32) -> (i32, i32) {
    %c0_i32 = arith.constant 0 : i32
    %c0_i32_0 = arith.constant 0 : i32
    %c0_i32_1 = arith.constant 0 : i32
    return %c0_i32, %c0_i32_0 : i32, i32
  }
}

module attributes {stable_mosaic.version = 11 : i64} {
  func.func @kernel(%arg0: i32, %arg1: memref<16x16xbf16, #tpu.memory_space<vmem>>, %arg2: memref<16x128xbf16, #tpu.memory_space<vmem>>, %arg3: memref<1x128xf32, #tpu.memory_space<vmem>>, %arg4: memref<1x128xf32, #tpu.memory_space<vmem>>, %arg5: memref<16x32xf32, #tpu.memory_space<vmem>>) attributes {dimension_semantics = [#tpu.dimension_semantics<arbitrary>], iteration_bounds = array<i64: 1>, scalar_prefetch = 0 : i64, scratch_operands = 0 : i64, tpu.core_type = #tpu.core_type<tc>, window_params = [{pipeline_mode = #tpu.pipeline_mode<synchronous>, transform_indices = @transform_0, window_bounds = array<i64: 16, 16>}, {pipeline_mode = #tpu.pipeline_mode<synchronous>, transform_indices = @transform_1, window_bounds = array<i64: 16, 128>}, {pipeline_mode = #tpu.pipeline_mode<synchronous>, transform_indices = @transform_2, window_bounds = array<i64: 1, 128>}, {pipeline_mode = #tpu.pipeline_mode<synchronous>, transform_indices = @transform_3, window_bounds = array<i64: 1, 128>}, {pipeline_mode = #tpu.pipeline_mode<synchronous>, transform_indices = @transform_4, window_bounds = array<i64: 16, 32>}]} {
    %c0 = arith.constant 0 : index
    %c0_0 = arith.constant 0 : index
    %0 = vector.load %arg1[%c0, %c0_0] : memref<16x16xbf16, #tpu.memory_space<vmem>>, vector<16x16xbf16>
    %c0_1 = arith.constant 0 : index
    %c0_2 = arith.constant 0 : index
    %1 = vector.load %arg2[%c0_1, %c0_2] : memref<16x128xbf16, #tpu.memory_space<vmem>>, vector<16x128xbf16>
    %cst = arith.constant dense<0.000000e+00> : vector<16x128xf32>
    %2 = tpu.matmul %0, %1, %cst {dimension_numbers = #tpu.dot_dimension_numbers<[1], [0], [0], [1], [0, 0, 1, 1], [], []>} : vector<16x16xbf16>, vector<16x128xbf16>, vector<16x128xf32> -> vector<16x128xf32>
    %cst_3 = arith.constant dense<0.000000e+00> : vector<128xf32>
    %3 = vector.multi_reduction <add>, %2, %cst_3 [0] : vector<16x128xf32> to vector<128xf32>
    %4 = vector.shape_cast %3 : vector<128xf32> to vector<1x128xf32>
    %cst_4 = arith.constant 1.250000e-01 : f32
    %5 = vector.broadcast %cst_4 : f32 to vector<1x128xf32>
    %6 = arith.mulf %4, %5 : vector<1x128xf32>
    %7 = vector.broadcast %6 : vector<1x128xf32> to vector<16x128xf32>
    %8 = arith.subf %2, %7 : vector<16x128xf32>
    %9 = tpu.iota {dimensions = array<i32: 0>} : vector<16x128xi32>
    %c8_i32 = arith.constant 8 : i32
    %10 = vector.broadcast %c8_i32 : i32 to vector<16x128xi32>
    %11 = arith.cmpi slt, %9, %10 : vector<16x128xi32>
    %12 = arith.mulf %8, %8 : vector<16x128xf32>
    %cst_5 = arith.constant 0.000000e+00 : f32
    %13 = vector.broadcast %cst_5 : f32 to vector<16x128xf32>
    %14 = arith.select %11, %12, %13 : vector<16x128xi1>, vector<16x128xf32>
    %cst_6 = arith.constant dense<0.000000e+00> : vector<128xf32>
    %15 = vector.multi_reduction <add>, %14, %cst_6 [0] : vector<16x128xf32> to vector<128xf32>
    %16 = vector.shape_cast %15 : vector<128xf32> to vector<1x128xf32>
    %cst_7 = arith.constant 1.250000e-01 : f32
    %17 = vector.broadcast %cst_7 : f32 to vector<1x128xf32>
    %18 = arith.mulf %16, %17 : vector<1x128xf32>
    %c0_8 = arith.constant 0 : index
    %c0_9 = arith.constant 0 : index
    %19 = vector.load %arg3[%c0_8, %c0_9] : memref<1x128xf32, #tpu.memory_space<vmem>>, vector<1x128xf32>
    %cst_10 = arith.constant 9.99999974E-6 : f32
    %20 = vector.broadcast %cst_10 : f32 to vector<1x128xf32>
    %21 = arith.addf %18, %20 : vector<1x128xf32>
    %22 = math.rsqrt %21 : vector<1x128xf32>
    %23 = arith.mulf %19, %22 : vector<1x128xf32>
    %c0_11 = arith.constant 0 : index
    %c0_12 = arith.constant 0 : index
    %24 = vector.load %arg4[%c0_11, %c0_12] : memref<1x128xf32, #tpu.memory_space<vmem>>, vector<1x128xf32>
    %25 = arith.mulf %6, %23 : vector<1x128xf32>
    %26 = arith.subf %24, %25 : vector<1x128xf32>
    %27 = vector.broadcast %23 : vector<1x128xf32> to vector<16x128xf32>
    %28 = arith.mulf %2, %27 : vector<16x128xf32>
    %29 = vector.broadcast %26 : vector<1x128xf32> to vector<16x128xf32>
    %30 = arith.addf %28, %29 : vector<16x128xf32>
    %31 = vector.extract_strided_slice %30 {offsets = [0, 0], sizes = [16, 32], strides = [1, 1]} : vector<16x128xf32> to vector<16x32xf32>
    %c0_13 = arith.constant 0 : index
    %c0_14 = arith.constant 0 : index
    %32 = vector.load %arg5[%c0_13, %c0_14] : memref<16x32xf32, #tpu.memory_space<vmem>>, vector<16x32xf32>
    tpu.vector_store %arg5[%c0_13, %c0_14], %31 {strides = array<i32>} : memref<16x32xf32, #tpu.memory_space<vmem>>, vector<16x32xf32>,
    return
  }
  func.func @transform_0(%arg0: i32) -> (i32, i32) {
    %c0_i32 = arith.constant 0 : i32
    %c0_i32_0 = arith.constant 0 : i32
    %c0_i32_1 = arith.constant 0 : i32
    return %c0_i32, %c0_i32_0 : i32, i32
  }
  func.func @transform_1(%arg0: i32) -> (i32, i32) {
    %c0_i32 = arith.constant 0 : i32
    %c0_i32_0 = arith.constant 0 : i32
    %c0_i32_1 = arith.constant 0 : i32
    return %c0_i32, %c0_i32_0 : i32, i32
  }
  func.func @transform_2(%arg0: i32) -> (i32, i32) {
    %c0_i32 = arith.constant 0 : i32
    %c0_i32_0 = arith.constant 0 : i32
    %c0_i32_1 = arith.constant 0 : i32
    return %c0_i32, %c0_i32_0 : i32, i32
  }
  func.func @transform_3(%arg0: i32) -> (i32, i32) {
    %c0_i32 = arith.constant 0 : i32
    %c0_i32_0 = arith.constant 0 : i32
    %c0_i32_1 = arith.constant 0 : i32
    return %c0_i32, %c0_i32_0 : i32, i32
  }
  func.func @transform_4(%arg0: i32) -> (i32, i32) {
    %c0_i32 = arith.constant 0 : i32
    %c0_i32_0 = arith.constant 0 : i32
    %c0_i32_1 = arith.constant 0 : i32
    return %c0_i32, %c0_i32_0 : i32, i32
  }
}

module attributes {stable_mosaic.version = 11 : i64} {
  func.func @kernel(%arg0: i32, %arg1: memref<16x288xbf16, #tpu.memory_space<vmem>>, %arg2: memref<288x128xbf16, #tpu.memory_space<vmem>>, %arg3: memref<1x128xf32, #tpu.memory_space<vmem>>, %arg4: memref<1x128xf32, #tpu.memory_space<vmem>>, %arg5: memref<16x32xf32, #tpu.memory_space<vmem>>, %arg6: memref<16x32xf32, #tpu.memory_space<vmem>>) attributes {dimension_semantics = [#tpu.dimension_semantics<arbitrary>], iteration_bounds = array<i64: 1>, scalar_prefetch = 0 : i64, scratch_operands = 0 : i64, tpu.core_type = #tpu.core_type<tc>, window_params = [{pipeline_mode = #tpu.pipeline_mode<synchronous>, transform_indices = @transform_0, window_bounds = array<i64: 16, 288>}, {pipeline_mode = #tpu.pipeline_mode<synchronous>, transform_indices = @transform_1, window_bounds = array<i64: 288, 128>}, {pipeline_mode = #tpu.pipeline_mode<synchronous>, transform_indices = @transform_2, window_bounds = array<i64: 1, 128>}, {pipeline_mode = #tpu.pipeline_mode<synchronous>, transform_indices = @transform_3, window_bounds = array<i64: 1, 128>}, {pipeline_mode = #tpu.pipeline_mode<synchronous>, transform_indices = @transform_4, window_bounds = array<i64: 16, 32>}, {pipeline_mode = #tpu.pipeline_mode<synchronous>, transform_indices = @transform_5, window_bounds = array<i64: 16, 32>}]} {
    %c0 = arith.constant 0 : index
    %c0_0 = arith.constant 0 : index
    %0 = vector.load %arg1[%c0, %c0_0] : memref<16x288xbf16, #tpu.memory_space<vmem>>, vector<16x288xbf16>
    %c0_1 = arith.constant 0 : index
    %c0_2 = arith.constant 0 : index
    %1 = vector.load %arg2[%c0_1, %c0_2] : memref<288x128xbf16, #tpu.memory_space<vmem>>, vector<288x128xbf16>
    %cst = arith.constant dense<0.000000e+00> : vector<16x128xf32>
    %2 = tpu.matmul %0, %1, %cst {dimension_numbers = #tpu.dot_dimension_numbers<[1], [0], [0], [1], [0, 0, 1, 1], [], []>} : vector<16x288xbf16>, vector<288x128xbf16>, vector<16x128xf32> -> vector<16x128xf32>
    %cst_3 = arith.constant dense<0.000000e+00> : vector<128xf32>
    %3 = vector.multi_reduction <add>, %2, %cst_3 [0] : vector<16x128xf32> to vector<128xf32>
    %4 = vector.shape_cast %3 : vector<128xf32> to vector<1x128xf32>
    %cst_4 = arith.constant 1.250000e-01 : f32
    %5 = vector.broadcast %cst_4 : f32 to vector<1x128xf32>
    %6 = arith.mulf %4, %5 : vector<1x128xf32>
    %7 = vector.broadcast %6 : vector<1x128xf32> to vector<16x128xf32>
    %8 = arith.subf %2, %7 : vector<16x128xf32>
    %9 = tpu.iota {dimensions = array<i32: 0>} : vector<16x128xi32>
    %c8_i32 = arith.constant 8 : i32
    %10 = vector.broadcast %c8_i32 : i32 to vector<16x128xi32>
    %11 = arith.cmpi slt, %9, %10 : vector<16x128xi32>
    %12 = arith.mulf %8, %8 : vector<16x128xf32>
    %cst_5 = arith.constant 0.000000e+00 : f32
    %13 = vector.broadcast %cst_5 : f32 to vector<16x128xf32>
    %14 = arith.select %11, %12, %13 : vector<16x128xi1>, vector<16x128xf32>
    %cst_6 = arith.constant dense<0.000000e+00> : vector<128xf32>
    %15 = vector.multi_reduction <add>, %14, %cst_6 [0] : vector<16x128xf32> to vector<128xf32>
    %16 = vector.shape_cast %15 : vector<128xf32> to vector<1x128xf32>
    %cst_7 = arith.constant 1.250000e-01 : f32
    %17 = vector.broadcast %cst_7 : f32 to vector<1x128xf32>
    %18 = arith.mulf %16, %17 : vector<1x128xf32>
    %c0_8 = arith.constant 0 : index
    %c0_9 = arith.constant 0 : index
    %19 = vector.load %arg3[%c0_8, %c0_9] : memref<1x128xf32, #tpu.memory_space<vmem>>, vector<1x128xf32>
    %cst_10 = arith.constant 9.99999974E-6 : f32
    %20 = vector.broadcast %cst_10 : f32 to vector<1x128xf32>
    %21 = arith.addf %18, %20 : vector<1x128xf32>
    %22 = math.rsqrt %21 : vector<1x128xf32>
    %23 = arith.mulf %19, %22 : vector<1x128xf32>
    %c0_11 = arith.constant 0 : index
    %c0_12 = arith.constant 0 : index
    %24 = vector.load %arg4[%c0_11, %c0_12] : memref<1x128xf32, #tpu.memory_space<vmem>>, vector<1x128xf32>
    %25 = arith.mulf %6, %23 : vector<1x128xf32>
    %26 = arith.subf %24, %25 : vector<1x128xf32>
    %27 = vector.broadcast %23 : vector<1x128xf32> to vector<16x128xf32>
    %28 = arith.mulf %2, %27 : vector<16x128xf32>
    %29 = vector.broadcast %26 : vector<1x128xf32> to vector<16x128xf32>
    %30 = arith.addf %28, %29 : vector<16x128xf32>
    %31 = vector.extract_strided_slice %30 {offsets = [0, 0], sizes = [16, 32], strides = [1, 1]} : vector<16x128xf32> to vector<16x32xf32>
    %c0_13 = arith.constant 0 : index
    %c0_14 = arith.constant 0 : index
    %32 = vector.load %arg5[%c0_13, %c0_14] : memref<16x32xf32, #tpu.memory_space<vmem>>, vector<16x32xf32>
    %33 = arith.addf %31, %32 : vector<16x32xf32>
    %cst_15 = arith.constant 0.000000e+00 : f32
    %34 = vector.broadcast %cst_15 : f32 to vector<16x32xf32>
    %35 = arith.maximumf %33, %34 : vector<16x32xf32>
    %c0_16 = arith.constant 0 : index
    %c0_17 = arith.constant 0 : index
    %36 = vector.load %arg6[%c0_16, %c0_17] : memref<16x32xf32, #tpu.memory_space<vmem>>, vector<16x32xf32>
    tpu.vector_store %arg6[%c0_16, %c0_17], %35 {strides = array<i32>} : memref<16x32xf32, #tpu.memory_space<vmem>>, vector<16x32xf32>,
    return
  }
  func.func @transform_0(%arg0: i32) -> (i32, i32) {
    %c0_i32 = arith.constant 0 : i32
    %c0_i32_0 = arith.constant 0 : i32
    %c0_i32_1 = arith.constant 0 : i32
    return %c0_i32, %c0_i32_0 : i32, i32
  }
  func.func @transform_1(%arg0: i32) -> (i32, i32) {
    %c0_i32 = arith.constant 0 : i32
    %c0_i32_0 = arith.constant 0 : i32
    %c0_i32_1 = arith.constant 0 : i32
    return %c0_i32, %c0_i32_0 : i32, i32
  }
  func.func @transform_2(%arg0: i32) -> (i32, i32) {
    %c0_i32 = arith.constant 0 : i32
    %c0_i32_0 = arith.constant 0 : i32
    %c0_i32_1 = arith.constant 0 : i32
    return %c0_i32, %c0_i32_0 : i32, i32
  }
  func.func @transform_3(%arg0: i32) -> (i32, i32) {
    %c0_i32 = arith.constant 0 : i32
    %c0_i32_0 = arith.constant 0 : i32
    %c0_i32_1 = arith.constant 0 : i32
    return %c0_i32, %c0_i32_0 : i32, i32
  }
  func.func @transform_4(%arg0: i32) -> (i32, i32) {
    %c0_i32 = arith.constant 0 : i32
    %c0_i32_0 = arith.constant 0 : i32
    %c0_i32_1 = arith.constant 0 : i32
    return %c0_i32, %c0_i32_0 : i32, i32
  }
  func.func @transform_5(%arg0: i32) -> (i32, i32) {
    %c0_i32 = arith.constant 0 : i32
    %c0_i32_0 = arith.constant 0 : i32
    %c0_i32_1 = arith.constant 0 : i32
    return %c0_i32, %c0_i32_0 : i32, i32
  }
}

module attributes {stable_mosaic.version = 11 : i64} {
  func.func @kernel(%arg0: i32, %arg1: memref<16x288xbf16, #tpu.memory_space<vmem>>, %arg2: memref<288x128xbf16, #tpu.memory_space<vmem>>, %arg3: memref<1x128xf32, #tpu.memory_space<vmem>>, %arg4: memref<1x128xf32, #tpu.memory_space<vmem>>, %arg5: memref<16x32xf32, #tpu.memory_space<vmem>>) attributes {dimension_semantics = [#tpu.dimension_semantics<arbitrary>], iteration_bounds = array<i64: 1>, scalar_prefetch = 0 : i64, scratch_operands = 0 : i64, tpu.core_type = #tpu.core_type<tc>, window_params = [{pipeline_mode = #tpu.pipeline_mode<synchronous>, transform_indices = @transform_0, window_bounds = array<i64: 16, 288>}, {pipeline_mode = #tpu.pipeline_mode<synchronous>, transform_indices = @transform_1, window_bounds = array<i64: 288, 128>}, {pipeline_mode = #tpu.pipeline_mode<synchronous>, transform_indices = @transform_2, window_bounds = array<i64: 1, 128>}, {pipeline_mode = #tpu.pipeline_mode<synchronous>, transform_indices = @transform_3, window_bounds = array<i64: 1, 128>}, {pipeline_mode = #tpu.pipeline_mode<synchronous>, transform_indices = @transform_4, window_bounds = array<i64: 16, 32>}]} {
    %c0 = arith.constant 0 : index
    %c0_0 = arith.constant 0 : index
    %0 = vector.load %arg1[%c0, %c0_0] : memref<16x288xbf16, #tpu.memory_space<vmem>>, vector<16x288xbf16>
    %c0_1 = arith.constant 0 : index
    %c0_2 = arith.constant 0 : index
    %1 = vector.load %arg2[%c0_1, %c0_2] : memref<288x128xbf16, #tpu.memory_space<vmem>>, vector<288x128xbf16>
    %cst = arith.constant dense<0.000000e+00> : vector<16x128xf32>
    %2 = tpu.matmul %0, %1, %cst {dimension_numbers = #tpu.dot_dimension_numbers<[1], [0], [0], [1], [0, 0, 1, 1], [], []>} : vector<16x288xbf16>, vector<288x128xbf16>, vector<16x128xf32> -> vector<16x128xf32>
    %cst_3 = arith.constant dense<0.000000e+00> : vector<128xf32>
    %3 = vector.multi_reduction <add>, %2, %cst_3 [0] : vector<16x128xf32> to vector<128xf32>
    %4 = vector.shape_cast %3 : vector<128xf32> to vector<1x128xf32>
    %cst_4 = arith.constant 1.250000e-01 : f32
    %5 = vector.broadcast %cst_4 : f32 to vector<1x128xf32>
    %6 = arith.mulf %4, %5 : vector<1x128xf32>
    %7 = vector.broadcast %6 : vector<1x128xf32> to vector<16x128xf32>
    %8 = arith.subf %2, %7 : vector<16x128xf32>
    %9 = tpu.iota {dimensions = array<i32: 0>} : vector<16x128xi32>
    %c8_i32 = arith.constant 8 : i32
    %10 = vector.broadcast %c8_i32 : i32 to vector<16x128xi32>
    %11 = arith.cmpi slt, %9, %10 : vector<16x128xi32>
    %12 = arith.mulf %8, %8 : vector<16x128xf32>
    %cst_5 = arith.constant 0.000000e+00 : f32
    %13 = vector.broadcast %cst_5 : f32 to vector<16x128xf32>
    %14 = arith.select %11, %12, %13 : vector<16x128xi1>, vector<16x128xf32>
    %cst_6 = arith.constant dense<0.000000e+00> : vector<128xf32>
    %15 = vector.multi_reduction <add>, %14, %cst_6 [0] : vector<16x128xf32> to vector<128xf32>
    %16 = vector.shape_cast %15 : vector<128xf32> to vector<1x128xf32>
    %cst_7 = arith.constant 1.250000e-01 : f32
    %17 = vector.broadcast %cst_7 : f32 to vector<1x128xf32>
    %18 = arith.mulf %16, %17 : vector<1x128xf32>
    %c0_8 = arith.constant 0 : index
    %c0_9 = arith.constant 0 : index
    %19 = vector.load %arg3[%c0_8, %c0_9] : memref<1x128xf32, #tpu.memory_space<vmem>>, vector<1x128xf32>
    %cst_10 = arith.constant 9.99999974E-6 : f32
    %20 = vector.broadcast %cst_10 : f32 to vector<1x128xf32>
    %21 = arith.addf %18, %20 : vector<1x128xf32>
    %22 = math.rsqrt %21 : vector<1x128xf32>
    %23 = arith.mulf %19, %22 : vector<1x128xf32>
    %c0_11 = arith.constant 0 : index
    %c0_12 = arith.constant 0 : index
    %24 = vector.load %arg4[%c0_11, %c0_12] : memref<1x128xf32, #tpu.memory_space<vmem>>, vector<1x128xf32>
    %25 = arith.mulf %6, %23 : vector<1x128xf32>
    %26 = arith.subf %24, %25 : vector<1x128xf32>
    %27 = vector.broadcast %23 : vector<1x128xf32> to vector<16x128xf32>
    %28 = arith.mulf %2, %27 : vector<16x128xf32>
    %29 = vector.broadcast %26 : vector<1x128xf32> to vector<16x128xf32>
    %30 = arith.addf %28, %29 : vector<16x128xf32>
    %31 = vector.extract_strided_slice %30 {offsets = [0, 0], sizes = [16, 32], strides = [1, 1]} : vector<16x128xf32> to vector<16x32xf32>
    %cst_13 = arith.constant 0.000000e+00 : f32
    %32 = vector.broadcast %cst_13 : f32 to vector<16x32xf32>
    %33 = arith.maximumf %31, %32 : vector<16x32xf32>
    %c0_14 = arith.constant 0 : index
    %c0_15 = arith.constant 0 : index
    %34 = vector.load %arg5[%c0_14, %c0_15] : memref<16x32xf32, #tpu.memory_space<vmem>>, vector<16x32xf32>
    tpu.vector_store %arg5[%c0_14, %c0_15], %33 {strides = array<i32>} : memref<16x32xf32, #tpu.memory_space<vmem>>, vector<16x32xf32>,
    return
  }
  func.func @transform_0(%arg0: i32) -> (i32, i32) {
    %c0_i32 = arith.constant 0 : i32
    %c0_i32_0 = arith.constant 0 : i32
    %c0_i32_1 = arith.constant 0 : i32
    return %c0_i32, %c0_i32_0 : i32, i32
  }
  func.func @transform_1(%arg0: i32) -> (i32, i32) {
    %c0_i32 = arith.constant 0 : i32
    %c0_i32_0 = arith.constant 0 : i32
    %c0_i32_1 = arith.constant 0 : i32
    return %c0_i32, %c0_i32_0 : i32, i32
  }
  func.func @transform_2(%arg0: i32) -> (i32, i32) {
    %c0_i32 = arith.constant 0 : i32
    %c0_i32_0 = arith.constant 0 : i32
    %c0_i32_1 = arith.constant 0 : i32
    return %c0_i32, %c0_i32_0 : i32, i32
  }
  func.func @transform_3(%arg0: i32) -> (i32, i32) {
    %c0_i32 = arith.constant 0 : i32
    %c0_i32_0 = arith.constant 0 : i32
    %c0_i32_1 = arith.constant 0 : i32
    return %c0_i32, %c0_i32_0 : i32, i32
  }
  func.func @transform_4(%arg0: i32) -> (i32, i32) {
    %c0_i32 = arith.constant 0 : i32
    %c0_i32_0 = arith.constant 0 : i32
    %c0_i32_1 = arith.constant 0 : i32
    return %c0_i32, %c0_i32_0 : i32, i32
  }
}

module attributes {stable_mosaic.version = 11 : i64} {
  func.func @kernel(%arg0: i32, %arg1: memref<16x32xbf16, #tpu.memory_space<vmem>>, %arg2: memref<32x128xbf16, #tpu.memory_space<vmem>>, %arg3: memref<1x128xf32, #tpu.memory_space<vmem>>, %arg4: memref<16x1xf32, #tpu.memory_space<vmem>>) attributes {dimension_semantics = [#tpu.dimension_semantics<parallel>], iteration_bounds = array<i64: 1>, scalar_prefetch = 0 : i64, scratch_operands = 0 : i64, tpu.core_type = #tpu.core_type<tc>, window_params = [{transform_indices = @transform_0, window_bounds = array<i64: 16, 32>}, {pipeline_mode = #tpu.pipeline_mode<synchronous>, transform_indices = @transform_1, window_bounds = array<i64: 32, 128>}, {pipeline_mode = #tpu.pipeline_mode<synchronous>, transform_indices = @transform_2, window_bounds = array<i64: 1, 128>}, {transform_indices = @transform_3, window_bounds = array<i64: 16, 1>}]} {
    %c0 = arith.constant 0 : index
    %c0_0 = arith.constant 0 : index
    %0 = vector.load %arg1[%c0, %c0_0] : memref<16x32xbf16, #tpu.memory_space<vmem>>, vector<16x32xbf16>
    %c0_1 = arith.constant 0 : index
    %c0_2 = arith.constant 0 : index
    %1 = vector.load %arg2[%c0_1, %c0_2] : memref<32x128xbf16, #tpu.memory_space<vmem>>, vector<32x128xbf16>
    %cst = arith.constant dense<0.000000e+00> : vector<16x128xf32>
    %2 = tpu.matmul %0, %1, %cst {dimension_numbers = #tpu.dot_dimension_numbers<[1], [0], [0], [1], [0, 0, 1, 1], [], []>} : vector<16x32xbf16>, vector<32x128xbf16>, vector<16x128xf32> -> vector<16x128xf32>
    %c0_3 = arith.constant 0 : index
    %c0_4 = arith.constant 0 : index
    %3 = vector.load %arg3[%c0_3, %c0_4] : memref<1x128xf32, #tpu.memory_space<vmem>>, vector<1x128xf32>
    %4 = vector.broadcast %3 : vector<1x128xf32> to vector<16x128xf32>
    %5 = arith.addf %2, %4 : vector<16x128xf32>
    %6 = vector.extract_strided_slice %5 {offsets = [0, 0], sizes = [16, 1], strides = [1, 1]} : vector<16x128xf32> to vector<16x1xf32>
    %7 = arith.negf %6 : vector<16x1xf32>
    %8 = math.exp %7 : vector<16x1xf32>
    %cst_5 = arith.constant 1.000000e+00 : f32
    %9 = vector.broadcast %cst_5 : f32 to vector<16x1xf32>
    %10 = arith.addf %9, %8 : vector<16x1xf32>
    %11 = arith.divf %9, %10 : vector<16x1xf32>
    %c0_6 = arith.constant 0 : index
    %c0_7 = arith.constant 0 : index
    %12 = vector.load %arg4[%c0_6, %c0_7] : memref<16x1xf32, #tpu.memory_space<vmem>>, vector<16x1xf32>
    tpu.vector_store %arg4[%c0_6, %c0_7], %11 {strides = array<i32>} : memref<16x1xf32, #tpu.memory_space<vmem>>, vector<16x1xf32>,
    return
  }
  func.func @transform_0(%arg0: i32) -> (i32, i32) {
    %c0_i32 = arith.constant 0 : i32
    %c0_i32_0 = arith.constant 0 : i32
    return %arg0, %c0_i32 : i32, i32
  }
  func.func @transform_1(%arg0: i32) -> (i32, i32) {
    %c0_i32 = arith.constant 0 : i32
    %c0_i32_0 = arith.constant 0 : i32
    %c0_i32_1 = arith.constant 0 : i32
    return %c0_i32, %c0_i32_0 : i32, i32
  }
  func.func @transform_2(%arg0: i32) -> (i32, i32) {
    %c0_i32 = arith.constant 0 : i32
    %c0_i32_0 = arith.constant 0 : i32
    %c0_i32_1 = arith.constant 0 : i32
    return %c0_i32, %c0_i32_0 : i32, i32
  }
  func.func @transform_3(%arg0: i32) -> (i32, i32) {
    %c0_i32 = arith.constant 0 : i32
    %c0_i32_0 = arith.constant 0 : i32
    return %arg0, %c0_i32 : i32, i32
  }
}

</mosaic_0001>

<llo_original>
// kernel: drn_forward.18
$region0: #{drn_forward.18}
  #allocation0 [shape = 'u32[]', space=smem, size = 0x4, offset = 0x4, fixed_abs, tag = 'smem constant byte address 0x4 - core index']
  #allocation1 [shape = 'u32[144,128]{1,0:T(1,128)}', space=vmem, size = 0x12000, scoped, tag = 'internal scratch']
  %s0 = inlined_call_operand.vmem [shape: bf16[512,80], index: 0, kind: input, shape index: {}]
  %s1 = inlined_call_operand.vmem [shape: bf16[80,128], index: 1, kind: input, shape index: {}]
  %s2 = inlined_call_operand.vmem [shape: f32[1,128], index: 2, kind: input, shape index: {}]
  %s3 = inlined_call_operand.vmem [shape: f32[1,128], index: 3, kind: input, shape index: {}]
  %s4 = inlined_call_operand.vmem [shape: f32[512,8], index: 4, kind: output, shape index: {}]
  %s5 = sld [smem:[#allocation0]]
  $region26: #{drn_forward.18} parent=0
    _
  %s7 = ssub.s32 1, %s5
  %s8 = scalar_select 0, %s7, %s5
  // Predicated region
  $region2: #{drn_forward.18} parent=0 // pred_check
    _
  $region3: #{drn_forward.18} parent=0 // pred_check_branch
    %10 = sbr.rel (0) target = $region5
  $region4: #{drn_forward.18} parent=0 // pred_region
    _
  $region5: #{drn_forward.18} parent=0 // pred_fallthru
    _
  // Predicated region
  $region6: #{drn_forward.18} parent=0 // pred_check
    _
  $region7: #{drn_forward.18} parent=0 // pred_check_branch
    %12 = sbr.rel (0) target = $region9
  $region8: #{drn_forward.18} parent=0 // pred_region
    _
  $region9: #{drn_forward.18} parent=0 // pred_fallthru
    _
  // Predicated region
  $region10: #{drn_forward.18} parent=0 // pred_check
    _
  $region11: #{drn_forward.18} parent=0 // pred_check_branch
    %14 = sbr.rel (0) target = $region13
  $region12: #{drn_forward.18} parent=0 // pred_region
    _
  $region13: #{drn_forward.18} parent=0 // pred_fallthru
    _
  // Predicated region
  $region14: #{drn_forward.18} parent=0 // pred_check
    _
  $region15: #{drn_forward.18} parent=0 // pred_check_branch
    %16 = sbr.rel (0) target = $region17
  $region16: #{drn_forward.18} parent=0 // pred_region
    _
  $region17: #{drn_forward.18} parent=0 // pred_fallthru
    _
  %v18 = vld [vmem:[%s0] sm:$0xf]
  %v19 = vld [vmem:[%s0 + $0x4] sm:$0xf]
  %v20 = vld [vmem:[%s0 + $0x8] sm:$0xf]
  %v21 = vld [vmem:[%s0 + $0xc] sm:$0xf]
  %v22 = vld [vmem:[%s0 + $0x10] sm:$0xf]
  %v23 = vld [vmem:[%s0 + $0x14] sm:$0xf]
  %v24 = vld [vmem:[%s0 + $0x18] sm:$0xf]
  %v25 = vld [vmem:[%s0 + $0x1c] sm:$0xf]
  %v26 = vld [vmem:[%s0 + $0x20] sm:$0xf]
  %v27 = vld [vmem:[%s0 + $0x24] sm:$0xf]
  %v28 = vld [vmem:[%s0 + $0x28] sm:$0xf]
  %v29 = vld [vmem:[%s0 + $0x2c] sm:$0xf]
  %v30 = vld [vmem:[%s0 + $0x30] sm:$0xf]
  %v31 = vld [vmem:[%s0 + $0x34] sm:$0xf]
  %v32 = vld [vmem:[%s0 + $0x38] sm:$0xf]
  %v33 = vld [vmem:[%s0 + $0x3c] sm:$0xf]
  %v34 = vld [vmem:[%s0 + $0x40] sm:$0xf]
  %v35 = vld [vmem:[%s0 + $0x44] sm:$0xf]
  %v36 = vld [vmem:[%s0 + $0x48] sm:$0xf]
  %v37 = vld [vmem:[%s0 + $0x4c] sm:$0xf]
  %v38 = vld [vmem:[%s0 + $0x50] sm:$0xf]
  %v39 = vld [vmem:[%s0 + $0x54] sm:$0xf]
  %v40 = vld [vmem:[%s0 + $0x58] sm:$0xf]
  %v41 = vld [vmem:[%s0 + $0x5c] sm:$0xf]
  %v42 = vld [vmem:[%s0 + $0x60] sm:$0xf]
  %v43 = vld [vmem:[%s0 + $0x64] sm:$0xf]
  %v44 = vld [vmem:[%s0 + $0x68] sm:$0xf]
  %v45 = vld [vmem:[%s0 + $0x6c] sm:$0xf]
  %v46 = vld [vmem:[%s0 + $0x70] sm:$0xf]
  %v47 = vld [vmem:[%s0 + $0x74] sm:$0xf]
  %v48 = vld [vmem:[%s0 + $0x78] sm:$0xf]
  %v49 = vld [vmem:[%s0 + $0x7c] sm:$0xf]
  %v50 = vld [vmem:[%s0 + $0x80] sm:$0xf]
  %v51 = vld [vmem:[%s0 + $0x84] sm:$0xf]
  %v52 = vld [vmem:[%s0 + $0x88] sm:$0xf]
  %v53 = vld [vmem:[%s0 + $0x8c] sm:$0xf]
  %v54 = vld [vmem:[%s0 + $0x90] sm:$0xf]
  %v55 = vld [vmem:[%s0 + $0x94] sm:$0xf]
  %v56 = vld [vmem:[%s0 + $0x98] sm:$0xf]
  %v57 = vld [vmem:[%s0 + $0x9c] sm:$0xf]
  %v58 = vld [vmem:[%s0 + $0xa0] sm:$0xf]
  %v59 = vld [vmem:[%s0 + $0xa4] sm:$0xf]
  %v60 = vld [vmem:[%s0 + $0xa8] sm:$0xf]
  %v61 = vld [vmem:[%s0 + $0xac] sm:$0xf]
  %v62 = vld [vmem:[%s0 + $0xb0] sm:$0xf]
  %v63 = vld [vmem:[%s0 + $0xb4] sm:$0xf]
  %v64 = vld [vmem:[%s0 + $0xb8] sm:$0xf]
  %v65 = vld [vmem:[%s0 + $0xbc] sm:$0xf]
  %v66 = vld [vmem:[%s0 + $0xc0] sm:$0xf]
  %v67 = vld [vmem:[%s0 + $0xc4] sm:$0xf]
  %v68 = vld [vmem:[%s0 + $0xc8] sm:$0xf]
  %v69 = vld [vmem:[%s0 + $0xcc] sm:$0xf]
  %v70 = vld [vmem:[%s0 + $0xd0] sm:$0xf]
  %v71 = vld [vmem:[%s0 + $0xd4] sm:$0xf]
  %v72 = vld [vmem:[%s0 + $0xd8] sm:$0xf]
  %v73 = vld [vmem:[%s0 + $0xdc] sm:$0xf]
  %v74 = vld [vmem:[%s0 + $0xe0] sm:$0xf]
  %v75 = vld [vmem:[%s0 + $0xe4] sm:$0xf]
  %v76 = vld [vmem:[%s0 + $0xe8] sm:$0xf]
  %v77 = vld [vmem:[%s0 + $0xec] sm:$0xf]
  %v78 = vld [vmem:[%s0 + $0xf0] sm:$0xf]
  %v79 = vld [vmem:[%s0 + $0xf4] sm:$0xf]
  %v80 = vld [vmem:[%s0 + $0xf8] sm:$0xf]
  %v81 = vld [vmem:[%s0 + $0xfc] sm:$0xf]
  %v82 = vld [vmem:[%s1] sm:$0xf]
  %v83 = vld [vmem:[%s1 + $0x4] sm:$0xf]
  %v84 = vld [vmem:[%s1 + $0x8] sm:$0xf]
  %v85 = vld [vmem:[%s1 + $0xc] sm:$0xf]
  %v86 = vld [vmem:[%s1 + $0x10] sm:$0xf]
  %v87 = vld [vmem:[%s1 + $0x14] sm:$0xf]
  %v88 = vld [vmem:[%s1 + $0x18] sm:$0xf]
  %v89 = vld [vmem:[%s1 + $0x1c] sm:$0xf]
  %v90 = vld [vmem:[%s1 + $0x20] sm:$0xf]
  %v91 = vld [vmem:[%s1 + $0x24] sm:$0xf]
  %v156 = vunpack.c.l.b16 %v18
  %v157 = vunpack.c.l.b16 %v19
  %v158 = vunpack.c.l.b16 %v20
  %v159 = vunpack.c.l.b16 %v21
  %v160 = vunpack.c.l.b16 %v22
  %v161 = vunpack.c.l.b16 %v23
  %v162 = vunpack.c.l.b16 %v24
  %v163 = vunpack.c.l.b16 %v25
  %v164 = vunpack.c.l.b16 %v26
  %v165 = vunpack.c.l.b16 %v27
  %v166 = vunpack.c.l.b16 %v28
  %v167 = vunpack.c.l.b16 %v29
  %v168 = vunpack.c.l.b16 %v30
  %v169 = vunpack.c.l.b16 %v31
  %v170 = vunpack.c.l.b16 %v32
  %v171 = vunpack.c.l.b16 %v33
  %v172 = vunpack.c.l.b16 %v34
  %v173 = vunpack.c.l.b16 %v35
  %v174 = vunpack.c.l.b16 %v36
  %v175 = vunpack.c.l.b16 %v37
  %v176 = vunpack.c.l.b16 %v38
  %v177 = vunpack.c.l.b16 %v39
  %v178 = vunpack.c.l.b16 %v40
  %v179 = vunpack.c.l.b16 %v41
  %v180 = vunpack.c.l.b16 %v42
  %v181 = vunpack.c.l.b16 %v43
  %v182 = vunpack.c.l.b16 %v44
  %v183 = vunpack.c.l.b16 %v45
  %v184 = vunpack.c.l.b16 %v46
  %v185 = vunpack.c.l.b16 %v47
  %v186 = vunpack.c.l.b16 %v48
  %v187 = vunpack.c.l.b16 %v49
  %v188 = vunpack.c.l.b16 %v50
  %v189 = vunpack.c.l.b16 %v51
  %v190 = vunpack.c.l.b16 %v52
  %v191 = vunpack.c.l.b16 %v53
  %v192 = vunpack.c.l.b16 %v54
  %v193 = vunpack.c.l.b16 %v55
  %v194 = vunpack.c.l.b16 %v56
  %v195 = vunpack.c.l.b16 %v57
  %v196 = vunpack.c.l.b16 %v58
  %v197 = vunpack.c.l.b16 %v59
  %v198 = vunpack.c.l.b16 %v60
  %v199 = vunpack.c.l.b16 %v61
  %v200 = vunpack.c.l.b16 %v62
  %v201 = vunpack.c.l.b16 %v63
  %v202 = vunpack.c.l.b16 %v64
  %v203 = vunpack.c.l.b16 %v65
  %v204 = vunpack.c.l.b16 %v66
  %v205 = vunpack.c.l.b16 %v67
  %v206 = vunpack.c.l.b16 %v68
  %v207 = vunpack.c.l.b16 %v69
  %v208 = vunpack.c.l.b16 %v70
  %v209 = vunpack.c.l.b16 %v71
  %v210 = vunpack.c.l.b16 %v72
  %v211 = vunpack.c.l.b16 %v73
  %v212 = vunpack.c.l.b16 %v74
  %v213 = vunpack.c.l.b16 %v75
  %v214 = vunpack.c.l.b16 %v76
  %v215 = vunpack.c.l.b16 %v77
  %v216 = vunpack.c.l.b16 %v78
  %v217 = vunpack.c.l.b16 %v79
  %v218 = vunpack.c.l.b16 %v80
  %v219 = vunpack.c.l.b16 %v81
  %v220 = vpack.c.b16 %v157, %v156
  %v221 = vpack.c.b16 %v159, %v158
  %v222 = vpack.c.b16 %v161, %v160
  %v223 = vpack.c.b16 %v163, %v162
  %v224 = vpack.c.b16 %v165, %v164
  %v225 = vpack.c.b16 %v167, %v166
  %v226 = vpack.c.b16 %v169, %v168
  %v227 = vpack.c.b16 %v171, %v170
  %v228 = vpack.c.b16 %v173, %v172
  %v229 = vpack.c.b16 %v175, %v174
  %v230 = vpack.c.b16 %v177, %v176
  %v231 = vpack.c.b16 %v179, %v178
  %v232 = vpack.c.b16 %v181, %v180
  %v233 = vpack.c.b16 %v183, %v182
  %v234 = vpack.c.b16 %v185, %v184
  %v235 = vpack.c.b16 %v187, %v186
  %v236 = vpack.c.b16 %v189, %v188
  %v237 = vpack.c.b16 %v191, %v190
  %v238 = vpack.c.b16 %v193, %v192
  %v239 = vpack.c.b16 %v195, %v194
  %v240 = vpack.c.b16 %v197, %v196
  %v241 = vpack.c.b16 %v199, %v198
  %v242 = vpack.c.b16 %v201, %v200
  %v243 = vpack.c.b16 %v203, %v202
  %v244 = vpack.c.b16 %v205, %v204
  %v245 = vpack.c.b16 %v207, %v206
  %v246 = vpack.c.b16 %v209, %v208
  %v247 = vpack.c.b16 %v211, %v210
  %v248 = vpack.c.b16 %v213, %v212
  %v249 = vpack.c.b16 %v215, %v214
  %v250 = vpack.c.b16 %v217, %v216
  %v251 = vpack.c.b16 %v219, %v218
  %v262 = vunpack.c.l.b16 %v82
  %v263 = vunpack.c.l.b16 %v83
  %v264 = vunpack.c.l.b16 %v84
  %v265 = vunpack.c.l.b16 %v85
  %v266 = vunpack.c.l.b16 %v86
  %v267 = vunpack.c.l.b16 %v87
  %v268 = vunpack.c.l.b16 %v88
  %v269 = vunpack.c.l.b16 %v89
  %v270 = vunpack.c.l.b16 %v90
  %v271 = vunpack.c.l.b16 %v91
  %v272 = vpack.c.b16 %v263, %v262
  %v273 = vpack.c.b16 %v265, %v264
  %v274 = vpack.c.b16 %v267, %v266
  %v275 = vpack.c.b16 %v269, %v268
  %v276 = vpack.c.b16 %v271, %v270
  %vm282 = vcmask 654336
  %v284 = vsel %vm282, %v220, 0
  %v287 = vsel %vm282, %v221, 0
  %v290 = vsel %vm282, %v222, 0
  %v293 = vsel %vm282, %v223, 0
  %v296 = vsel %vm282, %v224, 0
  %v299 = vsel %vm282, %v225, 0
  %v302 = vsel %vm282, %v226, 0
  %v305 = vsel %vm282, %v227, 0
  %v308 = vsel %vm282, %v228, 0
  %v311 = vsel %vm282, %v229, 0
  %v314 = vsel %vm282, %v230, 0
  %v317 = vsel %vm282, %v231, 0
  %v320 = vsel %vm282, %v232, 0
  %v323 = vsel %vm282, %v233, 0
  %v326 = vsel %vm282, %v234, 0
  %v329 = vsel %vm282, %v235, 0
  %v332 = vsel %vm282, %v236, 0
  %v335 = vsel %vm282, %v237, 0
  %v338 = vsel %vm282, %v238, 0
  %v341 = vsel %vm282, %v239, 0
  %v344 = vsel %vm282, %v240, 0
  %v347 = vsel %vm282, %v241, 0
  %v350 = vsel %vm282, %v242, 0
  %v353 = vsel %vm282, %v243, 0
  %v356 = vsel %vm282, %v244, 0
  %v359 = vsel %vm282, %v245, 0
  %v362 = vsel %vm282, %v246, 0
  %v365 = vsel %vm282, %v247, 0
  %v368 = vsel %vm282, %v248, 0
  %v371 = vsel %vm282, %v249, 0
  %v374 = vsel %vm282, %v250, 0
  %v377 = vsel %vm282, %v251, 0
  %379 = vmatprep.subr.bf16.mxu0 0
  %380 = vmatpush1.bf16.msra.mxu0 0
  %381 = vmatprep.subr.bf16.mxu0 0
  %382 = vmatpush1.bf16.msra.mxu0 0
  %383 = vmatprep.subr.bf16.mxu0 0
  %384 = vmatpush1.bf16.msra.mxu0 0
  %385 = vmatprep.subr.bf16.mxu0 0
  %386 = vmatpush1.bf16.msra.mxu0 %v276
  %387 = vmatprep.subr.bf16.mxu0 0
  %388 = vmatpush1.bf16.msra.mxu0 %v275
  %389 = vmatprep.subr.bf16.mxu0 0
  %390 = vmatpush1.bf16.msra.mxu0 %v274
  %391 = vmatprep.subr.bf16.mxu0 0
  %392 = vmatpush1.bf16.msra.mxu0 %v273
  %393 = vmatprep.subr.bf16.mxu0 0
  %394 = vmatpush1.bf16.msra.mxu0 %v272
  %395 = vmatprep.subr.bf16.mxu0 0
  %396 = vmatpush2.bf16.msra.mxu0 0
  %397 = vmatprep.subr.bf16.mxu0 0
  %398 = vmatpush2.bf16.msra.mxu0 0
  %399 = vmatprep.subr.bf16.mxu0 0
  %400 = vmatpush2.bf16.msra.mxu0 0
  %401 = vmatprep.subr.bf16.mxu0 0
  %402 = vmatpush2.bf16.msra.mxu0 0
  %403 = vmatprep.subr.bf16.mxu0 0
  %404 = vmatpush2.bf16.msra.mxu0 0
  %405 = vmatprep.subr.bf16.mxu0 0
  %406 = vmatpush2.bf16.msra.mxu0 0
  %407 = vmatprep.subr.bf16.mxu0 0
  %408 = vmatpush2.bf16.msra.mxu0 0
  %409 = vmatprep.subr.bf16.mxu0 0
  %410 = vmatpush2.bf16.msra.mxu0 0
  %411 = vmatprep.mubr.bf16.mxu0 0
  %412 = vmatmul.mubr.bf16.gmra.mxu0 %v284
  %v413 = vpop.f32.mrf.mxu0
  %v414 = vadd.f32 0.0, %v413
  %v415 = vpop.f32.mrf.mxu0
  %v416 = vpop.f32.mrf.mxu0
  %v417 = vadd.f32 0.0, %v416
  %v418 = vpop.f32.mrf.mxu0
  %419 = vmatprep.mubr.bf16.mxu0 0
  %420 = vmatmul.mubr.bf16.gmra.mxu0 %v287
  %v421 = vpop.f32.mrf.mxu0
  %v422 = vadd.f32 0.0, %v421
  %v423 = vpop.f32.mrf.mxu0
  %v424 = vpop.f32.mrf.mxu0
  %v425 = vadd.f32 0.0, %v424
  %v426 = vpop.f32.mrf.mxu0
  %427 = vmatprep.mubr.bf16.mxu0 0
  %428 = vmatmul.mubr.bf16.gmra.mxu0 %v290
  %v429 = vpop.f32.mrf.mxu0
  %v430 = vadd.f32 0.0, %v429
  %v431 = vpop.f32.mrf.mxu0
  %v432 = vpop.f32.mrf.mxu0
  %v433 = vadd.f32 0.0, %v432
  %v434 = vpop.f32.mrf.mxu0
  %435 = vmatprep.mubr.bf16.mxu0 0
  %436 = vmatmul.mubr.bf16.gmra.mxu0 %v293
  %v437 = vpop.f32.mrf.mxu0
  %v438 = vadd.f32 0.0, %v437
  %v439 = vpop.f32.mrf.mxu0
  %v440 = vpop.f32.mrf.mxu0
  %v441 = vadd.f32 0.0, %v440
  %v442 = vpop.f32.mrf.mxu0
  %443 = vmatprep.mubr.bf16.mxu0 0
  %444 = vmatmul.mubr.bf16.gmra.mxu0 %v296
  %v445 = vpop.f32.mrf.mxu0
  %v446 = vadd.f32 0.0, %v445
  %v447 = vpop.f32.mrf.mxu0
  %v448 = vpop.f32.mrf.mxu0
  %v449 = vadd.f32 0.0, %v448
  %v450 = vpop.f32.mrf.mxu0
  %451 = vmatprep.mubr.bf16.mxu0 0
  %452 = vmatmul.mubr.bf16.gmra.mxu0 %v299
  %v453 = vpop.f32.mrf.mxu0
  %v454 = vadd.f32 0.0, %v453
  %v455 = vpop.f32.mrf.mxu0
  %v456 = vpop.f32.mrf.mxu0
  %v457 = vadd.f32 0.0, %v456
  %v458 = vpop.f32.mrf.mxu0
  %459 = vmatprep.mubr.bf16.mxu0 0
  %460 = vmatmul.mubr.bf16.gmra.mxu0 %v302
  %v461 = vpop.f32.mrf.mxu0
  %v462 = vadd.f32 0.0, %v461
  %v463 = vpop.f32.mrf.mxu0
  %v464 = vpop.f32.mrf.mxu0
  %v465 = vadd.f32 0.0, %v464
  %v466 = vpop.f32.mrf.mxu0
  %467 = vmatprep.mubr.bf16.mxu0 0
  %468 = vmatmul.mubr.bf16.gmra.mxu0 %v305
  %v469 = vpop.f32.mrf.mxu0
  %v470 = vadd.f32 0.0, %v469
  %v471 = vpop.f32.mrf.mxu0
  %v472 = vpop.f32.mrf.mxu0
  %v473 = vadd.f32 0.0, %v472
  %v474 = vpop.f32.mrf.mxu0
  %475 = vmatprep.mubr.bf16.mxu0 0
  %476 = vmatmul.mubr.bf16.gmra.mxu0 %v308
  %v477 = vpop.f32.mrf.mxu0
  %v478 = vadd.f32 0.0, %v477
  %v479 = vpop.f32.mrf.mxu0
  %v480 = vpop.f32.mrf.mxu0
  %v481 = vadd.f32 0.0, %v480
  %v482 = vpop.f32.mrf.mxu0
  %483 = vmatprep.mubr.bf16.mxu0 0
  %484 = vmatmul.mubr.bf16.gmra.mxu0 %v311
  %v485 = vpop.f32.mrf.mxu0
  %v486 = vadd.f32 0.0, %v485
  %v487 = vpop.f32.mrf.mxu0
  %v488 = vpop.f32.mrf.mxu0
  %v489 = vadd.f32 0.0, %v488
  %v490 = vpop.f32.mrf.mxu0
  %491 = vmatprep.mubr.bf16.mxu0 0
  %492 = vmatmul.mubr.bf16.gmra.mxu0 %v314
  %v493 = vpop.f32.mrf.mxu0
  %v494 = vadd.f32 0.0, %v493
  %v495 = vpop.f32.mrf.mxu0
  %v496 = vpop.f32.mrf.mxu0
  %v497 = vadd.f32 0.0, %v496
  %v498 = vpop.f32.mrf.mxu0
  %499 = vmatprep.mubr.bf16.mxu0 0
  %500 = vmatmul.mubr.bf16.gmra.mxu0 %v317
  %v501 = vpop.f32.mrf.mxu0
  %v502 = vadd.f32 0.0, %v501
  %v503 = vpop.f32.mrf.mxu0
  %v504 = vpop.f32.mrf.mxu0
  %v505 = vadd.f32 0.0, %v504
  %v506 = vpop.f32.mrf.mxu0
  %507 = vmatprep.mubr.bf16.mxu0 0
  %508 = vmatmul.mubr.bf16.gmra.mxu0 %v320
  %v509 = vpop.f32.mrf.mxu0
  %v510 = vadd.f32 0.0, %v509
  %v511 = vpop.f32.mrf.mxu0
  %v512 = vpop.f32.mrf.mxu0
  %v513 = vadd.f32 0.0, %v512
  %v514 = vpop.f32.mrf.mxu0
  %515 = vmatprep.mubr.bf16.mxu0 0
  %516 = vmatmul.mubr.bf16.gmra.mxu0 %v323
  %v517 = vpop.f32.mrf.mxu0
  %v518 = vadd.f32 0.0, %v517
  %v519 = vpop.f32.mrf.mxu0
  %v520 = vpop.f32.mrf.mxu0
  %v521 = vadd.f32 0.0, %v520
  %v522 = vpop.f32.mrf.mxu0
  %523 = vmatprep.mubr.bf16.mxu0 0
  %524 = vmatmul.mubr.bf16.gmra.mxu0 %v326
  %v525 = vpop.f32.mrf.mxu0
  %v526 = vadd.f32 0.0, %v525
  %v527 = vpop.f32.mrf.mxu0
  %v528 = vpop.f32.mrf.mxu0
  %v529 = vadd.f32 0.0, %v528
  %v530 = vpop.f32.mrf.mxu0
  %531 = vmatprep.mubr.bf16.mxu0 0
  %532 = vmatmul.mubr.bf16.gmra.mxu0 %v329
  %v533 = vpop.f32.mrf.mxu0
  %v534 = vadd.f32 0.0, %v533
  %v535 = vpop.f32.mrf.mxu0
  %v536 = vpop.f32.mrf.mxu0
  %v537 = vadd.f32 0.0, %v536
  %v538 = vpop.f32.mrf.mxu0
  %539 = vmatprep.mubr.bf16.mxu0 0
  %540 = vmatmul.mubr.bf16.gmra.mxu0 %v332
  %v541 = vpop.f32.mrf.mxu0
  %v542 = vadd.f32 0.0, %v541
  %v543 = vpop.f32.mrf.mxu0
  %v544 = vpop.f32.mrf.mxu0
  %v545 = vadd.f32 0.0, %v544
  %v546 = vpop.f32.mrf.mxu0
  %547 = vmatprep.mubr.bf16.mxu0 0
  %548 = vmatmul.mubr.bf16.gmra.mxu0 %v335
  %v549 = vpop.f32.mrf.mxu0
  %v550 = vadd.f32 0.0, %v549
  %v551 = vpop.f32.mrf.mxu0
  %v552 = vpop.f32.mrf.mxu0
  %v553 = vadd.f32 0.0, %v552
  %v554 = vpop.f32.mrf.mxu0
  %555 = vmatprep.mubr.bf16.mxu0 0
  %556 = vmatmul.mubr.bf16.gmra.mxu0 %v338
  %v557 = vpop.f32.mrf.mxu0
  %v558 = vadd.f32 0.0, %v557
  %v559 = vpop.f32.mrf.mxu0
  %v560 = vpop.f32.mrf.mxu0
  %v561 = vadd.f32 0.0, %v560
  %v562 = vpop.f32.mrf.mxu0
  %563 = vmatprep.mubr.bf16.mxu0 0
  %564 = vmatmul.mubr.bf16.gmra.mxu0 %v341
  %v565 = vpop.f32.mrf.mxu0
  %v566 = vadd.f32 0.0, %v565
  %v567 = vpop.f32.mrf.mxu0
  %v568 = vpop.f32.mrf.mxu0
  %v569 = vadd.f32 0.0, %v568
  %v570 = vpop.f32.mrf.mxu0
  %571 = vmatprep.mubr.bf16.mxu0 0
  %572 = vmatmul.mubr.bf16.gmra.mxu0 %v344
  %v573 = vpop.f32.mrf.mxu0
  %v574 = vadd.f32 0.0, %v573
  %v575 = vpop.f32.mrf.mxu0
  %v576 = vpop.f32.mrf.mxu0
  %v577 = vadd.f32 0.0, %v576
  %v578 = vpop.f32.mrf.mxu0
  %579 = vmatprep.mubr.bf16.mxu0 0
  %580 = vmatmul.mubr.bf16.gmra.mxu0 %v347
  %v581 = vpop.f32.mrf.mxu0
  %v582 = vadd.f32 0.0, %v581
  %v583 = vpop.f32.mrf.mxu0
  %v584 = vpop.f32.mrf.mxu0
  %v585 = vadd.f32 0.0, %v584
  %v586 = vpop.f32.mrf.mxu0
  %587 = vmatprep.mubr.bf16.mxu0 0
  %588 = vmatmul.mubr.bf16.gmra.mxu0 %v350
  %v589 = vpop.f32.mrf.mxu0
  %v590 = vadd.f32 0.0, %v589
  %v591 = vpop.f32.mrf.mxu0
  %v592 = vpop.f32.mrf.mxu0
  %v593 = vadd.f32 0.0, %v592
  %v594 = vpop.f32.mrf.mxu0
  %595 = vmatprep.mubr.bf16.mxu0 0
  %596 = vmatmul.mubr.bf16.gmra.mxu0 %v353
  %v597 = vpop.f32.mrf.mxu0
  %v598 = vadd.f32 0.0, %v597
  %v599 = vpop.f32.mrf.mxu0
  %v600 = vpop.f32.mrf.mxu0
  %v601 = vadd.f32 0.0, %v600
  %v602 = vpop.f32.mrf.mxu0
  %603 = vmatprep.mubr.bf16.mxu0 0
  %604 = vmatmul.mubr.bf16.gmra.mxu0 %v356
  %v605 = vpop.f32.mrf.mxu0
  %v606 = vadd.f32 0.0, %v605
  %v607 = vpop.f32.mrf.mxu0
  %v608 = vpop.f32.mrf.mxu0
  %v609 = vadd.f32 0.0, %v608
  %v610 = vpop.f32.mrf.mxu0
  %611 = vmatprep.mubr.bf16.mxu0 0
  %612 = vmatmul.mubr.bf16.gmra.mxu0 %v359
  %v613 = vpop.f32.mrf.mxu0
  %v614 = vadd.f32 0.0, %v613
  %v615 = vpop.f32.mrf.mxu0
  %v616 = vpop.f32.mrf.mxu0
  %v617 = vadd.f32 0.0, %v616
  %v618 = vpop.f32.mrf.mxu0
  %619 = vmatprep.mubr.bf16.mxu0 0
  %620 = vmatmul.mubr.bf16.gmra.mxu0 %v362
  %v621 = vpop.f32.mrf.mxu0
  %v622 = vadd.f32 0.0, %v621
  %v623 = vpop.f32.mrf.mxu0
  %v624 = vpop.f32.mrf.mxu0
  %v625 = vadd.f32 0.0, %v624
  %v626 = vpop.f32.mrf.mxu0
  %627 = vmatprep.mubr.bf16.mxu0 0
  %628 = vmatmul.mubr.bf16.gmra.mxu0 %v365
  %v629 = vpop.f32.mrf.mxu0
  %v630 = vadd.f32 0.0, %v629
  %v631 = vpop.f32.mrf.mxu0
  %v632 = vpop.f32.mrf.mxu0
  %v633 = vadd.f32 0.0, %v632
  %v634 = vpop.f32.mrf.mxu0
  %635 = vmatprep.mubr.bf16.mxu0 0
  %636 = vmatmul.mubr.bf16.gmra.mxu0 %v368
  %v637 = vpop.f32.mrf.mxu0
  %v638 = vadd.f32 0.0, %v637
  %v639 = vpop.f32.mrf.mxu0
  %v640 = vpop.f32.mrf.mxu0
  %v641 = vadd.f32 0.0, %v640
  %v642 = vpop.f32.mrf.mxu0
  %643 = vmatprep.mubr.bf16.mxu0 0
  %644 = vmatmul.mubr.bf16.gmra.mxu0 %v371
  %v645 = vpop.f32.mrf.mxu0
  %v646 = vadd.f32 0.0, %v645
  %v647 = vpop.f32.mrf.mxu0
  %v648 = vpop.f32.mrf.mxu0
  %v649 = vadd.f32 0.0, %v648
  %v650 = vpop.f32.mrf.mxu0
  %651 = vmatprep.mubr.bf16.mxu0 0
  %652 = vmatmul.mubr.bf16.gmra.mxu0 %v374
  %v653 = vpop.f32.mrf.mxu0
  %v654 = vadd.f32 0.0, %v653
  %v655 = vpop.f32.mrf.mxu0
  %v656 = vpop.f32.mrf.mxu0
  %v657 = vadd.f32 0.0, %v656
  %v658 = vpop.f32.mrf.mxu0
  %659 = vmatprep.mubr.bf16.mxu0 0
  %660 = vmatmul.mubr.bf16.gmra.mxu0 %v377
  %v661 = vpop.f32.mrf.mxu0
  %v662 = vadd.f32 0.0, %v661
  %v663 = vpop.f32.mrf.mxu0
  %v664 = vpop.f32.mrf.mxu0
  %v665 = vadd.f32 0.0, %v664
  %v666 = vpop.f32.mrf.mxu0
  %667 = vdwg.mxu0
  %v668 = vadd.f32 %v414, %v417
  %v669 = vadd.f32 %v668, %v422
  %v670 = vadd.f32 %v669, %v425
  %v671 = vadd.f32 %v670, %v430
  %v672 = vadd.f32 %v671, %v433
  %v673 = vadd.f32 %v672, %v438
  %v674 = vadd.f32 %v673, %v441
  %v675 = vadd.f32 %v674, %v446
  %v676 = vadd.f32 %v675, %v449
  %v677 = vadd.f32 %v676, %v454
  %v678 = vadd.f32 %v677, %v457
  %v679 = vadd.f32 %v678, %v462
  %v680 = vadd.f32 %v679, %v465
  %v681 = vadd.f32 %v680, %v470
  %v682 = vadd.f32 %v681, %v473
  %v683 = vadd.f32 %v682, %v478
  %v684 = vadd.f32 %v683, %v481
  %v685 = vadd.f32 %v684, %v486
  %v686 = vadd.f32 %v685, %v489
  %v687 = vadd.f32 %v686, %v494
  %v688 = vadd.f32 %v687, %v497
  %v689 = vadd.f32 %v688, %v502
  %v690 = vadd.f32 %v689, %v505
  %v691 = vadd.f32 %v690, %v510
  %v692 = vadd.f32 %v691, %v513
  %v693 = vadd.f32 %v692, %v518
  %v694 = vadd.f32 %v693, %v521
  %v695 = vadd.f32 %v694, %v526
  %v696 = vadd.f32 %v695, %v529
  %v697 = vadd.f32 %v696, %v534
  %v698 = vadd.f32 %v697, %v537
  %v699 = vadd.f32 %v698, %v542
  %v700 = vadd.f32 %v699, %v545
  %v701 = vadd.f32 %v700, %v550
  %v702 = vadd.f32 %v701, %v553
  %v703 = vadd.f32 %v702, %v558
  %v704 = vadd.f32 %v703, %v561
  %v705 = vadd.f32 %v704, %v566
  %v706 = vadd.f32 %v705, %v569
  %v707 = vadd.f32 %v706, %v574
  %v708 = vadd.f32 %v707, %v577
  %v709 = vadd.f32 %v708, %v582
  %v710 = vadd.f32 %v709, %v585
  %v711 = vadd.f32 %v710, %v590
  %v712 = vadd.f32 %v711, %v593
  %v713 = vadd.f32 %v712, %v598
  %v714 = vadd.f32 %v713, %v601
  %v715 = vadd.f32 %v714, %v606
  %v716 = vadd.f32 %v715, %v609
  %v717 = vadd.f32 %v716, %v614
  %v718 = vadd.f32 %v717, %v617
  %v719 = vadd.f32 %v718, %v622
  %v720 = vadd.f32 %v719, %v625
  %v721 = vadd.f32 %v720, %v630
  %v722 = vadd.f32 %v721, %v633
  %v723 = vadd.f32 %v722, %v638
  %v724 = vadd.f32 %v723, %v641
  %v725 = vadd.f32 %v724, %v646
  %v726 = vadd.f32 %v725, %v649
  %v727 = vadd.f32 %v726, %v654
  %v728 = vadd.f32 %v727, %v657
  %v729 = vadd.f32 %v728, %v662
  %v730 = vadd.f32 %v729, %v665
  %v731 = vrot.slane %v730, 4
  %v732 = vadd.f32 %v730, %v731
  %v733 = vrot.slane %v732, 2
  %v734 = vadd.f32 %v732, %v733
  %v735 = vrot.slane %v734, 1
  %v736 = vadd.f32 %v734, %v735
  %v737 = vmul.f32 %v736, 0.001953125
  %v738 = vsub.f32 %v414, %v737
  %v739 = vsub.f32 %v417, %v737
  %v740 = vsub.f32 %v422, %v737
  %v741 = vsub.f32 %v425, %v737
  %v742 = vsub.f32 %v430, %v737
  %v743 = vsub.f32 %v433, %v737
  %v744 = vsub.f32 %v438, %v737
  %v745 = vsub.f32 %v441, %v737
  %v746 = vsub.f32 %v446, %v737
  %v747 = vsub.f32 %v449, %v737
  %v748 = vsub.f32 %v454, %v737
  %v749 = vsub.f32 %v457, %v737
  %v750 = vsub.f32 %v462, %v737
  %v751 = vsub.f32 %v465, %v737
  %v752 = vsub.f32 %v470, %v737
  %v753 = vsub.f32 %v473, %v737
  %v754 = vsub.f32 %v478, %v737
  %v755 = vsub.f32 %v481, %v737
  %v756 = vsub.f32 %v486, %v737
  %v757 = vsub.f32 %v489, %v737
  %v758 = vsub.f32 %v494, %v737
  %v759 = vsub.f32 %v497, %v737
  %v760 = vsub.f32 %v502, %v737
  %v761 = vsub.f32 %v505, %v737
  %v762 = vsub.f32 %v510, %v737
  %v763 = vsub.f32 %v513, %v737
  %v764 = vsub.f32 %v518, %v737
  %v765 = vsub.f32 %v521, %v737
  %v766 = vsub.f32 %v526, %v737
  %v767 = vsub.f32 %v529, %v737
  %v768 = vsub.f32 %v534, %v737
  %v769 = vsub.f32 %v537, %v737
  %v770 = vsub.f32 %v542, %v737
  %v771 = vsub.f32 %v545, %v737
  %v772 = vsub.f32 %v550, %v737
  %v773 = vsub.f32 %v553, %v737
  %v774 = vsub.f32 %v558, %v737
  %v775 = vsub.f32 %v561, %v737
  %v776 = vsub.f32 %v566, %v737
  %v777 = vsub.f32 %v569, %v737
  %v778 = vsub.f32 %v574, %v737
  %v779 = vsub.f32 %v577, %v737
  %v780 = vsub.f32 %v582, %v737
  %v781 = vsub.f32 %v585, %v737
  %v782 = vsub.f32 %v590, %v737
  %v783 = vsub.f32 %v593, %v737
  %v784 = vsub.f32 %v598, %v737
  %v785 = vsub.f32 %v601, %v737
  %v786 = vsub.f32 %v606, %v737
  %v787 = vsub.f32 %v609, %v737
  %v788 = vsub.f32 %v614, %v737
  %v789 = vsub.f32 %v617, %v737
  %v790 = vsub.f32 %v622, %v737
  %v791 = vsub.f32 %v625, %v737
  %v792 = vsub.f32 %v630, %v737
  %v793 = vsub.f32 %v633, %v737
  %v794 = vsub.f32 %v638, %v737
  %v795 = vsub.f32 %v641, %v737
  %v796 = vsub.f32 %v646, %v737
  %v797 = vsub.f32 %v649, %v737
  %v798 = vsub.f32 %v654, %v737
  %v799 = vsub.f32 %v657, %v737
  %v800 = vsub.f32 %v662, %v737
  %v801 = vsub.f32 %v665, %v737
  %v802 = vlaneseq
  %v803 = vshrl.u32 %v802, 7
  %v804 = vadd.s32 %v803, 8
  %v805 = vadd.s32 %v803, 16
  %v806 = vadd.s32 %v803, 24
  %v807 = vadd.s32 %v803, 32
  %v808 = vadd.s32 %v803, 40
  %v809 = vadd.s32 %v803, 48
  %v810 = vadd.s32 %v803, 56
  %v811 = vadd.s32 %v803, 64
  %v812 = vadd.s32 %v803, 72
  %v813 = vadd.s32 %v803, 80
  %v814 = vadd.s32 %v803, 88
  %v815 = vadd.s32 %v803, 96
  %v816 = vadd.s32 %v803, 104
  %v817 = vadd.s32 %v803, 112
  %v818 = vadd.s32 %v803, 120
  %v819 = vadd.s32 %v803, 128
  %v820 = vadd.s32 %v803, 136
  %v821 = vadd.s32 %v803, 144
  %v822 = vadd.s32 %v803, 152
  %v823 = vadd.s32 %v803, 160
  %v824 = vadd.s32 %v803, 168
  %v825 = vadd.s32 %v803, 176
  %v826 = vadd.s32 %v803, 184
  %v827 = vadd.s32 %v803, 192
  %v828 = vadd.s32 %v803, 200
  %v829 = vadd.s32 %v803, 208
  %v830 = vadd.s32 %v803, 216
  %v831 = vadd.s32 %v803, 224
  %v832 = vadd.s32 %v803, 232
  %v833 = vadd.s32 %v803, 240
  %v834 = vadd.s32 %v803, 248
  %v835 = vadd.s32 %v803, 256
  %v836 = vadd.s32 %v803, 264
  %v837 = vadd.s32 %v803, 272
  %v838 = vadd.s32 %v803, 280
  %v839 = vadd.s32 %v803, 288
  %v840 = vadd.s32 %v803, 296
  %v841 = vadd.s32 %v803, 304
  %v842 = vadd.s32 %v803, 312
  %v843 = vadd.s32 %v803, 320
  %v844 = vadd.s32 %v803, 328
  %v845 = vadd.s32 %v803, 336
  %v846 = vadd.s32 %v803, 344
  %v847 = vadd.s32 %v803, 352
  %v848 = vadd.s32 %v803, 360
  %v849 = vadd.s32 %v803, 368
  %v850 = vadd.s32 %v803, 376
  %v851 = vadd.s32 %v803, 384
  %v852 = vadd.s32 %v803, 392
  %v853 = vadd.s32 %v803, 400
  %v854 = vadd.s32 %v803, 408
  %v855 = vadd.s32 %v803, 416
  %v856 = vadd.s32 %v803, 424
  %v857 = vadd.s32 %v803, 432
  %v858 = vadd.s32 %v803, 440
  %v859 = vadd.s32 %v803, 448
  %v860 = vadd.s32 %v803, 456
  %v861 = vadd.s32 %v803, 464
  %v862 = vadd.s32 %v803, 472
  %v863 = vadd.s32 %v803, 480
  %v864 = vadd.s32 %v803, 488
  %v865 = vadd.s32 %v803, 496
  %v866 = vadd.s32 %v803, 504
  %vm867 = vcmp.lt.s32.totalorder %v803, 512
  %vm868 = vcmp.lt.s32.totalorder %v804, 512
  %vm869 = vcmp.lt.s32.totalorder %v805, 512
  %vm870 = vcmp.lt.s32.totalorder %v806, 512
  %vm871 = vcmp.lt.s32.totalorder %v807, 512
  %vm872 = vcmp.lt.s32.totalorder %v808, 512
  %vm873 = vcmp.lt.s32.totalorder %v809, 512
  %vm874 = vcmp.lt.s32.totalorder %v810, 512
  %vm875 = vcmp.lt.s32.totalorder %v811, 512
  %vm876 = vcmp.lt.s32.totalorder %v812, 512
  %vm877 = vcmp.lt.s32.totalorder %v813, 512
  %vm878 = vcmp.lt.s32.totalorder %v814, 512
  %vm879 = vcmp.lt.s32.totalorder %v815, 512
  %vm880 = vcmp.lt.s32.totalorder %v816, 512
  %vm881 = vcmp.lt.s32.totalorder %v817, 512
  %vm882 = vcmp.lt.s32.totalorder %v818, 512
  %vm883 = vcmp.lt.s32.totalorder %v819, 512
  %vm884 = vcmp.lt.s32.totalorder %v820, 512
  %vm885 = vcmp.lt.s32.totalorder %v821, 512
  %vm886 = vcmp.lt.s32.totalorder %v822, 512
  %vm887 = vcmp.lt.s32.totalorder %v823, 512
  %vm888 = vcmp.lt.s32.totalorder %v824, 512
  %vm889 = vcmp.lt.s32.totalorder %v825, 512
  %vm890 = vcmp.lt.s32.totalorder %v826, 512
  %vm891 = vcmp.lt.s32.totalorder %v827, 512
  %vm892 = vcmp.lt.s32.totalorder %v828, 512
  %vm893 = vcmp.lt.s32.totalorder %v829, 512
  %vm894 = vcmp.lt.s32.totalorder %v830, 512
  %vm895 = vcmp.lt.s32.totalorder %v831, 512
  %vm896 = vcmp.lt.s32.totalorder %v832, 512
  %vm897 = vcmp.lt.s32.totalorder %v833, 512
  %vm898 = vcmp.lt.s32.totalorder %v834, 512
  %vm899 = vcmp.lt.s32.totalorder %v835, 512
  %vm900 = vcmp.lt.s32.totalorder %v836, 512
  %vm901 = vcmp.lt.s32.totalorder %v837, 512
  %vm902 = vcmp.lt.s32.totalorder %v838, 512
  %vm903 = vcmp.lt.s32.totalorder %v839, 512
  %vm904 = vcmp.lt.s32.totalorder %v840, 512
  %vm905 = vcmp.lt.s32.totalorder %v841, 512
  %vm906 = vcmp.lt.s32.totalorder %v842, 512
  %vm907 = vcmp.lt.s32.totalorder %v843, 512
  %vm908 = vcmp.lt.s32.totalorder %v844, 512
  %vm909 = vcmp.lt.s32.totalorder %v845, 512
  %vm910 = vcmp.lt.s32.totalorder %v846, 512
  %vm911 = vcmp.lt.s32.totalorder %v847, 512
  %vm912 = vcmp.lt.s32.totalorder %v848, 512
  %vm913 = vcmp.lt.s32.totalorder %v849, 512
  %vm914 = vcmp.lt.s32.totalorder %v850, 512
  %vm915 = vcmp.lt.s32.totalorder %v851, 512
  %vm916 = vcmp.lt.s32.totalorder %v852, 512
  %vm917 = vcmp.lt.s32.totalorder %v853, 512
  %vm918 = vcmp.lt.s32.totalorder %v854, 512
  %vm919 = vcmp.lt.s32.totalorder %v855, 512
  %vm920 = vcmp.lt.s32.totalorder %v856, 512
  %vm921 = vcmp.lt.s32.totalorder %v857, 512
  %vm922 = vcmp.lt.s32.totalorder %v858, 512
  %vm923 = vcmp.lt.s32.totalorder %v859, 512
  %vm924 = vcmp.lt.s32.totalorder %v860, 512
  %vm925 = vcmp.lt.s32.totalorder %v861, 512
  %vm926 = vcmp.lt.s32.totalorder %v862, 512
  %vm927 = vcmp.lt.s32.totalorder %v863, 512
  %vm928 = vcmp.lt.s32.totalorder %v864, 512
  %vm929 = vcmp.lt.s32.totalorder %v865, 512
  %vm930 = vcmp.lt.s32.totalorder %v866, 512
  %v931 = vmul.f32 %v738, %v738
  %v932 = vmul.f32 %v739, %v739
  %v933 = vmul.f32 %v740, %v740
  %v934 = vmul.f32 %v741, %v741
  %v935 = vmul.f32 %v742, %v742
  %v936 = vmul.f32 %v743, %v743
  %v937 = vmul.f32 %v744, %v744
  %v938 = vmul.f32 %v745, %v745
  %v939 = vmul.f32 %v746, %v746
  %v940 = vmul.f32 %v747, %v747
  %v941 = vmul.f32 %v748, %v748
  %v942 = vmul.f32 %v749, %v749
  %v943 = vmul.f32 %v750, %v750
  %v944 = vmul.f32 %v751, %v751
  %v945 = vmul.f32 %v752, %v752
  %v946 = vmul.f32 %v753, %v753
  %v947 = vmul.f32 %v754, %v754
  %v948 = vmul.f32 %v755, %v755
  %v949 = vmul.f32 %v756, %v756
  %v950 = vmul.f32 %v757, %v757
  %v951 = vmul.f32 %v758, %v758
  %v952 = vmul.f32 %v759, %v759
  %v953 = vmul.f32 %v760, %v760
  %v954 = vmul.f32 %v761, %v761
  %v955 = vmul.f32 %v762, %v762
  %v956 = vmul.f32 %v763, %v763
  %v957 = vmul.f32 %v764, %v764
  %v958 = vmul.f32 %v765, %v765
  %v959 = vmul.f32 %v766, %v766
  %v960 = vmul.f32 %v767, %v767
  %v961 = vmul.f32 %v768, %v768
  %v962 = vmul.f32 %v769, %v769
  %v963 = vmul.f32 %v770, %v770
  %v964 = vmul.f32 %v771, %v771
  %v965 = vmul.f32 %v772, %v772
  %v966 = vmul.f32 %v773, %v773
  %v967 = vmul.f32 %v774, %v774
  %v968 = vmul.f32 %v775, %v775
  %v969 = vmul.f32 %v776, %v776
  %v970 = vmul.f32 %v777, %v777
  %v971 = vmul.f32 %v778, %v778
  %v972 = vmul.f32 %v779, %v779
  %v973 = vmul.f32 %v780, %v780
  %v974 = vmul.f32 %v781, %v781
  %v975 = vmul.f32 %v782, %v782
  %v976 = vmul.f32 %v783, %v783
  %v977 = vmul.f32 %v784, %v784
  %v978 = vmul.f32 %v785, %v785
  %v979 = vmul.f32 %v786, %v786
  %v980 = vmul.f32 %v787, %v787
  %v981 = vmul.f32 %v788, %v788
  %v982 = vmul.f32 %v789, %v789
  %v983 = vmul.f32 %v790, %v790
  %v984 = vmul.f32 %v791, %v791
  %v985 = vmul.f32 %v792, %v792
  %v986 = vmul.f32 %v793, %v793
  %v987 = vmul.f32 %v794, %v794
  %v988 = vmul.f32 %v795, %v795
  %v989 = vmul.f32 %v796, %v796
  %v990 = vmul.f32 %v797, %v797
  %v991 = vmul.f32 %v798, %v798
  %v992 = vmul.f32 %v799, %v799
  %v993 = vmul.f32 %v800, %v800
  %v994 = vmul.f32 %v801, %v801
  %v995 = vsel %vm867, %v931, 0.0
  %v996 = vsel %vm868, %v932, 0.0
  %v997 = vsel %vm869, %v933, 0.0
  %v998 = vsel %vm870, %v934, 0.0
  %v999 = vsel %vm871, %v935, 0.0
  %v1000 = vsel %vm872, %v936, 0.0
  %v1001 = vsel %vm873, %v937, 0.0
  %v1002 = vsel %vm874, %v938, 0.0
  %v1003 = vsel %vm875, %v939, 0.0
  %v1004 = vsel %vm876, %v940, 0.0
  %v1005 = vsel %vm877, %v941, 0.0
  %v1006 = vsel %vm878, %v942, 0.0
  %v1007 = vsel %vm879, %v943, 0.0
  %v1008 = vsel %vm880, %v944, 0.0
  %v1009 = vsel %vm881, %v945, 0.0
  %v1010 = vsel %vm882, %v946, 0.0
  %v1011 = vsel %vm883, %v947, 0.0
  %v1012 = vsel %vm884, %v948, 0.0
  %v1013 = vsel %vm885, %v949, 0.0
  %v1014 = vsel %vm886, %v950, 0.0
  %v1015 = vsel %vm887, %v951, 0.0
  %v1016 = vsel %vm888, %v952, 0.0
  %v1017 = vsel %vm889, %v953, 0.0
  %v1018 = vsel %vm890, %v954, 0.0
  %v1019 = vsel %vm891, %v955, 0.0
  %v1020 = vsel %vm892, %v956, 0.0
  %v1021 = vsel %vm893, %v957, 0.0
  %v1022 = vsel %vm894, %v958, 0.0
  %v1023 = vsel %vm895, %v959, 0.0
  %v1024 = vsel %vm896, %v960, 0.0
  %v1025 = vsel %vm897, %v961, 0.0
  %v1026 = vsel %vm898, %v962, 0.0
  %v1027 = vsel %vm899, %v963, 0.0
  %v1028 = vsel %vm900, %v964, 0.0
  %v1029 = vsel %vm901, %v965, 0.0
  %v1030 = vsel %vm902, %v966, 0.0
  %v1031 = vsel %vm903, %v967, 0.0
  %v1032 = vsel %vm904, %v968, 0.0
  %v1033 = vsel %vm905, %v969, 0.0
  %v1034 = vsel %vm906, %v970, 0.0
  %v1035 = vsel %vm907, %v971, 0.0
  %v1036 = vsel %vm908, %v972, 0.0
  %v1037 = vsel %vm909, %v973, 0.0
  %v1038 = vsel %vm910, %v974, 0.0
  %v1039 = vsel %vm911, %v975, 0.0
  %v1040 = vsel %vm912, %v976, 0.0
  %v1041 = vsel %vm913, %v977, 0.0
  %v1042 = vsel %vm914, %v978, 0.0
  %v1043 = vsel %vm915, %v979, 0.0
  %v1044 = vsel %vm916, %v980, 0.0
  %v1045 = vsel %vm917, %v981, 0.0
  %v1046 = vsel %vm918, %v982, 0.0
  %v1047 = vsel %vm919, %v983, 0.0
  %v1048 = vsel %vm920, %v984, 0.0
  %v1049 = vsel %vm921, %v985, 0.0
  %v1050 = vsel %vm922, %v986, 0.0
  %v1051 = vsel %vm923, %v987, 0.0
  %v1052 = vsel %vm924, %v988, 0.0
  %v1053 = vsel %vm925, %v989, 0.0
  %v1054 = vsel %vm926, %v990, 0.0
  %v1055 = vsel %vm927, %v991, 0.0
  %v1056 = vsel %vm928, %v992, 0.0
  %v1057 = vsel %vm929, %v993, 0.0
  %v1058 = vsel %vm930, %v994, 0.0
  %v1059 = vadd.f32 %v995, %v996
  %v1060 = vadd.f32 %v1059, %v997
  %v1061 = vadd.f32 %v1060, %v998
  %v1062 = vadd.f32 %v1061, %v999
  %v1063 = vadd.f32 %v1062, %v1000
  %v1064 = vadd.f32 %v1063, %v1001
  %v1065 = vadd.f32 %v1064, %v1002
  %v1066 = vadd.f32 %v1065, %v1003
  %v1067 = vadd.f32 %v1066, %v1004
  %v1068 = vadd.f32 %v1067, %v1005
  %v1069 = vadd.f32 %v1068, %v1006
  %v1070 = vadd.f32 %v1069, %v1007
  %v1071 = vadd.f32 %v1070, %v1008
  %v1072 = vadd.f32 %v1071, %v1009
  %v1073 = vadd.f32 %v1072, %v1010
  %v1074 = vadd.f32 %v1073, %v1011
  %v1075 = vadd.f32 %v1074, %v1012
  %v1076 = vadd.f32 %v1075, %v1013
  %v1077 = vadd.f32 %v1076, %v1014
  %v1078 = vadd.f32 %v1077, %v1015
  %v1079 = vadd.f32 %v1078, %v1016
  %v1080 = vadd.f32 %v1079, %v1017
  %v1081 = vadd.f32 %v1080, %v1018
  %v1082 = vadd.f32 %v1081, %v1019
  %v1083 = vadd.f32 %v1082, %v1020
  %v1084 = vadd.f32 %v1083, %v1021
  %v1085 = vadd.f32 %v1084, %v1022
  %v1086 = vadd.f32 %v1085, %v1023
  %v1087 = vadd.f32 %v1086, %v1024
  %v1088 = vadd.f32 %v1087, %v1025
  %v1089 = vadd.f32 %v1088, %v1026
  %v1090 = vadd.f32 %v1089, %v1027
  %v1091 = vadd.f32 %v1090, %v1028
  %v1092 = vadd.f32 %v1091, %v1029
  %v1093 = vadd.f32 %v1092, %v1030
  %v1094 = vadd.f32 %v1093, %v1031
  %v1095 = vadd.f32 %v1094, %v1032
  %v1096 = vadd.f32 %v1095, %v1033
  %v1097 = vadd.f32 %v1096, %v1034
  %v1098 = vadd.f32 %v1097, %v1035
  %v1099 = vadd.f32 %v1098, %v1036
  %v1100 = vadd.f32 %v1099, %v1037
  %v1101 = vadd.f32 %v1100, %v1038
  %v1102 = vadd.f32 %v1101, %v1039
  %v1103 = vadd.f32 %v1102, %v1040
  %v1104 = vadd.f32 %v1103, %v1041
  %v1105 = vadd.f32 %v1104, %v1042
  %v1106 = vadd.f32 %v1105, %v1043
  %v1107 = vadd.f32 %v1106, %v1044
  %v1108 = vadd.f32 %v1107, %v1045
  %v1109 = vadd.f32 %v1108, %v1046
  %v1110 = vadd.f32 %v1109, %v1047
  %v1111 = vadd.f32 %v1110, %v1048
  %v1112 = vadd.f32 %v1111, %v1049
  %v1113 = vadd.f32 %v1112, %v1050
  %v1114 = vadd.f32 %v1113, %v1051
  %v1115 = vadd.f32 %v1114, %v1052
  %v1116 = vadd.f32 %v1115, %v1053
  %v1117 = vadd.f32 %v1116, %v1054
  %v1118 = vadd.f32 %v1117, %v1055
  %v1119 = vadd.f32 %v1118, %v1056
  %v1120 = vadd.f32 %v1119, %v1057
  %v1121 = vadd.f32 %v1120, %v1058
  %v1122 = vrot.slane %v1121, 4
  %v1123 = vadd.f32 %v1121, %v1122
  %v1124 = vrot.slane %v1123, 2
  %v1125 = vadd.f32 %v1123, %v1124
  %v1126 = vrot.slane %v1125, 1
  %v1127 = vadd.f32 %v1125, %v1126
  %v1128 = vmul.f32 %v1127, 0.001953125
  %v1129 = vld [vmem:[%s2] sm:$0x1]
  %v1130 = vadd.f32 %v1128, 1e-05
  %v1131 = vrsqrt.pop %v1130
  %v1132 = vmul.f32 %v1129, %v1131
  %v1133 = vld [vmem:[%s3] sm:$0x1]
  %v1134 = vmul.f32 %v737, %v1132
  %v1135 = vsub.f32 %v1133, %v1134
  %v1137 = vlaneseq
  %v1138 = vshrl.u32 %v1137, 7
  %v1139 = vsub.s32 0, %v1138
  %v1140 = vrot.slane %v1132, %v1139
  %v1142 = vmul.f32 %v414, %v1140
  %v1143 = vmul.f32 %v417, %v1140
  %v1144 = vmul.f32 %v422, %v1140
  %v1145 = vmul.f32 %v425, %v1140
  %v1146 = vmul.f32 %v430, %v1140
  %v1147 = vmul.f32 %v433, %v1140
  %v1148 = vmul.f32 %v438, %v1140
  %v1149 = vmul.f32 %v441, %v1140
  %v1150 = vmul.f32 %v446, %v1140
  %v1151 = vmul.f32 %v449, %v1140
  %v1152 = vmul.f32 %v454, %v1140
  %v1153 = vmul.f32 %v457, %v1140
  %v1154 = vmul.f32 %v462, %v1140
  %v1155 = vmul.f32 %v465, %v1140
  %v1156 = vmul.f32 %v470, %v1140
  %v1157 = vmul.f32 %v473, %v1140
  %v1158 = vmul.f32 %v478, %v1140
  %v1159 = vmul.f32 %v481, %v1140
  %v1160 = vmul.f32 %v486, %v1140
  %v1161 = vmul.f32 %v489, %v1140
  %v1162 = vmul.f32 %v494, %v1140
  %v1163 = vmul.f32 %v497, %v1140
  %v1164 = vmul.f32 %v502, %v1140
  %v1165 = vmul.f32 %v505, %v1140
  %v1166 = vmul.f32 %v510, %v1140
  %v1167 = vmul.f32 %v513, %v1140
  %v1168 = vmul.f32 %v518, %v1140
  %v1169 = vmul.f32 %v521, %v1140
  %v1170 = vmul.f32 %v526, %v1140
  %v1171 = vmul.f32 %v529, %v1140
  %v1172 = vmul.f32 %v534, %v1140
  %v1173 = vmul.f32 %v537, %v1140
  %v1174 = vmul.f32 %v542, %v1140
  %v1175 = vmul.f32 %v545, %v1140
  %v1176 = vmul.f32 %v550, %v1140
  %v1177 = vmul.f32 %v553, %v1140
  %v1178 = vmul.f32 %v558, %v1140
  %v1179 = vmul.f32 %v561, %v1140
  %v1180 = vmul.f32 %v566, %v1140
  %v1181 = vmul.f32 %v569, %v1140
  %v1182 = vmul.f32 %v574, %v1140
  %v1183 = vmul.f32 %v577, %v1140
  %v1184 = vmul.f32 %v582, %v1140
  %v1185 = vmul.f32 %v585, %v1140
  %v1186 = vmul.f32 %v590, %v1140
  %v1187 = vmul.f32 %v593, %v1140
  %v1188 = vmul.f32 %v598, %v1140
  %v1189 = vmul.f32 %v601, %v1140
  %v1190 = vmul.f32 %v606, %v1140
  %v1191 = vmul.f32 %v609, %v1140
  %v1192 = vmul.f32 %v614, %v1140
  %v1193 = vmul.f32 %v617, %v1140
  %v1194 = vmul.f32 %v622, %v1140
  %v1195 = vmul.f32 %v625, %v1140
  %v1196 = vmul.f32 %v630, %v1140
  %v1197 = vmul.f32 %v633, %v1140
  %v1198 = vmul.f32 %v638, %v1140
  %v1199 = vmul.f32 %v641, %v1140
  %v1200 = vmul.f32 %v646, %v1140
  %v1201 = vmul.f32 %v649, %v1140
  %v1202 = vmul.f32 %v654, %v1140
  %v1203 = vmul.f32 %v657, %v1140
  %v1204 = vmul.f32 %v662, %v1140
  %v1205 = vmul.f32 %v665, %v1140
  %v1207 = vlaneseq
  %v1208 = vshrl.u32 %v1207, 7
  %v1209 = vsub.s32 0, %v1208
  %v1210 = vrot.slane %v1135, %v1209
  %v1212 = vadd.f32 %v1142, %v1210
  %v1213 = vadd.f32 %v1143, %v1210
  %v1214 = vadd.f32 %v1144, %v1210
  %v1215 = vadd.f32 %v1145, %v1210
  %v1216 = vadd.f32 %v1146, %v1210
  %v1217 = vadd.f32 %v1147, %v1210
  %v1218 = vadd.f32 %v1148, %v1210
  %v1219 = vadd.f32 %v1149, %v1210
  %v1220 = vadd.f32 %v1150, %v1210
  %v1221 = vadd.f32 %v1151, %v1210
  %v1222 = vadd.f32 %v1152, %v1210
  %v1223 = vadd.f32 %v1153, %v1210
  %v1224 = vadd.f32 %v1154, %v1210
  %v1225 = vadd.f32 %v1155, %v1210
  %v1226 = vadd.f32 %v1156, %v1210
  %v1227 = vadd.f32 %v1157, %v1210
  %v1228 = vadd.f32 %v1158, %v1210
  %v1229 = vadd.f32 %v1159, %v1210
  %v1230 = vadd.f32 %v1160, %v1210
  %v1231 = vadd.f32 %v1161, %v1210
  %v1232 = vadd.f32 %v1162, %v1210
  %v1233 = vadd.f32 %v1163, %v1210
  %v1234 = vadd.f32 %v1164, %v1210
  %v1235 = vadd.f32 %v1165, %v1210
  %v1236 = vadd.f32 %v1166, %v1210
  %v1237 = vadd.f32 %v1167, %v1210
  %v1238 = vadd.f32 %v1168, %v1210
  %v1239 = vadd.f32 %v1169, %v1210
  %v1240 = vadd.f32 %v1170, %v1210
  %v1241 = vadd.f32 %v1171, %v1210
  %v1242 = vadd.f32 %v1172, %v1210
  %v1243 = vadd.f32 %v1173, %v1210
  %v1244 = vadd.f32 %v1174, %v1210
  %v1245 = vadd.f32 %v1175, %v1210
  %v1246 = vadd.f32 %v1176, %v1210
  %v1247 = vadd.f32 %v1177, %v1210
  %v1248 = vadd.f32 %v1178, %v1210
  %v1249 = vadd.f32 %v1179, %v1210
  %v1250 = vadd.f32 %v1180, %v1210
  %v1251 = vadd.f32 %v1181, %v1210
  %v1252 = vadd.f32 %v1182, %v1210
  %v1253 = vadd.f32 %v1183, %v1210
  %v1254 = vadd.f32 %v1184, %v1210
  %v1255 = vadd.f32 %v1185, %v1210
  %v1256 = vadd.f32 %v1186, %v1210
  %v1257 = vadd.f32 %v1187, %v1210
  %v1258 = vadd.f32 %v1188, %v1210
  %v1259 = vadd.f32 %v1189, %v1210
  %v1260 = vadd.f32 %v1190, %v1210
  %v1261 = vadd.f32 %v1191, %v1210
  %v1262 = vadd.f32 %v1192, %v1210
  %v1263 = vadd.f32 %v1193, %v1210
  %v1264 = vadd.f32 %v1194, %v1210
  %v1265 = vadd.f32 %v1195, %v1210
  %v1266 = vadd.f32 %v1196, %v1210
  %v1267 = vadd.f32 %v1197, %v1210
  %v1268 = vadd.f32 %v1198, %v1210
  %v1269 = vadd.f32 %v1199, %v1210
  %v1270 = vadd.f32 %v1200, %v1210
  %v1271 = vadd.f32 %v1201, %v1210
  %v1272 = vadd.f32 %v1202, %v1210
  %v1273 = vadd.f32 %v1203, %v1210
  %v1274 = vadd.f32 %v1204, %v1210
  %v1275 = vadd.f32 %v1205, %v1210
  %v1276 = vmax.f32 %v1212, 0.0
  %v1277 = vmax.f32 %v1213, 0.0
  %v1278 = vmax.f32 %v1214, 0.0
  %v1279 = vmax.f32 %v1215, 0.0
  %v1280 = vmax.f32 %v1216, 0.0
  %v1281 = vmax.f32 %v1217, 0.0
  %v1282 = vmax.f32 %v1218, 0.0
  %v1283 = vmax.f32 %v1219, 0.0
  %v1284 = vmax.f32 %v1220, 0.0
  %v1285 = vmax.f32 %v1221, 0.0
  %v1286 = vmax.f32 %v1222, 0.0
  %v1287 = vmax.f32 %v1223, 0.0
  %v1288 = vmax.f32 %v1224, 0.0
  %v1289 = vmax.f32 %v1225, 0.0
  %v1290 = vmax.f32 %v1226, 0.0
  %v1291 = vmax.f32 %v1227, 0.0
  %v1292 = vmax.f32 %v1228, 0.0
  %v1293 = vmax.f32 %v1229, 0.0
  %v1294 = vmax.f32 %v1230, 0.0
  %v1295 = vmax.f32 %v1231, 0.0
  %v1296 = vmax.f32 %v1232, 0.0
  %v1297 = vmax.f32 %v1233, 0.0
  %v1298 = vmax.f32 %v1234, 0.0
  %v1299 = vmax.f32 %v1235, 0.0
  %v1300 = vmax.f32 %v1236, 0.0
  %v1301 = vmax.f32 %v1237, 0.0
  %v1302 = vmax.f32 %v1238, 0.0
  %v1303 = vmax.f32 %v1239, 0.0
  %v1304 = vmax.f32 %v1240, 0.0
  %v1305 = vmax.f32 %v1241, 0.0
  %v1306 = vmax.f32 %v1242, 0.0
  %v1307 = vmax.f32 %v1243, 0.0
  %v1308 = vmax.f32 %v1244, 0.0
  %v1309 = vmax.f32 %v1245, 0.0
  %v1310 = vmax.f32 %v1246, 0.0
  %v1311 = vmax.f32 %v1247, 0.0
  %v1312 = vmax.f32 %v1248, 0.0
  %v1313 = vmax.f32 %v1249, 0.0
  %v1314 = vmax.f32 %v1250, 0.0
  %v1315 = vmax.f32 %v1251, 0.0
  %v1316 = vmax.f32 %v1252, 0.0
  %v1317 = vmax.f32 %v1253, 0.0
  %v1318 = vmax.f32 %v1254, 0.0
  %v1319 = vmax.f32 %v1255, 0.0
  %v1320 = vmax.f32 %v1256, 0.0
  %v1321 = vmax.f32 %v1257, 0.0
  %v1322 = vmax.f32 %v1258, 0.0
  %v1323 = vmax.f32 %v1259, 0.0
  %v1324 = vmax.f32 %v1260, 0.0
  %v1325 = vmax.f32 %v1261, 0.0
  %v1326 = vmax.f32 %v1262, 0.0
  %v1327 = vmax.f32 %v1263, 0.0
  %v1328 = vmax.f32 %v1264, 0.0
  %v1329 = vmax.f32 %v1265, 0.0
  %v1330 = vmax.f32 %v1266, 0.0
  %v1331 = vmax.f32 %v1267, 0.0
  %v1332 = vmax.f32 %v1268, 0.0
  %v1333 = vmax.f32 %v1269, 0.0
  %v1334 = vmax.f32 %v1270, 0.0
  %v1335 = vmax.f32 %v1271, 0.0
  %v1336 = vmax.f32 %v1272, 0.0
  %v1337 = vmax.f32 %v1273, 0.0
  %v1338 = vmax.f32 %v1274, 0.0
  %v1339 = vmax.f32 %v1275, 0.0
  %vm1340 = vcmask 64512
  %1341 = vst.msk [vmem:[%s4] sm:$0xff] %vm1340, %v1276
  %1342 = vst.msk [vmem:[%s4 + $0x8] sm:$0xff] %vm1340, %v1277
  %1343 = vst.msk [vmem:[%s4 + $0x10] sm:$0xff] %vm1340, %v1278
  %1344 = vst.msk [vmem:[%s4 + $0x18] sm:$0xff] %vm1340, %v1279
  %1345 = vst.msk [vmem:[%s4 + $0x20] sm:$0xff] %vm1340, %v1280
  %1346 = vst.msk [vmem:[%s4 + $0x28] sm:$0xff] %vm1340, %v1281
  %1347 = vst.msk [vmem:[%s4 + $0x30] sm:$0xff] %vm1340, %v1282
  %1348 = vst.msk [vmem:[%s4 + $0x38] sm:$0xff] %vm1340, %v1283
  %1349 = vst.msk [vmem:[%s4 + $0x40] sm:$0xff] %vm1340, %v1284
  %1350 = vst.msk [vmem:[%s4 + $0x48] sm:$0xff] %vm1340, %v1285
  %1351 = vst.msk [vmem:[%s4 + $0x50] sm:$0xff] %vm1340, %v1286
  %1352 = vst.msk [vmem:[%s4 + $0x58] sm:$0xff] %vm1340, %v1287
  %1353 = vst.msk [vmem:[%s4 + $0x60] sm:$0xff] %vm1340, %v1288
  %1354 = vst.msk [vmem:[%s4 + $0x68] sm:$0xff] %vm1340, %v1289
  %1355 = vst.msk [vmem:[%s4 + $0x70] sm:$0xff] %vm1340, %v1290
  %1356 = vst.msk [vmem:[%s4 + $0x78] sm:$0xff] %vm1340, %v1291
  %1357 = vst.msk [vmem:[%s4 + $0x80] sm:$0xff] %vm1340, %v1292
  %1358 = vst.msk [vmem:[%s4 + $0x88] sm:$0xff] %vm1340, %v1293
  %1359 = vst.msk [vmem:[%s4 + $0x90] sm:$0xff] %vm1340, %v1294
  %1360 = vst.msk [vmem:[%s4 + $0x98] sm:$0xff] %vm1340, %v1295
  %1361 = vst.msk [vmem:[%s4 + $0xa0] sm:$0xff] %vm1340, %v1296
  %1362 = vst.msk [vmem:[%s4 + $0xa8] sm:$0xff] %vm1340, %v1297
  %1363 = vst.msk [vmem:[%s4 + $0xb0] sm:$0xff] %vm1340, %v1298
  %1364 = vst.msk [vmem:[%s4 + $0xb8] sm:$0xff] %vm1340, %v1299
  %1365 = vst.msk [vmem:[%s4 + $0xc0] sm:$0xff] %vm1340, %v1300
  %1366 = vst.msk [vmem:[%s4 + $0xc8] sm:$0xff] %vm1340, %v1301
  %1367 = vst.msk [vmem:[%s4 + $0xd0] sm:$0xff] %vm1340, %v1302
  %1368 = vst.msk [vmem:[%s4 + $0xd8] sm:$0xff] %vm1340, %v1303
  %1369 = vst.msk [vmem:[%s4 + $0xe0] sm:$0xff] %vm1340, %v1304
  %1370 = vst.msk [vmem:[%s4 + $0xe8] sm:$0xff] %vm1340, %v1305
  %1371 = vst.msk [vmem:[%s4 + $0xf0] sm:$0xff] %vm1340, %v1306
  %1372 = vst.msk [vmem:[%s4 + $0xf8] sm:$0xff] %vm1340, %v1307
  %1373 = vst.msk [vmem:[%s4 + $0x100] sm:$0xff] %vm1340, %v1308
  %1374 = vst.msk [vmem:[%s4 + $0x108] sm:$0xff] %vm1340, %v1309
  %1375 = vst.msk [vmem:[%s4 + $0x110] sm:$0xff] %vm1340, %v1310
  %1376 = vst.msk [vmem:[%s4 + $0x118] sm:$0xff] %vm1340, %v1311
  %1377 = vst.msk [vmem:[%s4 + $0x120] sm:$0xff] %vm1340, %v1312
  %1378 = vst.msk [vmem:[%s4 + $0x128] sm:$0xff] %vm1340, %v1313
  %1379 = vst.msk [vmem:[%s4 + $0x130] sm:$0xff] %vm1340, %v1314
  %1380 = vst.msk [vmem:[%s4 + $0x138] sm:$0xff] %vm1340, %v1315
  %1381 = vst.msk [vmem:[%s4 + $0x140] sm:$0xff] %vm1340, %v1316
  %1382 = vst.msk [vmem:[%s4 + $0x148] sm:$0xff] %vm1340, %v1317
  %1383 = vst.msk [vmem:[%s4 + $0x150] sm:$0xff] %vm1340, %v1318
  %1384 = vst.msk [vmem:[%s4 + $0x158] sm:$0xff] %vm1340, %v1319
  %1385 = vst.msk [vmem:[%s4 + $0x160] sm:$0xff] %vm1340, %v1320
  %1386 = vst.msk [vmem:[%s4 + $0x168] sm:$0xff] %vm1340, %v1321
  %1387 = vst.msk [vmem:[%s4 + $0x170] sm:$0xff] %vm1340, %v1322
  %1388 = vst.msk [vmem:[%s4 + $0x178] sm:$0xff] %vm1340, %v1323
  %1389 = vst.msk [vmem:[%s4 + $0x180] sm:$0xff] %vm1340, %v1324
  %1390 = vst.msk [vmem:[%s4 + $0x188] sm:$0xff] %vm1340, %v1325
  %1391 = vst.msk [vmem:[%s4 + $0x190] sm:$0xff] %vm1340, %v1326
  %1392 = vst.msk [vmem:[%s4 + $0x198] sm:$0xff] %vm1340, %v1327
  %1393 = vst.msk [vmem:[%s4 + $0x1a0] sm:$0xff] %vm1340, %v1328
  %1394 = vst.msk [vmem:[%s4 + $0x1a8] sm:$0xff] %vm1340, %v1329
  %1395 = vst.msk [vmem:[%s4 + $0x1b0] sm:$0xff] %vm1340, %v1330
  %1396 = vst.msk [vmem:[%s4 + $0x1b8] sm:$0xff] %vm1340, %v1331
  %1397 = vst.msk [vmem:[%s4 + $0x1c0] sm:$0xff] %vm1340, %v1332
  %1398 = vst.msk [vmem:[%s4 + $0x1c8] sm:$0xff] %vm1340, %v1333
  %1399 = vst.msk [vmem:[%s4 + $0x1d0] sm:$0xff] %vm1340, %v1334
  %1400 = vst.msk [vmem:[%s4 + $0x1d8] sm:$0xff] %vm1340, %v1335
  %1401 = vst.msk [vmem:[%s4 + $0x1e0] sm:$0xff] %vm1340, %v1336
  %1402 = vst.msk [vmem:[%s4 + $0x1e8] sm:$0xff] %vm1340, %v1337
  %1403 = vst.msk [vmem:[%s4 + $0x1f0] sm:$0xff] %vm1340, %v1338
  %1404 = vst.msk [vmem:[%s4 + $0x1f8] sm:$0xff] %vm1340, %v1339
  // Predicated region
  $region18: #{drn_forward.18} parent=0 // pred_check
    _
  $region19: #{drn_forward.18} parent=0 // pred_check_branch
    %1406 = sbr.rel (0) target = $region21
  $region20: #{drn_forward.18} parent=0 // pred_region
    _
  $region21: #{drn_forward.18} parent=0 // pred_fallthru
    _
  // Predicated region
  $region22: #{drn_forward.18} parent=0 // pred_check
    _
  $region23: #{drn_forward.18} parent=0 // pred_check_branch
    %1408 = sbr.rel (0) target = $region25
  $region24: #{drn_forward.18} parent=0 // pred_region
    _
  $region25: #{drn_forward.18} parent=0 // pred_fallthru
    _

// kernel: drn_forward.17
$region0: #{drn_forward.17}
  #allocation0 [shape = 'u32[]', space=smem, size = 0x4, offset = 0x4, fixed_abs, tag = 'smem constant byte address 0x4 - core index']
  #allocation1 [shape = 'u32[144,128]{1,0:T(1,128)}', space=vmem, size = 0x12000, scoped, tag = 'internal scratch']
  %s0 = inlined_call_operand.vmem [shape: bf16[512,160], index: 0, kind: input, shape index: {}]
  %s1 = inlined_call_operand.vmem [shape: bf16[160,128], index: 1, kind: input, shape index: {}]
  %s2 = inlined_call_operand.vmem [shape: f32[1,128], index: 2, kind: input, shape index: {}]
  %s3 = inlined_call_operand.vmem [shape: f32[1,128], index: 3, kind: input, shape index: {}]
  %s4 = inlined_call_operand.vmem [shape: f32[512,8], index: 4, kind: output, shape index: {}]
  %s5 = sld [smem:[#allocation0]]
  $region26: #{drn_forward.17} parent=0
    _
  %s7 = ssub.s32 1, %s5
  %s8 = scalar_select 0, %s7, %s5
  // Predicated region
  $region2: #{drn_forward.17} parent=0 // pred_check
    _
  $region3: #{drn_forward.17} parent=0 // pred_check_branch
    %10 = sbr.rel (0) target = $region5
  $region4: #{drn_forward.17} parent=0 // pred_region
    _
  $region5: #{drn_forward.17} parent=0 // pred_fallthru
    _
  // Predicated region
  $region6: #{drn_forward.17} parent=0 // pred_check
    _
  $region7: #{drn_forward.17} parent=0 // pred_check_branch
    %12 = sbr.rel (0) target = $region9
  $region8: #{drn_forward.17} parent=0 // pred_region
    _
  $region9: #{drn_forward.17} parent=0 // pred_fallthru
    _
  // Predicated region
  $region10: #{drn_forward.17} parent=0 // pred_check
    _
  $region11: #{drn_forward.17} parent=0 // pred_check_branch
    %14 = sbr.rel (0) target = $region13
  $region12: #{drn_forward.17} parent=0 // pred_region
    _
  $region13: #{drn_forward.17} parent=0 // pred_fallthru
    _
  // Predicated region
  $region14: #{drn_forward.17} parent=0 // pred_check
    _
  $region15: #{drn_forward.17} parent=0 // pred_check_branch
    %16 = sbr.rel (0) target = $region17
  $region16: #{drn_forward.17} parent=0 // pred_region
    _
  $region17: #{drn_forward.17} parent=0 // pred_fallthru
    _
  %v18 = vld [vmem:[%s0] sm:$0xff]
  %v19 = vld [vmem:[%s0 + $0x8] sm:$0xff]
  %v20 = vld [vmem:[%s0 + $0x10] sm:$0xff]
  %v21 = vld [vmem:[%s0 + $0x18] sm:$0xff]
  %v22 = vld [vmem:[%s0 + $0x20] sm:$0xff]
  %v23 = vld [vmem:[%s0 + $0x28] sm:$0xff]
  %v24 = vld [vmem:[%s0 + $0x30] sm:$0xff]
  %v25 = vld [vmem:[%s0 + $0x38] sm:$0xff]
  %v26 = vld [vmem:[%s0 + $0x40] sm:$0xff]
  %v27 = vld [vmem:[%s0 + $0x48] sm:$0xff]
  %v28 = vld [vmem:[%s0 + $0x50] sm:$0xff]
  %v29 = vld [vmem:[%s0 + $0x58] sm:$0xff]
  %v30 = vld [vmem:[%s0 + $0x60] sm:$0xff]
  %v31 = vld [vmem:[%s0 + $0x68] sm:$0xff]
  %v32 = vld [vmem:[%s0 + $0x70] sm:$0xff]
  %v33 = vld [vmem:[%s0 + $0x78] sm:$0xff]
  %v34 = vld [vmem:[%s0 + $0x80] sm:$0xff]
  %v35 = vld [vmem:[%s0 + $0x88] sm:$0xff]
  %v36 = vld [vmem:[%s0 + $0x90] sm:$0xff]
  %v37 = vld [vmem:[%s0 + $0x98] sm:$0xff]
  %v38 = vld [vmem:[%s0 + $0xa0] sm:$0xff]
  %v39 = vld [vmem:[%s0 + $0xa8] sm:$0xff]
  %v40 = vld [vmem:[%s0 + $0xb0] sm:$0xff]
  %v41 = vld [vmem:[%s0 + $0xb8] sm:$0xff]
  %v42 = vld [vmem:[%s0 + $0xc0] sm:$0xff]
  %v43 = vld [vmem:[%s0 + $0xc8] sm:$0xff]
  %v44 = vld [vmem:[%s0 + $0xd0] sm:$0xff]
  %v45 = vld [vmem:[%s0 + $0xd8] sm:$0xff]
  %v46 = vld [vmem:[%s0 + $0xe0] sm:$0xff]
  %v47 = vld [vmem:[%s0 + $0xe8] sm:$0xff]
  %v48 = vld [vmem:[%s0 + $0xf0] sm:$0xff]
  %v49 = vld [vmem:[%s0 + $0xf8] sm:$0xff]
  %v50 = vld [vmem:[%s0 + $0x100] sm:$0xff]
  %v51 = vld [vmem:[%s0 + $0x108] sm:$0xff]
  %v52 = vld [vmem:[%s0 + $0x110] sm:$0xff]
  %v53 = vld [vmem:[%s0 + $0x118] sm:$0xff]
  %v54 = vld [vmem:[%s0 + $0x120] sm:$0xff]
  %v55 = vld [vmem:[%s0 + $0x128] sm:$0xff]
  %v56 = vld [vmem:[%s0 + $0x130] sm:$0xff]
  %v57 = vld [vmem:[%s0 + $0x138] sm:$0xff]
  %v58 = vld [vmem:[%s0 + $0x140] sm:$0xff]
  %v59 = vld [vmem:[%s0 + $0x148] sm:$0xff]
  %v60 = vld [vmem:[%s0 + $0x150] sm:$0xff]
  %v61 = vld [vmem:[%s0 + $0x158] sm:$0xff]
  %v62 = vld [vmem:[%s0 + $0x160] sm:$0xff]
  %v63 = vld [vmem:[%s0 + $0x168] sm:$0xff]
  %v64 = vld [vmem:[%s0 + $0x170] sm:$0xff]
  %v65 = vld [vmem:[%s0 + $0x178] sm:$0xff]
  %v66 = vld [vmem:[%s0 + $0x180] sm:$0xff]
  %v67 = vld [vmem:[%s0 + $0x188] sm:$0xff]
  %v68 = vld [vmem:[%s0 + $0x190] sm:$0xff]
  %v69 = vld [vmem:[%s0 + $0x198] sm:$0xff]
  %v70 = vld [vmem:[%s0 + $0x1a0] sm:$0xff]
  %v71 = vld [vmem:[%s0 + $0x1a8] sm:$0xff]
  %v72 = vld [vmem:[%s0 + $0x1b0] sm:$0xff]
  %v73 = vld [vmem:[%s0 + $0x1b8] sm:$0xff]
  %v74 = vld [vmem:[%s0 + $0x1c0] sm:$0xff]
  %v75 = vld [vmem:[%s0 + $0x1c8] sm:$0xff]
  %v76 = vld [vmem:[%s0 + $0x1d0] sm:$0xff]
  %v77 = vld [vmem:[%s0 + $0x1d8] sm:$0xff]
  %v78 = vld [vmem:[%s0 + $0x1e0] sm:$0xff]
  %v79 = vld [vmem:[%s0 + $0x1e8] sm:$0xff]
  %v80 = vld [vmem:[%s0 + $0x1f0] sm:$0xff]
  %v81 = vld [vmem:[%s0 + $0x1f8] sm:$0xff]
  %v82 = vld [vmem:[%s1] sm:$0xf]
  %v83 = vld [vmem:[%s1 + $0x4] sm:$0xf]
  %v84 = vld [vmem:[%s1 + $0x8] sm:$0xf]
  %v85 = vld [vmem:[%s1 + $0xc] sm:$0xf]
  %v86 = vld [vmem:[%s1 + $0x10] sm:$0xf]
  %v87 = vld [vmem:[%s1 + $0x14] sm:$0xf]
  %v88 = vld [vmem:[%s1 + $0x18] sm:$0xf]
  %v89 = vld [vmem:[%s1 + $0x1c] sm:$0xf]
  %v90 = vld [vmem:[%s1 + $0x20] sm:$0xf]
  %v91 = vld [vmem:[%s1 + $0x24] sm:$0xf]
  %v92 = vld [vmem:[%s1 + $0x28] sm:$0xf]
  %v93 = vld [vmem:[%s1 + $0x2c] sm:$0xf]
  %v94 = vld [vmem:[%s1 + $0x30] sm:$0xf]
  %v95 = vld [vmem:[%s1 + $0x34] sm:$0xf]
  %v96 = vld [vmem:[%s1 + $0x38] sm:$0xf]
  %v97 = vld [vmem:[%s1 + $0x3c] sm:$0xf]
  %v98 = vld [vmem:[%s1 + $0x40] sm:$0xf]
  %v99 = vld [vmem:[%s1 + $0x44] sm:$0xf]
  %v100 = vld [vmem:[%s1 + $0x48] sm:$0xf]
  %v101 = vld [vmem:[%s1 + $0x4c] sm:$0xf]
  %v166 = vunpack.c.l.b16 %v18
  %v167 = vunpack.c.h.b16 %v18
  %v168 = vunpack.c.l.b16 %v19
  %v169 = vunpack.c.h.b16 %v19
  %v170 = vunpack.c.l.b16 %v20
  %v171 = vunpack.c.h.b16 %v20
  %v172 = vunpack.c.l.b16 %v21
  %v173 = vunpack.c.h.b16 %v21
  %v174 = vunpack.c.l.b16 %v22
  %v175 = vunpack.c.h.b16 %v22
  %v176 = vunpack.c.l.b16 %v23
  %v177 = vunpack.c.h.b16 %v23
  %v178 = vunpack.c.l.b16 %v24
  %v179 = vunpack.c.h.b16 %v24
  %v180 = vunpack.c.l.b16 %v25
  %v181 = vunpack.c.h.b16 %v25
  %v182 = vunpack.c.l.b16 %v26
  %v183 = vunpack.c.h.b16 %v26
  %v184 = vunpack.c.l.b16 %v27
  %v185 = vunpack.c.h.b16 %v27
  %v186 = vunpack.c.l.b16 %v28
  %v187 = vunpack.c.h.b16 %v28
  %v188 = vunpack.c.l.b16 %v29
  %v189 = vunpack.c.h.b16 %v29
  %v190 = vunpack.c.l.b16 %v30
  %v191 = vunpack.c.h.b16 %v30
  %v192 = vunpack.c.l.b16 %v31
  %v193 = vunpack.c.h.b16 %v31
  %v194 = vunpack.c.l.b16 %v32
  %v195 = vunpack.c.h.b16 %v32
  %v196 = vunpack.c.l.b16 %v33
  %v197 = vunpack.c.h.b16 %v33
  %v198 = vunpack.c.l.b16 %v34
  %v199 = vunpack.c.h.b16 %v34
  %v200 = vunpack.c.l.b16 %v35
  %v201 = vunpack.c.h.b16 %v35
  %v202 = vunpack.c.l.b16 %v36
  %v203 = vunpack.c.h.b16 %v36
  %v204 = vunpack.c.l.b16 %v37
  %v205 = vunpack.c.h.b16 %v37
  %v206 = vunpack.c.l.b16 %v38
  %v207 = vunpack.c.h.b16 %v38
  %v208 = vunpack.c.l.b16 %v39
  %v209 = vunpack.c.h.b16 %v39
  %v210 = vunpack.c.l.b16 %v40
  %v211 = vunpack.c.h.b16 %v40
  %v212 = vunpack.c.l.b16 %v41
  %v213 = vunpack.c.h.b16 %v41
  %v214 = vunpack.c.l.b16 %v42
  %v215 = vunpack.c.h.b16 %v42
  %v216 = vunpack.c.l.b16 %v43
  %v217 = vunpack.c.h.b16 %v43
  %v218 = vunpack.c.l.b16 %v44
  %v219 = vunpack.c.h.b16 %v44
  %v220 = vunpack.c.l.b16 %v45
  %v221 = vunpack.c.h.b16 %v45
  %v222 = vunpack.c.l.b16 %v46
  %v223 = vunpack.c.h.b16 %v46
  %v224 = vunpack.c.l.b16 %v47
  %v225 = vunpack.c.h.b16 %v47
  %v226 = vunpack.c.l.b16 %v48
  %v227 = vunpack.c.h.b16 %v48
  %v228 = vunpack.c.l.b16 %v49
  %v229 = vunpack.c.h.b16 %v49
  %v230 = vunpack.c.l.b16 %v50
  %v231 = vunpack.c.h.b16 %v50
  %v232 = vunpack.c.l.b16 %v51
  %v233 = vunpack.c.h.b16 %v51
  %v234 = vunpack.c.l.b16 %v52
  %v235 = vunpack.c.h.b16 %v52
  %v236 = vunpack.c.l.b16 %v53
  %v237 = vunpack.c.h.b16 %v53
  %v238 = vunpack.c.l.b16 %v54
  %v239 = vunpack.c.h.b16 %v54
  %v240 = vunpack.c.l.b16 %v55
  %v241 = vunpack.c.h.b16 %v55
  %v242 = vunpack.c.l.b16 %v56
  %v243 = vunpack.c.h.b16 %v56
  %v244 = vunpack.c.l.b16 %v57
  %v245 = vunpack.c.h.b16 %v57
  %v246 = vunpack.c.l.b16 %v58
  %v247 = vunpack.c.h.b16 %v58
  %v248 = vunpack.c.l.b16 %v59
  %v249 = vunpack.c.h.b16 %v59
  %v250 = vunpack.c.l.b16 %v60
  %v251 = vunpack.c.h.b16 %v60
  %v252 = vunpack.c.l.b16 %v61
  %v253 = vunpack.c.h.b16 %v61
  %v254 = vunpack.c.l.b16 %v62
  %v255 = vunpack.c.h.b16 %v62
  %v256 = vunpack.c.l.b16 %v63
  %v257 = vunpack.c.h.b16 %v63
  %v258 = vunpack.c.l.b16 %v64
  %v259 = vunpack.c.h.b16 %v64
  %v260 = vunpack.c.l.b16 %v65
  %v261 = vunpack.c.h.b16 %v65
  %v262 = vunpack.c.l.b16 %v66
  %v263 = vunpack.c.h.b16 %v66
  %v264 = vunpack.c.l.b16 %v67
  %v265 = vunpack.c.h.b16 %v67
  %v266 = vunpack.c.l.b16 %v68
  %v267 = vunpack.c.h.b16 %v68
  %v268 = vunpack.c.l.b16 %v69
  %v269 = vunpack.c.h.b16 %v69
  %v270 = vunpack.c.l.b16 %v70
  %v271 = vunpack.c.h.b16 %v70
  %v272 = vunpack.c.l.b16 %v71
  %v273 = vunpack.c.h.b16 %v71
  %v274 = vunpack.c.l.b16 %v72
  %v275 = vunpack.c.h.b16 %v72
  %v276 = vunpack.c.l.b16 %v73
  %v277 = vunpack.c.h.b16 %v73
  %v278 = vunpack.c.l.b16 %v74
  %v279 = vunpack.c.h.b16 %v74
  %v280 = vunpack.c.l.b16 %v75
  %v281 = vunpack.c.h.b16 %v75
  %v282 = vunpack.c.l.b16 %v76
  %v283 = vunpack.c.h.b16 %v76
  %v284 = vunpack.c.l.b16 %v77
  %v285 = vunpack.c.h.b16 %v77
  %v286 = vunpack.c.l.b16 %v78
  %v287 = vunpack.c.h.b16 %v78
  %v288 = vunpack.c.l.b16 %v79
  %v289 = vunpack.c.h.b16 %v79
  %v290 = vunpack.c.l.b16 %v80
  %v291 = vunpack.c.h.b16 %v80
  %v292 = vunpack.c.l.b16 %v81
  %v293 = vunpack.c.h.b16 %v81
  %v294 = vpack.c.b16 %v168, %v166
  %v295 = vpack.c.b16 %v169, %v167
  %v296 = vpack.c.b16 %v172, %v170
  %v297 = vpack.c.b16 %v173, %v171
  %v298 = vpack.c.b16 %v176, %v174
  %v299 = vpack.c.b16 %v177, %v175
  %v300 = vpack.c.b16 %v180, %v178
  %v301 = vpack.c.b16 %v181, %v179
  %v302 = vpack.c.b16 %v184, %v182
  %v303 = vpack.c.b16 %v185, %v183
  %v304 = vpack.c.b16 %v188, %v186
  %v305 = vpack.c.b16 %v189, %v187
  %v306 = vpack.c.b16 %v192, %v190
  %v307 = vpack.c.b16 %v193, %v191
  %v308 = vpack.c.b16 %v196, %v194
  %v309 = vpack.c.b16 %v197, %v195
  %v310 = vpack.c.b16 %v200, %v198
  %v311 = vpack.c.b16 %v201, %v199
  %v312 = vpack.c.b16 %v204, %v202
  %v313 = vpack.c.b16 %v205, %v203
  %v314 = vpack.c.b16 %v208, %v206
  %v315 = vpack.c.b16 %v209, %v207
  %v316 = vpack.c.b16 %v212, %v210
  %v317 = vpack.c.b16 %v213, %v211
  %v318 = vpack.c.b16 %v216, %v214
  %v319 = vpack.c.b16 %v217, %v215
  %v320 = vpack.c.b16 %v220, %v218
  %v321 = vpack.c.b16 %v221, %v219
  %v322 = vpack.c.b16 %v224, %v222
  %v323 = vpack.c.b16 %v225, %v223
  %v324 = vpack.c.b16 %v228, %v226
  %v325 = vpack.c.b16 %v229, %v227
  %v326 = vpack.c.b16 %v232, %v230
  %v327 = vpack.c.b16 %v233, %v231
  %v328 = vpack.c.b16 %v236, %v234
  %v329 = vpack.c.b16 %v237, %v235
  %v330 = vpack.c.b16 %v240, %v238
  %v331 = vpack.c.b16 %v241, %v239
  %v332 = vpack.c.b16 %v244, %v242
  %v333 = vpack.c.b16 %v245, %v243
  %v334 = vpack.c.b16 %v248, %v246
  %v335 = vpack.c.b16 %v249, %v247
  %v336 = vpack.c.b16 %v252, %v250
  %v337 = vpack.c.b16 %v253, %v251
  %v338 = vpack.c.b16 %v256, %v254
  %v339 = vpack.c.b16 %v257, %v255
  %v340 = vpack.c.b16 %v260, %v258
  %v341 = vpack.c.b16 %v261, %v259
  %v342 = vpack.c.b16 %v264, %v262
  %v343 = vpack.c.b16 %v265, %v263
  %v344 = vpack.c.b16 %v268, %v266
  %v345 = vpack.c.b16 %v269, %v267
  %v346 = vpack.c.b16 %v272, %v270
  %v347 = vpack.c.b16 %v273, %v271
  %v348 = vpack.c.b16 %v276, %v274
  %v349 = vpack.c.b16 %v277, %v275
  %v350 = vpack.c.b16 %v280, %v278
  %v351 = vpack.c.b16 %v281, %v279
  %v352 = vpack.c.b16 %v284, %v282
  %v353 = vpack.c.b16 %v285, %v283
  %v354 = vpack.c.b16 %v288, %v286
  %v355 = vpack.c.b16 %v289, %v287
  %v356 = vpack.c.b16 %v292, %v290
  %v357 = vpack.c.b16 %v293, %v291
  %v410 = vunpack.c.l.b16 %v82
  %v411 = vunpack.c.l.b16 %v83
  %v412 = vunpack.c.l.b16 %v84
  %v413 = vunpack.c.l.b16 %v85
  %v414 = vunpack.c.l.b16 %v86
  %v415 = vunpack.c.l.b16 %v87
  %v416 = vunpack.c.l.b16 %v88
  %v417 = vunpack.c.l.b16 %v89
  %v418 = vunpack.c.l.b16 %v90
  %v419 = vunpack.c.l.b16 %v91
  %v420 = vunpack.c.l.b16 %v92
  %v421 = vunpack.c.l.b16 %v93
  %v422 = vunpack.c.l.b16 %v94
  %v423 = vunpack.c.l.b16 %v95
  %v424 = vunpack.c.l.b16 %v96
  %v425 = vunpack.c.l.b16 %v97
  %v426 = vunpack.c.l.b16 %v98
  %v427 = vunpack.c.l.b16 %v99
  %v428 = vunpack.c.l.b16 %v100
  %v429 = vunpack.c.l.b16 %v101
  %v430 = vpack.c.b16 %v411, %v410
  %v431 = vpack.c.b16 %v413, %v412
  %v432 = vpack.c.b16 %v415, %v414
  %v433 = vpack.c.b16 %v417, %v416
  %v434 = vpack.c.b16 %v419, %v418
  %v435 = vpack.c.b16 %v421, %v420
  %v436 = vpack.c.b16 %v423, %v422
  %v437 = vpack.c.b16 %v425, %v424
  %v438 = vpack.c.b16 %v427, %v426
  %v439 = vpack.c.b16 %v429, %v428
  %vm450 = vcmask 261120
  %v452 = vsel %vm450, %v295, 0
  %v455 = vsel %vm450, %v297, 0
  %v458 = vsel %vm450, %v299, 0
  %v461 = vsel %vm450, %v301, 0
  %v464 = vsel %vm450, %v303, 0
  %v467 = vsel %vm450, %v305, 0
  %v470 = vsel %vm450, %v307, 0
  %v473 = vsel %vm450, %v309, 0
  %v476 = vsel %vm450, %v311, 0
  %v479 = vsel %vm450, %v313, 0
  %v482 = vsel %vm450, %v315, 0
  %v485 = vsel %vm450, %v317, 0
  %v488 = vsel %vm450, %v319, 0
  %v491 = vsel %vm450, %v321, 0
  %v494 = vsel %vm450, %v323, 0
  %v497 = vsel %vm450, %v325, 0
  %v500 = vsel %vm450, %v327, 0
  %v503 = vsel %vm450, %v329, 0
  %v506 = vsel %vm450, %v331, 0
  %v509 = vsel %vm450, %v333, 0
  %v512 = vsel %vm450, %v335, 0
  %v515 = vsel %vm450, %v337, 0
  %v518 = vsel %vm450, %v339, 0
  %v521 = vsel %vm450, %v341, 0
  %v524 = vsel %vm450, %v343, 0
  %v527 = vsel %vm450, %v345, 0
  %v530 = vsel %vm450, %v347, 0
  %v533 = vsel %vm450, %v349, 0
  %v536 = vsel %vm450, %v351, 0
  %v539 = vsel %vm450, %v353, 0
  %v542 = vsel %vm450, %v355, 0
  %v545 = vsel %vm450, %v357, 0
  %547 = vmatprep.subr.bf16.mxu0 0
  %548 = vmatpush1.bf16.msra.mxu0 %v437
  %549 = vmatprep.subr.bf16.mxu0 0
  %550 = vmatpush1.bf16.msra.mxu0 %v436
  %551 = vmatprep.subr.bf16.mxu0 0
  %552 = vmatpush1.bf16.msra.mxu0 %v435
  %553 = vmatprep.subr.bf16.mxu0 0
  %554 = vmatpush1.bf16.msra.mxu0 %v434
  %555 = vmatprep.subr.bf16.mxu0 0
  %556 = vmatpush1.bf16.msra.mxu0 %v433
  %557 = vmatprep.subr.bf16.mxu0 0
  %558 = vmatpush1.bf16.msra.mxu0 %v432
  %559 = vmatprep.subr.bf16.mxu0 0
  %560 = vmatpush1.bf16.msra.mxu0 %v431
  %561 = vmatprep.subr.bf16.mxu0 0
  %562 = vmatpush1.bf16.msra.mxu0 %v430
  %563 = vmatprep.subr.bf16.mxu0 0
  %564 = vmatpush2.bf16.msra.mxu0 0
  %565 = vmatprep.subr.bf16.mxu0 0
  %566 = vmatpush2.bf16.msra.mxu0 0
  %567 = vmatprep.subr.bf16.mxu0 0
  %568 = vmatpush2.bf16.msra.mxu0 0
  %569 = vmatprep.subr.bf16.mxu0 0
  %570 = vmatpush2.bf16.msra.mxu0 0
  %571 = vmatprep.subr.bf16.mxu0 0
  %572 = vmatpush2.bf16.msra.mxu0 0
  %573 = vmatprep.subr.bf16.mxu0 0
  %574 = vmatpush2.bf16.msra.mxu0 0
  %575 = vmatprep.subr.bf16.mxu0 0
  %576 = vmatpush2.bf16.msra.mxu0 %v439
  %577 = vmatprep.subr.bf16.mxu0 0
  %578 = vmatpush2.bf16.msra.mxu0 %v438
  %579 = vmatprep.mubr.bf16.mxu0 %v452
  %580 = vmatmul.mubr.bf16.gmra.mxu0 %v294
  %v581 = vpop.f32.mrf.mxu0
  %v582 = vadd.f32 0.0, %v581
  %v583 = vpop.f32.mrf.mxu0
  %v584 = vpop.f32.mrf.mxu0
  %v585 = vadd.f32 0.0, %v584
  %v586 = vpop.f32.mrf.mxu0
  %587 = vmatprep.mubr.bf16.mxu0 %v455
  %588 = vmatmul.mubr.bf16.gmra.mxu0 %v296
  %v589 = vpop.f32.mrf.mxu0
  %v590 = vadd.f32 0.0, %v589
  %v591 = vpop.f32.mrf.mxu0
  %v592 = vpop.f32.mrf.mxu0
  %v593 = vadd.f32 0.0, %v592
  %v594 = vpop.f32.mrf.mxu0
  %595 = vmatprep.mubr.bf16.mxu0 %v458
  %596 = vmatmul.mubr.bf16.gmra.mxu0 %v298
  %v597 = vpop.f32.mrf.mxu0
  %v598 = vadd.f32 0.0, %v597
  %v599 = vpop.f32.mrf.mxu0
  %v600 = vpop.f32.mrf.mxu0
  %v601 = vadd.f32 0.0, %v600
  %v602 = vpop.f32.mrf.mxu0
  %603 = vmatprep.mubr.bf16.mxu0 %v461
  %604 = vmatmul.mubr.bf16.gmra.mxu0 %v300
  %v605 = vpop.f32.mrf.mxu0
  %v606 = vadd.f32 0.0, %v605
  %v607 = vpop.f32.mrf.mxu0
  %v608 = vpop.f32.mrf.mxu0
  %v609 = vadd.f32 0.0, %v608
  %v610 = vpop.f32.mrf.mxu0
  %611 = vmatprep.mubr.bf16.mxu0 %v464
  %612 = vmatmul.mubr.bf16.gmra.mxu0 %v302
  %v613 = vpop.f32.mrf.mxu0
  %v614 = vadd.f32 0.0, %v613
  %v615 = vpop.f32.mrf.mxu0
  %v616 = vpop.f32.mrf.mxu0
  %v617 = vadd.f32 0.0, %v616
  %v618 = vpop.f32.mrf.mxu0
  %619 = vmatprep.mubr.bf16.mxu0 %v467
  %620 = vmatmul.mubr.bf16.gmra.mxu0 %v304
  %v621 = vpop.f32.mrf.mxu0
  %v622 = vadd.f32 0.0, %v621
  %v623 = vpop.f32.mrf.mxu0
  %v624 = vpop.f32.mrf.mxu0
  %v625 = vadd.f32 0.0, %v624
  %v626 = vpop.f32.mrf.mxu0
  %627 = vmatprep.mubr.bf16.mxu0 %v470
  %628 = vmatmul.mubr.bf16.gmra.mxu0 %v306
  %v629 = vpop.f32.mrf.mxu0
  %v630 = vadd.f32 0.0, %v629
  %v631 = vpop.f32.mrf.mxu0
  %v632 = vpop.f32.mrf.mxu0
  %v633 = vadd.f32 0.0, %v632
  %v634 = vpop.f32.mrf.mxu0
  %635 = vmatprep.mubr.bf16.mxu0 %v473
  %636 = vmatmul.mubr.bf16.gmra.mxu0 %v308
  %v637 = vpop.f32.mrf.mxu0
  %v638 = vadd.f32 0.0, %v637
  %v639 = vpop.f32.mrf.mxu0
  %v640 = vpop.f32.mrf.mxu0
  %v641 = vadd.f32 0.0, %v640
  %v642 = vpop.f32.mrf.mxu0
  %643 = vmatprep.mubr.bf16.mxu0 %v476
  %644 = vmatmul.mubr.bf16.gmra.mxu0 %v310
  %v645 = vpop.f32.mrf.mxu0
  %v646 = vadd.f32 0.0, %v645
  %v647 = vpop.f32.mrf.mxu0
  %v648 = vpop.f32.mrf.mxu0
  %v649 = vadd.f32 0.0, %v648
  %v650 = vpop.f32.mrf.mxu0
  %651 = vmatprep.mubr.bf16.mxu0 %v479
  %652 = vmatmul.mubr.bf16.gmra.mxu0 %v312
  %v653 = vpop.f32.mrf.mxu0
  %v654 = vadd.f32 0.0, %v653
  %v655 = vpop.f32.mrf.mxu0
  %v656 = vpop.f32.mrf.mxu0
  %v657 = vadd.f32 0.0, %v656
  %v658 = vpop.f32.mrf.mxu0
  %659 = vmatprep.mubr.bf16.mxu0 %v482
  %660 = vmatmul.mubr.bf16.gmra.mxu0 %v314
  %v661 = vpop.f32.mrf.mxu0
  %v662 = vadd.f32 0.0, %v661
  %v663 = vpop.f32.mrf.mxu0
  %v664 = vpop.f32.mrf.mxu0
  %v665 = vadd.f32 0.0, %v664
  %v666 = vpop.f32.mrf.mxu0
  %667 = vmatprep.mubr.bf16.mxu0 %v485
  %668 = vmatmul.mubr.bf16.gmra.mxu0 %v316
  %v669 = vpop.f32.mrf.mxu0
  %v670 = vadd.f32 0.0, %v669
  %v671 = vpop.f32.mrf.mxu0
  %v672 = vpop.f32.mrf.mxu0
  %v673 = vadd.f32 0.0, %v672
  %v674 = vpop.f32.mrf.mxu0
  %675 = vmatprep.mubr.bf16.mxu0 %v488
  %676 = vmatmul.mubr.bf16.gmra.mxu0 %v318
  %v677 = vpop.f32.mrf.mxu0
  %v678 = vadd.f32 0.0, %v677
  %v679 = vpop.f32.mrf.mxu0
  %v680 = vpop.f32.mrf.mxu0
  %v681 = vadd.f32 0.0, %v680
  %v682 = vpop.f32.mrf.mxu0
  %683 = vmatprep.mubr.bf16.mxu0 %v491
  %684 = vmatmul.mubr.bf16.gmra.mxu0 %v320
  %v685 = vpop.f32.mrf.mxu0
  %v686 = vadd.f32 0.0, %v685
  %v687 = vpop.f32.mrf.mxu0
  %v688 = vpop.f32.mrf.mxu0
  %v689 = vadd.f32 0.0, %v688
  %v690 = vpop.f32.mrf.mxu0
  %691 = vmatprep.mubr.bf16.mxu0 %v494
  %692 = vmatmul.mubr.bf16.gmra.mxu0 %v322
  %v693 = vpop.f32.mrf.mxu0
  %v694 = vadd.f32 0.0, %v693
  %v695 = vpop.f32.mrf.mxu0
  %v696 = vpop.f32.mrf.mxu0
  %v697 = vadd.f32 0.0, %v696
  %v698 = vpop.f32.mrf.mxu0
  %699 = vmatprep.mubr.bf16.mxu0 %v497
  %700 = vmatmul.mubr.bf16.gmra.mxu0 %v324
  %v701 = vpop.f32.mrf.mxu0
  %v702 = vadd.f32 0.0, %v701
  %v703 = vpop.f32.mrf.mxu0
  %v704 = vpop.f32.mrf.mxu0
  %v705 = vadd.f32 0.0, %v704
  %v706 = vpop.f32.mrf.mxu0
  %707 = vmatprep.mubr.bf16.mxu0 %v500
  %708 = vmatmul.mubr.bf16.gmra.mxu0 %v326
  %v709 = vpop.f32.mrf.mxu0
  %v710 = vadd.f32 0.0, %v709
  %v711 = vpop.f32.mrf.mxu0
  %v712 = vpop.f32.mrf.mxu0
  %v713 = vadd.f32 0.0, %v712
  %v714 = vpop.f32.mrf.mxu0
  %715 = vmatprep.mubr.bf16.mxu0 %v503
  %716 = vmatmul.mubr.bf16.gmra.mxu0 %v328
  %v717 = vpop.f32.mrf.mxu0
  %v718 = vadd.f32 0.0, %v717
  %v719 = vpop.f32.mrf.mxu0
  %v720 = vpop.f32.mrf.mxu0
  %v721 = vadd.f32 0.0, %v720
  %v722 = vpop.f32.mrf.mxu0
  %723 = vmatprep.mubr.bf16.mxu0 %v506
  %724 = vmatmul.mubr.bf16.gmra.mxu0 %v330
  %v725 = vpop.f32.mrf.mxu0
  %v726 = vadd.f32 0.0, %v725
  %v727 = vpop.f32.mrf.mxu0
  %v728 = vpop.f32.mrf.mxu0
  %v729 = vadd.f32 0.0, %v728
  %v730 = vpop.f32.mrf.mxu0
  %731 = vmatprep.mubr.bf16.mxu0 %v509
  %732 = vmatmul.mubr.bf16.gmra.mxu0 %v332
  %v733 = vpop.f32.mrf.mxu0
  %v734 = vadd.f32 0.0, %v733
  %v735 = vpop.f32.mrf.mxu0
  %v736 = vpop.f32.mrf.mxu0
  %v737 = vadd.f32 0.0, %v736
  %v738 = vpop.f32.mrf.mxu0
  %739 = vmatprep.mubr.bf16.mxu0 %v512
  %740 = vmatmul.mubr.bf16.gmra.mxu0 %v334
  %v741 = vpop.f32.mrf.mxu0
  %v742 = vadd.f32 0.0, %v741
  %v743 = vpop.f32.mrf.mxu0
  %v744 = vpop.f32.mrf.mxu0
  %v745 = vadd.f32 0.0, %v744
  %v746 = vpop.f32.mrf.mxu0
  %747 = vmatprep.mubr.bf16.mxu0 %v515
  %748 = vmatmul.mubr.bf16.gmra.mxu0 %v336
  %v749 = vpop.f32.mrf.mxu0
  %v750 = vadd.f32 0.0, %v749
  %v751 = vpop.f32.mrf.mxu0
  %v752 = vpop.f32.mrf.mxu0
  %v753 = vadd.f32 0.0, %v752
  %v754 = vpop.f32.mrf.mxu0
  %755 = vmatprep.mubr.bf16.mxu0 %v518
  %756 = vmatmul.mubr.bf16.gmra.mxu0 %v338
  %v757 = vpop.f32.mrf.mxu0
  %v758 = vadd.f32 0.0, %v757
  %v759 = vpop.f32.mrf.mxu0
  %v760 = vpop.f32.mrf.mxu0
  %v761 = vadd.f32 0.0, %v760
  %v762 = vpop.f32.mrf.mxu0
  %763 = vmatprep.mubr.bf16.mxu0 %v521
  %764 = vmatmul.mubr.bf16.gmra.mxu0 %v340
  %v765 = vpop.f32.mrf.mxu0
  %v766 = vadd.f32 0.0, %v765
  %v767 = vpop.f32.mrf.mxu0
  %v768 = vpop.f32.mrf.mxu0
  %v769 = vadd.f32 0.0, %v768
  %v770 = vpop.f32.mrf.mxu0
  %771 = vmatprep.mubr.bf16.mxu0 %v524
  %772 = vmatmul.mubr.bf16.gmra.mxu0 %v342
  %v773 = vpop.f32.mrf.mxu0
  %v774 = vadd.f32 0.0, %v773
  %v775 = vpop.f32.mrf.mxu0
  %v776 = vpop.f32.mrf.mxu0
  %v777 = vadd.f32 0.0, %v776
  %v778 = vpop.f32.mrf.mxu0
  %779 = vmatprep.mubr.bf16.mxu0 %v527
  %780 = vmatmul.mubr.bf16.gmra.mxu0 %v344
  %v781 = vpop.f32.mrf.mxu0
  %v782 = vadd.f32 0.0, %v781
  %v783 = vpop.f32.mrf.mxu0
  %v784 = vpop.f32.mrf.mxu0
  %v785 = vadd.f32 0.0, %v784
  %v786 = vpop.f32.mrf.mxu0
  %787 = vmatprep.mubr.bf16.mxu0 %v530
  %788 = vmatmul.mubr.bf16.gmra.mxu0 %v346
  %v789 = vpop.f32.mrf.mxu0
  %v790 = vadd.f32 0.0, %v789
  %v791 = vpop.f32.mrf.mxu0
  %v792 = vpop.f32.mrf.mxu0
  %v793 = vadd.f32 0.0, %v792
  %v794 = vpop.f32.mrf.mxu0
  %795 = vmatprep.mubr.bf16.mxu0 %v533
  %796 = vmatmul.mubr.bf16.gmra.mxu0 %v348
  %v797 = vpop.f32.mrf.mxu0
  %v798 = vadd.f32 0.0, %v797
  %v799 = vpop.f32.mrf.mxu0
  %v800 = vpop.f32.mrf.mxu0
  %v801 = vadd.f32 0.0, %v800
  %v802 = vpop.f32.mrf.mxu0
  %803 = vmatprep.mubr.bf16.mxu0 %v536
  %804 = vmatmul.mubr.bf16.gmra.mxu0 %v350
  %v805 = vpop.f32.mrf.mxu0
  %v806 = vadd.f32 0.0, %v805
  %v807 = vpop.f32.mrf.mxu0
  %v808 = vpop.f32.mrf.mxu0
  %v809 = vadd.f32 0.0, %v808
  %v810 = vpop.f32.mrf.mxu0
  %811 = vmatprep.mubr.bf16.mxu0 %v539
  %812 = vmatmul.mubr.bf16.gmra.mxu0 %v352
  %v813 = vpop.f32.mrf.mxu0
  %v814 = vadd.f32 0.0, %v813
  %v815 = vpop.f32.mrf.mxu0
  %v816 = vpop.f32.mrf.mxu0
  %v817 = vadd.f32 0.0, %v816
  %v818 = vpop.f32.mrf.mxu0
  %819 = vmatprep.mubr.bf16.mxu0 %v542
  %820 = vmatmul.mubr.bf16.gmra.mxu0 %v354
  %v821 = vpop.f32.mrf.mxu0
  %v822 = vadd.f32 0.0, %v821
  %v823 = vpop.f32.mrf.mxu0
  %v824 = vpop.f32.mrf.mxu0
  %v825 = vadd.f32 0.0, %v824
  %v826 = vpop.f32.mrf.mxu0
  %827 = vmatprep.mubr.bf16.mxu0 %v545
  %828 = vmatmul.mubr.bf16.gmra.mxu0 %v356
  %v829 = vpop.f32.mrf.mxu0
  %v830 = vadd.f32 0.0, %v829
  %v831 = vpop.f32.mrf.mxu0
  %v832 = vpop.f32.mrf.mxu0
  %v833 = vadd.f32 0.0, %v832
  %v834 = vpop.f32.mrf.mxu0
  %835 = vdwg.mxu0
  %v836 = vadd.f32 %v582, %v585
  %v837 = vadd.f32 %v836, %v590
  %v838 = vadd.f32 %v837, %v593
  %v839 = vadd.f32 %v838, %v598
  %v840 = vadd.f32 %v839, %v601
  %v841 = vadd.f32 %v840, %v606
  %v842 = vadd.f32 %v841, %v609
  %v843 = vadd.f32 %v842, %v614
  %v844 = vadd.f32 %v843, %v617
  %v845 = vadd.f32 %v844, %v622
  %v846 = vadd.f32 %v845, %v625
  %v847 = vadd.f32 %v846, %v630
  %v848 = vadd.f32 %v847, %v633
  %v849 = vadd.f32 %v848, %v638
  %v850 = vadd.f32 %v849, %v641
  %v851 = vadd.f32 %v850, %v646
  %v852 = vadd.f32 %v851, %v649
  %v853 = vadd.f32 %v852, %v654
  %v854 = vadd.f32 %v853, %v657
  %v855 = vadd.f32 %v854, %v662
  %v856 = vadd.f32 %v855, %v665
  %v857 = vadd.f32 %v856, %v670
  %v858 = vadd.f32 %v857, %v673
  %v859 = vadd.f32 %v858, %v678
  %v860 = vadd.f32 %v859, %v681
  %v861 = vadd.f32 %v860, %v686
  %v862 = vadd.f32 %v861, %v689
  %v863 = vadd.f32 %v862, %v694
  %v864 = vadd.f32 %v863, %v697
  %v865 = vadd.f32 %v864, %v702
  %v866 = vadd.f32 %v865, %v705
  %v867 = vadd.f32 %v866, %v710
  %v868 = vadd.f32 %v867, %v713
  %v869 = vadd.f32 %v868, %v718
  %v870 = vadd.f32 %v869, %v721
  %v871 = vadd.f32 %v870, %v726
  %v872 = vadd.f32 %v871, %v729
  %v873 = vadd.f32 %v872, %v734
  %v874 = vadd.f32 %v873, %v737
  %v875 = vadd.f32 %v874, %v742
  %v876 = vadd.f32 %v875, %v745
  %v877 = vadd.f32 %v876, %v750
  %v878 = vadd.f32 %v877, %v753
  %v879 = vadd.f32 %v878, %v758
  %v880 = vadd.f32 %v879, %v761
  %v881 = vadd.f32 %v880, %v766
  %v882 = vadd.f32 %v881, %v769
  %v883 = vadd.f32 %v882, %v774
  %v884 = vadd.f32 %v883, %v777
  %v885 = vadd.f32 %v884, %v782
  %v886 = vadd.f32 %v885, %v785
  %v887 = vadd.f32 %v886, %v790
  %v888 = vadd.f32 %v887, %v793
  %v889 = vadd.f32 %v888, %v798
  %v890 = vadd.f32 %v889, %v801
  %v891 = vadd.f32 %v890, %v806
  %v892 = vadd.f32 %v891, %v809
  %v893 = vadd.f32 %v892, %v814
  %v894 = vadd.f32 %v893, %v817
  %v895 = vadd.f32 %v894, %v822
  %v896 = vadd.f32 %v895, %v825
  %v897 = vadd.f32 %v896, %v830
  %v898 = vadd.f32 %v897, %v833
  %v899 = vrot.slane %v898, 4
  %v900 = vadd.f32 %v898, %v899
  %v901 = vrot.slane %v900, 2
  %v902 = vadd.f32 %v900, %v901
  %v903 = vrot.slane %v902, 1
  %v904 = vadd.f32 %v902, %v903
  %v905 = vmul.f32 %v904, 0.001953125
  %v906 = vsub.f32 %v582, %v905
  %v907 = vsub.f32 %v585, %v905
  %v908 = vsub.f32 %v590, %v905
  %v909 = vsub.f32 %v593, %v905
  %v910 = vsub.f32 %v598, %v905
  %v911 = vsub.f32 %v601, %v905
  %v912 = vsub.f32 %v606, %v905
  %v913 = vsub.f32 %v609, %v905
  %v914 = vsub.f32 %v614, %v905
  %v915 = vsub.f32 %v617, %v905
  %v916 = vsub.f32 %v622, %v905
  %v917 = vsub.f32 %v625, %v905
  %v918 = vsub.f32 %v630, %v905
  %v919 = vsub.f32 %v633, %v905
  %v920 = vsub.f32 %v638, %v905
  %v921 = vsub.f32 %v641, %v905
  %v922 = vsub.f32 %v646, %v905
  %v923 = vsub.f32 %v649, %v905
  %v924 = vsub.f32 %v654, %v905
  %v925 = vsub.f32 %v657, %v905
  %v926 = vsub.f32 %v662, %v905
  %v927 = vsub.f32 %v665, %v905
  %v928 = vsub.f32 %v670, %v905
  %v929 = vsub.f32 %v673, %v905
  %v930 = vsub.f32 %v678, %v905
  %v931 = vsub.f32 %v681, %v905
  %v932 = vsub.f32 %v686, %v905
  %v933 = vsub.f32 %v689, %v905
  %v934 = vsub.f32 %v694, %v905
  %v935 = vsub.f32 %v697, %v905
  %v936 = vsub.f32 %v702, %v905
  %v937 = vsub.f32 %v705, %v905
  %v938 = vsub.f32 %v710, %v905
  %v939 = vsub.f32 %v713, %v905
  %v940 = vsub.f32 %v718, %v905
  %v941 = vsub.f32 %v721, %v905
  %v942 = vsub.f32 %v726, %v905
  %v943 = vsub.f32 %v729, %v905
  %v944 = vsub.f32 %v734, %v905
  %v945 = vsub.f32 %v737, %v905
  %v946 = vsub.f32 %v742, %v905
  %v947 = vsub.f32 %v745, %v905
  %v948 = vsub.f32 %v750, %v905
  %v949 = vsub.f32 %v753, %v905
  %v950 = vsub.f32 %v758, %v905
  %v951 = vsub.f32 %v761, %v905
  %v952 = vsub.f32 %v766, %v905
  %v953 = vsub.f32 %v769, %v905
  %v954 = vsub.f32 %v774, %v905
  %v955 = vsub.f32 %v777, %v905
  %v956 = vsub.f32 %v782, %v905
  %v957 = vsub.f32 %v785, %v905
  %v958 = vsub.f32 %v790, %v905
  %v959 = vsub.f32 %v793, %v905
  %v960 = vsub.f32 %v798, %v905
  %v961 = vsub.f32 %v801, %v905
  %v962 = vsub.f32 %v806, %v905
  %v963 = vsub.f32 %v809, %v905
  %v964 = vsub.f32 %v814, %v905
  %v965 = vsub.f32 %v817, %v905
  %v966 = vsub.f32 %v822, %v905
  %v967 = vsub.f32 %v825, %v905
  %v968 = vsub.f32 %v830, %v905
  %v969 = vsub.f32 %v833, %v905
  %v970 = vlaneseq
  %v971 = vshrl.u32 %v970, 7
  %v972 = vadd.s32 %v971, 8
  %v973 = vadd.s32 %v971, 16
  %v974 = vadd.s32 %v971, 24
  %v975 = vadd.s32 %v971, 32
  %v976 = vadd.s32 %v971, 40
  %v977 = vadd.s32 %v971, 48
  %v978 = vadd.s32 %v971, 56
  %v979 = vadd.s32 %v971, 64
  %v980 = vadd.s32 %v971, 72
  %v981 = vadd.s32 %v971, 80
  %v982 = vadd.s32 %v971, 88
  %v983 = vadd.s32 %v971, 96
  %v984 = vadd.s32 %v971, 104
  %v985 = vadd.s32 %v971, 112
  %v986 = vadd.s32 %v971, 120
  %v987 = vadd.s32 %v971, 128
  %v988 = vadd.s32 %v971, 136
  %v989 = vadd.s32 %v971, 144
  %v990 = vadd.s32 %v971, 152
  %v991 = vadd.s32 %v971, 160
  %v992 = vadd.s32 %v971, 168
  %v993 = vadd.s32 %v971, 176
  %v994 = vadd.s32 %v971, 184
  %v995 = vadd.s32 %v971, 192
  %v996 = vadd.s32 %v971, 200
  %v997 = vadd.s32 %v971, 208
  %v998 = vadd.s32 %v971, 216
  %v999 = vadd.s32 %v971, 224
  %v1000 = vadd.s32 %v971, 232
  %v1001 = vadd.s32 %v971, 240
  %v1002 = vadd.s32 %v971, 248
  %v1003 = vadd.s32 %v971, 256
  %v1004 = vadd.s32 %v971, 264
  %v1005 = vadd.s32 %v971, 272
  %v1006 = vadd.s32 %v971, 280
  %v1007 = vadd.s32 %v971, 288
  %v1008 = vadd.s32 %v971, 296
  %v1009 = vadd.s32 %v971, 304
  %v1010 = vadd.s32 %v971, 312
  %v1011 = vadd.s32 %v971, 320
  %v1012 = vadd.s32 %v971, 328
  %v1013 = vadd.s32 %v971, 336
  %v1014 = vadd.s32 %v971, 344
  %v1015 = vadd.s32 %v971, 352
  %v1016 = vadd.s32 %v971, 360
  %v1017 = vadd.s32 %v971, 368
  %v1018 = vadd.s32 %v971, 376
  %v1019 = vadd.s32 %v971, 384
  %v1020 = vadd.s32 %v971, 392
  %v1021 = vadd.s32 %v971, 400
  %v1022 = vadd.s32 %v971, 408
  %v1023 = vadd.s32 %v971, 416
  %v1024 = vadd.s32 %v971, 424
  %v1025 = vadd.s32 %v971, 432
  %v1026 = vadd.s32 %v971, 440
  %v1027 = vadd.s32 %v971, 448
  %v1028 = vadd.s32 %v971, 456
  %v1029 = vadd.s32 %v971, 464
  %v1030 = vadd.s32 %v971, 472
  %v1031 = vadd.s32 %v971, 480
  %v1032 = vadd.s32 %v971, 488
  %v1033 = vadd.s32 %v971, 496
  %v1034 = vadd.s32 %v971, 504
  %vm1035 = vcmp.lt.s32.totalorder %v971, 512
  %vm1036 = vcmp.lt.s32.totalorder %v972, 512
  %vm1037 = vcmp.lt.s32.totalorder %v973, 512
  %vm1038 = vcmp.lt.s32.totalorder %v974, 512
  %vm1039 = vcmp.lt.s32.totalorder %v975, 512
  %vm1040 = vcmp.lt.s32.totalorder %v976, 512
  %vm1041 = vcmp.lt.s32.totalorder %v977, 512
  %vm1042 = vcmp.lt.s32.totalorder %v978, 512
  %vm1043 = vcmp.lt.s32.totalorder %v979, 512
  %vm1044 = vcmp.lt.s32.totalorder %v980, 512
  %vm1045 = vcmp.lt.s32.totalorder %v981, 512
  %vm1046 = vcmp.lt.s32.totalorder %v982, 512
  %vm1047 = vcmp.lt.s32.totalorder %v983, 512
  %vm1048 = vcmp.lt.s32.totalorder %v984, 512
  %vm1049 = vcmp.lt.s32.totalorder %v985, 512
  %vm1050 = vcmp.lt.s32.totalorder %v986, 512
  %vm1051 = vcmp.lt.s32.totalorder %v987, 512
  %vm1052 = vcmp.lt.s32.totalorder %v988, 512
  %vm1053 = vcmp.lt.s32.totalorder %v989, 512
  %vm1054 = vcmp.lt.s32.totalorder %v990, 512
  %vm1055 = vcmp.lt.s32.totalorder %v991, 512
  %vm1056 = vcmp.lt.s32.totalorder %v992, 512
  %vm1057 = vcmp.lt.s32.totalorder %v993, 512
  %vm1058 = vcmp.lt.s32.totalorder %v994, 512
  %vm1059 = vcmp.lt.s32.totalorder %v995, 512
  %vm1060 = vcmp.lt.s32.totalorder %v996, 512
  %vm1061 = vcmp.lt.s32.totalorder %v997, 512
  %vm1062 = vcmp.lt.s32.totalorder %v998, 512
  %vm1063 = vcmp.lt.s32.totalorder %v999, 512
  %vm1064 = vcmp.lt.s32.totalorder %v1000, 512
  %vm1065 = vcmp.lt.s32.totalorder %v1001, 512
  %vm1066 = vcmp.lt.s32.totalorder %v1002, 512
  %vm1067 = vcmp.lt.s32.totalorder %v1003, 512
  %vm1068 = vcmp.lt.s32.totalorder %v1004, 512
  %vm1069 = vcmp.lt.s32.totalorder %v1005, 512
  %vm1070 = vcmp.lt.s32.totalorder %v1006, 512
  %vm1071 = vcmp.lt.s32.totalorder %v1007, 512
  %vm1072 = vcmp.lt.s32.totalorder %v1008, 512
  %vm1073 = vcmp.lt.s32.totalorder %v1009, 512
  %vm1074 = vcmp.lt.s32.totalorder %v1010, 512
  %vm1075 = vcmp.lt.s32.totalorder %v1011, 512
  %vm1076 = vcmp.lt.s32.totalorder %v1012, 512
  %vm1077 = vcmp.lt.s32.totalorder %v1013, 512
  %vm1078 = vcmp.lt.s32.totalorder %v1014, 512
  %vm1079 = vcmp.lt.s32.totalorder %v1015, 512
  %vm1080 = vcmp.lt.s32.totalorder %v1016, 512
  %vm1081 = vcmp.lt.s32.totalorder %v1017, 512
  %vm1082 = vcmp.lt.s32.totalorder %v1018, 512
  %vm1083 = vcmp.lt.s32.totalorder %v1019, 512
  %vm1084 = vcmp.lt.s32.totalorder %v1020, 512
  %vm1085 = vcmp.lt.s32.totalorder %v1021, 512
  %vm1086 = vcmp.lt.s32.totalorder %v1022, 512
  %vm1087 = vcmp.lt.s32.totalorder %v1023, 512
  %vm1088 = vcmp.lt.s32.totalorder %v1024, 512
  %vm1089 = vcmp.lt.s32.totalorder %v1025, 512
  %vm1090 = vcmp.lt.s32.totalorder %v1026, 512
  %vm1091 = vcmp.lt.s32.totalorder %v1027, 512
  %vm1092 = vcmp.lt.s32.totalorder %v1028, 512
  %vm1093 = vcmp.lt.s32.totalorder %v1029, 512
  %vm1094 = vcmp.lt.s32.totalorder %v1030, 512
  %vm1095 = vcmp.lt.s32.totalorder %v1031, 512
  %vm1096 = vcmp.lt.s32.totalorder %v1032, 512
  %vm1097 = vcmp.lt.s32.totalorder %v1033, 512
  %vm1098 = vcmp.lt.s32.totalorder %v1034, 512
  %v1099 = vmul.f32 %v906, %v906
  %v1100 = vmul.f32 %v907, %v907
  %v1101 = vmul.f32 %v908, %v908
  %v1102 = vmul.f32 %v909, %v909
  %v1103 = vmul.f32 %v910, %v910
  %v1104 = vmul.f32 %v911, %v911
  %v1105 = vmul.f32 %v912, %v912
  %v1106 = vmul.f32 %v913, %v913
  %v1107 = vmul.f32 %v914, %v914
  %v1108 = vmul.f32 %v915, %v915
  %v1109 = vmul.f32 %v916, %v916
  %v1110 = vmul.f32 %v917, %v917
  %v1111 = vmul.f32 %v918, %v918
  %v1112 = vmul.f32 %v919, %v919
  %v1113 = vmul.f32 %v920, %v920
  %v1114 = vmul.f32 %v921, %v921
  %v1115 = vmul.f32 %v922, %v922
  %v1116 = vmul.f32 %v923, %v923
  %v1117 = vmul.f32 %v924, %v924
  %v1118 = vmul.f32 %v925, %v925
  %v1119 = vmul.f32 %v926, %v926
  %v1120 = vmul.f32 %v927, %v927
  %v1121 = vmul.f32 %v928, %v928
  %v1122 = vmul.f32 %v929, %v929
  %v1123 = vmul.f32 %v930, %v930
  %v1124 = vmul.f32 %v931, %v931
  %v1125 = vmul.f32 %v932, %v932
  %v1126 = vmul.f32 %v933, %v933
  %v1127 = vmul.f32 %v934, %v934
  %v1128 = vmul.f32 %v935, %v935
  %v1129 = vmul.f32 %v936, %v936
  %v1130 = vmul.f32 %v937, %v937
  %v1131 = vmul.f32 %v938, %v938
  %v1132 = vmul.f32 %v939, %v939
  %v1133 = vmul.f32 %v940, %v940
  %v1134 = vmul.f32 %v941, %v941
  %v1135 = vmul.f32 %v942, %v942
  %v1136 = vmul.f32 %v943, %v943
  %v1137 = vmul.f32 %v944, %v944
  %v1138 = vmul.f32 %v945, %v945
  %v1139 = vmul.f32 %v946, %v946
  %v1140 = vmul.f32 %v947, %v947
  %v1141 = vmul.f32 %v948, %v948
  %v1142 = vmul.f32 %v949, %v949
  %v1143 = vmul.f32 %v950, %v950
  %v1144 = vmul.f32 %v951, %v951
  %v1145 = vmul.f32 %v952, %v952
  %v1146 = vmul.f32 %v953, %v953
  %v1147 = vmul.f32 %v954, %v954
  %v1148 = vmul.f32 %v955, %v955
  %v1149 = vmul.f32 %v956, %v956
  %v1150 = vmul.f32 %v957, %v957
  %v1151 = vmul.f32 %v958, %v958
  %v1152 = vmul.f32 %v959, %v959
  %v1153 = vmul.f32 %v960, %v960
  %v1154 = vmul.f32 %v961, %v961
  %v1155 = vmul.f32 %v962, %v962
  %v1156 = vmul.f32 %v963, %v963
  %v1157 = vmul.f32 %v964, %v964
  %v1158 = vmul.f32 %v965, %v965
  %v1159 = vmul.f32 %v966, %v966
  %v1160 = vmul.f32 %v967, %v967
  %v1161 = vmul.f32 %v968, %v968
  %v1162 = vmul.f32 %v969, %v969
  %v1163 = vsel %vm1035, %v1099, 0.0
  %v1164 = vsel %vm1036, %v1100, 0.0
  %v1165 = vsel %vm1037, %v1101, 0.0
  %v1166 = vsel %vm1038, %v1102, 0.0
  %v1167 = vsel %vm1039, %v1103, 0.0
  %v1168 = vsel %vm1040, %v1104, 0.0
  %v1169 = vsel %vm1041, %v1105, 0.0
  %v1170 = vsel %vm1042, %v1106, 0.0
  %v1171 = vsel %vm1043, %v1107, 0.0
  %v1172 = vsel %vm1044, %v1108, 0.0
  %v1173 = vsel %vm1045, %v1109, 0.0
  %v1174 = vsel %vm1046, %v1110, 0.0
  %v1175 = vsel %vm1047, %v1111, 0.0
  %v1176 = vsel %vm1048, %v1112, 0.0
  %v1177 = vsel %vm1049, %v1113, 0.0
  %v1178 = vsel %vm1050, %v1114, 0.0
  %v1179 = vsel %vm1051, %v1115, 0.0
  %v1180 = vsel %vm1052, %v1116, 0.0
  %v1181 = vsel %vm1053, %v1117, 0.0
  %v1182 = vsel %vm1054, %v1118, 0.0
  %v1183 = vsel %vm1055, %v1119, 0.0
  %v1184 = vsel %vm1056, %v1120, 0.0
  %v1185 = vsel %vm1057, %v1121, 0.0
  %v1186 = vsel %vm1058, %v1122, 0.0
  %v1187 = vsel %vm1059, %v1123, 0.0
  %v1188 = vsel %vm1060, %v1124, 0.0
  %v1189 = vsel %vm1061, %v1125, 0.0
  %v1190 = vsel %vm1062, %v1126, 0.0
  %v1191 = vsel %vm1063, %v1127, 0.0
  %v1192 = vsel %vm1064, %v1128, 0.0
  %v1193 = vsel %vm1065, %v1129, 0.0
  %v1194 = vsel %vm1066, %v1130, 0.0
  %v1195 = vsel %vm1067, %v1131, 0.0
  %v1196 = vsel %vm1068, %v1132, 0.0
  %v1197 = vsel %vm1069, %v1133, 0.0
  %v1198 = vsel %vm1070, %v1134, 0.0
  %v1199 = vsel %vm1071, %v1135, 0.0
  %v1200 = vsel %vm1072, %v1136, 0.0
  %v1201 = vsel %vm1073, %v1137, 0.0
  %v1202 = vsel %vm1074, %v1138, 0.0
  %v1203 = vsel %vm1075, %v1139, 0.0
  %v1204 = vsel %vm1076, %v1140, 0.0
  %v1205 = vsel %vm1077, %v1141, 0.0
  %v1206 = vsel %vm1078, %v1142, 0.0
  %v1207 = vsel %vm1079, %v1143, 0.0
  %v1208 = vsel %vm1080, %v1144, 0.0
  %v1209 = vsel %vm1081, %v1145, 0.0
  %v1210 = vsel %vm1082, %v1146, 0.0
  %v1211 = vsel %vm1083, %v1147, 0.0
  %v1212 = vsel %vm1084, %v1148, 0.0
  %v1213 = vsel %vm1085, %v1149, 0.0
  %v1214 = vsel %vm1086, %v1150, 0.0
  %v1215 = vsel %vm1087, %v1151, 0.0
  %v1216 = vsel %vm1088, %v1152, 0.0
  %v1217 = vsel %vm1089, %v1153, 0.0
  %v1218 = vsel %vm1090, %v1154, 0.0
  %v1219 = vsel %vm1091, %v1155, 0.0
  %v1220 = vsel %vm1092, %v1156, 0.0
  %v1221 = vsel %vm1093, %v1157, 0.0
  %v1222 = vsel %vm1094, %v1158, 0.0
  %v1223 = vsel %vm1095, %v1159, 0.0
  %v1224 = vsel %vm1096, %v1160, 0.0
  %v1225 = vsel %vm1097, %v1161, 0.0
  %v1226 = vsel %vm1098, %v1162, 0.0
  %v1227 = vadd.f32 %v1163, %v1164
  %v1228 = vadd.f32 %v1227, %v1165
  %v1229 = vadd.f32 %v1228, %v1166
  %v1230 = vadd.f32 %v1229, %v1167
  %v1231 = vadd.f32 %v1230, %v1168
  %v1232 = vadd.f32 %v1231, %v1169
  %v1233 = vadd.f32 %v1232, %v1170
  %v1234 = vadd.f32 %v1233, %v1171
  %v1235 = vadd.f32 %v1234, %v1172
  %v1236 = vadd.f32 %v1235, %v1173
  %v1237 = vadd.f32 %v1236, %v1174
  %v1238 = vadd.f32 %v1237, %v1175
  %v1239 = vadd.f32 %v1238, %v1176
  %v1240 = vadd.f32 %v1239, %v1177
  %v1241 = vadd.f32 %v1240, %v1178
  %v1242 = vadd.f32 %v1241, %v1179
  %v1243 = vadd.f32 %v1242, %v1180
  %v1244 = vadd.f32 %v1243, %v1181
  %v1245 = vadd.f32 %v1244, %v1182
  %v1246 = vadd.f32 %v1245, %v1183
  %v1247 = vadd.f32 %v1246, %v1184
  %v1248 = vadd.f32 %v1247, %v1185
  %v1249 = vadd.f32 %v1248, %v1186
  %v1250 = vadd.f32 %v1249, %v1187
  %v1251 = vadd.f32 %v1250, %v1188
  %v1252 = vadd.f32 %v1251, %v1189
  %v1253 = vadd.f32 %v1252, %v1190
  %v1254 = vadd.f32 %v1253, %v1191
  %v1255 = vadd.f32 %v1254, %v1192
  %v1256 = vadd.f32 %v1255, %v1193
  %v1257 = vadd.f32 %v1256, %v1194
  %v1258 = vadd.f32 %v1257, %v1195
  %v1259 = vadd.f32 %v1258, %v1196
  %v1260 = vadd.f32 %v1259, %v1197
  %v1261 = vadd.f32 %v1260, %v1198
  %v1262 = vadd.f32 %v1261, %v1199
  %v1263 = vadd.f32 %v1262, %v1200
  %v1264 = vadd.f32 %v1263, %v1201
  %v1265 = vadd.f32 %v1264, %v1202
  %v1266 = vadd.f32 %v1265, %v1203
  %v1267 = vadd.f32 %v1266, %v1204
  %v1268 = vadd.f32 %v1267, %v1205
  %v1269 = vadd.f32 %v1268, %v1206
  %v1270 = vadd.f32 %v1269, %v1207
  %v1271 = vadd.f32 %v1270, %v1208
  %v1272 = vadd.f32 %v1271, %v1209
  %v1273 = vadd.f32 %v1272, %v1210
  %v1274 = vadd.f32 %v1273, %v1211
  %v1275 = vadd.f32 %v1274, %v1212
  %v1276 = vadd.f32 %v1275, %v1213
  %v1277 = vadd.f32 %v1276, %v1214
  %v1278 = vadd.f32 %v1277, %v1215
  %v1279 = vadd.f32 %v1278, %v1216
  %v1280 = vadd.f32 %v1279, %v1217
  %v1281 = vadd.f32 %v1280, %v1218
  %v1282 = vadd.f32 %v1281, %v1219
  %v1283 = vadd.f32 %v1282, %v1220
  %v1284 = vadd.f32 %v1283, %v1221
  %v1285 = vadd.f32 %v1284, %v1222
  %v1286 = vadd.f32 %v1285, %v1223
  %v1287 = vadd.f32 %v1286, %v1224
  %v1288 = vadd.f32 %v1287, %v1225
  %v1289 = vadd.f32 %v1288, %v1226
  %v1290 = vrot.slane %v1289, 4
  %v1291 = vadd.f32 %v1289, %v1290
  %v1292 = vrot.slane %v1291, 2
  %v1293 = vadd.f32 %v1291, %v1292
  %v1294 = vrot.slane %v1293, 1
  %v1295 = vadd.f32 %v1293, %v1294
  %v1296 = vmul.f32 %v1295, 0.001953125
  %v1297 = vld [vmem:[%s2] sm:$0x1]
  %v1298 = vadd.f32 %v1296, 1e-05
  %v1299 = vrsqrt.pop %v1298
  %v1300 = vmul.f32 %v1297, %v1299
  %v1301 = vld [vmem:[%s3] sm:$0x1]
  %v1302 = vmul.f32 %v905, %v1300
  %v1303 = vsub.f32 %v1301, %v1302
  %v1305 = vlaneseq
  %v1306 = vshrl.u32 %v1305, 7
  %v1307 = vsub.s32 0, %v1306
  %v1308 = vrot.slane %v1300, %v1307
  %v1310 = vmul.f32 %v582, %v1308
  %v1311 = vmul.f32 %v585, %v1308
  %v1312 = vmul.f32 %v590, %v1308
  %v1313 = vmul.f32 %v593, %v1308
  %v1314 = vmul.f32 %v598, %v1308
  %v1315 = vmul.f32 %v601, %v1308
  %v1316 = vmul.f32 %v606, %v1308
  %v1317 = vmul.f32 %v609, %v1308
  %v1318 = vmul.f32 %v614, %v1308
  %v1319 = vmul.f32 %v617, %v1308
  %v1320 = vmul.f32 %v622, %v1308
  %v1321 = vmul.f32 %v625, %v1308
  %v1322 = vmul.f32 %v630, %v1308
  %v1323 = vmul.f32 %v633, %v1308
  %v1324 = vmul.f32 %v638, %v1308
  %v1325 = vmul.f32 %v641, %v1308
  %v1326 = vmul.f32 %v646, %v1308
  %v1327 = vmul.f32 %v649, %v1308
  %v1328 = vmul.f32 %v654, %v1308
  %v1329 = vmul.f32 %v657, %v1308
  %v1330 = vmul.f32 %v662, %v1308
  %v1331 = vmul.f32 %v665, %v1308
  %v1332 = vmul.f32 %v670, %v1308
  %v1333 = vmul.f32 %v673, %v1308
  %v1334 = vmul.f32 %v678, %v1308
  %v1335 = vmul.f32 %v681, %v1308
  %v1336 = vmul.f32 %v686, %v1308
  %v1337 = vmul.f32 %v689, %v1308
  %v1338 = vmul.f32 %v694, %v1308
  %v1339 = vmul.f32 %v697, %v1308
  %v1340 = vmul.f32 %v702, %v1308
  %v1341 = vmul.f32 %v705, %v1308
  %v1342 = vmul.f32 %v710, %v1308
  %v1343 = vmul.f32 %v713, %v1308
  %v1344 = vmul.f32 %v718, %v1308
  %v1345 = vmul.f32 %v721, %v1308
  %v1346 = vmul.f32 %v726, %v1308
  %v1347 = vmul.f32 %v729, %v1308
  %v1348 = vmul.f32 %v734, %v1308
  %v1349 = vmul.f32 %v737, %v1308
  %v1350 = vmul.f32 %v742, %v1308
  %v1351 = vmul.f32 %v745, %v1308
  %v1352 = vmul.f32 %v750, %v1308
  %v1353 = vmul.f32 %v753, %v1308
  %v1354 = vmul.f32 %v758, %v1308
  %v1355 = vmul.f32 %v761, %v1308
  %v1356 = vmul.f32 %v766, %v1308
  %v1357 = vmul.f32 %v769, %v1308
  %v1358 = vmul.f32 %v774, %v1308
  %v1359 = vmul.f32 %v777, %v1308
  %v1360 = vmul.f32 %v782, %v1308
  %v1361 = vmul.f32 %v785, %v1308
  %v1362 = vmul.f32 %v790, %v1308
  %v1363 = vmul.f32 %v793, %v1308
  %v1364 = vmul.f32 %v798, %v1308
  %v1365 = vmul.f32 %v801, %v1308
  %v1366 = vmul.f32 %v806, %v1308
  %v1367 = vmul.f32 %v809, %v1308
  %v1368 = vmul.f32 %v814, %v1308
  %v1369 = vmul.f32 %v817, %v1308
  %v1370 = vmul.f32 %v822, %v1308
  %v1371 = vmul.f32 %v825, %v1308
  %v1372 = vmul.f32 %v830, %v1308
  %v1373 = vmul.f32 %v833, %v1308
  %v1375 = vlaneseq
  %v1376 = vshrl.u32 %v1375, 7
  %v1377 = vsub.s32 0, %v1376
  %v1378 = vrot.slane %v1303, %v1377
  %v1380 = vadd.f32 %v1310, %v1378
  %v1381 = vadd.f32 %v1311, %v1378
  %v1382 = vadd.f32 %v1312, %v1378
  %v1383 = vadd.f32 %v1313, %v1378
  %v1384 = vadd.f32 %v1314, %v1378
  %v1385 = vadd.f32 %v1315, %v1378
  %v1386 = vadd.f32 %v1316, %v1378
  %v1387 = vadd.f32 %v1317, %v1378
  %v1388 = vadd.f32 %v1318, %v1378
  %v1389 = vadd.f32 %v1319, %v1378
  %v1390 = vadd.f32 %v1320, %v1378
  %v1391 = vadd.f32 %v1321, %v1378
  %v1392 = vadd.f32 %v1322, %v1378
  %v1393 = vadd.f32 %v1323, %v1378
  %v1394 = vadd.f32 %v1324, %v1378
  %v1395 = vadd.f32 %v1325, %v1378
  %v1396 = vadd.f32 %v1326, %v1378
  %v1397 = vadd.f32 %v1327, %v1378
  %v1398 = vadd.f32 %v1328, %v1378
  %v1399 = vadd.f32 %v1329, %v1378
  %v1400 = vadd.f32 %v1330, %v1378
  %v1401 = vadd.f32 %v1331, %v1378
  %v1402 = vadd.f32 %v1332, %v1378
  %v1403 = vadd.f32 %v1333, %v1378
  %v1404 = vadd.f32 %v1334, %v1378
  %v1405 = vadd.f32 %v1335, %v1378
  %v1406 = vadd.f32 %v1336, %v1378
  %v1407 = vadd.f32 %v1337, %v1378
  %v1408 = vadd.f32 %v1338, %v1378
  %v1409 = vadd.f32 %v1339, %v1378
  %v1410 = vadd.f32 %v1340, %v1378
  %v1411 = vadd.f32 %v1341, %v1378
  %v1412 = vadd.f32 %v1342, %v1378
  %v1413 = vadd.f32 %v1343, %v1378
  %v1414 = vadd.f32 %v1344, %v1378
  %v1415 = vadd.f32 %v1345, %v1378
  %v1416 = vadd.f32 %v1346, %v1378
  %v1417 = vadd.f32 %v1347, %v1378
  %v1418 = vadd.f32 %v1348, %v1378
  %v1419 = vadd.f32 %v1349, %v1378
  %v1420 = vadd.f32 %v1350, %v1378
  %v1421 = vadd.f32 %v1351, %v1378
  %v1422 = vadd.f32 %v1352, %v1378
  %v1423 = vadd.f32 %v1353, %v1378
  %v1424 = vadd.f32 %v1354, %v1378
  %v1425 = vadd.f32 %v1355, %v1378
  %v1426 = vadd.f32 %v1356, %v1378
  %v1427 = vadd.f32 %v1357, %v1378
  %v1428 = vadd.f32 %v1358, %v1378
  %v1429 = vadd.f32 %v1359, %v1378
  %v1430 = vadd.f32 %v1360, %v1378
  %v1431 = vadd.f32 %v1361, %v1378
  %v1432 = vadd.f32 %v1362, %v1378
  %v1433 = vadd.f32 %v1363, %v1378
  %v1434 = vadd.f32 %v1364, %v1378
  %v1435 = vadd.f32 %v1365, %v1378
  %v1436 = vadd.f32 %v1366, %v1378
  %v1437 = vadd.f32 %v1367, %v1378
  %v1438 = vadd.f32 %v1368, %v1378
  %v1439 = vadd.f32 %v1369, %v1378
  %v1440 = vadd.f32 %v1370, %v1378
  %v1441 = vadd.f32 %v1371, %v1378
  %v1442 = vadd.f32 %v1372, %v1378
  %v1443 = vadd.f32 %v1373, %v1378
  %v1444 = vmax.f32 %v1380, 0.0
  %v1445 = vmax.f32 %v1381, 0.0
  %v1446 = vmax.f32 %v1382, 0.0
  %v1447 = vmax.f32 %v1383, 0.0
  %v1448 = vmax.f32 %v1384, 0.0
  %v1449 = vmax.f32 %v1385, 0.0
  %v1450 = vmax.f32 %v1386, 0.0
  %v1451 = vmax.f32 %v1387, 0.0
  %v1452 = vmax.f32 %v1388, 0.0
  %v1453 = vmax.f32 %v1389, 0.0
  %v1454 = vmax.f32 %v1390, 0.0
  %v1455 = vmax.f32 %v1391, 0.0
  %v1456 = vmax.f32 %v1392, 0.0
  %v1457 = vmax.f32 %v1393, 0.0
  %v1458 = vmax.f32 %v1394, 0.0
  %v1459 = vmax.f32 %v1395, 0.0
  %v1460 = vmax.f32 %v1396, 0.0
  %v1461 = vmax.f32 %v1397, 0.0
  %v1462 = vmax.f32 %v1398, 0.0
  %v1463 = vmax.f32 %v1399, 0.0
  %v1464 = vmax.f32 %v1400, 0.0
  %v1465 = vmax.f32 %v1401, 0.0
  %v1466 = vmax.f32 %v1402, 0.0
  %v1467 = vmax.f32 %v1403, 0.0
  %v1468 = vmax.f32 %v1404, 0.0
  %v1469 = vmax.f32 %v1405, 0.0
  %v1470 = vmax.f32 %v1406, 0.0
  %v1471 = vmax.f32 %v1407, 0.0
  %v1472 = vmax.f32 %v1408, 0.0
  %v1473 = vmax.f32 %v1409, 0.0
  %v1474 = vmax.f32 %v1410, 0.0
  %v1475 = vmax.f32 %v1411, 0.0
  %v1476 = vmax.f32 %v1412, 0.0
  %v1477 = vmax.f32 %v1413, 0.0
  %v1478 = vmax.f32 %v1414, 0.0
  %v1479 = vmax.f32 %v1415, 0.0
  %v1480 = vmax.f32 %v1416, 0.0
  %v1481 = vmax.f32 %v1417, 0.0
  %v1482 = vmax.f32 %v1418, 0.0
  %v1483 = vmax.f32 %v1419, 0.0
  %v1484 = vmax.f32 %v1420, 0.0
  %v1485 = vmax.f32 %v1421, 0.0
  %v1486 = vmax.f32 %v1422, 0.0
  %v1487 = vmax.f32 %v1423, 0.0
  %v1488 = vmax.f32 %v1424, 0.0
  %v1489 = vmax.f32 %v1425, 0.0
  %v1490 = vmax.f32 %v1426, 0.0
  %v1491 = vmax.f32 %v1427, 0.0
  %v1492 = vmax.f32 %v1428, 0.0
  %v1493 = vmax.f32 %v1429, 0.0
  %v1494 = vmax.f32 %v1430, 0.0
  %v1495 = vmax.f32 %v1431, 0.0
  %v1496 = vmax.f32 %v1432, 0.0
  %v1497 = vmax.f32 %v1433, 0.0
  %v1498 = vmax.f32 %v1434, 0.0
  %v1499 = vmax.f32 %v1435, 0.0
  %v1500 = vmax.f32 %v1436, 0.0
  %v1501 = vmax.f32 %v1437, 0.0
  %v1502 = vmax.f32 %v1438, 0.0
  %v1503 = vmax.f32 %v1439, 0.0
  %v1504 = vmax.f32 %v1440, 0.0
  %v1505 = vmax.f32 %v1441, 0.0
  %v1506 = vmax.f32 %v1442, 0.0
  %v1507 = vmax.f32 %v1443, 0.0
  %vm1508 = vcmask 64512
  %1509 = vst.msk [vmem:[%s4] sm:$0xff] %vm1508, %v1444
  %1510 = vst.msk [vmem:[%s4 + $0x8] sm:$0xff] %vm1508, %v1445
  %1511 = vst.msk [vmem:[%s4 + $0x10] sm:$0xff] %vm1508, %v1446
  %1512 = vst.msk [vmem:[%s4 + $0x18] sm:$0xff] %vm1508, %v1447
  %1513 = vst.msk [vmem:[%s4 + $0x20] sm:$0xff] %vm1508, %v1448
  %1514 = vst.msk [vmem:[%s4 + $0x28] sm:$0xff] %vm1508, %v1449
  %1515 = vst.msk [vmem:[%s4 + $0x30] sm:$0xff] %vm1508, %v1450
  %1516 = vst.msk [vmem:[%s4 + $0x38] sm:$0xff] %vm1508, %v1451
  %1517 = vst.msk [vmem:[%s4 + $0x40] sm:$0xff] %vm1508, %v1452
  %1518 = vst.msk [vmem:[%s4 + $0x48] sm:$0xff] %vm1508, %v1453
  %1519 = vst.msk [vmem:[%s4 + $0x50] sm:$0xff] %vm1508, %v1454
  %1520 = vst.msk [vmem:[%s4 + $0x58] sm:$0xff] %vm1508, %v1455
  %1521 = vst.msk [vmem:[%s4 + $0x60] sm:$0xff] %vm1508, %v1456
  %1522 = vst.msk [vmem:[%s4 + $0x68] sm:$0xff] %vm1508, %v1457
  %1523 = vst.msk [vmem:[%s4 + $0x70] sm:$0xff] %vm1508, %v1458
  %1524 = vst.msk [vmem:[%s4 + $0x78] sm:$0xff] %vm1508, %v1459
  %1525 = vst.msk [vmem:[%s4 + $0x80] sm:$0xff] %vm1508, %v1460
  %1526 = vst.msk [vmem:[%s4 + $0x88] sm:$0xff] %vm1508, %v1461
  %1527 = vst.msk [vmem:[%s4 + $0x90] sm:$0xff] %vm1508, %v1462
  %1528 = vst.msk [vmem:[%s4 + $0x98] sm:$0xff] %vm1508, %v1463
  %1529 = vst.msk [vmem:[%s4 + $0xa0] sm:$0xff] %vm1508, %v1464
  %1530 = vst.msk [vmem:[%s4 + $0xa8] sm:$0xff] %vm1508, %v1465
  %1531 = vst.msk [vmem:[%s4 + $0xb0] sm:$0xff] %vm1508, %v1466
  %1532 = vst.msk [vmem:[%s4 + $0xb8] sm:$0xff] %vm1508, %v1467
  %1533 = vst.msk [vmem:[%s4 + $0xc0] sm:$0xff] %vm1508, %v1468
  %1534 = vst.msk [vmem:[%s4 + $0xc8] sm:$0xff] %vm1508, %v1469
  %1535 = vst.msk [vmem:[%s4 + $0xd0] sm:$0xff] %vm1508, %v1470
  %1536 = vst.msk [vmem:[%s4 + $0xd8] sm:$0xff] %vm1508, %v1471
  %1537 = vst.msk [vmem:[%s4 + $0xe0] sm:$0xff] %vm1508, %v1472
  %1538 = vst.msk [vmem:[%s4 + $0xe8] sm:$0xff] %vm1508, %v1473
  %1539 = vst.msk [vmem:[%s4 + $0xf0] sm:$0xff] %vm1508, %v1474
  %1540 = vst.msk [vmem:[%s4 + $0xf8] sm:$0xff] %vm1508, %v1475
  %1541 = vst.msk [vmem:[%s4 + $0x100] sm:$0xff] %vm1508, %v1476
  %1542 = vst.msk [vmem:[%s4 + $0x108] sm:$0xff] %vm1508, %v1477
  %1543 = vst.msk [vmem:[%s4 + $0x110] sm:$0xff] %vm1508, %v1478
  %1544 = vst.msk [vmem:[%s4 + $0x118] sm:$0xff] %vm1508, %v1479
  %1545 = vst.msk [vmem:[%s4 + $0x120] sm:$0xff] %vm1508, %v1480
  %1546 = vst.msk [vmem:[%s4 + $0x128] sm:$0xff] %vm1508, %v1481
  %1547 = vst.msk [vmem:[%s4 + $0x130] sm:$0xff] %vm1508, %v1482
  %1548 = vst.msk [vmem:[%s4 + $0x138] sm:$0xff] %vm1508, %v1483
  %1549 = vst.msk [vmem:[%s4 + $0x140] sm:$0xff] %vm1508, %v1484
  %1550 = vst.msk [vmem:[%s4 + $0x148] sm:$0xff] %vm1508, %v1485
  %1551 = vst.msk [vmem:[%s4 + $0x150] sm:$0xff] %vm1508, %v1486
  %1552 = vst.msk [vmem:[%s4 + $0x158] sm:$0xff] %vm1508, %v1487
  %1553 = vst.msk [vmem:[%s4 + $0x160] sm:$0xff] %vm1508, %v1488
  %1554 = vst.msk [vmem:[%s4 + $0x168] sm:$0xff] %vm1508, %v1489
  %1555 = vst.msk [vmem:[%s4 + $0x170] sm:$0xff] %vm1508, %v1490
  %1556 = vst.msk [vmem:[%s4 + $0x178] sm:$0xff] %vm1508, %v1491
  %1557 = vst.msk [vmem:[%s4 + $0x180] sm:$0xff] %vm1508, %v1492
  %1558 = vst.msk [vmem:[%s4 + $0x188] sm:$0xff] %vm1508, %v1493
  %1559 = vst.msk [vmem:[%s4 + $0x190] sm:$0xff] %vm1508, %v1494
  %1560 = vst.msk [vmem:[%s4 + $0x198] sm:$0xff] %vm1508, %v1495
  %1561 = vst.msk [vmem:[%s4 + $0x1a0] sm:$0xff] %vm1508, %v1496
  %1562 = vst.msk [vmem:[%s4 + $0x1a8] sm:$0xff] %vm1508, %v1497
  %1563 = vst.msk [vmem:[%s4 + $0x1b0] sm:$0xff] %vm1508, %v1498
  %1564 = vst.msk [vmem:[%s4 + $0x1b8] sm:$0xff] %vm1508, %v1499
  %1565 = vst.msk [vmem:[%s4 + $0x1c0] sm:$0xff] %vm1508, %v1500
  %1566 = vst.msk [vmem:[%s4 + $0x1c8] sm:$0xff] %vm1508, %v1501
  %1567 = vst.msk [vmem:[%s4 + $0x1d0] sm:$0xff] %vm1508, %v1502
  %1568 = vst.msk [vmem:[%s4 + $0x1d8] sm:$0xff] %vm1508, %v1503
  %1569 = vst.msk [vmem:[%s4 + $0x1e0] sm:$0xff] %vm1508, %v1504
  %1570 = vst.msk [vmem:[%s4 + $0x1e8] sm:$0xff] %vm1508, %v1505
  %1571 = vst.msk [vmem:[%s4 + $0x1f0] sm:$0xff] %vm1508, %v1506
  %1572 = vst.msk [vmem:[%s4 + $0x1f8] sm:$0xff] %vm1508, %v1507
  // Predicated region
  $region18: #{drn_forward.17} parent=0 // pred_check
    _
  $region19: #{drn_forward.17} parent=0 // pred_check_branch
    %1574 = sbr.rel (0) target = $region21
  $region20: #{drn_forward.17} parent=0 // pred_region
    _
  $region21: #{drn_forward.17} parent=0 // pred_fallthru
    _
  // Predicated region
  $region22: #{drn_forward.17} parent=0 // pred_check
    _
  $region23: #{drn_forward.17} parent=0 // pred_check_branch
    %1576 = sbr.rel (0) target = $region25
  $region24: #{drn_forward.17} parent=0 // pred_region
    _
  $region25: #{drn_forward.17} parent=0 // pred_fallthru
    _

// kernel: drn_forward.19
$region0: #{drn_forward.19}
  #allocation0 [shape = 'u32[]', space=smem, size = 0x4, offset = 0x4, fixed_abs, tag = 'smem constant byte address 0x4 - core index']
  #allocation1 [shape = 'u32[144,128]{1,0:T(1,128)}', space=vmem, size = 0x12000, scoped, tag = 'internal scratch']
  %s0 = inlined_call_operand.vmem [shape: bf16[128,80], index: 0, kind: input, shape index: {}]
  %s1 = inlined_call_operand.vmem [shape: bf16[80,128], index: 1, kind: input, shape index: {}]
  %s2 = inlined_call_operand.vmem [shape: f32[1,128], index: 2, kind: input, shape index: {}]
  %s3 = inlined_call_operand.vmem [shape: f32[1,128], index: 3, kind: input, shape index: {}]
  %s4 = inlined_call_operand.vmem [shape: f32[128,8], index: 4, kind: output, shape index: {}]
  %s5 = sld [smem:[#allocation0]]
  $region26: #{drn_forward.19} parent=0
    _
  %s7 = ssub.s32 1, %s5
  %s8 = scalar_select 0, %s7, %s5
  // Predicated region
  $region2: #{drn_forward.19} parent=0 // pred_check
    _
  $region3: #{drn_forward.19} parent=0 // pred_check_branch
    %10 = sbr.rel (0) target = $region5
  $region4: #{drn_forward.19} parent=0 // pred_region
    _
  $region5: #{drn_forward.19} parent=0 // pred_fallthru
    _
  // Predicated region
  $region6: #{drn_forward.19} parent=0 // pred_check
    _
  $region7: #{drn_forward.19} parent=0 // pred_check_branch
    %12 = sbr.rel (0) target = $region9
  $region8: #{drn_forward.19} parent=0 // pred_region
    _
  $region9: #{drn_forward.19} parent=0 // pred_fallthru
    _
  // Predicated region
  $region10: #{drn_forward.19} parent=0 // pred_check
    _
  $region11: #{drn_forward.19} parent=0 // pred_check_branch
    %14 = sbr.rel (0) target = $region13
  $region12: #{drn_forward.19} parent=0 // pred_region
    _
  $region13: #{drn_forward.19} parent=0 // pred_fallthru
    _
  // Predicated region
  $region14: #{drn_forward.19} parent=0 // pred_check
    _
  $region15: #{drn_forward.19} parent=0 // pred_check_branch
    %16 = sbr.rel (0) target = $region17
  $region16: #{drn_forward.19} parent=0 // pred_region
    _
  $region17: #{drn_forward.19} parent=0 // pred_fallthru
    _
  %v18 = vld [vmem:[%s0] sm:$0xf]
  %v19 = vld [vmem:[%s0 + $0x4] sm:$0xf]
  %v20 = vld [vmem:[%s0 + $0x8] sm:$0xf]
  %v21 = vld [vmem:[%s0 + $0xc] sm:$0xf]
  %v22 = vld [vmem:[%s0 + $0x10] sm:$0xf]
  %v23 = vld [vmem:[%s0 + $0x14] sm:$0xf]
  %v24 = vld [vmem:[%s0 + $0x18] sm:$0xf]
  %v25 = vld [vmem:[%s0 + $0x1c] sm:$0xf]
  %v26 = vld [vmem:[%s0 + $0x20] sm:$0xf]
  %v27 = vld [vmem:[%s0 + $0x24] sm:$0xf]
  %v28 = vld [vmem:[%s0 + $0x28] sm:$0xf]
  %v29 = vld [vmem:[%s0 + $0x2c] sm:$0xf]
  %v30 = vld [vmem:[%s0 + $0x30] sm:$0xf]
  %v31 = vld [vmem:[%s0 + $0x34] sm:$0xf]
  %v32 = vld [vmem:[%s0 + $0x38] sm:$0xf]
  %v33 = vld [vmem:[%s0 + $0x3c] sm:$0xf]
  %v34 = vld [vmem:[%s1] sm:$0xf]
  %v35 = vld [vmem:[%s1 + $0x4] sm:$0xf]
  %v36 = vld [vmem:[%s1 + $0x8] sm:$0xf]
  %v37 = vld [vmem:[%s1 + $0xc] sm:$0xf]
  %v38 = vld [vmem:[%s1 + $0x10] sm:$0xf]
  %v39 = vld [vmem:[%s1 + $0x14] sm:$0xf]
  %v40 = vld [vmem:[%s1 + $0x18] sm:$0xf]
  %v41 = vld [vmem:[%s1 + $0x1c] sm:$0xf]
  %v42 = vld [vmem:[%s1 + $0x20] sm:$0xf]
  %v43 = vld [vmem:[%s1 + $0x24] sm:$0xf]
  %v60 = vunpack.c.l.b16 %v18
  %v61 = vunpack.c.l.b16 %v19
  %v62 = vunpack.c.l.b16 %v20
  %v63 = vunpack.c.l.b16 %v21
  %v64 = vunpack.c.l.b16 %v22
  %v65 = vunpack.c.l.b16 %v23
  %v66 = vunpack.c.l.b16 %v24
  %v67 = vunpack.c.l.b16 %v25
  %v68 = vunpack.c.l.b16 %v26
  %v69 = vunpack.c.l.b16 %v27
  %v70 = vunpack.c.l.b16 %v28
  %v71 = vunpack.c.l.b16 %v29
  %v72 = vunpack.c.l.b16 %v30
  %v73 = vunpack.c.l.b16 %v31
  %v74 = vunpack.c.l.b16 %v32
  %v75 = vunpack.c.l.b16 %v33
  %v76 = vpack.c.b16 %v61, %v60
  %v77 = vpack.c.b16 %v63, %v62
  %v78 = vpack.c.b16 %v65, %v64
  %v79 = vpack.c.b16 %v67, %v66
  %v80 = vpack.c.b16 %v69, %v68
  %v81 = vpack.c.b16 %v71, %v70
  %v82 = vpack.c.b16 %v73, %v72
  %v83 = vpack.c.b16 %v75, %v74
  %v94 = vunpack.c.l.b16 %v34
  %v95 = vunpack.c.l.b16 %v35
  %v96 = vunpack.c.l.b16 %v36
  %v97 = vunpack.c.l.b16 %v37
  %v98 = vunpack.c.l.b16 %v38
  %v99 = vunpack.c.l.b16 %v39
  %v100 = vunpack.c.l.b16 %v40
  %v101 = vunpack.c.l.b16 %v41
  %v102 = vunpack.c.l.b16 %v42
  %v103 = vunpack.c.l.b16 %v43
  %v104 = vpack.c.b16 %v95, %v94
  %v105 = vpack.c.b16 %v97, %v96
  %v106 = vpack.c.b16 %v99, %v98
  %v107 = vpack.c.b16 %v101, %v100
  %v108 = vpack.c.b16 %v103, %v102
  %vm114 = vcmask 654336
  %v116 = vsel %vm114, %v76, 0
  %v119 = vsel %vm114, %v77, 0
  %v122 = vsel %vm114, %v78, 0
  %v125 = vsel %vm114, %v79, 0
  %v128 = vsel %vm114, %v80, 0
  %v131 = vsel %vm114, %v81, 0
  %v134 = vsel %vm114, %v82, 0
  %v137 = vsel %vm114, %v83, 0
  %139 = vmatprep.subr.bf16.mxu0 0
  %140 = vmatpush1.bf16.msra.mxu0 0
  %141 = vmatprep.subr.bf16.mxu0 0
  %142 = vmatpush1.bf16.msra.mxu0 0
  %143 = vmatprep.subr.bf16.mxu0 0
  %144 = vmatpush1.bf16.msra.mxu0 0
  %145 = vmatprep.subr.bf16.mxu0 0
  %146 = vmatpush1.bf16.msra.mxu0 %v108
  %147 = vmatprep.subr.bf16.mxu0 0
  %148 = vmatpush1.bf16.msra.mxu0 %v107
  %149 = vmatprep.subr.bf16.mxu0 0
  %150 = vmatpush1.bf16.msra.mxu0 %v106
  %151 = vmatprep.subr.bf16.mxu0 0
  %152 = vmatpush1.bf16.msra.mxu0 %v105
  %153 = vmatprep.subr.bf16.mxu0 0
  %154 = vmatpush1.bf16.msra.mxu0 %v104
  %155 = vmatprep.subr.bf16.mxu0 0
  %156 = vmatpush2.bf16.msra.mxu0 0
  %157 = vmatprep.subr.bf16.mxu0 0
  %158 = vmatpush2.bf16.msra.mxu0 0
  %159 = vmatprep.subr.bf16.mxu0 0
  %160 = vmatpush2.bf16.msra.mxu0 0
  %161 = vmatprep.subr.bf16.mxu0 0
  %162 = vmatpush2.bf16.msra.mxu0 0
  %163 = vmatprep.subr.bf16.mxu0 0
  %164 = vmatpush2.bf16.msra.mxu0 0
  %165 = vmatprep.subr.bf16.mxu0 0
  %166 = vmatpush2.bf16.msra.mxu0 0
  %167 = vmatprep.subr.bf16.mxu0 0
  %168 = vmatpush2.bf16.msra.mxu0 0
  %169 = vmatprep.subr.bf16.mxu0 0
  %170 = vmatpush2.bf16.msra.mxu0 0
  %171 = vmatprep.mubr.bf16.mxu0 0
  %172 = vmatmul.mubr.bf16.gmra.mxu0 %v116
  %v173 = vpop.f32.mrf.mxu0
  %v174 = vadd.f32 0.0, %v173
  %v175 = vpop.f32.mrf.mxu0
  %v176 = vpop.f32.mrf.mxu0
  %v177 = vadd.f32 0.0, %v176
  %v178 = vpop.f32.mrf.mxu0
  %179 = vmatprep.mubr.bf16.mxu0 0
  %180 = vmatmul.mubr.bf16.gmra.mxu0 %v119
  %v181 = vpop.f32.mrf.mxu0
  %v182 = vadd.f32 0.0, %v181
  %v183 = vpop.f32.mrf.mxu0
  %v184 = vpop.f32.mrf.mxu0
  %v185 = vadd.f32 0.0, %v184
  %v186 = vpop.f32.mrf.mxu0
  %187 = vmatprep.mubr.bf16.mxu0 0
  %188 = vmatmul.mubr.bf16.gmra.mxu0 %v122
  %v189 = vpop.f32.mrf.mxu0
  %v190 = vadd.f32 0.0, %v189
  %v191 = vpop.f32.mrf.mxu0
  %v192 = vpop.f32.mrf.mxu0
  %v193 = vadd.f32 0.0, %v192
  %v194 = vpop.f32.mrf.mxu0
  %195 = vmatprep.mubr.bf16.mxu0 0
  %196 = vmatmul.mubr.bf16.gmra.mxu0 %v125
  %v197 = vpop.f32.mrf.mxu0
  %v198 = vadd.f32 0.0, %v197
  %v199 = vpop.f32.mrf.mxu0
  %v200 = vpop.f32.mrf.mxu0
  %v201 = vadd.f32 0.0, %v200
  %v202 = vpop.f32.mrf.mxu0
  %203 = vmatprep.mubr.bf16.mxu0 0
  %204 = vmatmul.mubr.bf16.gmra.mxu0 %v128
  %v205 = vpop.f32.mrf.mxu0
  %v206 = vadd.f32 0.0, %v205
  %v207 = vpop.f32.mrf.mxu0
  %v208 = vpop.f32.mrf.mxu0
  %v209 = vadd.f32 0.0, %v208
  %v210 = vpop.f32.mrf.mxu0
  %211 = vmatprep.mubr.bf16.mxu0 0
  %212 = vmatmul.mubr.bf16.gmra.mxu0 %v131
  %v213 = vpop.f32.mrf.mxu0
  %v214 = vadd.f32 0.0, %v213
  %v215 = vpop.f32.mrf.mxu0
  %v216 = vpop.f32.mrf.mxu0
  %v217 = vadd.f32 0.0, %v216
  %v218 = vpop.f32.mrf.mxu0
  %219 = vmatprep.mubr.bf16.mxu0 0
  %220 = vmatmul.mubr.bf16.gmra.mxu0 %v134
  %v221 = vpop.f32.mrf.mxu0
  %v222 = vadd.f32 0.0, %v221
  %v223 = vpop.f32.mrf.mxu0
  %v224 = vpop.f32.mrf.mxu0
  %v225 = vadd.f32 0.0, %v224
  %v226 = vpop.f32.mrf.mxu0
  %227 = vmatprep.mubr.bf16.mxu0 0
  %228 = vmatmul.mubr.bf16.gmra.mxu0 %v137
  %v229 = vpop.f32.mrf.mxu0
  %v230 = vadd.f32 0.0, %v229
  %v231 = vpop.f32.mrf.mxu0
  %v232 = vpop.f32.mrf.mxu0
  %v233 = vadd.f32 0.0, %v232
  %v234 = vpop.f32.mrf.mxu0
  %235 = vdwg.mxu0
  %v236 = vadd.f32 %v174, %v177
  %v237 = vadd.f32 %v236, %v182
  %v238 = vadd.f32 %v237, %v185
  %v239 = vadd.f32 %v238, %v190
  %v240 = vadd.f32 %v239, %v193
  %v241 = vadd.f32 %v240, %v198
  %v242 = vadd.f32 %v241, %v201
  %v243 = vadd.f32 %v242, %v206
  %v244 = vadd.f32 %v243, %v209
  %v245 = vadd.f32 %v244, %v214
  %v246 = vadd.f32 %v245, %v217
  %v247 = vadd.f32 %v246, %v222
  %v248 = vadd.f32 %v247, %v225
  %v249 = vadd.f32 %v248, %v230
  %v250 = vadd.f32 %v249, %v233
  %v251 = vrot.slane %v250, 4
  %v252 = vadd.f32 %v250, %v251
  %v253 = vrot.slane %v252, 2
  %v254 = vadd.f32 %v252, %v253
  %v255 = vrot.slane %v254, 1
  %v256 = vadd.f32 %v254, %v255
  %v257 = vmul.f32 %v256, 0.0078125
  %v258 = vsub.f32 %v174, %v257
  %v259 = vsub.f32 %v177, %v257
  %v260 = vsub.f32 %v182, %v257
  %v261 = vsub.f32 %v185, %v257
  %v262 = vsub.f32 %v190, %v257
  %v263 = vsub.f32 %v193, %v257
  %v264 = vsub.f32 %v198, %v257
  %v265 = vsub.f32 %v201, %v257
  %v266 = vsub.f32 %v206, %v257
  %v267 = vsub.f32 %v209, %v257
  %v268 = vsub.f32 %v214, %v257
  %v269 = vsub.f32 %v217, %v257
  %v270 = vsub.f32 %v222, %v257
  %v271 = vsub.f32 %v225, %v257
  %v272 = vsub.f32 %v230, %v257
  %v273 = vsub.f32 %v233, %v257
  %v274 = vlaneseq
  %v275 = vshrl.u32 %v274, 7
  %v276 = vadd.s32 %v275, 8
  %v277 = vadd.s32 %v275, 16
  %v278 = vadd.s32 %v275, 24
  %v279 = vadd.s32 %v275, 32
  %v280 = vadd.s32 %v275, 40
  %v281 = vadd.s32 %v275, 48
  %v282 = vadd.s32 %v275, 56
  %v283 = vadd.s32 %v275, 64
  %v284 = vadd.s32 %v275, 72
  %v285 = vadd.s32 %v275, 80
  %v286 = vadd.s32 %v275, 88
  %v287 = vadd.s32 %v275, 96
  %v288 = vadd.s32 %v275, 104
  %v289 = vadd.s32 %v275, 112
  %v290 = vadd.s32 %v275, 120
  %vm291 = vcmp.lt.s32.totalorder %v275, 128
  %vm292 = vcmp.lt.s32.totalorder %v276, 128
  %vm293 = vcmp.lt.s32.totalorder %v277, 128
  %vm294 = vcmp.lt.s32.totalorder %v278, 128
  %vm295 = vcmp.lt.s32.totalorder %v279, 128
  %vm296 = vcmp.lt.s32.totalorder %v280, 128
  %vm297 = vcmp.lt.s32.totalorder %v281, 128
  %vm298 = vcmp.lt.s32.totalorder %v282, 128
  %vm299 = vcmp.lt.s32.totalorder %v283, 128
  %vm300 = vcmp.lt.s32.totalorder %v284, 128
  %vm301 = vcmp.lt.s32.totalorder %v285, 128
  %vm302 = vcmp.lt.s32.totalorder %v286, 128
  %vm303 = vcmp.lt.s32.totalorder %v287, 128
  %vm304 = vcmp.lt.s32.totalorder %v288, 128
  %vm305 = vcmp.lt.s32.totalorder %v289, 128
  %vm306 = vcmp.lt.s32.totalorder %v290, 128
  %v307 = vmul.f32 %v258, %v258
  %v308 = vmul.f32 %v259, %v259
  %v309 = vmul.f32 %v260, %v260
  %v310 = vmul.f32 %v261, %v261
  %v311 = vmul.f32 %v262, %v262
  %v312 = vmul.f32 %v263, %v263
  %v313 = vmul.f32 %v264, %v264
  %v314 = vmul.f32 %v265, %v265
  %v315 = vmul.f32 %v266, %v266
  %v316 = vmul.f32 %v267, %v267
  %v317 = vmul.f32 %v268, %v268
  %v318 = vmul.f32 %v269, %v269
  %v319 = vmul.f32 %v270, %v270
  %v320 = vmul.f32 %v271, %v271
  %v321 = vmul.f32 %v272, %v272
  %v322 = vmul.f32 %v273, %v273
  %v323 = vsel %vm291, %v307, 0.0
  %v324 = vsel %vm292, %v308, 0.0
  %v325 = vsel %vm293, %v309, 0.0
  %v326 = vsel %vm294, %v310, 0.0
  %v327 = vsel %vm295, %v311, 0.0
  %v328 = vsel %vm296, %v312, 0.0
  %v329 = vsel %vm297, %v313, 0.0
  %v330 = vsel %vm298, %v314, 0.0
  %v331 = vsel %vm299, %v315, 0.0
  %v332 = vsel %vm300, %v316, 0.0
  %v333 = vsel %vm301, %v317, 0.0
  %v334 = vsel %vm302, %v318, 0.0
  %v335 = vsel %vm303, %v319, 0.0
  %v336 = vsel %vm304, %v320, 0.0
  %v337 = vsel %vm305, %v321, 0.0
  %v338 = vsel %vm306, %v322, 0.0
  %v339 = vadd.f32 %v323, %v324
  %v340 = vadd.f32 %v339, %v325
  %v341 = vadd.f32 %v340, %v326
  %v342 = vadd.f32 %v341, %v327
  %v343 = vadd.f32 %v342, %v328
  %v344 = vadd.f32 %v343, %v329
  %v345 = vadd.f32 %v344, %v330
  %v346 = vadd.f32 %v345, %v331
  %v347 = vadd.f32 %v346, %v332
  %v348 = vadd.f32 %v347, %v333
  %v349 = vadd.f32 %v348, %v334
  %v350 = vadd.f32 %v349, %v335
  %v351 = vadd.f32 %v350, %v336
  %v352 = vadd.f32 %v351, %v337
  %v353 = vadd.f32 %v352, %v338
  %v354 = vrot.slane %v353, 4
  %v355 = vadd.f32 %v353, %v354
  %v356 = vrot.slane %v355, 2
  %v357 = vadd.f32 %v355, %v356
  %v358 = vrot.slane %v357, 1
  %v359 = vadd.f32 %v357, %v358
  %v360 = vmul.f32 %v359, 0.0078125
  %v361 = vld [vmem:[%s2] sm:$0x1]
  %v362 = vadd.f32 %v360, 1e-05
  %v363 = vrsqrt.pop %v362
  %v364 = vmul.f32 %v361, %v363
  %v365 = vld [vmem:[%s3] sm:$0x1]
  %v366 = vmul.f32 %v257, %v364
  %v367 = vsub.f32 %v365, %v366
  %v369 = vlaneseq
  %v370 = vshrl.u32 %v369, 7
  %v371 = vsub.s32 0, %v370
  %v372 = vrot.slane %v364, %v371
  %v374 = vmul.f32 %v174, %v372
  %v375 = vmul.f32 %v177, %v372
  %v376 = vmul.f32 %v182, %v372
  %v377 = vmul.f32 %v185, %v372
  %v378 = vmul.f32 %v190, %v372
  %v379 = vmul.f32 %v193, %v372
  %v380 = vmul.f32 %v198, %v372
  %v381 = vmul.f32 %v201, %v372
  %v382 = vmul.f32 %v206, %v372
  %v383 = vmul.f32 %v209, %v372
  %v384 = vmul.f32 %v214, %v372
  %v385 = vmul.f32 %v217, %v372
  %v386 = vmul.f32 %v222, %v372
  %v387 = vmul.f32 %v225, %v372
  %v388 = vmul.f32 %v230, %v372
  %v389 = vmul.f32 %v233, %v372
  %v391 = vlaneseq
  %v392 = vshrl.u32 %v391, 7
  %v393 = vsub.s32 0, %v392
  %v394 = vrot.slane %v367, %v393
  %v396 = vadd.f32 %v374, %v394
  %v397 = vadd.f32 %v375, %v394
  %v398 = vadd.f32 %v376, %v394
  %v399 = vadd.f32 %v377, %v394
  %v400 = vadd.f32 %v378, %v394
  %v401 = vadd.f32 %v379, %v394
  %v402 = vadd.f32 %v380, %v394
  %v403 = vadd.f32 %v381, %v394
  %v404 = vadd.f32 %v382, %v394
  %v405 = vadd.f32 %v383, %v394
  %v406 = vadd.f32 %v384, %v394
  %v407 = vadd.f32 %v385, %v394
  %v408 = vadd.f32 %v386, %v394
  %v409 = vadd.f32 %v387, %v394
  %v410 = vadd.f32 %v388, %v394
  %v411 = vadd.f32 %v389, %v394
  %v412 = vmax.f32 %v396, 0.0
  %v413 = vmax.f32 %v397, 0.0
  %v414 = vmax.f32 %v398, 0.0
  %v415 = vmax.f32 %v399, 0.0
  %v416 = vmax.f32 %v400, 0.0
  %v417 = vmax.f32 %v401, 0.0
  %v418 = vmax.f32 %v402, 0.0
  %v419 = vmax.f32 %v403, 0.0
  %v420 = vmax.f32 %v404, 0.0
  %v421 = vmax.f32 %v405, 0.0
  %v422 = vmax.f32 %v406, 0.0
  %v423 = vmax.f32 %v407, 0.0
  %v424 = vmax.f32 %v408, 0.0
  %v425 = vmax.f32 %v409, 0.0
  %v426 = vmax.f32 %v410, 0.0
  %v427 = vmax.f32 %v411, 0.0
  %vm428 = vcmask 64512
  %429 = vst.msk [vmem:[%s4] sm:$0xff] %vm428, %v412
  %430 = vst.msk [vmem:[%s4 + $0x8] sm:$0xff] %vm428, %v413
  %431 = vst.msk [vmem:[%s4 + $0x10] sm:$0xff] %vm428, %v414
  %432 = vst.msk [vmem:[%s4 + $0x18] sm:$0xff] %vm428, %v415
  %433 = vst.msk [vmem:[%s4 + $0x20] sm:$0xff] %vm428, %v416
  %434 = vst.msk [vmem:[%s4 + $0x28] sm:$0xff] %vm428, %v417
  %435 = vst.msk [vmem:[%s4 + $0x30] sm:$0xff] %vm428, %v418
  %436 = vst.msk [vmem:[%s4 + $0x38] sm:$0xff] %vm428, %v419
  %437 = vst.msk [vmem:[%s4 + $0x40] sm:$0xff] %vm428, %v420
  %438 = vst.msk [vmem:[%s4 + $0x48] sm:$0xff] %vm428, %v421
  %439 = vst.msk [vmem:[%s4 + $0x50] sm:$0xff] %vm428, %v422
  %440 = vst.msk [vmem:[%s4 + $0x58] sm:$0xff] %vm428, %v423
  %441 = vst.msk [vmem:[%s4 + $0x60] sm:$0xff] %vm428, %v424
  %442 = vst.msk [vmem:[%s4 + $0x68] sm:$0xff] %vm428, %v425
  %443 = vst.msk [vmem:[%s4 + $0x70] sm:$0xff] %vm428, %v426
  %444 = vst.msk [vmem:[%s4 + $0x78] sm:$0xff] %vm428, %v427
  // Predicated region
  $region18: #{drn_forward.19} parent=0 // pred_check
    _
  $region19: #{drn_forward.19} parent=0 // pred_check_branch
    %446 = sbr.rel (0) target = $region21
  $region20: #{drn_forward.19} parent=0 // pred_region
    _
  $region21: #{drn_forward.19} parent=0 // pred_fallthru
    _
  // Predicated region
  $region22: #{drn_forward.19} parent=0 // pred_check
    _
  $region23: #{drn_forward.19} parent=0 // pred_check_branch
    %448 = sbr.rel (0) target = $region25
  $region24: #{drn_forward.19} parent=0 // pred_region
    _
  $region25: #{drn_forward.19} parent=0 // pred_fallthru
    _

// kernel: drn_forward.21
$region0: #{drn_forward.21}
  #allocation0 [shape = 'u32[]', space=smem, size = 0x4, offset = 0x4, fixed_abs, tag = 'smem constant byte address 0x4 - core index']
  #allocation1 [shape = 'u32[144,128]{1,0:T(1,128)}', space=vmem, size = 0x12000, scoped, tag = 'internal scratch']
  %s0 = inlined_call_operand.vmem [shape: bf16[32,80], index: 0, kind: input, shape index: {}]
  %s1 = inlined_call_operand.vmem [shape: bf16[80,128], index: 1, kind: input, shape index: {}]
  %s2 = inlined_call_operand.vmem [shape: f32[1,128], index: 2, kind: input, shape index: {}]
  %s3 = inlined_call_operand.vmem [shape: f32[1,128], index: 3, kind: input, shape index: {}]
  %s4 = inlined_call_operand.vmem [shape: f32[32,16], index: 4, kind: output, shape index: {}]
  %s5 = sld [smem:[#allocation0]]
  $region26: #{drn_forward.21} parent=0
    _
  %s7 = ssub.s32 1, %s5
  %s8 = scalar_select 0, %s7, %s5
  // Predicated region
  $region2: #{drn_forward.21} parent=0 // pred_check
    _
  $region3: #{drn_forward.21} parent=0 // pred_check_branch
    %10 = sbr.rel (0) target = $region5
  $region4: #{drn_forward.21} parent=0 // pred_region
    _
  $region5: #{drn_forward.21} parent=0 // pred_fallthru
    _
  // Predicated region
  $region6: #{drn_forward.21} parent=0 // pred_check
    _
  $region7: #{drn_forward.21} parent=0 // pred_check_branch
    %12 = sbr.rel (0) target = $region9
  $region8: #{drn_forward.21} parent=0 // pred_region
    _
  $region9: #{drn_forward.21} parent=0 // pred_fallthru
    _
  // Predicated region
  $region10: #{drn_forward.21} parent=0 // pred_check
    _
  $region11: #{drn_forward.21} parent=0 // pred_check_branch
    %14 = sbr.rel (0) target = $region13
  $region12: #{drn_forward.21} parent=0 // pred_region
    _
  $region13: #{drn_forward.21} parent=0 // pred_fallthru
    _
  // Predicated region
  $region14: #{drn_forward.21} parent=0 // pred_check
    _
  $region15: #{drn_forward.21} parent=0 // pred_check_branch
    %16 = sbr.rel (0) target = $region17
  $region16: #{drn_forward.21} parent=0 // pred_region
    _
  $region17: #{drn_forward.21} parent=0 // pred_fallthru
    _
  %v18 = vld [vmem:[%s0] sm:$0xf]
  %v19 = vld [vmem:[%s0 + $0x4] sm:$0xf]
  %v20 = vld [vmem:[%s0 + $0x8] sm:$0xf]
  %v21 = vld [vmem:[%s0 + $0xc] sm:$0xf]
  %v22 = vld [vmem:[%s1] sm:$0xf]
  %v23 = vld [vmem:[%s1 + $0x4] sm:$0xf]
  %v24 = vld [vmem:[%s1 + $0x8] sm:$0xf]
  %v25 = vld [vmem:[%s1 + $0xc] sm:$0xf]
  %v26 = vld [vmem:[%s1 + $0x10] sm:$0xf]
  %v27 = vld [vmem:[%s1 + $0x14] sm:$0xf]
  %v28 = vld [vmem:[%s1 + $0x18] sm:$0xf]
  %v29 = vld [vmem:[%s1 + $0x1c] sm:$0xf]
  %v30 = vld [vmem:[%s1 + $0x20] sm:$0xf]
  %v31 = vld [vmem:[%s1 + $0x24] sm:$0xf]
  %v36 = vunpack.c.l.b16 %v18
  %v37 = vunpack.c.l.b16 %v19
  %v38 = vunpack.c.l.b16 %v20
  %v39 = vunpack.c.l.b16 %v21
  %v40 = vpack.c.b16 %v37, %v36
  %v41 = vpack.c.b16 %v39, %v38
  %v52 = vunpack.c.l.b16 %v22
  %v53 = vunpack.c.l.b16 %v23
  %v54 = vunpack.c.l.b16 %v24
  %v55 = vunpack.c.l.b16 %v25
  %v56 = vunpack.c.l.b16 %v26
  %v57 = vunpack.c.l.b16 %v27
  %v58 = vunpack.c.l.b16 %v28
  %v59 = vunpack.c.l.b16 %v29
  %v60 = vunpack.c.l.b16 %v30
  %v61 = vunpack.c.l.b16 %v31
  %v62 = vpack.c.b16 %v53, %v52
  %v63 = vpack.c.b16 %v55, %v54
  %v64 = vpack.c.b16 %v57, %v56
  %v65 = vpack.c.b16 %v59, %v58
  %v66 = vpack.c.b16 %v61, %v60
  %vm72 = vcmask 654336
  %v74 = vsel %vm72, %v40, 0
  %v77 = vsel %vm72, %v41, 0
  %79 = vmatprep.subr.bf16.mxu0 0
  %80 = vmatpush1.bf16.msra.mxu0 0
  %81 = vmatprep.subr.bf16.mxu0 0
  %82 = vmatpush1.bf16.msra.mxu0 0
  %83 = vmatprep.subr.bf16.mxu0 0
  %84 = vmatpush1.bf16.msra.mxu0 0
  %85 = vmatprep.subr.bf16.mxu0 0
  %86 = vmatpush1.bf16.msra.mxu0 %v66
  %87 = vmatprep.subr.bf16.mxu0 0
  %88 = vmatpush1.bf16.msra.mxu0 %v65
  %89 = vmatprep.subr.bf16.mxu0 0
  %90 = vmatpush1.bf16.msra.mxu0 %v64
  %91 = vmatprep.subr.bf16.mxu0 0
  %92 = vmatpush1.bf16.msra.mxu0 %v63
  %93 = vmatprep.subr.bf16.mxu0 0
  %94 = vmatpush1.bf16.msra.mxu0 %v62
  %95 = vmatprep.subr.bf16.mxu0 0
  %96 = vmatpush2.bf16.msra.mxu0 0
  %97 = vmatprep.subr.bf16.mxu0 0
  %98 = vmatpush2.bf16.msra.mxu0 0
  %99 = vmatprep.subr.bf16.mxu0 0
  %100 = vmatpush2.bf16.msra.mxu0 0
  %101 = vmatprep.subr.bf16.mxu0 0
  %102 = vmatpush2.bf16.msra.mxu0 0
  %103 = vmatprep.subr.bf16.mxu0 0
  %104 = vmatpush2.bf16.msra.mxu0 0
  %105 = vmatprep.subr.bf16.mxu0 0
  %106 = vmatpush2.bf16.msra.mxu0 0
  %107 = vmatprep.subr.bf16.mxu0 0
  %108 = vmatpush2.bf16.msra.mxu0 0
  %109 = vmatprep.subr.bf16.mxu0 0
  %110 = vmatpush2.bf16.msra.mxu0 0
  %111 = vmatprep.mubr.bf16.mxu0 0
  %112 = vmatmul.mubr.bf16.gmra.mxu0 %v74
  %v113 = vpop.f32.mrf.mxu0
  %v114 = vadd.f32 0.0, %v113
  %v115 = vpop.f32.mrf.mxu0
  %v116 = vpop.f32.mrf.mxu0
  %v117 = vadd.f32 0.0, %v116
  %v118 = vpop.f32.mrf.mxu0
  %119 = vmatprep.mubr.bf16.mxu0 0
  %120 = vmatmul.mubr.bf16.gmra.mxu0 %v77
  %v121 = vpop.f32.mrf.mxu0
  %v122 = vadd.f32 0.0, %v121
  %v123 = vpop.f32.mrf.mxu0
  %v124 = vpop.f32.mrf.mxu0
  %v125 = vadd.f32 0.0, %v124
  %v126 = vpop.f32.mrf.mxu0
  %127 = vdwg.mxu0
  %v128 = vadd.f32 %v114, %v117
  %v129 = vadd.f32 %v128, %v122
  %v130 = vadd.f32 %v129, %v125
  %v131 = vrot.slane %v130, 4
  %v132 = vadd.f32 %v130, %v131
  %v133 = vrot.slane %v132, 2
  %v134 = vadd.f32 %v132, %v133
  %v135 = vrot.slane %v134, 1
  %v136 = vadd.f32 %v134, %v135
  %v137 = vmul.f32 %v136, 0.03125
  %v138 = vsub.f32 %v114, %v137
  %v139 = vsub.f32 %v117, %v137
  %v140 = vsub.f32 %v122, %v137
  %v141 = vsub.f32 %v125, %v137
  %v142 = vlaneseq
  %v143 = vshrl.u32 %v142, 7
  %v144 = vadd.s32 %v143, 8
  %v145 = vadd.s32 %v143, 16
  %v146 = vadd.s32 %v143, 24
  %vm147 = vcmp.lt.s32.totalorder %v143, 32
  %vm148 = vcmp.lt.s32.totalorder %v144, 32
  %vm149 = vcmp.lt.s32.totalorder %v145, 32
  %vm150 = vcmp.lt.s32.totalorder %v146, 32
  %v151 = vmul.f32 %v138, %v138
  %v152 = vmul.f32 %v139, %v139
  %v153 = vmul.f32 %v140, %v140
  %v154 = vmul.f32 %v141, %v141
  %v155 = vsel %vm147, %v151, 0.0
  %v156 = vsel %vm148, %v152, 0.0
  %v157 = vsel %vm149, %v153, 0.0
  %v158 = vsel %vm150, %v154, 0.0
  %v159 = vadd.f32 %v155, %v156
  %v160 = vadd.f32 %v159, %v157
  %v161 = vadd.f32 %v160, %v158
  %v162 = vrot.slane %v161, 4
  %v163 = vadd.f32 %v161, %v162
  %v164 = vrot.slane %v163, 2
  %v165 = vadd.f32 %v163, %v164
  %v166 = vrot.slane %v165, 1
  %v167 = vadd.f32 %v165, %v166
  %v168 = vmul.f32 %v167, 0.03125
  %v169 = vld [vmem:[%s2] sm:$0x1]
  %v170 = vadd.f32 %v168, 1e-05
  %v171 = vrsqrt.pop %v170
  %v172 = vmul.f32 %v169, %v171
  %v173 = vld [vmem:[%s3] sm:$0x1]
  %v174 = vmul.f32 %v137, %v172
  %v175 = vsub.f32 %v173, %v174
  %v177 = vlaneseq
  %v178 = vshrl.u32 %v177, 7
  %v179 = vsub.s32 0, %v178
  %v180 = vrot.slane %v172, %v179
  %v182 = vmul.f32 %v114, %v180
  %v183 = vmul.f32 %v117, %v180
  %v184 = vmul.f32 %v122, %v180
  %v185 = vmul.f32 %v125, %v180
  %v187 = vlaneseq
  %v188 = vshrl.u32 %v187, 7
  %v189 = vsub.s32 0, %v188
  %v190 = vrot.slane %v175, %v189
  %v192 = vadd.f32 %v182, %v190
  %v193 = vadd.f32 %v183, %v190
  %v194 = vadd.f32 %v184, %v190
  %v195 = vadd.f32 %v185, %v190
  %v196 = vmax.f32 %v192, 0.0
  %v197 = vmax.f32 %v193, 0.0
  %v198 = vmax.f32 %v194, 0.0
  %v199 = vmax.f32 %v195, 0.0
  %vm200 = vcmask 130048
  %201 = vst.msk [vmem:[%s4] sm:$0xff] %vm200, %v196
  %202 = vst.msk [vmem:[%s4 + $0x8] sm:$0xff] %vm200, %v197
  %203 = vst.msk [vmem:[%s4 + $0x10] sm:$0xff] %vm200, %v198
  %204 = vst.msk [vmem:[%s4 + $0x18] sm:$0xff] %vm200, %v199
  // Predicated region
  $region18: #{drn_forward.21} parent=0 // pred_check
    _
  $region19: #{drn_forward.21} parent=0 // pred_check_branch
    %206 = sbr.rel (0) target = $region21
  $region20: #{drn_forward.21} parent=0 // pred_region
    _
  $region21: #{drn_forward.21} parent=0 // pred_fallthru
    _
  // Predicated region
  $region22: #{drn_forward.21} parent=0 // pred_check
    _
  $region23: #{drn_forward.21} parent=0 // pred_check_branch
    %208 = sbr.rel (0) target = $region25
  $region24: #{drn_forward.21} parent=0 // pred_region
    _
  $region25: #{drn_forward.21} parent=0 // pred_fallthru
    _

// kernel: drn_forward.20
$region0: #{drn_forward.20}
  #allocation0 [shape = 'u32[]', space=smem, size = 0x4, offset = 0x4, fixed_abs, tag = 'smem constant byte address 0x4 - core index']
  #allocation1 [shape = 'u32[144,128]{1,0:T(1,128)}', space=vmem, size = 0x12000, scoped, tag = 'internal scratch']
  %s0 = inlined_call_operand.vmem [shape: bf16[32,16], index: 0, kind: input, shape index: {}]
  %s1 = inlined_call_operand.vmem [shape: bf16[16,128], index: 1, kind: input, shape index: {}]
  %s2 = inlined_call_operand.vmem [shape: f32[1,128], index: 2, kind: input, shape index: {}]
  %s3 = inlined_call_operand.vmem [shape: f32[1,128], index: 3, kind: input, shape index: {}]
  %s4 = inlined_call_operand.vmem [shape: f32[32,16], index: 4, kind: output, shape index: {}]
  %s5 = sld [smem:[#allocation0]]
  $region26: #{drn_forward.20} parent=0
    _
  %s7 = ssub.s32 1, %s5
  %s8 = scalar_select 0, %s7, %s5
  // Predicated region
  $region2: #{drn_forward.20} parent=0 // pred_check
    _
  $region3: #{drn_forward.20} parent=0 // pred_check_branch
    %10 = sbr.rel (0) target = $region5
  $region4: #{drn_forward.20} parent=0 // pred_region
    _
  $region5: #{drn_forward.20} parent=0 // pred_fallthru
    _
  // Predicated region
  $region6: #{drn_forward.20} parent=0 // pred_check
    _
  $region7: #{drn_forward.20} parent=0 // pred_check_branch
    %12 = sbr.rel (0) target = $region9
  $region8: #{drn_forward.20} parent=0 // pred_region
    _
  $region9: #{drn_forward.20} parent=0 // pred_fallthru
    _
  // Predicated region
  $region10: #{drn_forward.20} parent=0 // pred_check
    _
  $region11: #{drn_forward.20} parent=0 // pred_check_branch
    %14 = sbr.rel (0) target = $region13
  $region12: #{drn_forward.20} parent=0 // pred_region
    _
  $region13: #{drn_forward.20} parent=0 // pred_fallthru
    _
  // Predicated region
  $region14: #{drn_forward.20} parent=0 // pred_check
    _
  $region15: #{drn_forward.20} parent=0 // pred_check_branch
    %16 = sbr.rel (0) target = $region17
  $region16: #{drn_forward.20} parent=0 // pred_region
    _
  $region17: #{drn_forward.20} parent=0 // pred_fallthru
    _
  %v18 = vld [vmem:[%s0] sm:$0xf]
  %v19 = vld [vmem:[%s0 + $0x4] sm:$0xf]
  %v20 = vld [vmem:[%s0 + $0x8] sm:$0xf]
  %v21 = vld [vmem:[%s0 + $0xc] sm:$0xf]
  %v22 = vld [vmem:[%s1] sm:$0xf]
  %v23 = vld [vmem:[%s1 + $0x4] sm:$0xf]
  %v28 = vunpack.c.l.b16 %v18
  %v29 = vunpack.c.l.b16 %v19
  %v30 = vunpack.c.l.b16 %v20
  %v31 = vunpack.c.l.b16 %v21
  %v32 = vpack.c.b16 %v29, %v28
  %v33 = vpack.c.b16 %v31, %v30
  %v36 = vunpack.c.l.b16 %v22
  %v37 = vunpack.c.l.b16 %v23
  %v38 = vpack.c.b16 %v37, %v36
  %vm40 = vcmask 130048
  %v42 = vsel %vm40, %v32, 0
  %v45 = vsel %vm40, %v33, 0
  %47 = vmatprep.subr.bf16.mxu0 0
  %48 = vmatpush1.bf16.msra.mxu0 0
  %49 = vmatprep.subr.bf16.mxu0 0
  %50 = vmatpush1.bf16.msra.mxu0 0
  %51 = vmatprep.subr.bf16.mxu0 0
  %52 = vmatpush1.bf16.msra.mxu0 0
  %53 = vmatprep.subr.bf16.mxu0 0
  %54 = vmatpush1.bf16.msra.mxu0 0
  %55 = vmatprep.subr.bf16.mxu0 0
  %56 = vmatpush1.bf16.msra.mxu0 0
  %57 = vmatprep.subr.bf16.mxu0 0
  %58 = vmatpush1.bf16.msra.mxu0 0
  %59 = vmatprep.subr.bf16.mxu0 0
  %60 = vmatpush1.bf16.msra.mxu0 0
  %61 = vmatprep.subr.bf16.mxu0 0
  %62 = vmatpush1.bf16.msra.mxu0 %v38
  %63 = vmatprep.subr.bf16.mxu0 0
  %64 = vmatpush2.bf16.msra.mxu0 0
  %65 = vmatprep.subr.bf16.mxu0 0
  %66 = vmatpush2.bf16.msra.mxu0 0
  %67 = vmatprep.subr.bf16.mxu0 0
  %68 = vmatpush2.bf16.msra.mxu0 0
  %69 = vmatprep.subr.bf16.mxu0 0
  %70 = vmatpush2.bf16.msra.mxu0 0
  %71 = vmatprep.subr.bf16.mxu0 0
  %72 = vmatpush2.bf16.msra.mxu0 0
  %73 = vmatprep.subr.bf16.mxu0 0
  %74 = vmatpush2.bf16.msra.mxu0 0
  %75 = vmatprep.subr.bf16.mxu0 0
  %76 = vmatpush2.bf16.msra.mxu0 0
  %77 = vmatprep.subr.bf16.mxu0 0
  %78 = vmatpush2.bf16.msra.mxu0 0
  %79 = vmatprep.mubr.bf16.mxu0 0
  %80 = vmatmul.mubr.bf16.gmra.mxu0 %v42
  %v81 = vpop.f32.mrf.mxu0
  %v82 = vadd.f32 0.0, %v81
  %v83 = vpop.f32.mrf.mxu0
  %v84 = vpop.f32.mrf.mxu0
  %v85 = vadd.f32 0.0, %v84
  %v86 = vpop.f32.mrf.mxu0
  %87 = vmatprep.mubr.bf16.mxu0 0
  %88 = vmatmul.mubr.bf16.gmra.mxu0 %v45
  %v89 = vpop.f32.mrf.mxu0
  %v90 = vadd.f32 0.0, %v89
  %v91 = vpop.f32.mrf.mxu0
  %v92 = vpop.f32.mrf.mxu0
  %v93 = vadd.f32 0.0, %v92
  %v94 = vpop.f32.mrf.mxu0
  %95 = vdwg.mxu0
  %v96 = vadd.f32 %v82, %v85
  %v97 = vadd.f32 %v96, %v90
  %v98 = vadd.f32 %v97, %v93
  %v99 = vrot.slane %v98, 4
  %v100 = vadd.f32 %v98, %v99
  %v101 = vrot.slane %v100, 2
  %v102 = vadd.f32 %v100, %v101
  %v103 = vrot.slane %v102, 1
  %v104 = vadd.f32 %v102, %v103
  %v105 = vmul.f32 %v104, 0.03125
  %v106 = vsub.f32 %v82, %v105
  %v107 = vsub.f32 %v85, %v105
  %v108 = vsub.f32 %v90, %v105
  %v109 = vsub.f32 %v93, %v105
  %v110 = vlaneseq
  %v111 = vshrl.u32 %v110, 7
  %v112 = vadd.s32 %v111, 8
  %v113 = vadd.s32 %v111, 16
  %v114 = vadd.s32 %v111, 24
  %vm115 = vcmp.lt.s32.totalorder %v111, 32
  %vm116 = vcmp.lt.s32.totalorder %v112, 32
  %vm117 = vcmp.lt.s32.totalorder %v113, 32
  %vm118 = vcmp.lt.s32.totalorder %v114, 32
  %v119 = vmul.f32 %v106, %v106
  %v120 = vmul.f32 %v107, %v107
  %v121 = vmul.f32 %v108, %v108
  %v122 = vmul.f32 %v109, %v109
  %v123 = vsel %vm115, %v119, 0.0
  %v124 = vsel %vm116, %v120, 0.0
  %v125 = vsel %vm117, %v121, 0.0
  %v126 = vsel %vm118, %v122, 0.0
  %v127 = vadd.f32 %v123, %v124
  %v128 = vadd.f32 %v127, %v125
  %v129 = vadd.f32 %v128, %v126
  %v130 = vrot.slane %v129, 4
  %v131 = vadd.f32 %v129, %v130
  %v132 = vrot.slane %v131, 2
  %v133 = vadd.f32 %v131, %v132
  %v134 = vrot.slane %v133, 1
  %v135 = vadd.f32 %v133, %v134
  %v136 = vmul.f32 %v135, 0.03125
  %v137 = vld [vmem:[%s2] sm:$0x1]
  %v138 = vadd.f32 %v136, 1e-05
  %v139 = vrsqrt.pop %v138
  %v140 = vmul.f32 %v137, %v139
  %v141 = vld [vmem:[%s3] sm:$0x1]
  %v142 = vmul.f32 %v105, %v140
  %v143 = vsub.f32 %v141, %v142
  %v145 = vlaneseq
  %v146 = vshrl.u32 %v145, 7
  %v147 = vsub.s32 0, %v146
  %v148 = vrot.slane %v140, %v147
  %v150 = vmul.f32 %v82, %v148
  %v151 = vmul.f32 %v85, %v148
  %v152 = vmul.f32 %v90, %v148
  %v153 = vmul.f32 %v93, %v148
  %v155 = vlaneseq
  %v156 = vshrl.u32 %v155, 7
  %v157 = vsub.s32 0, %v156
  %v158 = vrot.slane %v143, %v157
  %v160 = vadd.f32 %v150, %v158
  %v161 = vadd.f32 %v151, %v158
  %v162 = vadd.f32 %v152, %v158
  %v163 = vadd.f32 %v153, %v158
  %164 = vst.msk [vmem:[%s4] sm:$0xff] %vm40, %v160
  %165 = vst.msk [vmem:[%s4 + $0x8] sm:$0xff] %vm40, %v161
  %166 = vst.msk [vmem:[%s4 + $0x10] sm:$0xff] %vm40, %v162
  %167 = vst.msk [vmem:[%s4 + $0x18] sm:$0xff] %vm40, %v163
  // Predicated region
  $region18: #{drn_forward.20} parent=0 // pred_check
    _
  $region19: #{drn_forward.20} parent=0 // pred_check_branch
    %169 = sbr.rel (0) target = $region21
  $region20: #{drn_forward.20} parent=0 // pred_region
    _
  $region21: #{drn_forward.20} parent=0 // pred_fallthru
    _
  // Predicated region
  $region22: #{drn_forward.20} parent=0 // pred_check
    _
  $region23: #{drn_forward.20} parent=0 // pred_check_branch
    %171 = sbr.rel (0) target = $region25
  $region24: #{drn_forward.20} parent=0 // pred_region
    _
  $region25: #{drn_forward.20} parent=0 // pred_fallthru
    _

// kernel: drn_forward.22
$region0: #{drn_forward.22}
  #allocation0 [shape = 'u32[]', space=smem, size = 0x4, offset = 0x4, fixed_abs, tag = 'smem constant byte address 0x4 - core index']
  #allocation1 [shape = 'u32[144,128]{1,0:T(1,128)}', space=vmem, size = 0x12000, scoped, tag = 'internal scratch']
  %s0 = inlined_call_operand.vmem [shape: bf16[32,144], index: 0, kind: input, shape index: {}]
  %s1 = inlined_call_operand.vmem [shape: bf16[144,128], index: 1, kind: input, shape index: {}]
  %s2 = inlined_call_operand.vmem [shape: f32[1,128], index: 2, kind: input, shape index: {}]
  %s3 = inlined_call_operand.vmem [shape: f32[1,128], index: 3, kind: input, shape index: {}]
  %s4 = inlined_call_operand.vmem [shape: f32[32,16], index: 4, kind: input, shape index: {}]
  %s5 = inlined_call_operand.vmem [shape: f32[32,16], index: 5, kind: output, shape index: {}]
  %s6 = sld [smem:[#allocation0]]
  $region30: #{drn_forward.22} parent=0
    _
  %s8 = ssub.s32 1, %s6
  %s9 = scalar_select 0, %s8, %s6
  // Predicated region
  $region2: #{drn_forward.22} parent=0 // pred_check
    _
  $region3: #{drn_forward.22} parent=0 // pred_check_branch
    %11 = sbr.rel (0) target = $region5
  $region4: #{drn_forward.22} parent=0 // pred_region
    _
  $region5: #{drn_forward.22} parent=0 // pred_fallthru
    _
  // Predicated region
  $region6: #{drn_forward.22} parent=0 // pred_check
    _
  $region7: #{drn_forward.22} parent=0 // pred_check_branch
    %13 = sbr.rel (0) target = $region9
  $region8: #{drn_forward.22} parent=0 // pred_region
    _
  $region9: #{drn_forward.22} parent=0 // pred_fallthru
    _
  // Predicated region
  $region10: #{drn_forward.22} parent=0 // pred_check
    _
  $region11: #{drn_forward.22} parent=0 // pred_check_branch
    %15 = sbr.rel (0) target = $region13
  $region12: #{drn_forward.22} parent=0 // pred_region
    _
  $region13: #{drn_forward.22} parent=0 // pred_fallthru
    _
  // Predicated region
  $region14: #{drn_forward.22} parent=0 // pred_check
    _
  $region15: #{drn_forward.22} parent=0 // pred_check_branch
    %17 = sbr.rel (0) target = $region17
  $region16: #{drn_forward.22} parent=0 // pred_region
    _
  $region17: #{drn_forward.22} parent=0 // pred_fallthru
    _
  // Predicated region
  $region18: #{drn_forward.22} parent=0 // pred_check
    _
  $region19: #{drn_forward.22} parent=0 // pred_check_branch
    %19 = sbr.rel (0) target = $region21
  $region20: #{drn_forward.22} parent=0 // pred_region
    _
  $region21: #{drn_forward.22} parent=0 // pred_fallthru
    _
  %v21 = vld [vmem:[%s0] sm:$0xff]
  %v22 = vld [vmem:[%s0 + $0x8] sm:$0xff]
  %v23 = vld [vmem:[%s0 + $0x10] sm:$0xff]
  %v24 = vld [vmem:[%s0 + $0x18] sm:$0xff]
  %v25 = vld [vmem:[%s1] sm:$0xf]
  %v26 = vld [vmem:[%s1 + $0x4] sm:$0xf]
  %v27 = vld [vmem:[%s1 + $0x8] sm:$0xf]
  %v28 = vld [vmem:[%s1 + $0xc] sm:$0xf]
  %v29 = vld [vmem:[%s1 + $0x10] sm:$0xf]
  %v30 = vld [vmem:[%s1 + $0x14] sm:$0xf]
  %v31 = vld [vmem:[%s1 + $0x18] sm:$0xf]
  %v32 = vld [vmem:[%s1 + $0x1c] sm:$0xf]
  %v33 = vld [vmem:[%s1 + $0x20] sm:$0xf]
  %v34 = vld [vmem:[%s1 + $0x24] sm:$0xf]
  %v35 = vld [vmem:[%s1 + $0x28] sm:$0xf]
  %v36 = vld [vmem:[%s1 + $0x2c] sm:$0xf]
  %v37 = vld [vmem:[%s1 + $0x30] sm:$0xf]
  %v38 = vld [vmem:[%s1 + $0x34] sm:$0xf]
  %v39 = vld [vmem:[%s1 + $0x38] sm:$0xf]
  %v40 = vld [vmem:[%s1 + $0x3c] sm:$0xf]
  %v41 = vld [vmem:[%s1 + $0x40] sm:$0xf]
  %v42 = vld [vmem:[%s1 + $0x44] sm:$0xf]
  %v47 = vunpack.c.l.b16 %v21
  %v48 = vunpack.c.h.b16 %v21
  %v49 = vunpack.c.l.b16 %v22
  %v50 = vunpack.c.h.b16 %v22
  %v51 = vunpack.c.l.b16 %v23
  %v52 = vunpack.c.h.b16 %v23
  %v53 = vunpack.c.l.b16 %v24
  %v54 = vunpack.c.h.b16 %v24
  %v55 = vpack.c.b16 %v49, %v47
  %v56 = vpack.c.b16 %v50, %v48
  %v57 = vpack.c.b16 %v53, %v51
  %v58 = vpack.c.b16 %v54, %v52
  %v79 = vunpack.c.l.b16 %v25
  %v80 = vunpack.c.l.b16 %v26
  %v81 = vunpack.c.l.b16 %v27
  %v82 = vunpack.c.l.b16 %v28
  %v83 = vunpack.c.l.b16 %v29
  %v84 = vunpack.c.l.b16 %v30
  %v85 = vunpack.c.l.b16 %v31
  %v86 = vunpack.c.l.b16 %v32
  %v87 = vunpack.c.l.b16 %v33
  %v88 = vunpack.c.l.b16 %v34
  %v89 = vunpack.c.l.b16 %v35
  %v90 = vunpack.c.l.b16 %v36
  %v91 = vunpack.c.l.b16 %v37
  %v92 = vunpack.c.l.b16 %v38
  %v93 = vunpack.c.l.b16 %v39
  %v94 = vunpack.c.l.b16 %v40
  %v95 = vunpack.c.l.b16 %v41
  %v96 = vunpack.c.l.b16 %v42
  %v97 = vpack.c.b16 %v80, %v79
  %v98 = vpack.c.b16 %v82, %v81
  %v99 = vpack.c.b16 %v84, %v83
  %v100 = vpack.c.b16 %v86, %v85
  %v101 = vpack.c.b16 %v88, %v87
  %v102 = vpack.c.b16 %v90, %v89
  %v103 = vpack.c.b16 %v92, %v91
  %v104 = vpack.c.b16 %v94, %v93
  %v105 = vpack.c.b16 %v96, %v95
  %vm115 = vcmask 130048
  %v117 = vsel %vm115, %v56, 0
  %v120 = vsel %vm115, %v58, 0
  %122 = vmatprep.subr.bf16.mxu0 0
  %123 = vmatpush1.bf16.msra.mxu0 %v104
  %124 = vmatprep.subr.bf16.mxu0 0
  %125 = vmatpush1.bf16.msra.mxu0 %v103
  %126 = vmatprep.subr.bf16.mxu0 0
  %127 = vmatpush1.bf16.msra.mxu0 %v102
  %128 = vmatprep.subr.bf16.mxu0 0
  %129 = vmatpush1.bf16.msra.mxu0 %v101
  %130 = vmatprep.subr.bf16.mxu0 0
  %131 = vmatpush1.bf16.msra.mxu0 %v100
  %132 = vmatprep.subr.bf16.mxu0 0
  %133 = vmatpush1.bf16.msra.mxu0 %v99
  %134 = vmatprep.subr.bf16.mxu0 0
  %135 = vmatpush1.bf16.msra.mxu0 %v98
  %136 = vmatprep.subr.bf16.mxu0 0
  %137 = vmatpush1.bf16.msra.mxu0 %v97
  %138 = vmatprep.subr.bf16.mxu0 0
  %139 = vmatpush2.bf16.msra.mxu0 0
  %140 = vmatprep.subr.bf16.mxu0 0
  %141 = vmatpush2.bf16.msra.mxu0 0
  %142 = vmatprep.subr.bf16.mxu0 0
  %143 = vmatpush2.bf16.msra.mxu0 0
  %144 = vmatprep.subr.bf16.mxu0 0
  %145 = vmatpush2.bf16.msra.mxu0 0
  %146 = vmatprep.subr.bf16.mxu0 0
  %147 = vmatpush2.bf16.msra.mxu0 0
  %148 = vmatprep.subr.bf16.mxu0 0
  %149 = vmatpush2.bf16.msra.mxu0 0
  %150 = vmatprep.subr.bf16.mxu0 0
  %151 = vmatpush2.bf16.msra.mxu0 0
  %152 = vmatprep.subr.bf16.mxu0 0
  %153 = vmatpush2.bf16.msra.mxu0 %v105
  %154 = vmatprep.mubr.bf16.mxu0 %v117
  %155 = vmatmul.mubr.bf16.gmra.mxu0 %v55
  %v156 = vpop.f32.mrf.mxu0
  %v157 = vadd.f32 0.0, %v156
  %v158 = vpop.f32.mrf.mxu0
  %v159 = vpop.f32.mrf.mxu0
  %v160 = vadd.f32 0.0, %v159
  %v161 = vpop.f32.mrf.mxu0
  %162 = vmatprep.mubr.bf16.mxu0 %v120
  %163 = vmatmul.mubr.bf16.gmra.mxu0 %v57
  %v164 = vpop.f32.mrf.mxu0
  %v165 = vadd.f32 0.0, %v164
  %v166 = vpop.f32.mrf.mxu0
  %v167 = vpop.f32.mrf.mxu0
  %v168 = vadd.f32 0.0, %v167
  %v169 = vpop.f32.mrf.mxu0
  %170 = vdwg.mxu0
  %v171 = vadd.f32 %v157, %v160
  %v172 = vadd.f32 %v171, %v165
  %v173 = vadd.f32 %v172, %v168
  %v174 = vrot.slane %v173, 4
  %v175 = vadd.f32 %v173, %v174
  %v176 = vrot.slane %v175, 2
  %v177 = vadd.f32 %v175, %v176
  %v178 = vrot.slane %v177, 1
  %v179 = vadd.f32 %v177, %v178
  %v180 = vmul.f32 %v179, 0.03125
  %v181 = vsub.f32 %v157, %v180
  %v182 = vsub.f32 %v160, %v180
  %v183 = vsub.f32 %v165, %v180
  %v184 = vsub.f32 %v168, %v180
  %v185 = vlaneseq
  %v186 = vshrl.u32 %v185, 7
  %v187 = vadd.s32 %v186, 8
  %v188 = vadd.s32 %v186, 16
  %v189 = vadd.s32 %v186, 24
  %vm190 = vcmp.lt.s32.totalorder %v186, 32
  %vm191 = vcmp.lt.s32.totalorder %v187, 32
  %vm192 = vcmp.lt.s32.totalorder %v188, 32
  %vm193 = vcmp.lt.s32.totalorder %v189, 32
  %v194 = vmul.f32 %v181, %v181
  %v195 = vmul.f32 %v182, %v182
  %v196 = vmul.f32 %v183, %v183
  %v197 = vmul.f32 %v184, %v184
  %v198 = vsel %vm190, %v194, 0.0
  %v199 = vsel %vm191, %v195, 0.0
  %v200 = vsel %vm192, %v196, 0.0
  %v201 = vsel %vm193, %v197, 0.0
  %v202 = vadd.f32 %v198, %v199
  %v203 = vadd.f32 %v202, %v200
  %v204 = vadd.f32 %v203, %v201
  %v205 = vrot.slane %v204, 4
  %v206 = vadd.f32 %v204, %v205
  %v207 = vrot.slane %v206, 2
  %v208 = vadd.f32 %v206, %v207
  %v209 = vrot.slane %v208, 1
  %v210 = vadd.f32 %v208, %v209
  %v211 = vmul.f32 %v210, 0.03125
  %v212 = vld [vmem:[%s2] sm:$0x1]
  %v213 = vadd.f32 %v211, 1e-05
  %v214 = vrsqrt.pop %v213
  %v215 = vmul.f32 %v212, %v214
  %v216 = vld [vmem:[%s3] sm:$0x1]
  %v217 = vmul.f32 %v180, %v215
  %v218 = vsub.f32 %v216, %v217
  %v220 = vlaneseq
  %v221 = vshrl.u32 %v220, 7
  %v222 = vsub.s32 0, %v221
  %v223 = vrot.slane %v215, %v222
  %v225 = vmul.f32 %v157, %v223
  %v226 = vmul.f32 %v160, %v223
  %v227 = vmul.f32 %v165, %v223
  %v228 = vmul.f32 %v168, %v223
  %v230 = vlaneseq
  %v231 = vshrl.u32 %v230, 7
  %v232 = vsub.s32 0, %v231
  %v233 = vrot.slane %v218, %v232
  %v235 = vadd.f32 %v225, %v233
  %v236 = vadd.f32 %v226, %v233
  %v237 = vadd.f32 %v227, %v233
  %v238 = vadd.f32 %v228, %v233
  %v239 = vld [vmem:[%s4] sm:$0xff]
  %v240 = vld [vmem:[%s4 + $0x8] sm:$0xff]
  %v241 = vld [vmem:[%s4 + $0x10] sm:$0xff]
  %v242 = vld [vmem:[%s4 + $0x18] sm:$0xff]
  %v243 = vadd.f32 %v235, %v239
  %v244 = vadd.f32 %v236, %v240
  %v245 = vadd.f32 %v237, %v241
  %v246 = vadd.f32 %v238, %v242
  %v247 = vmax.f32 %v243, 0.0
  %v248 = vmax.f32 %v244, 0.0
  %v249 = vmax.f32 %v245, 0.0
  %v250 = vmax.f32 %v246, 0.0
  %251 = vst.msk [vmem:[%s5] sm:$0xff] %vm115, %v247
  %252 = vst.msk [vmem:[%s5 + $0x8] sm:$0xff] %vm115, %v248
  %253 = vst.msk [vmem:[%s5 + $0x10] sm:$0xff] %vm115, %v249
  %254 = vst.msk [vmem:[%s5 + $0x18] sm:$0xff] %vm115, %v250
  // Predicated region
  $region22: #{drn_forward.22} parent=0 // pred_check
    _
  $region23: #{drn_forward.22} parent=0 // pred_check_branch
    %256 = sbr.rel (0) target = $region25
  $region24: #{drn_forward.22} parent=0 // pred_region
    _
  $region25: #{drn_forward.22} parent=0 // pred_fallthru
    _
  // Predicated region
  $region26: #{drn_forward.22} parent=0 // pred_check
    _
  $region27: #{drn_forward.22} parent=0 // pred_check_branch
    %258 = sbr.rel (0) target = $region29
  $region28: #{drn_forward.22} parent=0 // pred_region
    _
  $region29: #{drn_forward.22} parent=0 // pred_fallthru
    _

// kernel: drn_forward.24
$region0: #{drn_forward.24}
  #allocation0 [shape = 'u32[]', space=smem, size = 0x4, offset = 0x4, fixed_abs, tag = 'smem constant byte address 0x4 - core index']
  #allocation1 [shape = 'u32[144,128]{1,0:T(1,128)}', space=vmem, size = 0x12000, scoped, tag = 'internal scratch']
  %s0 = inlined_call_operand.vmem [shape: bf16[16,144], index: 0, kind: input, shape index: {}]
  %s1 = inlined_call_operand.vmem [shape: bf16[144,128], index: 1, kind: input, shape index: {}]
  %s2 = inlined_call_operand.vmem [shape: f32[1,128], index: 2, kind: input, shape index: {}]
  %s3 = inlined_call_operand.vmem [shape: f32[1,128], index: 3, kind: input, shape index: {}]
  %s4 = inlined_call_operand.vmem [shape: f32[16,16], index: 4, kind: output, shape index: {}]
  %s5 = sld [smem:[#allocation0]]
  $region26: #{drn_forward.24} parent=0
    _
  %s7 = ssub.s32 1, %s5
  %s8 = scalar_select 0, %s7, %s5
  // Predicated region
  $region2: #{drn_forward.24} parent=0 // pred_check
    _
  $region3: #{drn_forward.24} parent=0 // pred_check_branch
    %10 = sbr.rel (0) target = $region5
  $region4: #{drn_forward.24} parent=0 // pred_region
    _
  $region5: #{drn_forward.24} parent=0 // pred_fallthru
    _
  // Predicated region
  $region6: #{drn_forward.24} parent=0 // pred_check
    _
  $region7: #{drn_forward.24} parent=0 // pred_check_branch
    %12 = sbr.rel (0) target = $region9
  $region8: #{drn_forward.24} parent=0 // pred_region
    _
  $region9: #{drn_forward.24} parent=0 // pred_fallthru
    _
  // Predicated region
  $region10: #{drn_forward.24} parent=0 // pred_check
    _
  $region11: #{drn_forward.24} parent=0 // pred_check_branch
    %14 = sbr.rel (0) target = $region13
  $region12: #{drn_forward.24} parent=0 // pred_region
    _
  $region13: #{drn_forward.24} parent=0 // pred_fallthru
    _
  // Predicated region
  $region14: #{drn_forward.24} parent=0 // pred_check
    _
  $region15: #{drn_forward.24} parent=0 // pred_check_branch
    %16 = sbr.rel (0) target = $region17
  $region16: #{drn_forward.24} parent=0 // pred_region
    _
  $region17: #{drn_forward.24} parent=0 // pred_fallthru
    _
  %v18 = vld [vmem:[%s0] sm:$0xff]
  %v19 = vld [vmem:[%s0 + $0x8] sm:$0xff]
  %v20 = vld [vmem:[%s1] sm:$0xf]
  %v21 = vld [vmem:[%s1 + $0x4] sm:$0xf]
  %v22 = vld [vmem:[%s1 + $0x8] sm:$0xf]
  %v23 = vld [vmem:[%s1 + $0xc] sm:$0xf]
  %v24 = vld [vmem:[%s1 + $0x10] sm:$0xf]
  %v25 = vld [vmem:[%s1 + $0x14] sm:$0xf]
  %v26 = vld [vmem:[%s1 + $0x18] sm:$0xf]
  %v27 = vld [vmem:[%s1 + $0x1c] sm:$0xf]
  %v28 = vld [vmem:[%s1 + $0x20] sm:$0xf]
  %v29 = vld [vmem:[%s1 + $0x24] sm:$0xf]
  %v30 = vld [vmem:[%s1 + $0x28] sm:$0xf]
  %v31 = vld [vmem:[%s1 + $0x2c] sm:$0xf]
  %v32 = vld [vmem:[%s1 + $0x30] sm:$0xf]
  %v33 = vld [vmem:[%s1 + $0x34] sm:$0xf]
  %v34 = vld [vmem:[%s1 + $0x38] sm:$0xf]
  %v35 = vld [vmem:[%s1 + $0x3c] sm:$0xf]
  %v36 = vld [vmem:[%s1 + $0x40] sm:$0xf]
  %v37 = vld [vmem:[%s1 + $0x44] sm:$0xf]
  %v40 = vunpack.c.l.b16 %v18
  %v41 = vunpack.c.h.b16 %v18
  %v42 = vunpack.c.l.b16 %v19
  %v43 = vunpack.c.h.b16 %v19
  %v44 = vpack.c.b16 %v42, %v40
  %v45 = vpack.c.b16 %v43, %v41
  %v65 = vunpack.c.l.b16 %v20
  %v66 = vunpack.c.l.b16 %v21
  %v67 = vunpack.c.l.b16 %v22
  %v68 = vunpack.c.l.b16 %v23
  %v69 = vunpack.c.l.b16 %v24
  %v70 = vunpack.c.l.b16 %v25
  %v71 = vunpack.c.l.b16 %v26
  %v72 = vunpack.c.l.b16 %v27
  %v73 = vunpack.c.l.b16 %v28
  %v74 = vunpack.c.l.b16 %v29
  %v75 = vunpack.c.l.b16 %v30
  %v76 = vunpack.c.l.b16 %v31
  %v77 = vunpack.c.l.b16 %v32
  %v78 = vunpack.c.l.b16 %v33
  %v79 = vunpack.c.l.b16 %v34
  %v80 = vunpack.c.l.b16 %v35
  %v81 = vunpack.c.l.b16 %v36
  %v82 = vunpack.c.l.b16 %v37
  %v83 = vpack.c.b16 %v66, %v65
  %v84 = vpack.c.b16 %v68, %v67
  %v85 = vpack.c.b16 %v70, %v69
  %v86 = vpack.c.b16 %v72, %v71
  %v87 = vpack.c.b16 %v74, %v73
  %v88 = vpack.c.b16 %v76, %v75
  %v89 = vpack.c.b16 %v78, %v77
  %v90 = vpack.c.b16 %v80, %v79
  %v91 = vpack.c.b16 %v82, %v81
  %vm101 = vcmask 130048
  %v103 = vsel %vm101, %v45, 0
  %105 = vmatprep.subr.bf16.mxu0 0
  %106 = vmatpush1.bf16.msra.mxu0 %v90
  %107 = vmatprep.subr.bf16.mxu0 0
  %108 = vmatpush1.bf16.msra.mxu0 %v89
  %109 = vmatprep.subr.bf16.mxu0 0
  %110 = vmatpush1.bf16.msra.mxu0 %v88
  %111 = vmatprep.subr.bf16.mxu0 0
  %112 = vmatpush1.bf16.msra.mxu0 %v87
  %113 = vmatprep.subr.bf16.mxu0 0
  %114 = vmatpush1.bf16.msra.mxu0 %v86
  %115 = vmatprep.subr.bf16.mxu0 0
  %116 = vmatpush1.bf16.msra.mxu0 %v85
  %117 = vmatprep.subr.bf16.mxu0 0
  %118 = vmatpush1.bf16.msra.mxu0 %v84
  %119 = vmatprep.subr.bf16.mxu0 0
  %120 = vmatpush1.bf16.msra.mxu0 %v83
  %121 = vmatprep.subr.bf16.mxu0 0
  %122 = vmatpush2.bf16.msra.mxu0 0
  %123 = vmatprep.subr.bf16.mxu0 0
  %124 = vmatpush2.bf16.msra.mxu0 0
  %125 = vmatprep.subr.bf16.mxu0 0
  %126 = vmatpush2.bf16.msra.mxu0 0
  %127 = vmatprep.subr.bf16.mxu0 0
  %128 = vmatpush2.bf16.msra.mxu0 0
  %129 = vmatprep.subr.bf16.mxu0 0
  %130 = vmatpush2.bf16.msra.mxu0 0
  %131 = vmatprep.subr.bf16.mxu0 0
  %132 = vmatpush2.bf16.msra.mxu0 0
  %133 = vmatprep.subr.bf16.mxu0 0
  %134 = vmatpush2.bf16.msra.mxu0 0
  %135 = vmatprep.subr.bf16.mxu0 0
  %136 = vmatpush2.bf16.msra.mxu0 %v91
  %137 = vmatprep.mubr.bf16.mxu0 %v103
  %138 = vmatmul.mubr.bf16.gmra.mxu0 %v44
  %v139 = vpop.f32.mrf.mxu0
  %v140 = vadd.f32 0.0, %v139
  %v141 = vpop.f32.mrf.mxu0
  %v142 = vpop.f32.mrf.mxu0
  %v143 = vadd.f32 0.0, %v142
  %v144 = vpop.f32.mrf.mxu0
  %145 = vdwg.mxu0
  %v146 = vadd.f32 %v140, %v143
  %v147 = vrot.slane %v146, 4
  %v148 = vadd.f32 %v146, %v147
  %v149 = vrot.slane %v148, 2
  %v150 = vadd.f32 %v148, %v149
  %v151 = vrot.slane %v150, 1
  %v152 = vadd.f32 %v150, %v151
  %v153 = vmul.f32 %v152, 0.125
  %v154 = vsub.f32 %v140, %v153
  %v155 = vsub.f32 %v143, %v153
  %v156 = vlaneseq
  %v157 = vshrl.u32 %v156, 7
  %v158 = vadd.s32 %v157, 8
  %vm159 = vcmp.lt.s32.totalorder %v157, 8
  %vm160 = vcmp.lt.s32.totalorder %v158, 8
  %v161 = vmul.f32 %v154, %v154
  %v162 = vmul.f32 %v155, %v155
  %v163 = vsel %vm159, %v161, 0.0
  %v164 = vsel %vm160, %v162, 0.0
  %v165 = vadd.f32 %v163, %v164
  %v166 = vrot.slane %v165, 4
  %v167 = vadd.f32 %v165, %v166
  %v168 = vrot.slane %v167, 2
  %v169 = vadd.f32 %v167, %v168
  %v170 = vrot.slane %v169, 1
  %v171 = vadd.f32 %v169, %v170
  %v172 = vmul.f32 %v171, 0.125
  %v173 = vld [vmem:[%s2] sm:$0x1]
  %v174 = vadd.f32 %v172, 1e-05
  %v175 = vrsqrt.pop %v174
  %v176 = vmul.f32 %v173, %v175
  %v177 = vld [vmem:[%s3] sm:$0x1]
  %v178 = vmul.f32 %v153, %v176
  %v179 = vsub.f32 %v177, %v178
  %v181 = vlaneseq
  %v182 = vshrl.u32 %v181, 7
  %v183 = vsub.s32 0, %v182
  %v184 = vrot.slane %v176, %v183
  %v186 = vmul.f32 %v140, %v184
  %v187 = vmul.f32 %v143, %v184
  %v189 = vlaneseq
  %v190 = vshrl.u32 %v189, 7
  %v191 = vsub.s32 0, %v190
  %v192 = vrot.slane %v179, %v191
  %v194 = vadd.f32 %v186, %v192
  %v195 = vadd.f32 %v187, %v192
  %v196 = vmax.f32 %v194, 0.0
  %v197 = vmax.f32 %v195, 0.0
  %198 = vst.msk [vmem:[%s4] sm:$0xff] %vm101, %v196
  %199 = vst.msk [vmem:[%s4 + $0x8] sm:$0xff] %vm101, %v197
  // Predicated region
  $region18: #{drn_forward.24} parent=0 // pred_check
    _
  $region19: #{drn_forward.24} parent=0 // pred_check_branch
    %201 = sbr.rel (0) target = $region21
  $region20: #{drn_forward.24} parent=0 // pred_region
    _
  $region21: #{drn_forward.24} parent=0 // pred_fallthru
    _
  // Predicated region
  $region22: #{drn_forward.24} parent=0 // pred_check
    _
  $region23: #{drn_forward.24} parent=0 // pred_check_branch
    %203 = sbr.rel (0) target = $region25
  $region24: #{drn_forward.24} parent=0 // pred_region
    _
  $region25: #{drn_forward.24} parent=0 // pred_fallthru
    _

// kernel: drn_forward.23
$region0: #{drn_forward.23}
  #allocation0 [shape = 'u32[]', space=smem, size = 0x4, offset = 0x4, fixed_abs, tag = 'smem constant byte address 0x4 - core index']
  #allocation1 [shape = 'u32[144,128]{1,0:T(1,128)}', space=vmem, size = 0x12000, scoped, tag = 'internal scratch']
  %s0 = inlined_call_operand.vmem [shape: bf16[16,16], index: 0, kind: input, shape index: {}]
  %s1 = inlined_call_operand.vmem [shape: bf16[16,128], index: 1, kind: input, shape index: {}]
  %s2 = inlined_call_operand.vmem [shape: f32[1,128], index: 2, kind: input, shape index: {}]
  %s3 = inlined_call_operand.vmem [shape: f32[1,128], index: 3, kind: input, shape index: {}]
  %s4 = inlined_call_operand.vmem [shape: f32[16,16], index: 4, kind: output, shape index: {}]
  %s5 = sld [smem:[#allocation0]]
  $region26: #{drn_forward.23} parent=0
    _
  %s7 = ssub.s32 1, %s5
  %s8 = scalar_select 0, %s7, %s5
  // Predicated region
  $region2: #{drn_forward.23} parent=0 // pred_check
    _
  $region3: #{drn_forward.23} parent=0 // pred_check_branch
    %10 = sbr.rel (0) target = $region5
  $region4: #{drn_forward.23} parent=0 // pred_region
    _
  $region5: #{drn_forward.23} parent=0 // pred_fallthru
    _
  // Predicated region
  $region6: #{drn_forward.23} parent=0 // pred_check
    _
  $region7: #{drn_forward.23} parent=0 // pred_check_branch
    %12 = sbr.rel (0) target = $region9
  $region8: #{drn_forward.23} parent=0 // pred_region
    _
  $region9: #{drn_forward.23} parent=0 // pred_fallthru
    _
  // Predicated region
  $region10: #{drn_forward.23} parent=0 // pred_check
    _
  $region11: #{drn_forward.23} parent=0 // pred_check_branch
    %14 = sbr.rel (0) target = $region13
  $region12: #{drn_forward.23} parent=0 // pred_region
    _
  $region13: #{drn_forward.23} parent=0 // pred_fallthru
    _
  // Predicated region
  $region14: #{drn_forward.23} parent=0 // pred_check
    _
  $region15: #{drn_forward.23} parent=0 // pred_check_branch
    %16 = sbr.rel (0) target = $region17
  $region16: #{drn_forward.23} parent=0 // pred_region
    _
  $region17: #{drn_forward.23} parent=0 // pred_fallthru
    _
  %v18 = vld [vmem:[%s0] sm:$0xf]
  %v19 = vld [vmem:[%s0 + $0x4] sm:$0xf]
  %v20 = vld [vmem:[%s1] sm:$0xf]
  %v21 = vld [vmem:[%s1 + $0x4] sm:$0xf]
  %v24 = vunpack.c.l.b16 %v18
  %v25 = vunpack.c.l.b16 %v19
  %v26 = vpack.c.b16 %v25, %v24
  %v29 = vunpack.c.l.b16 %v20
  %v30 = vunpack.c.l.b16 %v21
  %v31 = vpack.c.b16 %v30, %v29
  %vm33 = vcmask 130048
  %v35 = vsel %vm33, %v26, 0
  %37 = vmatprep.subr.bf16.mxu0 0
  %38 = vmatpush1.bf16.msra.mxu0 0
  %39 = vmatprep.subr.bf16.mxu0 0
  %40 = vmatpush1.bf16.msra.mxu0 0
  %41 = vmatprep.subr.bf16.mxu0 0
  %42 = vmatpush1.bf16.msra.mxu0 0
  %43 = vmatprep.subr.bf16.mxu0 0
  %44 = vmatpush1.bf16.msra.mxu0 0
  %45 = vmatprep.subr.bf16.mxu0 0
  %46 = vmatpush1.bf16.msra.mxu0 0
  %47 = vmatprep.subr.bf16.mxu0 0
  %48 = vmatpush1.bf16.msra.mxu0 0
  %49 = vmatprep.subr.bf16.mxu0 0
  %50 = vmatpush1.bf16.msra.mxu0 0
  %51 = vmatprep.subr.bf16.mxu0 0
  %52 = vmatpush1.bf16.msra.mxu0 %v31
  %53 = vmatprep.subr.bf16.mxu0 0
  %54 = vmatpush2.bf16.msra.mxu0 0
  %55 = vmatprep.subr.bf16.mxu0 0
  %56 = vmatpush2.bf16.msra.mxu0 0
  %57 = vmatprep.subr.bf16.mxu0 0
  %58 = vmatpush2.bf16.msra.mxu0 0
  %59 = vmatprep.subr.bf16.mxu0 0
  %60 = vmatpush2.bf16.msra.mxu0 0
  %61 = vmatprep.subr.bf16.mxu0 0
  %62 = vmatpush2.bf16.msra.mxu0 0
  %63 = vmatprep.subr.bf16.mxu0 0
  %64 = vmatpush2.bf16.msra.mxu0 0
  %65 = vmatprep.subr.bf16.mxu0 0
  %66 = vmatpush2.bf16.msra.mxu0 0
  %67 = vmatprep.subr.bf16.mxu0 0
  %68 = vmatpush2.bf16.msra.mxu0 0
  %69 = vmatprep.mubr.bf16.mxu0 0
  %70 = vmatmul.mubr.bf16.gmra.mxu0 %v35
  %v71 = vpop.f32.mrf.mxu0
  %v72 = vadd.f32 0.0, %v71
  %v73 = vpop.f32.mrf.mxu0
  %v74 = vpop.f32.mrf.mxu0
  %v75 = vadd.f32 0.0, %v74
  %v76 = vpop.f32.mrf.mxu0
  %77 = vdwg.mxu0
  %v78 = vadd.f32 %v72, %v75
  %v79 = vrot.slane %v78, 4
  %v80 = vadd.f32 %v78, %v79
  %v81 = vrot.slane %v80, 2
  %v82 = vadd.f32 %v80, %v81
  %v83 = vrot.slane %v82, 1
  %v84 = vadd.f32 %v82, %v83
  %v85 = vmul.f32 %v84, 0.125
  %v86 = vsub.f32 %v72, %v85
  %v87 = vsub.f32 %v75, %v85
  %v88 = vlaneseq
  %v89 = vshrl.u32 %v88, 7
  %v90 = vadd.s32 %v89, 8
  %vm91 = vcmp.lt.s32.totalorder %v89, 8
  %vm92 = vcmp.lt.s32.totalorder %v90, 8
  %v93 = vmul.f32 %v86, %v86
  %v94 = vmul.f32 %v87, %v87
  %v95 = vsel %vm91, %v93, 0.0
  %v96 = vsel %vm92, %v94, 0.0
  %v97 = vadd.f32 %v95, %v96
  %v98 = vrot.slane %v97, 4
  %v99 = vadd.f32 %v97, %v98
  %v100 = vrot.slane %v99, 2
  %v101 = vadd.f32 %v99, %v100
  %v102 = vrot.slane %v101, 1
  %v103 = vadd.f32 %v101, %v102
  %v104 = vmul.f32 %v103, 0.125
  %v105 = vld [vmem:[%s2] sm:$0x1]
  %v106 = vadd.f32 %v104, 1e-05
  %v107 = vrsqrt.pop %v106
  %v108 = vmul.f32 %v105, %v107
  %v109 = vld [vmem:[%s3] sm:$0x1]
  %v110 = vmul.f32 %v85, %v108
  %v111 = vsub.f32 %v109, %v110
  %v113 = vlaneseq
  %v114 = vshrl.u32 %v113, 7
  %v115 = vsub.s32 0, %v114
  %v116 = vrot.slane %v108, %v115
  %v118 = vmul.f32 %v72, %v116
  %v119 = vmul.f32 %v75, %v116
  %v121 = vlaneseq
  %v122 = vshrl.u32 %v121, 7
  %v123 = vsub.s32 0, %v122
  %v124 = vrot.slane %v111, %v123
  %v126 = vadd.f32 %v118, %v124
  %v127 = vadd.f32 %v119, %v124
  %128 = vst.msk [vmem:[%s4] sm:$0xff] %vm33, %v126
  %129 = vst.msk [vmem:[%s4 + $0x8] sm:$0xff] %vm33, %v127
  // Predicated region
  $region18: #{drn_forward.23} parent=0 // pred_check
    _
  $region19: #{drn_forward.23} parent=0 // pred_check_branch
    %131 = sbr.rel (0) target = $region21
  $region20: #{drn_forward.23} parent=0 // pred_region
    _
  $region21: #{drn_forward.23} parent=0 // pred_fallthru
    _
  // Predicated region
  $region22: #{drn_forward.23} parent=0 // pred_check
    _
  $region23: #{drn_forward.23} parent=0 // pred_check_branch
    %133 = sbr.rel (0) target = $region25
  $region24: #{drn_forward.23} parent=0 // pred_region
    _
  $region25: #{drn_forward.23} parent=0 // pred_fallthru
    _

// kernel: drn_forward.25
$region0: #{drn_forward.25}
  #allocation0 [shape = 'u32[]', space=smem, size = 0x4, offset = 0x4, fixed_abs, tag = 'smem constant byte address 0x4 - core index']
  #allocation1 [shape = 'u32[144,128]{1,0:T(1,128)}', space=vmem, size = 0x12000, scoped, tag = 'internal scratch']
  %s0 = inlined_call_operand.vmem [shape: bf16[16,144], index: 0, kind: input, shape index: {}]
  %s1 = inlined_call_operand.vmem [shape: bf16[144,128], index: 1, kind: input, shape index: {}]
  %s2 = inlined_call_operand.vmem [shape: f32[1,128], index: 2, kind: input, shape index: {}]
  %s3 = inlined_call_operand.vmem [shape: f32[1,128], index: 3, kind: input, shape index: {}]
  %s4 = inlined_call_operand.vmem [shape: f32[16,16], index: 4, kind: input, shape index: {}]
  %s5 = inlined_call_operand.vmem [shape: f32[16,16], index: 5, kind: output, shape index: {}]
  %s6 = sld [smem:[#allocation0]]
  $region30: #{drn_forward.25} parent=0
    _
  %s8 = ssub.s32 1, %s6
  %s9 = scalar_select 0, %s8, %s6
  // Predicated region
  $region2: #{drn_forward.25} parent=0 // pred_check
    _
  $region3: #{drn_forward.25} parent=0 // pred_check_branch
    %11 = sbr.rel (0) target = $region5
  $region4: #{drn_forward.25} parent=0 // pred_region
    _
  $region5: #{drn_forward.25} parent=0 // pred_fallthru
    _
  // Predicated region
  $region6: #{drn_forward.25} parent=0 // pred_check
    _
  $region7: #{drn_forward.25} parent=0 // pred_check_branch
    %13 = sbr.rel (0) target = $region9
  $region8: #{drn_forward.25} parent=0 // pred_region
    _
  $region9: #{drn_forward.25} parent=0 // pred_fallthru
    _
  // Predicated region
  $region10: #{drn_forward.25} parent=0 // pred_check
    _
  $region11: #{drn_forward.25} parent=0 // pred_check_branch
    %15 = sbr.rel (0) target = $region13
  $region12: #{drn_forward.25} parent=0 // pred_region
    _
  $region13: #{drn_forward.25} parent=0 // pred_fallthru
    _
  // Predicated region
  $region14: #{drn_forward.25} parent=0 // pred_check
    _
  $region15: #{drn_forward.25} parent=0 // pred_check_branch
    %17 = sbr.rel (0) target = $region17
  $region16: #{drn_forward.25} parent=0 // pred_region
    _
  $region17: #{drn_forward.25} parent=0 // pred_fallthru
    _
  // Predicated region
  $region18: #{drn_forward.25} parent=0 // pred_check
    _
  $region19: #{drn_forward.25} parent=0 // pred_check_branch
    %19 = sbr.rel (0) target = $region21
  $region20: #{drn_forward.25} parent=0 // pred_region
    _
  $region21: #{drn_forward.25} parent=0 // pred_fallthru
    _
  %v21 = vld [vmem:[%s0] sm:$0xff]
  %v22 = vld [vmem:[%s0 + $0x8] sm:$0xff]
  %v23 = vld [vmem:[%s1] sm:$0xf]
  %v24 = vld [vmem:[%s1 + $0x4] sm:$0xf]
  %v25 = vld [vmem:[%s1 + $0x8] sm:$0xf]
  %v26 = vld [vmem:[%s1 + $0xc] sm:$0xf]
  %v27 = vld [vmem:[%s1 + $0x10] sm:$0xf]
  %v28 = vld [vmem:[%s1 + $0x14] sm:$0xf]
  %v29 = vld [vmem:[%s1 + $0x18] sm:$0xf]
  %v30 = vld [vmem:[%s1 + $0x1c] sm:$0xf]
  %v31 = vld [vmem:[%s1 + $0x20] sm:$0xf]
  %v32 = vld [vmem:[%s1 + $0x24] sm:$0xf]
  %v33 = vld [vmem:[%s1 + $0x28] sm:$0xf]
  %v34 = vld [vmem:[%s1 + $0x2c] sm:$0xf]
  %v35 = vld [vmem:[%s1 + $0x30] sm:$0xf]
  %v36 = vld [vmem:[%s1 + $0x34] sm:$0xf]
  %v37 = vld [vmem:[%s1 + $0x38] sm:$0xf]
  %v38 = vld [vmem:[%s1 + $0x3c] sm:$0xf]
  %v39 = vld [vmem:[%s1 + $0x40] sm:$0xf]
  %v40 = vld [vmem:[%s1 + $0x44] sm:$0xf]
  %v43 = vunpack.c.l.b16 %v21
  %v44 = vunpack.c.h.b16 %v21
  %v45 = vunpack.c.l.b16 %v22
  %v46 = vunpack.c.h.b16 %v22
  %v47 = vpack.c.b16 %v45, %v43
  %v48 = vpack.c.b16 %v46, %v44
  %v68 = vunpack.c.l.b16 %v23
  %v69 = vunpack.c.l.b16 %v24
  %v70 = vunpack.c.l.b16 %v25
  %v71 = vunpack.c.l.b16 %v26
  %v72 = vunpack.c.l.b16 %v27
  %v73 = vunpack.c.l.b16 %v28
  %v74 = vunpack.c.l.b16 %v29
  %v75 = vunpack.c.l.b16 %v30
  %v76 = vunpack.c.l.b16 %v31
  %v77 = vunpack.c.l.b16 %v32
  %v78 = vunpack.c.l.b16 %v33
  %v79 = vunpack.c.l.b16 %v34
  %v80 = vunpack.c.l.b16 %v35
  %v81 = vunpack.c.l.b16 %v36
  %v82 = vunpack.c.l.b16 %v37
  %v83 = vunpack.c.l.b16 %v38
  %v84 = vunpack.c.l.b16 %v39
  %v85 = vunpack.c.l.b16 %v40
  %v86 = vpack.c.b16 %v69, %v68
  %v87 = vpack.c.b16 %v71, %v70
  %v88 = vpack.c.b16 %v73, %v72
  %v89 = vpack.c.b16 %v75, %v74
  %v90 = vpack.c.b16 %v77, %v76
  %v91 = vpack.c.b16 %v79, %v78
  %v92 = vpack.c.b16 %v81, %v80
  %v93 = vpack.c.b16 %v83, %v82
  %v94 = vpack.c.b16 %v85, %v84
  %vm104 = vcmask 130048
  %v106 = vsel %vm104, %v48, 0
  %108 = vmatprep.subr.bf16.mxu0 0
  %109 = vmatpush1.bf16.msra.mxu0 %v93
  %110 = vmatprep.subr.bf16.mxu0 0
  %111 = vmatpush1.bf16.msra.mxu0 %v92
  %112 = vmatprep.subr.bf16.mxu0 0
  %113 = vmatpush1.bf16.msra.mxu0 %v91
  %114 = vmatprep.subr.bf16.mxu0 0
  %115 = vmatpush1.bf16.msra.mxu0 %v90
  %116 = vmatprep.subr.bf16.mxu0 0
  %117 = vmatpush1.bf16.msra.mxu0 %v89
  %118 = vmatprep.subr.bf16.mxu0 0
  %119 = vmatpush1.bf16.msra.mxu0 %v88
  %120 = vmatprep.subr.bf16.mxu0 0
  %121 = vmatpush1.bf16.msra.mxu0 %v87
  %122 = vmatprep.subr.bf16.mxu0 0
  %123 = vmatpush1.bf16.msra.mxu0 %v86
  %124 = vmatprep.subr.bf16.mxu0 0
  %125 = vmatpush2.bf16.msra.mxu0 0
  %126 = vmatprep.subr.bf16.mxu0 0
  %127 = vmatpush2.bf16.msra.mxu0 0
  %128 = vmatprep.subr.bf16.mxu0 0
  %129 = vmatpush2.bf16.msra.mxu0 0
  %130 = vmatprep.subr.bf16.mxu0 0
  %131 = vmatpush2.bf16.msra.mxu0 0
  %132 = vmatprep.subr.bf16.mxu0 0
  %133 = vmatpush2.bf16.msra.mxu0 0
  %134 = vmatprep.subr.bf16.mxu0 0
  %135 = vmatpush2.bf16.msra.mxu0 0
  %136 = vmatprep.subr.bf16.mxu0 0
  %137 = vmatpush2.bf16.msra.mxu0 0
  %138 = vmatprep.subr.bf16.mxu0 0
  %139 = vmatpush2.bf16.msra.mxu0 %v94
  %140 = vmatprep.mubr.bf16.mxu0 %v106
  %141 = vmatmul.mubr.bf16.gmra.mxu0 %v47
  %v142 = vpop.f32.mrf.mxu0
  %v143 = vadd.f32 0.0, %v142
  %v144 = vpop.f32.mrf.mxu0
  %v145 = vpop.f32.mrf.mxu0
  %v146 = vadd.f32 0.0, %v145
  %v147 = vpop.f32.mrf.mxu0
  %148 = vdwg.mxu0
  %v149 = vadd.f32 %v143, %v146
  %v150 = vrot.slane %v149, 4
  %v151 = vadd.f32 %v149, %v150
  %v152 = vrot.slane %v151, 2
  %v153 = vadd.f32 %v151, %v152
  %v154 = vrot.slane %v153, 1
  %v155 = vadd.f32 %v153, %v154
  %v156 = vmul.f32 %v155, 0.125
  %v157 = vsub.f32 %v143, %v156
  %v158 = vsub.f32 %v146, %v156
  %v159 = vlaneseq
  %v160 = vshrl.u32 %v159, 7
  %v161 = vadd.s32 %v160, 8
  %vm162 = vcmp.lt.s32.totalorder %v160, 8
  %vm163 = vcmp.lt.s32.totalorder %v161, 8
  %v164 = vmul.f32 %v157, %v157
  %v165 = vmul.f32 %v158, %v158
  %v166 = vsel %vm162, %v164, 0.0
  %v167 = vsel %vm163, %v165, 0.0
  %v168 = vadd.f32 %v166, %v167
  %v169 = vrot.slane %v168, 4
  %v170 = vadd.f32 %v168, %v169
  %v171 = vrot.slane %v170, 2
  %v172 = vadd.f32 %v170, %v171
  %v173 = vrot.slane %v172, 1
  %v174 = vadd.f32 %v172, %v173
  %v175 = vmul.f32 %v174, 0.125
  %v176 = vld [vmem:[%s2] sm:$0x1]
  %v177 = vadd.f32 %v175, 1e-05
  %v178 = vrsqrt.pop %v177
  %v179 = vmul.f32 %v176, %v178
  %v180 = vld [vmem:[%s3] sm:$0x1]
  %v181 = vmul.f32 %v156, %v179
  %v182 = vsub.f32 %v180, %v181
  %v184 = vlaneseq
  %v185 = vshrl.u32 %v184, 7
  %v186 = vsub.s32 0, %v185
  %v187 = vrot.slane %v179, %v186
  %v189 = vmul.f32 %v143, %v187
  %v190 = vmul.f32 %v146, %v187
  %v192 = vlaneseq
  %v193 = vshrl.u32 %v192, 7
  %v194 = vsub.s32 0, %v193
  %v195 = vrot.slane %v182, %v194
  %v197 = vadd.f32 %v189, %v195
  %v198 = vadd.f32 %v190, %v195
  %v199 = vld [vmem:[%s4] sm:$0xff]
  %v200 = vld [vmem:[%s4 + $0x8] sm:$0xff]
  %v201 = vadd.f32 %v197, %v199
  %v202 = vadd.f32 %v198, %v200
  %v203 = vmax.f32 %v201, 0.0
  %v204 = vmax.f32 %v202, 0.0
  %205 = vst.msk [vmem:[%s5] sm:$0xff] %vm104, %v203
  %206 = vst.msk [vmem:[%s5 + $0x8] sm:$0xff] %vm104, %v204
  // Predicated region
  $region22: #{drn_forward.25} parent=0 // pred_check
    _
  $region23: #{drn_forward.25} parent=0 // pred_check_branch
    %208 = sbr.rel (0) target = $region25
  $region24: #{drn_forward.25} parent=0 // pred_region
    _
  $region25: #{drn_forward.25} parent=0 // pred_fallthru
    _
  // Predicated region
  $region26: #{drn_forward.25} parent=0 // pred_check
    _
  $region27: #{drn_forward.25} parent=0 // pred_check_branch
    %210 = sbr.rel (0) target = $region29
  $region28: #{drn_forward.25} parent=0 // pred_region
    _
  $region29: #{drn_forward.25} parent=0 // pred_fallthru
    _

// kernel: drn_forward.26
$region0: #{drn_forward.26}
  #allocation0 [shape = 'u32[]', space=smem, size = 0x4, offset = 0x4, fixed_abs, tag = 'smem constant byte address 0x4 - core index']
  #allocation1 [shape = 'u32[144,128]{1,0:T(1,128)}', space=vmem, size = 0x12000, scoped, tag = 'internal scratch']
  %s0 = inlined_call_operand.vmem [shape: bf16[16,16], index: 0, kind: input, shape index: {}]
  %s1 = inlined_call_operand.vmem [shape: bf16[16,128], index: 1, kind: input, shape index: {}]
  %s2 = inlined_call_operand.vmem [shape: f32[1,128], index: 2, kind: input, shape index: {}]
  %s3 = inlined_call_operand.vmem [shape: f32[1,128], index: 3, kind: input, shape index: {}]
  %s4 = inlined_call_operand.vmem [shape: f32[16,32], index: 4, kind: output, shape index: {}]
  %s5 = sld [smem:[#allocation0]]
  $region26: #{drn_forward.26} parent=0
    _
  %s7 = ssub.s32 1, %s5
  %s8 = scalar_select 0, %s7, %s5
  // Predicated region
  $region2: #{drn_forward.26} parent=0 // pred_check
    _
  $region3: #{drn_forward.26} parent=0 // pred_check_branch
    %10 = sbr.rel (0) target = $region5
  $region4: #{drn_forward.26} parent=0 // pred_region
    _
  $region5: #{drn_forward.26} parent=0 // pred_fallthru
    _
  // Predicated region
  $region6: #{drn_forward.26} parent=0 // pred_check
    _
  $region7: #{drn_forward.26} parent=0 // pred_check_branch
    %12 = sbr.rel (0) target = $region9
  $region8: #{drn_forward.26} parent=0 // pred_region
    _
  $region9: #{drn_forward.26} parent=0 // pred_fallthru
    _
  // Predicated region
  $region10: #{drn_forward.26} parent=0 // pred_check
    _
  $region11: #{drn_forward.26} parent=0 // pred_check_branch
    %14 = sbr.rel (0) target = $region13
  $region12: #{drn_forward.26} parent=0 // pred_region
    _
  $region13: #{drn_forward.26} parent=0 // pred_fallthru
    _
  // Predicated region
  $region14: #{drn_forward.26} parent=0 // pred_check
    _
  $region15: #{drn_forward.26} parent=0 // pred_check_branch
    %16 = sbr.rel (0) target = $region17
  $region16: #{drn_forward.26} parent=0 // pred_region
    _
  $region17: #{drn_forward.26} parent=0 // pred_fallthru
    _
  %v18 = vld [vmem:[%s0] sm:$0xf]
  %v19 = vld [vmem:[%s0 + $0x4] sm:$0xf]
  %v20 = vld [vmem:[%s1] sm:$0xf]
  %v21 = vld [vmem:[%s1 + $0x4] sm:$0xf]
  %v24 = vunpack.c.l.b16 %v18
  %v25 = vunpack.c.l.b16 %v19
  %v26 = vpack.c.b16 %v25, %v24
  %v29 = vunpack.c.l.b16 %v20
  %v30 = vunpack.c.l.b16 %v21
  %v31 = vpack.c.b16 %v30, %v29
  %vm33 = vcmask 130048
  %v35 = vsel %vm33, %v26, 0
  %37 = vmatprep.subr.bf16.mxu0 0
  %38 = vmatpush1.bf16.msra.mxu0 0
  %39 = vmatprep.subr.bf16.mxu0 0
  %40 = vmatpush1.bf16.msra.mxu0 0
  %41 = vmatprep.subr.bf16.mxu0 0
  %42 = vmatpush1.bf16.msra.mxu0 0
  %43 = vmatprep.subr.bf16.mxu0 0
  %44 = vmatpush1.bf16.msra.mxu0 0
  %45 = vmatprep.subr.bf16.mxu0 0
  %46 = vmatpush1.bf16.msra.mxu0 0
  %47 = vmatprep.subr.bf16.mxu0 0
  %48 = vmatpush1.bf16.msra.mxu0 0
  %49 = vmatprep.subr.bf16.mxu0 0
  %50 = vmatpush1.bf16.msra.mxu0 0
  %51 = vmatprep.subr.bf16.mxu0 0
  %52 = vmatpush1.bf16.msra.mxu0 %v31
  %53 = vmatprep.subr.bf16.mxu0 0
  %54 = vmatpush2.bf16.msra.mxu0 0
  %55 = vmatprep.subr.bf16.mxu0 0
  %56 = vmatpush2.bf16.msra.mxu0 0
  %57 = vmatprep.subr.bf16.mxu0 0
  %58 = vmatpush2.bf16.msra.mxu0 0
  %59 = vmatprep.subr.bf16.mxu0 0
  %60 = vmatpush2.bf16.msra.mxu0 0
  %61 = vmatprep.subr.bf16.mxu0 0
  %62 = vmatpush2.bf16.msra.mxu0 0
  %63 = vmatprep.subr.bf16.mxu0 0
  %64 = vmatpush2.bf16.msra.mxu0 0
  %65 = vmatprep.subr.bf16.mxu0 0
  %66 = vmatpush2.bf16.msra.mxu0 0
  %67 = vmatprep.subr.bf16.mxu0 0
  %68 = vmatpush2.bf16.msra.mxu0 0
  %69 = vmatprep.mubr.bf16.mxu0 0
  %70 = vmatmul.mubr.bf16.gmra.mxu0 %v35
  %v71 = vpop.f32.mrf.mxu0
  %v72 = vadd.f32 0.0, %v71
  %v73 = vpop.f32.mrf.mxu0
  %v74 = vpop.f32.mrf.mxu0
  %v75 = vadd.f32 0.0, %v74
  %v76 = vpop.f32.mrf.mxu0
  %77 = vdwg.mxu0
  %v78 = vadd.f32 %v72, %v75
  %v79 = vrot.slane %v78, 4
  %v80 = vadd.f32 %v78, %v79
  %v81 = vrot.slane %v80, 2
  %v82 = vadd.f32 %v80, %v81
  %v83 = vrot.slane %v82, 1
  %v84 = vadd.f32 %v82, %v83
  %v85 = vmul.f32 %v84, 0.125
  %v86 = vsub.f32 %v72, %v85
  %v87 = vsub.f32 %v75, %v85
  %v88 = vlaneseq
  %v89 = vshrl.u32 %v88, 7
  %v90 = vadd.s32 %v89, 8
  %vm91 = vcmp.lt.s32.totalorder %v89, 8
  %vm92 = vcmp.lt.s32.totalorder %v90, 8
  %v93 = vmul.f32 %v86, %v86
  %v94 = vmul.f32 %v87, %v87
  %v95 = vsel %vm91, %v93, 0.0
  %v96 = vsel %vm92, %v94, 0.0
  %v97 = vadd.f32 %v95, %v96
  %v98 = vrot.slane %v97, 4
  %v99 = vadd.f32 %v97, %v98
  %v100 = vrot.slane %v99, 2
  %v101 = vadd.f32 %v99, %v100
  %v102 = vrot.slane %v101, 1
  %v103 = vadd.f32 %v101, %v102
  %v104 = vmul.f32 %v103, 0.125
  %v105 = vld [vmem:[%s2] sm:$0x1]
  %v106 = vadd.f32 %v104, 1e-05
  %v107 = vrsqrt.pop %v106
  %v108 = vmul.f32 %v105, %v107
  %v109 = vld [vmem:[%s3] sm:$0x1]
  %v110 = vmul.f32 %v85, %v108
  %v111 = vsub.f32 %v109, %v110
  %v113 = vlaneseq
  %v114 = vshrl.u32 %v113, 7
  %v115 = vsub.s32 0, %v114
  %v116 = vrot.slane %v108, %v115
  %v118 = vmul.f32 %v72, %v116
  %v119 = vmul.f32 %v75, %v116
  %v121 = vlaneseq
  %v122 = vshrl.u32 %v121, 7
  %v123 = vsub.s32 0, %v122
  %v124 = vrot.slane %v111, %v123
  %v126 = vadd.f32 %v118, %v124
  %v127 = vadd.f32 %v119, %v124
  %vm128 = vcmask 261120
  %129 = vst.msk [vmem:[%s4] sm:$0xff] %vm128, %v126
  %130 = vst.msk [vmem:[%s4 + $0x8] sm:$0xff] %vm128, %v127
  // Predicated region
  $region18: #{drn_forward.26} parent=0 // pred_check
    _
  $region19: #{drn_forward.26} parent=0 // pred_check_branch
    %132 = sbr.rel (0) target = $region21
  $region20: #{drn_forward.26} parent=0 // pred_region
    _
  $region21: #{drn_forward.26} parent=0 // pred_fallthru
    _
  // Predicated region
  $region22: #{drn_forward.26} parent=0 // pred_check
    _
  $region23: #{drn_forward.26} parent=0 // pred_check_branch
    %134 = sbr.rel (0) target = $region25
  $region24: #{drn_forward.26} parent=0 // pred_region
    _
  $region25: #{drn_forward.26} parent=0 // pred_fallthru
    _

// kernel: drn_forward.27
$region0: #{drn_forward.27}
  #allocation0 [shape = 'u32[]', space=smem, size = 0x4, offset = 0x4, fixed_abs, tag = 'smem constant byte address 0x4 - core index']
  #allocation1 [shape = 'u32[144,128]{1,0:T(1,128)}', space=vmem, size = 0x12000, scoped, tag = 'internal scratch']
  %s0 = inlined_call_operand.vmem [shape: bf16[16,144], index: 0, kind: input, shape index: {}]
  %s1 = inlined_call_operand.vmem [shape: bf16[144,128], index: 1, kind: input, shape index: {}]
  %s2 = inlined_call_operand.vmem [shape: f32[1,128], index: 2, kind: input, shape index: {}]
  %s3 = inlined_call_operand.vmem [shape: f32[1,128], index: 3, kind: input, shape index: {}]
  %s4 = inlined_call_operand.vmem [shape: f32[16,32], index: 4, kind: output, shape index: {}]
  %s5 = sld [smem:[#allocation0]]
  $region26: #{drn_forward.27} parent=0
    _
  %s7 = ssub.s32 1, %s5
  %s8 = scalar_select 0, %s7, %s5
  // Predicated region
  $region2: #{drn_forward.27} parent=0 // pred_check
    _
  $region3: #{drn_forward.27} parent=0 // pred_check_branch
    %10 = sbr.rel (0) target = $region5
  $region4: #{drn_forward.27} parent=0 // pred_region
    _
  $region5: #{drn_forward.27} parent=0 // pred_fallthru
    _
  // Predicated region
  $region6: #{drn_forward.27} parent=0 // pred_check
    _
  $region7: #{drn_forward.27} parent=0 // pred_check_branch
    %12 = sbr.rel (0) target = $region9
  $region8: #{drn_forward.27} parent=0 // pred_region
    _
  $region9: #{drn_forward.27} parent=0 // pred_fallthru
    _
  // Predicated region
  $region10: #{drn_forward.27} parent=0 // pred_check
    _
  $region11: #{drn_forward.27} parent=0 // pred_check_branch
    %14 = sbr.rel (0) target = $region13
  $region12: #{drn_forward.27} parent=0 // pred_region
    _
  $region13: #{drn_forward.27} parent=0 // pred_fallthru
    _
  // Predicated region
  $region14: #{drn_forward.27} parent=0 // pred_check
    _
  $region15: #{drn_forward.27} parent=0 // pred_check_branch
    %16 = sbr.rel (0) target = $region17
  $region16: #{drn_forward.27} parent=0 // pred_region
    _
  $region17: #{drn_forward.27} parent=0 // pred_fallthru
    _
  %v18 = vld [vmem:[%s0] sm:$0xff]
  %v19 = vld [vmem:[%s0 + $0x8] sm:$0xff]
  %v20 = vld [vmem:[%s1] sm:$0xf]
  %v21 = vld [vmem:[%s1 + $0x4] sm:$0xf]
  %v22 = vld [vmem:[%s1 + $0x8] sm:$0xf]
  %v23 = vld [vmem:[%s1 + $0xc] sm:$0xf]
  %v24 = vld [vmem:[%s1 + $0x10] sm:$0xf]
  %v25 = vld [vmem:[%s1 + $0x14] sm:$0xf]
  %v26 = vld [vmem:[%s1 + $0x18] sm:$0xf]
  %v27 = vld [vmem:[%s1 + $0x1c] sm:$0xf]
  %v28 = vld [vmem:[%s1 + $0x20] sm:$0xf]
  %v29 = vld [vmem:[%s1 + $0x24] sm:$0xf]
  %v30 = vld [vmem:[%s1 + $0x28] sm:$0xf]
  %v31 = vld [vmem:[%s1 + $0x2c] sm:$0xf]
  %v32 = vld [vmem:[%s1 + $0x30] sm:$0xf]
  %v33 = vld [vmem:[%s1 + $0x34] sm:$0xf]
  %v34 = vld [vmem:[%s1 + $0x38] sm:$0xf]
  %v35 = vld [vmem:[%s1 + $0x3c] sm:$0xf]
  %v36 = vld [vmem:[%s1 + $0x40] sm:$0xf]
  %v37 = vld [vmem:[%s1 + $0x44] sm:$0xf]
  %v40 = vunpack.c.l.b16 %v18
  %v41 = vunpack.c.h.b16 %v18
  %v42 = vunpack.c.l.b16 %v19
  %v43 = vunpack.c.h.b16 %v19
  %v44 = vpack.c.b16 %v42, %v40
  %v45 = vpack.c.b16 %v43, %v41
  %v65 = vunpack.c.l.b16 %v20
  %v66 = vunpack.c.l.b16 %v21
  %v67 = vunpack.c.l.b16 %v22
  %v68 = vunpack.c.l.b16 %v23
  %v69 = vunpack.c.l.b16 %v24
  %v70 = vunpack.c.l.b16 %v25
  %v71 = vunpack.c.l.b16 %v26
  %v72 = vunpack.c.l.b16 %v27
  %v73 = vunpack.c.l.b16 %v28
  %v74 = vunpack.c.l.b16 %v29
  %v75 = vunpack.c.l.b16 %v30
  %v76 = vunpack.c.l.b16 %v31
  %v77 = vunpack.c.l.b16 %v32
  %v78 = vunpack.c.l.b16 %v33
  %v79 = vunpack.c.l.b16 %v34
  %v80 = vunpack.c.l.b16 %v35
  %v81 = vunpack.c.l.b16 %v36
  %v82 = vunpack.c.l.b16 %v37
  %v83 = vpack.c.b16 %v66, %v65
  %v84 = vpack.c.b16 %v68, %v67
  %v85 = vpack.c.b16 %v70, %v69
  %v86 = vpack.c.b16 %v72, %v71
  %v87 = vpack.c.b16 %v74, %v73
  %v88 = vpack.c.b16 %v76, %v75
  %v89 = vpack.c.b16 %v78, %v77
  %v90 = vpack.c.b16 %v80, %v79
  %v91 = vpack.c.b16 %v82, %v81
  %vm101 = vcmask 130048
  %v103 = vsel %vm101, %v45, 0
  %105 = vmatprep.subr.bf16.mxu0 0
  %106 = vmatpush1.bf16.msra.mxu0 %v90
  %107 = vmatprep.subr.bf16.mxu0 0
  %108 = vmatpush1.bf16.msra.mxu0 %v89
  %109 = vmatprep.subr.bf16.mxu0 0
  %110 = vmatpush1.bf16.msra.mxu0 %v88
  %111 = vmatprep.subr.bf16.mxu0 0
  %112 = vmatpush1.bf16.msra.mxu0 %v87
  %113 = vmatprep.subr.bf16.mxu0 0
  %114 = vmatpush1.bf16.msra.mxu0 %v86
  %115 = vmatprep.subr.bf16.mxu0 0
  %116 = vmatpush1.bf16.msra.mxu0 %v85
  %117 = vmatprep.subr.bf16.mxu0 0
  %118 = vmatpush1.bf16.msra.mxu0 %v84
  %119 = vmatprep.subr.bf16.mxu0 0
  %120 = vmatpush1.bf16.msra.mxu0 %v83
  %121 = vmatprep.subr.bf16.mxu0 0
  %122 = vmatpush2.bf16.msra.mxu0 0
  %123 = vmatprep.subr.bf16.mxu0 0
  %124 = vmatpush2.bf16.msra.mxu0 0
  %125 = vmatprep.subr.bf16.mxu0 0
  %126 = vmatpush2.bf16.msra.mxu0 0
  %127 = vmatprep.subr.bf16.mxu0 0
  %128 = vmatpush2.bf16.msra.mxu0 0
  %129 = vmatprep.subr.bf16.mxu0 0
  %130 = vmatpush2.bf16.msra.mxu0 0
  %131 = vmatprep.subr.bf16.mxu0 0
  %132 = vmatpush2.bf16.msra.mxu0 0
  %133 = vmatprep.subr.bf16.mxu0 0
  %134 = vmatpush2.bf16.msra.mxu0 0
  %135 = vmatprep.subr.bf16.mxu0 0
  %136 = vmatpush2.bf16.msra.mxu0 %v91
  %137 = vmatprep.mubr.bf16.mxu0 %v103
  %138 = vmatmul.mubr.bf16.gmra.mxu0 %v44
  %v139 = vpop.f32.mrf.mxu0
  %v140 = vadd.f32 0.0, %v139
  %v141 = vpop.f32.mrf.mxu0
  %v142 = vpop.f32.mrf.mxu0
  %v143 = vadd.f32 0.0, %v142
  %v144 = vpop.f32.mrf.mxu0
  %145 = vdwg.mxu0
  %v146 = vadd.f32 %v140, %v143
  %v147 = vrot.slane %v146, 4
  %v148 = vadd.f32 %v146, %v147
  %v149 = vrot.slane %v148, 2
  %v150 = vadd.f32 %v148, %v149
  %v151 = vrot.slane %v150, 1
  %v152 = vadd.f32 %v150, %v151
  %v153 = vmul.f32 %v152, 0.125
  %v154 = vsub.f32 %v140, %v153
  %v155 = vsub.f32 %v143, %v153
  %v156 = vlaneseq
  %v157 = vshrl.u32 %v156, 7
  %v158 = vadd.s32 %v157, 8
  %vm159 = vcmp.lt.s32.totalorder %v157, 8
  %vm160 = vcmp.lt.s32.totalorder %v158, 8
  %v161 = vmul.f32 %v154, %v154
  %v162 = vmul.f32 %v155, %v155
  %v163 = vsel %vm159, %v161, 0.0
  %v164 = vsel %vm160, %v162, 0.0
  %v165 = vadd.f32 %v163, %v164
  %v166 = vrot.slane %v165, 4
  %v167 = vadd.f32 %v165, %v166
  %v168 = vrot.slane %v167, 2
  %v169 = vadd.f32 %v167, %v168
  %v170 = vrot.slane %v169, 1
  %v171 = vadd.f32 %v169, %v170
  %v172 = vmul.f32 %v171, 0.125
  %v173 = vld [vmem:[%s2] sm:$0x1]
  %v174 = vadd.f32 %v172, 1e-05
  %v175 = vrsqrt.pop %v174
  %v176 = vmul.f32 %v173, %v175
  %v177 = vld [vmem:[%s3] sm:$0x1]
  %v178 = vmul.f32 %v153, %v176
  %v179 = vsub.f32 %v177, %v178
  %v181 = vlaneseq
  %v182 = vshrl.u32 %v181, 7
  %v183 = vsub.s32 0, %v182
  %v184 = vrot.slane %v176, %v183
  %v186 = vmul.f32 %v140, %v184
  %v187 = vmul.f32 %v143, %v184
  %v189 = vlaneseq
  %v190 = vshrl.u32 %v189, 7
  %v191 = vsub.s32 0, %v190
  %v192 = vrot.slane %v179, %v191
  %v194 = vadd.f32 %v186, %v192
  %v195 = vadd.f32 %v187, %v192
  %v196 = vmax.f32 %v194, 0.0
  %v197 = vmax.f32 %v195, 0.0
  %vm198 = vcmask 261120
  %199 = vst.msk [vmem:[%s4] sm:$0xff] %vm198, %v196
  %200 = vst.msk [vmem:[%s4 + $0x8] sm:$0xff] %vm198, %v197
  // Predicated region
  $region18: #{drn_forward.27} parent=0 // pred_check
    _
  $region19: #{drn_forward.27} parent=0 // pred_check_branch
    %202 = sbr.rel (0) target = $region21
  $region20: #{drn_forward.27} parent=0 // pred_region
    _
  $region21: #{drn_forward.27} parent=0 // pred_fallthru
    _
  // Predicated region
  $region22: #{drn_forward.27} parent=0 // pred_check
    _
  $region23: #{drn_forward.27} parent=0 // pred_check_branch
    %204 = sbr.rel (0) target = $region25
  $region24: #{drn_forward.27} parent=0 // pred_region
    _
  $region25: #{drn_forward.27} parent=0 // pred_fallthru
    _

// kernel: drn_forward.28
$region0: #{drn_forward.28}
  #allocation0 [shape = 'u32[]', space=smem, size = 0x4, offset = 0x4, fixed_abs, tag = 'smem constant byte address 0x4 - core index']
  #allocation1 [shape = 'u32[144,128]{1,0:T(1,128)}', space=vmem, size = 0x12000, scoped, tag = 'internal scratch']
  %s0 = inlined_call_operand.vmem [shape: bf16[16,288], index: 0, kind: input, shape index: {}]
  %s1 = inlined_call_operand.vmem [shape: bf16[288,128], index: 1, kind: input, shape index: {}]
  %s2 = inlined_call_operand.vmem [shape: f32[1,128], index: 2, kind: input, shape index: {}]
  %s3 = inlined_call_operand.vmem [shape: f32[1,128], index: 3, kind: input, shape index: {}]
  %s4 = inlined_call_operand.vmem [shape: f32[16,32], index: 4, kind: input, shape index: {}]
  %s5 = inlined_call_operand.vmem [shape: f32[16,32], index: 5, kind: output, shape index: {}]
  %s6 = sld [smem:[#allocation0]]
  $region30: #{drn_forward.28} parent=0
    _
  %s8 = ssub.s32 1, %s6
  %s9 = scalar_select 0, %s8, %s6
  // Predicated region
  $region2: #{drn_forward.28} parent=0 // pred_check
    _
  $region3: #{drn_forward.28} parent=0 // pred_check_branch
    %11 = sbr.rel (0) target = $region5
  $region4: #{drn_forward.28} parent=0 // pred_region
    _
  $region5: #{drn_forward.28} parent=0 // pred_fallthru
    _
  // Predicated region
  $region6: #{drn_forward.28} parent=0 // pred_check
    _
  $region7: #{drn_forward.28} parent=0 // pred_check_branch
    %13 = sbr.rel (0) target = $region9
  $region8: #{drn_forward.28} parent=0 // pred_region
    _
  $region9: #{drn_forward.28} parent=0 // pred_fallthru
    _
  // Predicated region
  $region10: #{drn_forward.28} parent=0 // pred_check
    _
  $region11: #{drn_forward.28} parent=0 // pred_check_branch
    %15 = sbr.rel (0) target = $region13
  $region12: #{drn_forward.28} parent=0 // pred_region
    _
  $region13: #{drn_forward.28} parent=0 // pred_fallthru
    _
  // Predicated region
  $region14: #{drn_forward.28} parent=0 // pred_check
    _
  $region15: #{drn_forward.28} parent=0 // pred_check_branch
    %17 = sbr.rel (0) target = $region17
  $region16: #{drn_forward.28} parent=0 // pred_region
    _
  $region17: #{drn_forward.28} parent=0 // pred_fallthru
    _
  // Predicated region
  $region18: #{drn_forward.28} parent=0 // pred_check
    _
  $region19: #{drn_forward.28} parent=0 // pred_check_branch
    %19 = sbr.rel (0) target = $region21
  $region20: #{drn_forward.28} parent=0 // pred_region
    _
  $region21: #{drn_forward.28} parent=0 // pred_fallthru
    _
  %v21 = vld [vmem:[%s0] sm:$0xff]
  %v22 = vld [vmem:[%s0 + $0x8] sm:$0xf]
  %v23 = vld [vmem:[%s0 + $0xc] sm:$0xff]
  %v24 = vld [vmem:[%s0 + $0x14] sm:$0xf]
  %v25 = vld [vmem:[%s1] sm:$0xf]
  %v26 = vld [vmem:[%s1 + $0x4] sm:$0xf]
  %v27 = vld [vmem:[%s1 + $0x8] sm:$0xf]
  %v28 = vld [vmem:[%s1 + $0xc] sm:$0xf]
  %v29 = vld [vmem:[%s1 + $0x10] sm:$0xf]
  %v30 = vld [vmem:[%s1 + $0x14] sm:$0xf]
  %v31 = vld [vmem:[%s1 + $0x18] sm:$0xf]
  %v32 = vld [vmem:[%s1 + $0x1c] sm:$0xf]
  %v33 = vld [vmem:[%s1 + $0x20] sm:$0xf]
  %v34 = vld [vmem:[%s1 + $0x24] sm:$0xf]
  %v35 = vld [vmem:[%s1 + $0x28] sm:$0xf]
  %v36 = vld [vmem:[%s1 + $0x2c] sm:$0xf]
  %v37 = vld [vmem:[%s1 + $0x30] sm:$0xf]
  %v38 = vld [vmem:[%s1 + $0x34] sm:$0xf]
  %v39 = vld [vmem:[%s1 + $0x38] sm:$0xf]
  %v40 = vld [vmem:[%s1 + $0x3c] sm:$0xf]
  %v41 = vld [vmem:[%s1 + $0x40] sm:$0xf]
  %v42 = vld [vmem:[%s1 + $0x44] sm:$0xf]
  %v43 = vld [vmem:[%s1 + $0x48] sm:$0xf]
  %v44 = vld [vmem:[%s1 + $0x4c] sm:$0xf]
  %v45 = vld [vmem:[%s1 + $0x50] sm:$0xf]
  %v46 = vld [vmem:[%s1 + $0x54] sm:$0xf]
  %v47 = vld [vmem:[%s1 + $0x58] sm:$0xf]
  %v48 = vld [vmem:[%s1 + $0x5c] sm:$0xf]
  %v49 = vld [vmem:[%s1 + $0x60] sm:$0xf]
  %v50 = vld [vmem:[%s1 + $0x64] sm:$0xf]
  %v51 = vld [vmem:[%s1 + $0x68] sm:$0xf]
  %v52 = vld [vmem:[%s1 + $0x6c] sm:$0xf]
  %v53 = vld [vmem:[%s1 + $0x70] sm:$0xf]
  %v54 = vld [vmem:[%s1 + $0x74] sm:$0xf]
  %v55 = vld [vmem:[%s1 + $0x78] sm:$0xf]
  %v56 = vld [vmem:[%s1 + $0x7c] sm:$0xf]
  %v57 = vld [vmem:[%s1 + $0x80] sm:$0xf]
  %v58 = vld [vmem:[%s1 + $0x84] sm:$0xf]
  %v59 = vld [vmem:[%s1 + $0x88] sm:$0xf]
  %v60 = vld [vmem:[%s1 + $0x8c] sm:$0xf]
  %v65 = vunpack.c.l.b16 %v21
  %v66 = vunpack.c.h.b16 %v21
  %v67 = vunpack.c.l.b16 %v22
  %v68 = vunpack.c.l.b16 %v23
  %v69 = vunpack.c.h.b16 %v23
  %v70 = vunpack.c.l.b16 %v24
  %v71 = vpack.c.b16 %v68, %v65
  %v72 = vpack.c.b16 %v69, %v66
  %v73 = vpack.c.b16 %v70, %v67
  %v112 = vunpack.c.l.b16 %v25
  %v113 = vunpack.c.l.b16 %v26
  %v114 = vunpack.c.l.b16 %v27
  %v115 = vunpack.c.l.b16 %v28
  %v116 = vunpack.c.l.b16 %v29
  %v117 = vunpack.c.l.b16 %v30
  %v118 = vunpack.c.l.b16 %v31
  %v119 = vunpack.c.l.b16 %v32
  %v120 = vunpack.c.l.b16 %v33
  %v121 = vunpack.c.l.b16 %v34
  %v122 = vunpack.c.l.b16 %v35
  %v123 = vunpack.c.l.b16 %v36
  %v124 = vunpack.c.l.b16 %v37
  %v125 = vunpack.c.l.b16 %v38
  %v126 = vunpack.c.l.b16 %v39
  %v127 = vunpack.c.l.b16 %v40
  %v128 = vunpack.c.l.b16 %v41
  %v129 = vunpack.c.l.b16 %v42
  %v130 = vunpack.c.l.b16 %v43
  %v131 = vunpack.c.l.b16 %v44
  %v132 = vunpack.c.l.b16 %v45
  %v133 = vunpack.c.l.b16 %v46
  %v134 = vunpack.c.l.b16 %v47
  %v135 = vunpack.c.l.b16 %v48
  %v136 = vunpack.c.l.b16 %v49
  %v137 = vunpack.c.l.b16 %v50
  %v138 = vunpack.c.l.b16 %v51
  %v139 = vunpack.c.l.b16 %v52
  %v140 = vunpack.c.l.b16 %v53
  %v141 = vunpack.c.l.b16 %v54
  %v142 = vunpack.c.l.b16 %v55
  %v143 = vunpack.c.l.b16 %v56
  %v144 = vunpack.c.l.b16 %v57
  %v145 = vunpack.c.l.b16 %v58
  %v146 = vunpack.c.l.b16 %v59
  %v147 = vunpack.c.l.b16 %v60
  %v148 = vpack.c.b16 %v113, %v112
  %v149 = vpack.c.b16 %v115, %v114
  %v150 = vpack.c.b16 %v117, %v116
  %v151 = vpack.c.b16 %v119, %v118
  %v152 = vpack.c.b16 %v121, %v120
  %v153 = vpack.c.b16 %v123, %v122
  %v154 = vpack.c.b16 %v125, %v124
  %v155 = vpack.c.b16 %v127, %v126
  %v156 = vpack.c.b16 %v129, %v128
  %v157 = vpack.c.b16 %v131, %v130
  %v158 = vpack.c.b16 %v133, %v132
  %v159 = vpack.c.b16 %v135, %v134
  %v160 = vpack.c.b16 %v137, %v136
  %v161 = vpack.c.b16 %v139, %v138
  %v162 = vpack.c.b16 %v141, %v140
  %v163 = vpack.c.b16 %v143, %v142
  %v164 = vpack.c.b16 %v145, %v144
  %v165 = vpack.c.b16 %v147, %v146
  %vm184 = vcmask 261120
  %v186 = vsel %vm184, %v73, 0
  %188 = vmatprep.subr.bf16.mxu0 0
  %189 = vmatpush1.bf16.msra.mxu0 %v155
  %190 = vmatprep.subr.bf16.mxu0 0
  %191 = vmatpush1.bf16.msra.mxu0 %v154
  %192 = vmatprep.subr.bf16.mxu0 0
  %193 = vmatpush1.bf16.msra.mxu0 %v153
  %194 = vmatprep.subr.bf16.mxu0 0
  %195 = vmatpush1.bf16.msra.mxu0 %v152
  %196 = vmatprep.subr.bf16.mxu0 0
  %197 = vmatpush1.bf16.msra.mxu0 %v151
  %198 = vmatprep.subr.bf16.mxu0 0
  %199 = vmatpush1.bf16.msra.mxu0 %v150
  %200 = vmatprep.subr.bf16.mxu0 0
  %201 = vmatpush1.bf16.msra.mxu0 %v149
  %202 = vmatprep.subr.bf16.mxu0 0
  %203 = vmatpush1.bf16.msra.mxu0 %v148
  %204 = vmatprep.subr.bf16.mxu0 0
  %205 = vmatpush2.bf16.msra.mxu0 %v163
  %206 = vmatprep.subr.bf16.mxu0 0
  %207 = vmatpush2.bf16.msra.mxu0 %v162
  %208 = vmatprep.subr.bf16.mxu0 0
  %209 = vmatpush2.bf16.msra.mxu0 %v161
  %210 = vmatprep.subr.bf16.mxu0 0
  %211 = vmatpush2.bf16.msra.mxu0 %v160
  %212 = vmatprep.subr.bf16.mxu0 0
  %213 = vmatpush2.bf16.msra.mxu0 %v159
  %214 = vmatprep.subr.bf16.mxu0 0
  %215 = vmatpush2.bf16.msra.mxu0 %v158
  %216 = vmatprep.subr.bf16.mxu0 0
  %217 = vmatpush2.bf16.msra.mxu0 %v157
  %218 = vmatprep.subr.bf16.mxu0 0
  %219 = vmatpush2.bf16.msra.mxu0 %v156
  %220 = vmatprep.mubr.bf16.mxu0 %v72
  %221 = vmatmul.mubr.bf16.gmra.mxu0 %v71
  %v222 = vpop.f32.mrf.mxu0
  %v223 = vadd.f32 0.0, %v222
  %v224 = vpop.f32.mrf.mxu0
  %v225 = vpop.f32.mrf.mxu0
  %v226 = vadd.f32 0.0, %v225
  %v227 = vpop.f32.mrf.mxu0
  %228 = vdwg.mxu0
  %229 = vmatprep.subr.bf16.mxu0 0
  %230 = vmatpush1.bf16.msra.mxu0 0
  %231 = vmatprep.subr.bf16.mxu0 0
  %232 = vmatpush1.bf16.msra.mxu0 0
  %233 = vmatprep.subr.bf16.mxu0 0
  %234 = vmatpush1.bf16.msra.mxu0 0
  %235 = vmatprep.subr.bf16.mxu0 0
  %236 = vmatpush1.bf16.msra.mxu0 0
  %237 = vmatprep.subr.bf16.mxu0 0
  %238 = vmatpush1.bf16.msra.mxu0 0
  %239 = vmatprep.subr.bf16.mxu0 0
  %240 = vmatpush1.bf16.msra.mxu0 0
  %241 = vmatprep.subr.bf16.mxu0 0
  %242 = vmatpush1.bf16.msra.mxu0 %v165
  %243 = vmatprep.subr.bf16.mxu0 0
  %244 = vmatpush1.bf16.msra.mxu0 %v164
  %245 = vmatprep.subr.bf16.mxu0 0
  %246 = vmatpush2.bf16.msra.mxu0 0
  %247 = vmatprep.subr.bf16.mxu0 0
  %248 = vmatpush2.bf16.msra.mxu0 0
  %249 = vmatprep.subr.bf16.mxu0 0
  %250 = vmatpush2.bf16.msra.mxu0 0
  %251 = vmatprep.subr.bf16.mxu0 0
  %252 = vmatpush2.bf16.msra.mxu0 0
  %253 = vmatprep.subr.bf16.mxu0 0
  %254 = vmatpush2.bf16.msra.mxu0 0
  %255 = vmatprep.subr.bf16.mxu0 0
  %256 = vmatpush2.bf16.msra.mxu0 0
  %257 = vmatprep.subr.bf16.mxu0 0
  %258 = vmatpush2.bf16.msra.mxu0 0
  %259 = vmatprep.subr.bf16.mxu0 0
  %260 = vmatpush2.bf16.msra.mxu0 0
  %261 = vmatprep.mubr.bf16.mxu0 0
  %262 = vmatmul.mubr.bf16.gmra.mxu0 %v186
  %v263 = vpop.f32.mrf.mxu0
  %v264 = vadd.f32 %v223, %v263
  %v265 = vpop.f32.mrf.mxu0
  %v266 = vpop.f32.mrf.mxu0
  %v267 = vadd.f32 %v226, %v266
  %v268 = vpop.f32.mrf.mxu0
  %269 = vdwg.mxu0
  %v270 = vadd.f32 %v264, %v267
  %v271 = vrot.slane %v270, 4
  %v272 = vadd.f32 %v270, %v271
  %v273 = vrot.slane %v272, 2
  %v274 = vadd.f32 %v272, %v273
  %v275 = vrot.slane %v274, 1
  %v276 = vadd.f32 %v274, %v275
  %v277 = vmul.f32 %v276, 0.125
  %v278 = vsub.f32 %v264, %v277
  %v279 = vsub.f32 %v267, %v277
  %v280 = vlaneseq
  %v281 = vshrl.u32 %v280, 7
  %v282 = vadd.s32 %v281, 8
  %vm283 = vcmp.lt.s32.totalorder %v281, 8
  %vm284 = vcmp.lt.s32.totalorder %v282, 8
  %v285 = vmul.f32 %v278, %v278
  %v286 = vmul.f32 %v279, %v279
  %v287 = vsel %vm283, %v285, 0.0
  %v288 = vsel %vm284, %v286, 0.0
  %v289 = vadd.f32 %v287, %v288
  %v290 = vrot.slane %v289, 4
  %v291 = vadd.f32 %v289, %v290
  %v292 = vrot.slane %v291, 2
  %v293 = vadd.f32 %v291, %v292
  %v294 = vrot.slane %v293, 1
  %v295 = vadd.f32 %v293, %v294
  %v296 = vmul.f32 %v295, 0.125
  %v297 = vld [vmem:[%s2] sm:$0x1]
  %v298 = vadd.f32 %v296, 1e-05
  %v299 = vrsqrt.pop %v298
  %v300 = vmul.f32 %v297, %v299
  %v301 = vld [vmem:[%s3] sm:$0x1]
  %v302 = vmul.f32 %v277, %v300
  %v303 = vsub.f32 %v301, %v302
  %v305 = vlaneseq
  %v306 = vshrl.u32 %v305, 7
  %v307 = vsub.s32 0, %v306
  %v308 = vrot.slane %v300, %v307
  %v310 = vmul.f32 %v264, %v308
  %v311 = vmul.f32 %v267, %v308
  %v313 = vlaneseq
  %v314 = vshrl.u32 %v313, 7
  %v315 = vsub.s32 0, %v314
  %v316 = vrot.slane %v303, %v315
  %v318 = vadd.f32 %v310, %v316
  %v319 = vadd.f32 %v311, %v316
  %v320 = vld [vmem:[%s4] sm:$0xff]
  %v321 = vld [vmem:[%s4 + $0x8] sm:$0xff]
  %v322 = vadd.f32 %v318, %v320
  %v323 = vadd.f32 %v319, %v321
  %v324 = vmax.f32 %v322, 0.0
  %v325 = vmax.f32 %v323, 0.0
  %326 = vst.msk [vmem:[%s5] sm:$0xff] %vm184, %v324
  %327 = vst.msk [vmem:[%s5 + $0x8] sm:$0xff] %vm184, %v325
  // Predicated region
  $region22: #{drn_forward.28} parent=0 // pred_check
    _
  $region23: #{drn_forward.28} parent=0 // pred_check_branch
    %329 = sbr.rel (0) target = $region25
  $region24: #{drn_forward.28} parent=0 // pred_region
    _
  $region25: #{drn_forward.28} parent=0 // pred_fallthru
    _
  // Predicated region
  $region26: #{drn_forward.28} parent=0 // pred_check
    _
  $region27: #{drn_forward.28} parent=0 // pred_check_branch
    %331 = sbr.rel (0) target = $region29
  $region28: #{drn_forward.28} parent=0 // pred_region
    _
  $region29: #{drn_forward.28} parent=0 // pred_fallthru
    _

// kernel: drn_forward.29
$region0: #{drn_forward.29}
  #allocation0 [shape = 'u32[]', space=smem, size = 0x4, offset = 0x4, fixed_abs, tag = 'smem constant byte address 0x4 - core index']
  #allocation1 [shape = 'u32[144,128]{1,0:T(1,128)}', space=vmem, size = 0x12000, scoped, tag = 'internal scratch']
  %s0 = inlined_call_operand.vmem [shape: bf16[16,288], index: 0, kind: input, shape index: {}]
  %s1 = inlined_call_operand.vmem [shape: bf16[288,128], index: 1, kind: input, shape index: {}]
  %s2 = inlined_call_operand.vmem [shape: f32[1,128], index: 2, kind: input, shape index: {}]
  %s3 = inlined_call_operand.vmem [shape: f32[1,128], index: 3, kind: input, shape index: {}]
  %s4 = inlined_call_operand.vmem [shape: f32[16,32], index: 4, kind: output, shape index: {}]
  %s5 = sld [smem:[#allocation0]]
  $region26: #{drn_forward.29} parent=0
    _
  %s7 = ssub.s32 1, %s5
  %s8 = scalar_select 0, %s7, %s5
  // Predicated region
  $region2: #{drn_forward.29} parent=0 // pred_check
    _
  $region3: #{drn_forward.29} parent=0 // pred_check_branch
    %10 = sbr.rel (0) target = $region5
  $region4: #{drn_forward.29} parent=0 // pred_region
    _
  $region5: #{drn_forward.29} parent=0 // pred_fallthru
    _
  // Predicated region
  $region6: #{drn_forward.29} parent=0 // pred_check
    _
  $region7: #{drn_forward.29} parent=0 // pred_check_branch
    %12 = sbr.rel (0) target = $region9
  $region8: #{drn_forward.29} parent=0 // pred_region
    _
  $region9: #{drn_forward.29} parent=0 // pred_fallthru
    _
  // Predicated region
  $region10: #{drn_forward.29} parent=0 // pred_check
    _
  $region11: #{drn_forward.29} parent=0 // pred_check_branch
    %14 = sbr.rel (0) target = $region13
  $region12: #{drn_forward.29} parent=0 // pred_region
    _
  $region13: #{drn_forward.29} parent=0 // pred_fallthru
    _
  // Predicated region
  $region14: #{drn_forward.29} parent=0 // pred_check
    _
  $region15: #{drn_forward.29} parent=0 // pred_check_branch
    %16 = sbr.rel (0) target = $region17
  $region16: #{drn_forward.29} parent=0 // pred_region
    _
  $region17: #{drn_forward.29} parent=0 // pred_fallthru
    _
  %v18 = vld [vmem:[%s0] sm:$0xff]
  %v19 = vld [vmem:[%s0 + $0x8] sm:$0xf]
  %v20 = vld [vmem:[%s0 + $0xc] sm:$0xff]
  %v21 = vld [vmem:[%s0 + $0x14] sm:$0xf]
  %v22 = vld [vmem:[%s1] sm:$0xf]
  %v23 = vld [vmem:[%s1 + $0x4] sm:$0xf]
  %v24 = vld [vmem:[%s1 + $0x8] sm:$0xf]
  %v25 = vld [vmem:[%s1 + $0xc] sm:$0xf]
  %v26 = vld [vmem:[%s1 + $0x10] sm:$0xf]
  %v27 = vld [vmem:[%s1 + $0x14] sm:$0xf]
  %v28 = vld [vmem:[%s1 + $0x18] sm:$0xf]
  %v29 = vld [vmem:[%s1 + $0x1c] sm:$0xf]
  %v30 = vld [vmem:[%s1 + $0x20] sm:$0xf]
  %v31 = vld [vmem:[%s1 + $0x24] sm:$0xf]
  %v32 = vld [vmem:[%s1 + $0x28] sm:$0xf]
  %v33 = vld [vmem:[%s1 + $0x2c] sm:$0xf]
  %v34 = vld [vmem:[%s1 + $0x30] sm:$0xf]
  %v35 = vld [vmem:[%s1 + $0x34] sm:$0xf]
  %v36 = vld [vmem:[%s1 + $0x38] sm:$0xf]
  %v37 = vld [vmem:[%s1 + $0x3c] sm:$0xf]
  %v38 = vld [vmem:[%s1 + $0x40] sm:$0xf]
  %v39 = vld [vmem:[%s1 + $0x44] sm:$0xf]
  %v40 = vld [vmem:[%s1 + $0x48] sm:$0xf]
  %v41 = vld [vmem:[%s1 + $0x4c] sm:$0xf]
  %v42 = vld [vmem:[%s1 + $0x50] sm:$0xf]
  %v43 = vld [vmem:[%s1 + $0x54] sm:$0xf]
  %v44 = vld [vmem:[%s1 + $0x58] sm:$0xf]
  %v45 = vld [vmem:[%s1 + $0x5c] sm:$0xf]
  %v46 = vld [vmem:[%s1 + $0x60] sm:$0xf]
  %v47 = vld [vmem:[%s1 + $0x64] sm:$0xf]
  %v48 = vld [vmem:[%s1 + $0x68] sm:$0xf]
  %v49 = vld [vmem:[%s1 + $0x6c] sm:$0xf]
  %v50 = vld [vmem:[%s1 + $0x70] sm:$0xf]
  %v51 = vld [vmem:[%s1 + $0x74] sm:$0xf]
  %v52 = vld [vmem:[%s1 + $0x78] sm:$0xf]
  %v53 = vld [vmem:[%s1 + $0x7c] sm:$0xf]
  %v54 = vld [vmem:[%s1 + $0x80] sm:$0xf]
  %v55 = vld [vmem:[%s1 + $0x84] sm:$0xf]
  %v56 = vld [vmem:[%s1 + $0x88] sm:$0xf]
  %v57 = vld [vmem:[%s1 + $0x8c] sm:$0xf]
  %v62 = vunpack.c.l.b16 %v18
  %v63 = vunpack.c.h.b16 %v18
  %v64 = vunpack.c.l.b16 %v19
  %v65 = vunpack.c.l.b16 %v20
  %v66 = vunpack.c.h.b16 %v20
  %v67 = vunpack.c.l.b16 %v21
  %v68 = vpack.c.b16 %v65, %v62
  %v69 = vpack.c.b16 %v66, %v63
  %v70 = vpack.c.b16 %v67, %v64
  %v109 = vunpack.c.l.b16 %v22
  %v110 = vunpack.c.l.b16 %v23
  %v111 = vunpack.c.l.b16 %v24
  %v112 = vunpack.c.l.b16 %v25
  %v113 = vunpack.c.l.b16 %v26
  %v114 = vunpack.c.l.b16 %v27
  %v115 = vunpack.c.l.b16 %v28
  %v116 = vunpack.c.l.b16 %v29
  %v117 = vunpack.c.l.b16 %v30
  %v118 = vunpack.c.l.b16 %v31
  %v119 = vunpack.c.l.b16 %v32
  %v120 = vunpack.c.l.b16 %v33
  %v121 = vunpack.c.l.b16 %v34
  %v122 = vunpack.c.l.b16 %v35
  %v123 = vunpack.c.l.b16 %v36
  %v124 = vunpack.c.l.b16 %v37
  %v125 = vunpack.c.l.b16 %v38
  %v126 = vunpack.c.l.b16 %v39
  %v127 = vunpack.c.l.b16 %v40
  %v128 = vunpack.c.l.b16 %v41
  %v129 = vunpack.c.l.b16 %v42
  %v130 = vunpack.c.l.b16 %v43
  %v131 = vunpack.c.l.b16 %v44
  %v132 = vunpack.c.l.b16 %v45
  %v133 = vunpack.c.l.b16 %v46
  %v134 = vunpack.c.l.b16 %v47
  %v135 = vunpack.c.l.b16 %v48
  %v136 = vunpack.c.l.b16 %v49
  %v137 = vunpack.c.l.b16 %v50
  %v138 = vunpack.c.l.b16 %v51
  %v139 = vunpack.c.l.b16 %v52
  %v140 = vunpack.c.l.b16 %v53
  %v141 = vunpack.c.l.b16 %v54
  %v142 = vunpack.c.l.b16 %v55
  %v143 = vunpack.c.l.b16 %v56
  %v144 = vunpack.c.l.b16 %v57
  %v145 = vpack.c.b16 %v110, %v109
  %v146 = vpack.c.b16 %v112, %v111
  %v147 = vpack.c.b16 %v114, %v113
  %v148 = vpack.c.b16 %v116, %v115
  %v149 = vpack.c.b16 %v118, %v117
  %v150 = vpack.c.b16 %v120, %v119
  %v151 = vpack.c.b16 %v122, %v121
  %v152 = vpack.c.b16 %v124, %v123
  %v153 = vpack.c.b16 %v126, %v125
  %v154 = vpack.c.b16 %v128, %v127
  %v155 = vpack.c.b16 %v130, %v129
  %v156 = vpack.c.b16 %v132, %v131
  %v157 = vpack.c.b16 %v134, %v133
  %v158 = vpack.c.b16 %v136, %v135
  %v159 = vpack.c.b16 %v138, %v137
  %v160 = vpack.c.b16 %v140, %v139
  %v161 = vpack.c.b16 %v142, %v141
  %v162 = vpack.c.b16 %v144, %v143
  %vm181 = vcmask 261120
  %v183 = vsel %vm181, %v70, 0
  %185 = vmatprep.subr.bf16.mxu0 0
  %186 = vmatpush1.bf16.msra.mxu0 %v152
  %187 = vmatprep.subr.bf16.mxu0 0
  %188 = vmatpush1.bf16.msra.mxu0 %v151
  %189 = vmatprep.subr.bf16.mxu0 0
  %190 = vmatpush1.bf16.msra.mxu0 %v150
  %191 = vmatprep.subr.bf16.mxu0 0
  %192 = vmatpush1.bf16.msra.mxu0 %v149
  %193 = vmatprep.subr.bf16.mxu0 0
  %194 = vmatpush1.bf16.msra.mxu0 %v148
  %195 = vmatprep.subr.bf16.mxu0 0
  %196 = vmatpush1.bf16.msra.mxu0 %v147
  %197 = vmatprep.subr.bf16.mxu0 0
  %198 = vmatpush1.bf16.msra.mxu0 %v146
  %199 = vmatprep.subr.bf16.mxu0 0
  %200 = vmatpush1.bf16.msra.mxu0 %v145
  %201 = vmatprep.subr.bf16.mxu0 0
  %202 = vmatpush2.bf16.msra.mxu0 %v160
  %203 = vmatprep.subr.bf16.mxu0 0
  %204 = vmatpush2.bf16.msra.mxu0 %v159
  %205 = vmatprep.subr.bf16.mxu0 0
  %206 = vmatpush2.bf16.msra.mxu0 %v158
  %207 = vmatprep.subr.bf16.mxu0 0
  %208 = vmatpush2.bf16.msra.mxu0 %v157
  %209 = vmatprep.subr.bf16.mxu0 0
  %210 = vmatpush2.bf16.msra.mxu0 %v156
  %211 = vmatprep.subr.bf16.mxu0 0
  %212 = vmatpush2.bf16.msra.mxu0 %v155
  %213 = vmatprep.subr.bf16.mxu0 0
  %214 = vmatpush2.bf16.msra.mxu0 %v154
  %215 = vmatprep.subr.bf16.mxu0 0
  %216 = vmatpush2.bf16.msra.mxu0 %v153
  %217 = vmatprep.mubr.bf16.mxu0 %v69
  %218 = vmatmul.mubr.bf16.gmra.mxu0 %v68
  %v219 = vpop.f32.mrf.mxu0
  %v220 = vadd.f32 0.0, %v219
  %v221 = vpop.f32.mrf.mxu0
  %v222 = vpop.f32.mrf.mxu0
  %v223 = vadd.f32 0.0, %v222
  %v224 = vpop.f32.mrf.mxu0
  %225 = vdwg.mxu0
  %226 = vmatprep.subr.bf16.mxu0 0
  %227 = vmatpush1.bf16.msra.mxu0 0
  %228 = vmatprep.subr.bf16.mxu0 0
  %229 = vmatpush1.bf16.msra.mxu0 0
  %230 = vmatprep.subr.bf16.mxu0 0
  %231 = vmatpush1.bf16.msra.mxu0 0
  %232 = vmatprep.subr.bf16.mxu0 0
  %233 = vmatpush1.bf16.msra.mxu0 0
  %234 = vmatprep.subr.bf16.mxu0 0
  %235 = vmatpush1.bf16.msra.mxu0 0
  %236 = vmatprep.subr.bf16.mxu0 0
  %237 = vmatpush1.bf16.msra.mxu0 0
  %238 = vmatprep.subr.bf16.mxu0 0
  %239 = vmatpush1.bf16.msra.mxu0 %v162
  %240 = vmatprep.subr.bf16.mxu0 0
  %241 = vmatpush1.bf16.msra.mxu0 %v161
  %242 = vmatprep.subr.bf16.mxu0 0
  %243 = vmatpush2.bf16.msra.mxu0 0
  %244 = vmatprep.subr.bf16.mxu0 0
  %245 = vmatpush2.bf16.msra.mxu0 0
  %246 = vmatprep.subr.bf16.mxu0 0
  %247 = vmatpush2.bf16.msra.mxu0 0
  %248 = vmatprep.subr.bf16.mxu0 0
  %249 = vmatpush2.bf16.msra.mxu0 0
  %250 = vmatprep.subr.bf16.mxu0 0
  %251 = vmatpush2.bf16.msra.mxu0 0
  %252 = vmatprep.subr.bf16.mxu0 0
  %253 = vmatpush2.bf16.msra.mxu0 0
  %254 = vmatprep.subr.bf16.mxu0 0
  %255 = vmatpush2.bf16.msra.mxu0 0
  %256 = vmatprep.subr.bf16.mxu0 0
  %257 = vmatpush2.bf16.msra.mxu0 0
  %258 = vmatprep.mubr.bf16.mxu0 0
  %259 = vmatmul.mubr.bf16.gmra.mxu0 %v183
  %v260 = vpop.f32.mrf.mxu0
  %v261 = vadd.f32 %v220, %v260
  %v262 = vpop.f32.mrf.mxu0
  %v263 = vpop.f32.mrf.mxu0
  %v264 = vadd.f32 %v223, %v263
  %v265 = vpop.f32.mrf.mxu0
  %266 = vdwg.mxu0
  %v267 = vadd.f32 %v261, %v264
  %v268 = vrot.slane %v267, 4
  %v269 = vadd.f32 %v267, %v268
  %v270 = vrot.slane %v269, 2
  %v271 = vadd.f32 %v269, %v270
  %v272 = vrot.slane %v271, 1
  %v273 = vadd.f32 %v271, %v272
  %v274 = vmul.f32 %v273, 0.125
  %v275 = vsub.f32 %v261, %v274
  %v276 = vsub.f32 %v264, %v274
  %v277 = vlaneseq
  %v278 = vshrl.u32 %v277, 7
  %v279 = vadd.s32 %v278, 8
  %vm280 = vcmp.lt.s32.totalorder %v278, 8
  %vm281 = vcmp.lt.s32.totalorder %v279, 8
  %v282 = vmul.f32 %v275, %v275
  %v283 = vmul.f32 %v276, %v276
  %v284 = vsel %vm280, %v282, 0.0
  %v285 = vsel %vm281, %v283, 0.0
  %v286 = vadd.f32 %v284, %v285
  %v287 = vrot.slane %v286, 4
  %v288 = vadd.f32 %v286, %v287
  %v289 = vrot.slane %v288, 2
  %v290 = vadd.f32 %v288, %v289
  %v291 = vrot.slane %v290, 1
  %v292 = vadd.f32 %v290, %v291
  %v293 = vmul.f32 %v292, 0.125
  %v294 = vld [vmem:[%s2] sm:$0x1]
  %v295 = vadd.f32 %v293, 1e-05
  %v296 = vrsqrt.pop %v295
  %v297 = vmul.f32 %v294, %v296
  %v298 = vld [vmem:[%s3] sm:$0x1]
  %v299 = vmul.f32 %v274, %v297
  %v300 = vsub.f32 %v298, %v299
  %v302 = vlaneseq
  %v303 = vshrl.u32 %v302, 7
  %v304 = vsub.s32 0, %v303
  %v305 = vrot.slane %v297, %v304
  %v307 = vmul.f32 %v261, %v305
  %v308 = vmul.f32 %v264, %v305
  %v310 = vlaneseq
  %v311 = vshrl.u32 %v310, 7
  %v312 = vsub.s32 0, %v311
  %v313 = vrot.slane %v300, %v312
  %v315 = vadd.f32 %v307, %v313
  %v316 = vadd.f32 %v308, %v313
  %v317 = vmax.f32 %v315, 0.0
  %v318 = vmax.f32 %v316, 0.0
  %319 = vst.msk [vmem:[%s4] sm:$0xff] %vm181, %v317
  %320 = vst.msk [vmem:[%s4 + $0x8] sm:$0xff] %vm181, %v318
  // Predicated region
  $region18: #{drn_forward.29} parent=0 // pred_check
    _
  $region19: #{drn_forward.29} parent=0 // pred_check_branch
    %322 = sbr.rel (0) target = $region21
  $region20: #{drn_forward.29} parent=0 // pred_region
    _
  $region21: #{drn_forward.29} parent=0 // pred_fallthru
    _
  // Predicated region
  $region22: #{drn_forward.29} parent=0 // pred_check
    _
  $region23: #{drn_forward.29} parent=0 // pred_check_branch
    %324 = sbr.rel (0) target = $region25
  $region24: #{drn_forward.29} parent=0 // pred_region
    _
  $region25: #{drn_forward.29} parent=0 // pred_fallthru
    _

// kernel: drn_forward.33
$region0: #{drn_forward.33}
  #allocation0 [shape = 'u32[]', space=smem, size = 0x4, offset = 0x4, fixed_abs, tag = 'smem constant byte address 0x4 - core index']
  #allocation1 [shape = 'u32[144,128]{1,0:T(1,128)}', space=vmem, size = 0x12000, scoped, tag = 'internal scratch']
  %s0 = inlined_call_operand.vmem [shape: bf16[16,32], index: 0, kind: input, shape index: {}]
  %s1 = inlined_call_operand.vmem [shape: bf16[32,128], index: 1, kind: input, shape index: {}]
  %s2 = inlined_call_operand.vmem [shape: f32[1,128], index: 2, kind: input, shape index: {}]
  %s3 = inlined_call_operand.vmem [shape: f32[16,1], index: 3, kind: output, shape index: {}]
  %s4 = sld [smem:[#allocation0]]
  $region22: #{drn_forward.33} parent=0
    _
  %s6 = ssub.s32 1, %s4
  %s7 = scalar_select 0, %s6, %s4
  // Predicated region
  $region2: #{drn_forward.33} parent=0 // pred_check
    _
  $region3: #{drn_forward.33} parent=0 // pred_check_branch
    %9 = sbr.rel (0) target = $region5
  $region4: #{drn_forward.33} parent=0 // pred_region
    _
  $region5: #{drn_forward.33} parent=0 // pred_fallthru
    _
  // Predicated region
  $region6: #{drn_forward.33} parent=0 // pred_check
    _
  $region7: #{drn_forward.33} parent=0 // pred_check_branch
    %11 = sbr.rel (0) target = $region9
  $region8: #{drn_forward.33} parent=0 // pred_region
    _
  $region9: #{drn_forward.33} parent=0 // pred_fallthru
    _
  // Predicated region
  $region10: #{drn_forward.33} parent=0 // pred_check
    _
  $region11: #{drn_forward.33} parent=0 // pred_check_branch
    %13 = sbr.rel (0) target = $region13
  $region12: #{drn_forward.33} parent=0 // pred_region
    _
  $region13: #{drn_forward.33} parent=0 // pred_fallthru
    _
  %v15 = vld [vmem:[%s0] sm:$0xf]
  %v16 = vld [vmem:[%s0 + $0x4] sm:$0xf]
  %v17 = vld [vmem:[%s1] sm:$0xf]
  %v18 = vld [vmem:[%s1 + $0x4] sm:$0xf]
  %v19 = vld [vmem:[%s1 + $0x8] sm:$0xf]
  %v20 = vld [vmem:[%s1 + $0xc] sm:$0xf]
  %v21 = vld [vmem:[%s2] sm:$0x1]
  %v23 = vlaneseq
  %v24 = vshrl.u32 %v23, 7
  %v25 = vsub.s32 0, %v24
  %v26 = vrot.slane %v21, %v25
  %v30 = vunpack.c.l.b16 %v15
  %v31 = vunpack.c.l.b16 %v16
  %v32 = vpack.c.b16 %v31, %v30
  %v37 = vunpack.c.l.b16 %v17
  %v38 = vunpack.c.l.b16 %v18
  %v39 = vunpack.c.l.b16 %v19
  %v40 = vunpack.c.l.b16 %v20
  %v41 = vpack.c.b16 %v38, %v37
  %v42 = vpack.c.b16 %v40, %v39
  %vm45 = vcmask 261120
  %v47 = vsel %vm45, %v32, 0
  %49 = vmatprep.subr.bf16.mxu0 0
  %50 = vmatpush1.bf16.msra.mxu0 0
  %51 = vmatprep.subr.bf16.mxu0 0
  %52 = vmatpush1.bf16.msra.mxu0 0
  %53 = vmatprep.subr.bf16.mxu0 0
  %54 = vmatpush1.bf16.msra.mxu0 0
  %55 = vmatprep.subr.bf16.mxu0 0
  %56 = vmatpush1.bf16.msra.mxu0 0
  %57 = vmatprep.subr.bf16.mxu0 0
  %58 = vmatpush1.bf16.msra.mxu0 0
  %59 = vmatprep.subr.bf16.mxu0 0
  %60 = vmatpush1.bf16.msra.mxu0 0
  %61 = vmatprep.subr.bf16.mxu0 0
  %62 = vmatpush1.bf16.msra.mxu0 %v42
  %63 = vmatprep.subr.bf16.mxu0 0
  %64 = vmatpush1.bf16.msra.mxu0 %v41
  %65 = vmatprep.subr.bf16.mxu0 0
  %66 = vmatpush2.bf16.msra.mxu0 0
  %67 = vmatprep.subr.bf16.mxu0 0
  %68 = vmatpush2.bf16.msra.mxu0 0
  %69 = vmatprep.subr.bf16.mxu0 0
  %70 = vmatpush2.bf16.msra.mxu0 0
  %71 = vmatprep.subr.bf16.mxu0 0
  %72 = vmatpush2.bf16.msra.mxu0 0
  %73 = vmatprep.subr.bf16.mxu0 0
  %74 = vmatpush2.bf16.msra.mxu0 0
  %75 = vmatprep.subr.bf16.mxu0 0
  %76 = vmatpush2.bf16.msra.mxu0 0
  %77 = vmatprep.subr.bf16.mxu0 0
  %78 = vmatpush2.bf16.msra.mxu0 0
  %79 = vmatprep.subr.bf16.mxu0 0
  %80 = vmatpush2.bf16.msra.mxu0 0
  %81 = vmatprep.mubr.bf16.mxu0 0
  %82 = vmatmul.mubr.bf16.gmra.mxu0 %v47
  %v83 = vpop.f32.mrf.mxu0
  %v84 = vadd.f32 %v26, %v83
  %v85 = vpop.f32.mrf.mxu0
  %v86 = vpop.f32.mrf.mxu0
  %v87 = vadd.f32 %v26, %v86
  %v88 = vpop.f32.mrf.mxu0
  %89 = vdwg.mxu0
  %v90 = vxor.u32 %v84, 2147483648
  %v91 = vxor.u32 %v87, 2147483648
  %v92 = vmul.f32 %v90, 1.442695
  %v93 = vpow.pop %v92
  %v94 = vmul.f32 %v91, 1.442695
  %v95 = vpow.pop %v94
  %v96 = vadd.f32 %v93, 1.0
  %v97 = vadd.f32 %v95, 1.0
  %v98 = vrcp.pop %v96
  %v99 = vmul.f32 1.0, %v98
  %v100 = vrcp.pop %v97
  %v101 = vmul.f32 1.0, %v100
  %vm102 = vcmask 7168
  %103 = vst.msk [vmem:[%s3] sm:$0xff] %vm102, %v99
  %104 = vst.msk [vmem:[%s3 + $0x8] sm:$0xff] %vm102, %v101
  // Predicated region
  $region14: #{drn_forward.33} parent=0 // pred_check
    _
  $region15: #{drn_forward.33} parent=0 // pred_check_branch
    %106 = sbr.rel (0) target = $region17
  $region16: #{drn_forward.33} parent=0 // pred_region
    _
  $region17: #{drn_forward.33} parent=0 // pred_fallthru
    _
  // Predicated region
  $region18: #{drn_forward.33} parent=0 // pred_check
    _
  $region19: #{drn_forward.33} parent=0 // pred_check_branch
    %108 = sbr.rel (0) target = $region21
  $region20: #{drn_forward.33} parent=0 // pred_region
    _
  $region21: #{drn_forward.33} parent=0 // pred_fallthru
    _

</llo_original>
